<compile_context>
chip_gen: v7x
topology: tpu7x:2x2x1
jax: 0.10.0
libtpu: 0.0.40
codegen_flags: <defaults>
</compile_context>

<pallas_src>
import functools

import jax
import jax.numpy as jnp
from jax.experimental import pallas as pl
from jax.experimental.pallas import tpu as pltpu

EPS = 1e-5
MATMUL_DTYPE = jnp.bfloat16   # matmul operand dtype (accumulation stays f32)
MAX_TILE_M = 512              # lane-axis tile; multiple of 128, VMEM-safe on v5e/v6e/v7x


# ----------------------------------------------------------------------------
# small helpers
# ----------------------------------------------------------------------------
def _round_up(x, m):
    return ((x + m - 1) // m) * m


def _pad_to(a, shape, value=0.0):
    pads = [(0, t - s) for t, s in zip(shape, a.shape)]
    return jnp.pad(a, pads, constant_values=value)


def _fold_bn(p):
    scale = p["gamma"] / jnp.sqrt(p["var"] + EPS)
    bias = p["beta"] - p["mean"] * scale
    return scale, bias


# ----------------------------------------------------------------------------
# Pallas kernels
# ----------------------------------------------------------------------------
def _matmul_bias_act_kernel(x_ref, w_ref, b_ref, o_ref, *, relu):
    # x_ref: (Kp, tm)  bf16   activations / im2col patches (pixels on lanes)
    # w_ref: (Cp, Kp)  bf16   BN-folded conv / linear weights
    # b_ref: (Cp, 1)   f32    BN-folded bias (or linear bias)
    # o_ref: (Cp, tm)  f32    lane-dense output tile
    acc = jnp.dot(w_ref[...], x_ref[...], preferred_element_type=jnp.float32)
    y = acc + b_ref[...]
    if relu:
        y = jnp.maximum(y, 0.0)
    o_ref[...] = y.astype(o_ref.dtype)


def _dw3x3_pw_bn_relu_kernel(t_ref, wd_ref, bd_ref, wp_ref, bp_ref, o_ref, *, relu):
    # Fused depthwise-3x3(+BN) -> 1x1 projection(+BN[+ReLU]).
    # t_ref:  (9, Cp, tm)   f32   strided 3x3 taps of the dw input
    # wd_ref: (9, Cp, 1)    f32   per-channel tap weights (BN scale folded in)
    # bd_ref: (Cp, 1)       f32   dw BN-folded bias
    # wp_ref: (Coutp, Cp)   bf16  1x1 projection weights (BN scale folded in)
    # bp_ref: (Coutp, 1)    f32   1x1 BN-folded bias
    # o_ref:  (Coutp, tm)   f32
    acc = t_ref[0] * wd_ref[0]
    for k in range(1, 9):
        acc = acc + t_ref[k] * wd_ref[k]
    dw = acc + bd_ref[...]                       # (Cp, tm) f32, no ReLU after dw (matches torch)
    y = jnp.dot(wp_ref[...], dw.astype(MATMUL_DTYPE),
                preferred_element_type=jnp.float32) + bp_ref[...]
    if relu:
        y = jnp.maximum(y, 0.0)
    o_ref[...] = y.astype(o_ref.dtype)


def _maxpool9_kernel(x_ref, o_ref):
    # x_ref: (9, Cp, tm) f32 ; o_ref: (Cp, tm) f32
    m = x_ref[0]
    for k in range(1, 9):
        m = jnp.maximum(m, x_ref[k])
    o_ref[...] = m


# ----------------------------------------------------------------------------
# Pallas op wrappers
# ----------------------------------------------------------------------------
def matmul_bias_act(x_km, w_ck, bias_c, *, relu):
    """out[C, M] = relu?(W[C, K] @ X[K, M] + bias[C])  -- MXU kernel."""
    k_dim, m_dim = x_km.shape
    c_dim = w_ck.shape[0]
    # K / C_out blocks cover the full (padded) array dim, so only light padding
    # for sublane packing is needed -- NOT padding K to 128 saves HBM traffic
    # on the small-channel 1x1 convs.
    kp = _round_up(k_dim, 16)
    cp = _round_up(c_dim, 8)
    tm = min(MAX_TILE_M, _round_up(m_dim, 128))
    mp = _round_up(m_dim, tm)

    x_p = _pad_to(x_km, (kp, mp)).astype(MATMUL_DTYPE)
    w_p = _pad_to(w_ck, (cp, kp)).astype(MATMUL_DTYPE)
    b_p = _pad_to(bias_c.reshape(c_dim, 1), (cp, 1)).astype(jnp.float32)

    bytes_acc = (x_p.size * x_p.dtype.itemsize + w_p.size * w_p.dtype.itemsize
                 + cp * mp * 4 + cp * 4)
    out = pl.pallas_call(
        functools.partial(_matmul_bias_act_kernel, relu=relu),
        out_shape=jax.ShapeDtypeStruct((cp, mp), jnp.float32),
        grid_spec=pltpu.PrefetchScalarGridSpec(
            num_scalar_prefetch=0,
            grid=(mp // tm,),
            in_specs=[
                pl.BlockSpec((kp, tm), lambda i: (0, i)),
                pl.BlockSpec((cp, kp), lambda i: (0, 0)),
                pl.BlockSpec((cp, 1), lambda i: (0, 0)),
            ],
            out_specs=pl.BlockSpec((cp, tm), lambda i: (0, i)),
        ),
        compiler_params=pltpu.CompilerParams(
            dimension_semantics=("parallel",)),
        cost_estimate=pl.CostEstimate(
            flops=2 * cp * kp * mp, transcendentals=0, bytes_accessed=bytes_acc),
    )(x_p, w_p, b_p)
    return out[:c_dim, :m_dim]


def _extract_taps(x_cnhw, stride, pad_value=0.0):
    # TODO(synk): for large spatial inputs, fuse this tap / im2col extraction
    # into the kernels via halo DMA instead of materializing 9 strided views.
    c, n, h, w = x_cnhw.shape
    ho = (h + 2 - 3) // stride + 1
    wo = (w + 2 - 3) // stride + 1
    xp = jnp.pad(x_cnhw, ((0, 0), (0, 0), (1, 1), (1, 1)),
                 constant_values=pad_value)
    taps = []
    for i in range(3):
        for j in range(3):
            taps.append(xp[:, :, i:i + stride * ho:stride, j:j + stride * wo:stride])
    return jnp.stack(taps, axis=0), ho, wo          # (9, C, N, Ho, Wo)


def conv3x3_bn_relu(x_cnhw, p, *, stride):
    """Dense 3x3 conv (stem) + BN + ReLU via im2col into the matmul kernel."""
    c_in, n, h, w = x_cnhw.shape
    c_out = p["w"].shape[0]
    taps, ho, wo = _extract_taps(x_cnhw, stride)
    patches = taps.reshape(9 * c_in, n * ho * wo)               # (K, M)
    scale, bias = _fold_bn(p)
    # torch weight (C_out, C_in, kh, kw) -> (C_out, kh, kw, C_in) -> (C_out, 9*C_in)
    w2d = jnp.transpose(p["w"], (0, 2, 3, 1)).reshape(c_out, 9 * c_in)
    w2d = w2d * scale[:, None]
    y = matmul_bias_act(patches, w2d, bias, relu=True)
    return y.reshape(c_out, n, ho, wo)


def conv1x1_bn_relu(x_cm, p, *, relu=True):
    c_out = p["w"].shape[0]
    scale, bias = _fold_bn(p)
    w2d = p["w"].reshape(c_out, -1) * scale[:, None]
    return matmul_bias_act(x_cm, w2d, bias, relu=relu)


def dw3x3_pw_bn_relu(x_cnhw, p_dw, p_pw, *, stride, relu=True):
    """Fused depthwise 3x3 + BN  ->  1x1 conv + BN + ReLU (single kernel)."""
    c, n, h, w = x_cnhw.shape
    taps, ho, wo = _extract_taps(x_cnhw, stride)
    m_dim = n * ho * wo
    taps = taps.reshape(9, c, m_dim)

    s_dw, b_dw = _fold_bn(p_dw)
    w9c = (p_dw["w"] * s_dw[:, None, None]).reshape(c, 9).T     # (9, C)

    c_out = p_pw["w"].shape[0]
    s_pw, b_pw = _fold_bn(p_pw)
    wpw = p_pw["w"].reshape(c_out, c) * s_pw[:, None]            # (C_out, C)

    cp = _round_up(c, 8)
    coutp = _round_up(c_out, 8)
    tm = min(MAX_TILE_M, _round_up(m_dim, 128))
    mp = _round_up(m_dim, tm)

    taps_p = _pad_to(taps, (9, cp, mp)).astype(jnp.float32)
    wd_p = _pad_to(w9c[:, :, None], (9, cp, 1)).astype(jnp.float32)
    bd_p = _pad_to(b_dw.reshape(c, 1), (cp, 1)).astype(jnp.float32)
    wp_p = _pad_to(wpw, (coutp, cp)).astype(MATMUL_DTYPE)
    bp_p = _pad_to(b_pw.reshape(c_out, 1), (coutp, 1)).astype(jnp.float32)

    bytes_acc = (taps_p.size * 4 + wd_p.size * 4 + bd_p.size * 4
                 + wp_p.size * wp_p.dtype.itemsize + bp_p.size * 4
                 + coutp * mp * 4)
    out = pl.pallas_call(
        functools.partial(_dw3x3_pw_bn_relu_kernel, relu=relu),
        out_shape=jax.ShapeDtypeStruct((coutp, mp), jnp.float32),
        grid_spec=pltpu.PrefetchScalarGridSpec(
            num_scalar_prefetch=0,
            grid=(mp // tm,),
            in_specs=[
                pl.BlockSpec((9, cp, tm), lambda i: (0, 0, i)),
                pl.BlockSpec((9, cp, 1), lambda i: (0, 0, 0)),
                pl.BlockSpec((cp, 1), lambda i: (0, 0)),
                pl.BlockSpec((coutp, cp), lambda i: (0, 0)),
                pl.BlockSpec((coutp, 1), lambda i: (0, 0)),
            ],
            out_specs=pl.BlockSpec((coutp, tm), lambda i: (0, i)),
        ),
        compiler_params=pltpu.CompilerParams(
            dimension_semantics=("parallel",)),
        cost_estimate=pl.CostEstimate(
            flops=18 * cp * mp + 2 * coutp * cp * mp,
            transcendentals=0, bytes_accessed=bytes_acc),
    )(taps_p, wd_p, bd_p, wp_p, bp_p)
    return out[:c_out, :m_dim].reshape(c_out, n, ho, wo)


def maxpool3x3_s2(x_cnhw):
    c, n, h, w = x_cnhw.shape
    neg = float(jnp.finfo(jnp.float32).min)
    taps, ho, wo = _extract_taps(x_cnhw, 2, pad_value=neg)
    m_dim = n * ho * wo
    taps = taps.reshape(9, c, m_dim)
    cp = _round_up(c, 8)
    tm = min(MAX_TILE_M, _round_up(m_dim, 128))
    mp = _round_up(m_dim, tm)
    taps_p = _pad_to(taps, (9, cp, mp)).astype(jnp.float32)

    out = pl.pallas_call(
        _maxpool9_kernel,
        out_shape=jax.ShapeDtypeStruct((cp, mp), jnp.float32),
        grid_spec=pltpu.PrefetchScalarGridSpec(
            num_scalar_prefetch=0,
            grid=(mp // tm,),
            in_specs=[pl.BlockSpec((9, cp, tm), lambda i: (0, 0, i))],
            out_specs=pl.BlockSpec((cp, tm), lambda i: (0, i)),
        ),
        compiler_params=pltpu.CompilerParams(
            dimension_semantics=("parallel",)),
        cost_estimate=pl.CostEstimate(
            flops=9 * cp * mp, transcendentals=0,
            bytes_accessed=taps_p.size * 4 + cp * mp * 4),
    )(taps_p)
    return out[:c, :m_dim].reshape(c, n, ho, wo)


# ----------------------------------------------------------------------------
# ShuffleNetV2 forward (Pallas path), channel-major (C, N, H, W) layout
# ----------------------------------------------------------------------------
def _channel_shuffle_cm(x_cnhw, groups=2):
    c, n, h, w = x_cnhw.shape
    x = x_cnhw.reshape(groups, c // groups, n, h, w)
    x = jnp.transpose(x, (1, 0, 2, 3, 4))
    return x.reshape(c, n, h, w)


def _branch2(x_cnhw, p, stride):
    c, n, h, w = x_cnhw.shape
    y = conv1x1_bn_relu(x_cnhw.reshape(c, n * h * w), p["pw1"], relu=True)
    c1 = p["pw1"]["w"].shape[0]
    return dw3x3_pw_bn_relu(y.reshape(c1, n, h, w), p["dw"], p["pw2"],
                            stride=stride, relu=True)


def _branch1(x_cnhw, p, stride):
    return dw3x3_pw_bn_relu(x_cnhw, p["dw"], p["pw"], stride=stride, relu=True)


def _shuffle_block(x_cnhw, blk):
    if blk["benchmodel"] == 1:
        c = x_cnhw.shape[0]
        x1, x2 = x_cnhw[: c // 2], x_cnhw[c // 2:]
        out = jnp.concatenate([x1, _branch2(x2, blk["banch2"], 1)], axis=0)
    else:
        b1 = _branch1(x_cnhw, blk["banch1"], blk["stride"])
        b2 = _branch2(x_cnhw, blk["banch2"], blk["stride"])
        out = jnp.concatenate([b1, b2], axis=0)
    return _channel_shuffle_cm(out, 2)


def shufflenet_v2_forward(x_nchw, params):
    """Pallas forward pass. Input NCHW, returns (N, num_classes) logits."""
    x = jnp.transpose(x_nchw, (1, 0, 2, 3))                     # (C, N, H, W)
    x = conv3x3_bn_relu(x, params["conv1"], stride=2)
    x = maxpool3x3_s2(x)
    for blk in params["blocks"]:
        x = _shuffle_block(x, blk)
    c, n, h, w = x.shape
    y = conv1x1_bn_relu(x.reshape(c, n * h * w), params["conv_last"], relu=True)
    c_last = params["conv_last"]["w"].shape[0]
    y = y.reshape(c_last, n, h, w)
    # global average pool (AvgPool2d(input_size/32) == full-spatial mean) - tiny glue.
    pooled = jnp.mean(y, axis=(2, 3))                           # (C_last, N)
    logits = matmul_bias_act(pooled, params["fc"]["w"], params["fc"]["b"], relu=False)
    return logits.T                                             # (N, num_classes)


# ----------------------------------------------------------------------------
# parameter construction (matches the torch module structure, eval-mode BN)
# ----------------------------------------------------------------------------
def _conv_bn_params(key, c_in, c_out, k):
    ks = jax.random.split(key, 5)
    fan_in = c_in * k * k
    return dict(
        w=jax.random.normal(ks[0], (c_out, c_in, k, k), jnp.float32) * fan_in ** -0.5,
        gamma=1.0 + 0.1 * jax.random.normal(ks[1], (c_out,), jnp.float32),
        beta=0.1 * jax.random.normal(ks[2], (c_out,), jnp.float32),
        mean=0.1 * jax.random.normal(ks[3], (c_out,), jnp.float32),
        var=jnp.abs(1.0 + 0.1 * jax.random.normal(ks[4], (c_out,), jnp.float32)),
    )


def _dw_bn_params(key, c):
    ks = jax.random.split(key, 5)
    return dict(
        w=jax.random.normal(ks[0], (c, 3, 3), jnp.float32) * (1.0 / 3.0),
        gamma=1.0 + 0.1 * jax.random.normal(ks[1], (c,), jnp.float32),
        beta=0.1 * jax.random.normal(ks[2], (c,), jnp.float32),
        mean=0.1 * jax.random.normal(ks[3], (c,), jnp.float32),
        var=jnp.abs(1.0 + 0.1 * jax.random.normal(ks[4], (c,), jnp.float32)),
    )


def build_shufflenet_v2_params(key, num_classes=16, width_mult=0.5):
    stage_repeats = [4, 8, 4]
    stage_out_channels = {
        0.5: [-1, 24, 48, 96, 192, 1024],
        1.0: [-1, 24, 116, 232, 464, 1024],
        1.5: [-1, 24, 176, 352, 704, 1024],
        2.0: [-1, 24, 224, 488, 976, 2048],
    }[width_mult]

    counter = [0]

    def nk():
        counter[0] += 1
        return jax.random.fold_in(key, counter[0])

    params = {}
    input_channel = stage_out_channels[1]
    params["conv1"] = _conv_bn_params(nk(), 3, input_channel, 3)
    blocks = []
    for idxstage in range(len(stage_repeats)):
        output_channel = stage_out_channels[idxstage + 2]
        oup_inc = output_channel // 2
        for i in range(stage_repeats[idxstage]):
            if i == 0:
                blk = dict(
                    benchmodel=2, stride=2,
                    banch1=dict(dw=_dw_bn_params(nk(), input_channel),
                                pw=_conv_bn_params(nk(), input_channel, oup_inc, 1)),
                    banch2=dict(pw1=_conv_bn_params(nk(), input_channel, oup_inc, 1),
                                dw=_dw_bn_params(nk(), oup_inc),
                                pw2=_conv_bn_params(nk(), oup_inc, oup_inc, 1)),
                )
            else:
                blk = dict(
                    benchmodel=1, stride=1,
                    banch2=dict(pw1=_conv_bn_params(nk(), oup_inc, oup_inc, 1),
                                dw=_dw_bn_params(nk(), oup_inc),
                                pw2=_conv_bn_params(nk(), oup_inc, oup_inc, 1)),
                )
            blocks.append(blk)
            input_channel = output_channel
    params["blocks"] = blocks
    params["conv_last"] = _conv_bn_params(nk(), input_channel, stage_out_channels[-1], 1)
    params["fc"] = dict(
        w=jax.random.normal(nk(), (num_classes, stage_out_channels[-1]), jnp.float32)
        * stage_out_channels[-1] ** -0.5,
        b=0.01 * jax.random.normal(nk(), (num_classes,), jnp.float32),
    )
    return params


# ----------------------------------------------------------------------------
# pure-JAX reference (NCHW, same BN folding & bf16 operand choices)
# ----------------------------------------------------------------------------
def _ref_conv_bn(x, p, *, stride, padding, relu, groups=1, cast=False):
    scale, bias = _fold_bn(p)
    w = p["w"]
    if w.ndim == 3:                               # depthwise (C,3,3) -> (C,1,3,3)
        w = w[:, None, :, :]
    w = w * scale[:, None, None, None]
    if cast:
        x = x.astype(MATMUL_DTYPE)
        w = w.astype(MATMUL_DTYPE)
    y = jax.lax.conv_general_dilated(
        x, w, window_strides=(stride, stride),
        padding=((padding, padding), (padding, padding)),
        dimension_numbers=("NCHW", "OIHW", "NCHW"),
        feature_group_count=groups,
        preferred_element_type=jnp.float32,
        precision=jax.lax.Precision.HIGHEST)
    y = y + bias[None, :, None, None]
    if relu:
        y = jnp.maximum(y, 0.0)
    return y


def _ref_branch2(x, p, stride):
    y = _ref_conv_bn(x, p["pw1"], stride=1, padding=0, relu=True, cast=True)
    y = _ref_conv_bn(y, p["dw"], stride=stride, padding=1, relu=False, groups=y.shape[1])
    y = _ref_conv_bn(y, p["pw2"], stride=1, padding=0, relu=True, cast=True)
    return y


def _ref_branch1(x, p, stride):
    y = _ref_conv_bn(x, p["dw"], stride=stride, padding=1, relu=False, groups=x.shape[1])
    y = _ref_conv_bn(y, p["pw"], stride=1, padding=0, relu=True, cast=True)
    return y


def _ref_channel_shuffle(x, groups=2):
    n, c, h, w = x.shape
    x = x.reshape(n, groups, c // groups, h, w)
    x = jnp.transpose(x, (0, 2, 1, 3, 4))
    return x.reshape(n, c, h, w)


def reference_forward(x_nchw, params):
    y = _ref_conv_bn(x_nchw, params["conv1"], stride=2, padding=1, relu=True, cast=True)
    y = jax.lax.reduce_window(
        y, -jnp.inf, jax.lax.max, (1, 1, 3, 3), (1, 1, 2, 2),
        ((0, 0), (0, 0), (1, 1), (1, 1)))
    for blk in params["blocks"]:
        if blk["benchmodel"] == 1:
            c = y.shape[1]
            y1, y2 = y[:, : c // 2], y[:, c // 2:]
            out = jnp.concatenate([y1, _ref_branch2(y2, blk["banch2"], 1)], axis=1)
        else:
            out = jnp.concatenate(
                [_ref_branch1(y, blk["banch1"], blk["stride"]),
                 _ref_branch2(y, blk["banch2"], blk["stride"])], axis=1)
        y = _ref_channel_shuffle(out, 2)
    y = _ref_conv_bn(y, params["conv_last"], stride=1, padding=0, relu=True, cast=True)
    pooled = jnp.mean(y, axis=(2, 3))                           # (N, C_last)
    logits = jnp.dot(pooled.astype(MATMUL_DTYPE),
                     params["fc"]["w"].T.astype(MATMUL_DTYPE),
                     preferred_element_type=jnp.float32,
                     precision=jax.lax.Precision.HIGHEST) + params["fc"]["b"]
    return logits


# ----------------------------------------------------------------------------
if __name__ == "__main__":
    key = jax.random.PRNGKey(0)
    k_params, k_x = jax.random.split(key)

    # Small but structurally faithful config: ShuffleNetV2 x0.5, 32x32 input
    # (input size must be divisible by 32), batch 2, 16 classes.
    NUM_CLASSES = 16
    N, H, W = 2, 32, 32
    params = build_shufflenet_v2_params(k_params, num_classes=NUM_CLASSES,
                                        width_mult=0.5)
    x = jax.random.normal(k_x, (N, 3, H, W), jnp.float32)

    fwd = jax.jit(lambda inp: shufflenet_v2_forward(inp, params))
    out = jax.block_until_ready(fwd(x))
    assert out.shape == (N, NUM_CLASSES), out.shape
    assert bool(jnp.all(jnp.isfinite(out)))

    ref = jax.block_until_ready(jax.jit(lambda inp: reference_forward(inp, params))(x))
    # Both paths use bf16 matmul operands with f32 accumulation; tiny
    # cross-implementation f32 rounding differences get re-quantized to bf16 at
    # every layer boundary across ~17 conv layers, so allow a modest tolerance
    # on the final logits (structural bugs would show O(1) errors).
    max_err = float(jnp.max(jnp.abs(out - ref)))
    assert jnp.allclose(out, ref, atol=1e-1, rtol=1e-1), max_err

    print("KERNEL_OK")
</pallas_src>

<mosaic_0001>
module attributes {stable_mosaic.version = 11 : i64} {
  func.func @_matmul_bias_act_kernel(%arg0: i32, %arg1: memref<32x512xbf16, #tpu.memory_space<vmem>>, %arg2: memref<24x32xbf16, #tpu.memory_space<vmem>>, %arg3: memref<24x1xf32, #tpu.memory_space<vmem>>, %arg4: memref<24x512xf32, #tpu.memory_space<vmem>>) attributes {dimension_semantics = [#tpu.dimension_semantics<parallel>], iteration_bounds = array<i64: 1>, scalar_prefetch = 0 : i64, scratch_operands = 0 : i64, tpu.core_type = #tpu.core_type<tc>, window_params = [{transform_indices = @transform_0, window_bounds = array<i64: 32, 512>}, {pipeline_mode = #tpu.pipeline_mode<synchronous>, transform_indices = @transform_1, window_bounds = array<i64: 24, 32>}, {pipeline_mode = #tpu.pipeline_mode<synchronous>, transform_indices = @transform_2, window_bounds = array<i64: 24, 1>}, {transform_indices = @transform_3, window_bounds = array<i64: 24, 512>}]} {
    %c0 = arith.constant 0 : index
    %c0_0 = arith.constant 0 : index
    %0 = vector.load %arg2[%c0, %c0_0] : memref<24x32xbf16, #tpu.memory_space<vmem>>, vector<24x32xbf16>
    %c0_1 = arith.constant 0 : index
    %c0_2 = arith.constant 0 : index
    %1 = vector.load %arg1[%c0_1, %c0_2] : memref<32x512xbf16, #tpu.memory_space<vmem>>, vector<32x512xbf16>
    %cst = arith.constant dense<0.000000e+00> : vector<24x512xf32>
    %2 = tpu.matmul %0, %1, %cst {dimension_numbers = #tpu.dot_dimension_numbers<[1], [0], [0], [1], [0, 0, 1, 1], [], []>} : vector<24x32xbf16>, vector<32x512xbf16>, vector<24x512xf32> -> vector<24x512xf32>
    %c0_3 = arith.constant 0 : index
    %c0_4 = arith.constant 0 : index
    %3 = vector.load %arg3[%c0_3, %c0_4] : memref<24x1xf32, #tpu.memory_space<vmem>>, vector<24x1xf32>
    %4 = vector.broadcast %3 : vector<24x1xf32> to vector<24x512xf32>
    %5 = arith.addf %2, %4 : vector<24x512xf32>
    %cst_5 = arith.constant 0.000000e+00 : f32
    %6 = vector.broadcast %cst_5 : f32 to vector<24x512xf32>
    %7 = arith.maximumf %5, %6 : vector<24x512xf32>
    %c0_6 = arith.constant 0 : index
    %c0_7 = arith.constant 0 : index
    %8 = vector.load %arg4[%c0_6, %c0_7] : memref<24x512xf32, #tpu.memory_space<vmem>>, vector<24x512xf32>
    tpu.vector_store %arg4[%c0_6, %c0_7], %7 {strides = array<i32>} : memref<24x512xf32, #tpu.memory_space<vmem>>, vector<24x512xf32>,
    return
  }
  func.func @transform_0(%arg0: i32) -> (i32, i32) {
    %c0_i32 = arith.constant 0 : i32
    %c0_i32_0 = arith.constant 0 : i32
    return %c0_i32, %arg0 : i32, i32
  }
  func.func @transform_1(%arg0: i32) -> (i32, i32) {
    %c0_i32 = arith.constant 0 : i32
    %c0_i32_0 = arith.constant 0 : i32
    %c0_i32_1 = arith.constant 0 : i32
    return %c0_i32, %c0_i32_0 : i32, i32
  }
  func.func @transform_2(%arg0: i32) -> (i32, i32) {
    %c0_i32 = arith.constant 0 : i32
    %c0_i32_0 = arith.constant 0 : i32
    %c0_i32_1 = arith.constant 0 : i32
    return %c0_i32, %c0_i32_0 : i32, i32
  }
  func.func @transform_3(%arg0: i32) -> (i32, i32) {
    %c0_i32 = arith.constant 0 : i32
    %c0_i32_0 = arith.constant 0 : i32
    return %c0_i32, %arg0 : i32, i32
  }
}

module attributes {stable_mosaic.version = 11 : i64} {
  func.func @_maxpool9_kernel(%arg0: i32, %arg1: memref<9x24x128xf32, #tpu.memory_space<vmem>>, %arg2: memref<24x128xf32, #tpu.memory_space<vmem>>) attributes {dimension_semantics = [#tpu.dimension_semantics<parallel>], iteration_bounds = array<i64: 1>, scalar_prefetch = 0 : i64, scratch_operands = 0 : i64, tpu.core_type = #tpu.core_type<tc>, window_params = [{transform_indices = @transform_0, window_bounds = array<i64: 9, 24, 128>}, {transform_indices = @transform_1, window_bounds = array<i64: 24, 128>}]} {
    %c0 = arith.constant 0 : index
    %c0_0 = arith.constant 0 : index
    %c0_1 = arith.constant 0 : index
    %0 = vector.load %arg1[%c0, %c0_0, %c0_1] : memref<9x24x128xf32, #tpu.memory_space<vmem>>, vector<1x24x128xf32>
    %1 = vector.shape_cast %0 : vector<1x24x128xf32> to vector<24x128xf32>
    %c1 = arith.constant 1 : index
    %c0_2 = arith.constant 0 : index
    %c0_3 = arith.constant 0 : index
    %2 = vector.load %arg1[%c1, %c0_2, %c0_3] : memref<9x24x128xf32, #tpu.memory_space<vmem>>, vector<1x24x128xf32>
    %3 = vector.shape_cast %2 : vector<1x24x128xf32> to vector<24x128xf32>
    %4 = arith.maximumf %1, %3 : vector<24x128xf32>
    %c2 = arith.constant 2 : index
    %c0_4 = arith.constant 0 : index
    %c0_5 = arith.constant 0 : index
    %5 = vector.load %arg1[%c2, %c0_4, %c0_5] : memref<9x24x128xf32, #tpu.memory_space<vmem>>, vector<1x24x128xf32>
    %6 = vector.shape_cast %5 : vector<1x24x128xf32> to vector<24x128xf32>
    %7 = arith.maximumf %4, %6 : vector<24x128xf32>
    %c3 = arith.constant 3 : index
    %c0_6 = arith.constant 0 : index
    %c0_7 = arith.constant 0 : index
    %8 = vector.load %arg1[%c3, %c0_6, %c0_7] : memref<9x24x128xf32, #tpu.memory_space<vmem>>, vector<1x24x128xf32>
    %9 = vector.shape_cast %8 : vector<1x24x128xf32> to vector<24x128xf32>
    %10 = arith.maximumf %7, %9 : vector<24x128xf32>
    %c4 = arith.constant 4 : index
    %c0_8 = arith.constant 0 : index
    %c0_9 = arith.constant 0 : index
    %11 = vector.load %arg1[%c4, %c0_8, %c0_9] : memref<9x24x128xf32, #tpu.memory_space<vmem>>, vector<1x24x128xf32>
    %12 = vector.shape_cast %11 : vector<1x24x128xf32> to vector<24x128xf32>
    %13 = arith.maximumf %10, %12 : vector<24x128xf32>
    %c5 = arith.constant 5 : index
    %c0_10 = arith.constant 0 : index
    %c0_11 = arith.constant 0 : index
    %14 = vector.load %arg1[%c5, %c0_10, %c0_11] : memref<9x24x128xf32, #tpu.memory_space<vmem>>, vector<1x24x128xf32>
    %15 = vector.shape_cast %14 : vector<1x24x128xf32> to vector<24x128xf32>
    %16 = arith.maximumf %13, %15 : vector<24x128xf32>
    %c6 = arith.constant 6 : index
    %c0_12 = arith.constant 0 : index
    %c0_13 = arith.constant 0 : index
    %17 = vector.load %arg1[%c6, %c0_12, %c0_13] : memref<9x24x128xf32, #tpu.memory_space<vmem>>, vector<1x24x128xf32>
    %18 = vector.shape_cast %17 : vector<1x24x128xf32> to vector<24x128xf32>
    %19 = arith.maximumf %16, %18 : vector<24x128xf32>
    %c7 = arith.constant 7 : index
    %c0_14 = arith.constant 0 : index
    %c0_15 = arith.constant 0 : index
    %20 = vector.load %arg1[%c7, %c0_14, %c0_15] : memref<9x24x128xf32, #tpu.memory_space<vmem>>, vector<1x24x128xf32>
    %21 = vector.shape_cast %20 : vector<1x24x128xf32> to vector<24x128xf32>
    %22 = arith.maximumf %19, %21 : vector<24x128xf32>
    %c8 = arith.constant 8 : index
    %c0_16 = arith.constant 0 : index
    %c0_17 = arith.constant 0 : index
    %23 = vector.load %arg1[%c8, %c0_16, %c0_17] : memref<9x24x128xf32, #tpu.memory_space<vmem>>, vector<1x24x128xf32>
    %24 = vector.shape_cast %23 : vector<1x24x128xf32> to vector<24x128xf32>
    %25 = arith.maximumf %22, %24 : vector<24x128xf32>
    %c0_18 = arith.constant 0 : index
    %c0_19 = arith.constant 0 : index
    %26 = vector.load %arg2[%c0_18, %c0_19] : memref<24x128xf32, #tpu.memory_space<vmem>>, vector<24x128xf32>
    tpu.vector_store %arg2[%c0_18, %c0_19], %25 {strides = array<i32>} : memref<24x128xf32, #tpu.memory_space<vmem>>, vector<24x128xf32>,
    return
  }
  func.func @transform_0(%arg0: i32) -> (i32, i32, i32) {
    %c0_i32 = arith.constant 0 : i32
    %c0_i32_0 = arith.constant 0 : i32
    %c0_i32_1 = arith.constant 0 : i32
    return %c0_i32, %c0_i32_0, %arg0 : i32, i32, i32
  }
  func.func @transform_1(%arg0: i32) -> (i32, i32) {
    %c0_i32 = arith.constant 0 : i32
    %c0_i32_0 = arith.constant 0 : i32
    return %c0_i32, %arg0 : i32, i32
  }
}

module attributes {stable_mosaic.version = 11 : i64} {
  func.func @_matmul_bias_act_kernel(%arg0: i32, %arg1: memref<32x128xbf16, #tpu.memory_space<vmem>>, %arg2: memref<24x32xbf16, #tpu.memory_space<vmem>>, %arg3: memref<24x1xf32, #tpu.memory_space<vmem>>, %arg4: memref<24x128xf32, #tpu.memory_space<vmem>>) attributes {dimension_semantics = [#tpu.dimension_semantics<parallel>], iteration_bounds = array<i64: 1>, scalar_prefetch = 0 : i64, scratch_operands = 0 : i64, tpu.core_type = #tpu.core_type<tc>, window_params = [{transform_indices = @transform_0, window_bounds = array<i64: 32, 128>}, {pipeline_mode = #tpu.pipeline_mode<synchronous>, transform_indices = @transform_1, window_bounds = array<i64: 24, 32>}, {pipeline_mode = #tpu.pipeline_mode<synchronous>, transform_indices = @transform_2, window_bounds = array<i64: 24, 1>}, {transform_indices = @transform_3, window_bounds = array<i64: 24, 128>}]} {
    %c0 = arith.constant 0 : index
    %c0_0 = arith.constant 0 : index
    %0 = vector.load %arg2[%c0, %c0_0] : memref<24x32xbf16, #tpu.memory_space<vmem>>, vector<24x32xbf16>
    %c0_1 = arith.constant 0 : index
    %c0_2 = arith.constant 0 : index
    %1 = vector.load %arg1[%c0_1, %c0_2] : memref<32x128xbf16, #tpu.memory_space<vmem>>, vector<32x128xbf16>
    %cst = arith.constant dense<0.000000e+00> : vector<24x128xf32>
    %2 = tpu.matmul %0, %1, %cst {dimension_numbers = #tpu.dot_dimension_numbers<[1], [0], [0], [1], [0, 0, 1, 1], [], []>} : vector<24x32xbf16>, vector<32x128xbf16>, vector<24x128xf32> -> vector<24x128xf32>
    %c0_3 = arith.constant 0 : index
    %c0_4 = arith.constant 0 : index
    %3 = vector.load %arg3[%c0_3, %c0_4] : memref<24x1xf32, #tpu.memory_space<vmem>>, vector<24x1xf32>
    %4 = vector.broadcast %3 : vector<24x1xf32> to vector<24x128xf32>
    %5 = arith.addf %2, %4 : vector<24x128xf32>
    %cst_5 = arith.constant 0.000000e+00 : f32
    %6 = vector.broadcast %cst_5 : f32 to vector<24x128xf32>
    %7 = arith.maximumf %5, %6 : vector<24x128xf32>
    %c0_6 = arith.constant 0 : index
    %c0_7 = arith.constant 0 : index
    %8 = vector.load %arg4[%c0_6, %c0_7] : memref<24x128xf32, #tpu.memory_space<vmem>>, vector<24x128xf32>
    tpu.vector_store %arg4[%c0_6, %c0_7], %7 {strides = array<i32>} : memref<24x128xf32, #tpu.memory_space<vmem>>, vector<24x128xf32>,
    return
  }
  func.func @transform_0(%arg0: i32) -> (i32, i32) {
    %c0_i32 = arith.constant 0 : i32
    %c0_i32_0 = arith.constant 0 : i32
    return %c0_i32, %arg0 : i32, i32
  }
  func.func @transform_1(%arg0: i32) -> (i32, i32) {
    %c0_i32 = arith.constant 0 : i32
    %c0_i32_0 = arith.constant 0 : i32
    %c0_i32_1 = arith.constant 0 : i32
    return %c0_i32, %c0_i32_0 : i32, i32
  }
  func.func @transform_2(%arg0: i32) -> (i32, i32) {
    %c0_i32 = arith.constant 0 : i32
    %c0_i32_0 = arith.constant 0 : i32
    %c0_i32_1 = arith.constant 0 : i32
    return %c0_i32, %c0_i32_0 : i32, i32
  }
  func.func @transform_3(%arg0: i32) -> (i32, i32) {
    %c0_i32 = arith.constant 0 : i32
    %c0_i32_0 = arith.constant 0 : i32
    return %c0_i32, %arg0 : i32, i32
  }
}

module attributes {stable_mosaic.version = 11 : i64} {
  func.func @_dw3x3_pw_bn_relu_kernel(%arg0: i32, %arg1: memref<9x24x128xf32, #tpu.memory_space<vmem>>, %arg2: memref<9x24x1xf32, #tpu.memory_space<vmem>>, %arg3: memref<24x1xf32, #tpu.memory_space<vmem>>, %arg4: memref<24x24xbf16, #tpu.memory_space<vmem>>, %arg5: memref<24x1xf32, #tpu.memory_space<vmem>>, %arg6: memref<24x128xf32, #tpu.memory_space<vmem>>) attributes {dimension_semantics = [#tpu.dimension_semantics<parallel>], iteration_bounds = array<i64: 1>, scalar_prefetch = 0 : i64, scratch_operands = 0 : i64, tpu.core_type = #tpu.core_type<tc>, window_params = [{transform_indices = @transform_0, window_bounds = array<i64: 9, 24, 128>}, {pipeline_mode = #tpu.pipeline_mode<synchronous>, transform_indices = @transform_1, window_bounds = array<i64: 9, 24, 1>}, {pipeline_mode = #tpu.pipeline_mode<synchronous>, transform_indices = @transform_2, window_bounds = array<i64: 24, 1>}, {pipeline_mode = #tpu.pipeline_mode<synchronous>, transform_indices = @transform_3, window_bounds = array<i64: 24, 24>}, {pipeline_mode = #tpu.pipeline_mode<synchronous>, transform_indices = @transform_4, window_bounds = array<i64: 24, 1>}, {transform_indices = @transform_5, window_bounds = array<i64: 24, 128>}]} {
    %c0 = arith.constant 0 : index
    %c0_0 = arith.constant 0 : index
    %c0_1 = arith.constant 0 : index
    %0 = vector.load %arg1[%c0, %c0_0, %c0_1] : memref<9x24x128xf32, #tpu.memory_space<vmem>>, vector<1x24x128xf32>
    %1 = vector.shape_cast %0 : vector<1x24x128xf32> to vector<24x128xf32>
    %c0_2 = arith.constant 0 : index
    %c0_3 = arith.constant 0 : index
    %c0_4 = arith.constant 0 : index
    %2 = vector.load %arg2[%c0_2, %c0_3, %c0_4] : memref<9x24x1xf32, #tpu.memory_space<vmem>>, vector<1x24x1xf32>
    %3 = vector.shape_cast %2 : vector<1x24x1xf32> to vector<24x1xf32>
    %4 = vector.broadcast %3 : vector<24x1xf32> to vector<24x128xf32>
    %5 = arith.mulf %1, %4 : vector<24x128xf32>
    %c1 = arith.constant 1 : index
    %c0_5 = arith.constant 0 : index
    %c0_6 = arith.constant 0 : index
    %6 = vector.load %arg1[%c1, %c0_5, %c0_6] : memref<9x24x128xf32, #tpu.memory_space<vmem>>, vector<1x24x128xf32>
    %7 = vector.shape_cast %6 : vector<1x24x128xf32> to vector<24x128xf32>
    %c1_7 = arith.constant 1 : index
    %c0_8 = arith.constant 0 : index
    %c0_9 = arith.constant 0 : index
    %8 = vector.load %arg2[%c1_7, %c0_8, %c0_9] : memref<9x24x1xf32, #tpu.memory_space<vmem>>, vector<1x24x1xf32>
    %9 = vector.shape_cast %8 : vector<1x24x1xf32> to vector<24x1xf32>
    %10 = vector.broadcast %9 : vector<24x1xf32> to vector<24x128xf32>
    %11 = arith.mulf %7, %10 : vector<24x128xf32>
    %12 = arith.addf %5, %11 : vector<24x128xf32>
    %c2 = arith.constant 2 : index
    %c0_10 = arith.constant 0 : index
    %c0_11 = arith.constant 0 : index
    %13 = vector.load %arg1[%c2, %c0_10, %c0_11] : memref<9x24x128xf32, #tpu.memory_space<vmem>>, vector<1x24x128xf32>
    %14 = vector.shape_cast %13 : vector<1x24x128xf32> to vector<24x128xf32>
    %c2_12 = arith.constant 2 : index
    %c0_13 = arith.constant 0 : index
    %c0_14 = arith.constant 0 : index
    %15 = vector.load %arg2[%c2_12, %c0_13, %c0_14] : memref<9x24x1xf32, #tpu.memory_space<vmem>>, vector<1x24x1xf32>
    %16 = vector.shape_cast %15 : vector<1x24x1xf32> to vector<24x1xf32>
    %17 = vector.broadcast %16 : vector<24x1xf32> to vector<24x128xf32>
    %18 = arith.mulf %14, %17 : vector<24x128xf32>
    %19 = arith.addf %12, %18 : vector<24x128xf32>
    %c3 = arith.constant 3 : index
    %c0_15 = arith.constant 0 : index
    %c0_16 = arith.constant 0 : index
    %20 = vector.load %arg1[%c3, %c0_15, %c0_16] : memref<9x24x128xf32, #tpu.memory_space<vmem>>, vector<1x24x128xf32>
    %21 = vector.shape_cast %20 : vector<1x24x128xf32> to vector<24x128xf32>
    %c3_17 = arith.constant 3 : index
    %c0_18 = arith.constant 0 : index
    %c0_19 = arith.constant 0 : index
    %22 = vector.load %arg2[%c3_17, %c0_18, %c0_19] : memref<9x24x1xf32, #tpu.memory_space<vmem>>, vector<1x24x1xf32>
    %23 = vector.shape_cast %22 : vector<1x24x1xf32> to vector<24x1xf32>
    %24 = vector.broadcast %23 : vector<24x1xf32> to vector<24x128xf32>
    %25 = arith.mulf %21, %24 : vector<24x128xf32>
    %26 = arith.addf %19, %25 : vector<24x128xf32>
    %c4 = arith.constant 4 : index
    %c0_20 = arith.constant 0 : index
    %c0_21 = arith.constant 0 : index
    %27 = vector.load %arg1[%c4, %c0_20, %c0_21] : memref<9x24x128xf32, #tpu.memory_space<vmem>>, vector<1x24x128xf32>
    %28 = vector.shape_cast %27 : vector<1x24x128xf32> to vector<24x128xf32>
    %c4_22 = arith.constant 4 : index
    %c0_23 = arith.constant 0 : index
    %c0_24 = arith.constant 0 : index
    %29 = vector.load %arg2[%c4_22, %c0_23, %c0_24] : memref<9x24x1xf32, #tpu.memory_space<vmem>>, vector<1x24x1xf32>
    %30 = vector.shape_cast %29 : vector<1x24x1xf32> to vector<24x1xf32>
    %31 = vector.broadcast %30 : vector<24x1xf32> to vector<24x128xf32>
    %32 = arith.mulf %28, %31 : vector<24x128xf32>
    %33 = arith.addf %26, %32 : vector<24x128xf32>
    %c5 = arith.constant 5 : index
    %c0_25 = arith.constant 0 : index
    %c0_26 = arith.constant 0 : index
    %34 = vector.load %arg1[%c5, %c0_25, %c0_26] : memref<9x24x128xf32, #tpu.memory_space<vmem>>, vector<1x24x128xf32>
    %35 = vector.shape_cast %34 : vector<1x24x128xf32> to vector<24x128xf32>
    %c5_27 = arith.constant 5 : index
    %c0_28 = arith.constant 0 : index
    %c0_29 = arith.constant 0 : index
    %36 = vector.load %arg2[%c5_27, %c0_28, %c0_29] : memref<9x24x1xf32, #tpu.memory_space<vmem>>, vector<1x24x1xf32>
    %37 = vector.shape_cast %36 : vector<1x24x1xf32> to vector<24x1xf32>
    %38 = vector.broadcast %37 : vector<24x1xf32> to vector<24x128xf32>
    %39 = arith.mulf %35, %38 : vector<24x128xf32>
    %40 = arith.addf %33, %39 : vector<24x128xf32>
    %c6 = arith.constant 6 : index
    %c0_30 = arith.constant 0 : index
    %c0_31 = arith.constant 0 : index
    %41 = vector.load %arg1[%c6, %c0_30, %c0_31] : memref<9x24x128xf32, #tpu.memory_space<vmem>>, vector<1x24x128xf32>
    %42 = vector.shape_cast %41 : vector<1x24x128xf32> to vector<24x128xf32>
    %c6_32 = arith.constant 6 : index
    %c0_33 = arith.constant 0 : index
    %c0_34 = arith.constant 0 : index
    %43 = vector.load %arg2[%c6_32, %c0_33, %c0_34] : memref<9x24x1xf32, #tpu.memory_space<vmem>>, vector<1x24x1xf32>
    %44 = vector.shape_cast %43 : vector<1x24x1xf32> to vector<24x1xf32>
    %45 = vector.broadcast %44 : vector<24x1xf32> to vector<24x128xf32>
    %46 = arith.mulf %42, %45 : vector<24x128xf32>
    %47 = arith.addf %40, %46 : vector<24x128xf32>
    %c7 = arith.constant 7 : index
    %c0_35 = arith.constant 0 : index
    %c0_36 = arith.constant 0 : index
    %48 = vector.load %arg1[%c7, %c0_35, %c0_36] : memref<9x24x128xf32, #tpu.memory_space<vmem>>, vector<1x24x128xf32>
    %49 = vector.shape_cast %48 : vector<1x24x128xf32> to vector<24x128xf32>
    %c7_37 = arith.constant 7 : index
    %c0_38 = arith.constant 0 : index
    %c0_39 = arith.constant 0 : index
    %50 = vector.load %arg2[%c7_37, %c0_38, %c0_39] : memref<9x24x1xf32, #tpu.memory_space<vmem>>, vector<1x24x1xf32>
    %51 = vector.shape_cast %50 : vector<1x24x1xf32> to vector<24x1xf32>
    %52 = vector.broadcast %51 : vector<24x1xf32> to vector<24x128xf32>
    %53 = arith.mulf %49, %52 : vector<24x128xf32>
    %54 = arith.addf %47, %53 : vector<24x128xf32>
    %c8 = arith.constant 8 : index
    %c0_40 = arith.constant 0 : index
    %c0_41 = arith.constant 0 : index
    %55 = vector.load %arg1[%c8, %c0_40, %c0_41] : memref<9x24x128xf32, #tpu.memory_space<vmem>>, vector<1x24x128xf32>
    %56 = vector.shape_cast %55 : vector<1x24x128xf32> to vector<24x128xf32>
    %c8_42 = arith.constant 8 : index
    %c0_43 = arith.constant 0 : index
    %c0_44 = arith.constant 0 : index
    %57 = vector.load %arg2[%c8_42, %c0_43, %c0_44] : memref<9x24x1xf32, #tpu.memory_space<vmem>>, vector<1x24x1xf32>
    %58 = vector.shape_cast %57 : vector<1x24x1xf32> to vector<24x1xf32>
    %59 = vector.broadcast %58 : vector<24x1xf32> to vector<24x128xf32>
    %60 = arith.mulf %56, %59 : vector<24x128xf32>
    %61 = arith.addf %54, %60 : vector<24x128xf32>
    %c0_45 = arith.constant 0 : index
    %c0_46 = arith.constant 0 : index
    %62 = vector.load %arg3[%c0_45, %c0_46] : memref<24x1xf32, #tpu.memory_space<vmem>>, vector<24x1xf32>
    %63 = vector.broadcast %62 : vector<24x1xf32> to vector<24x128xf32>
    %64 = arith.addf %61, %63 : vector<24x128xf32>
    %c0_47 = arith.constant 0 : index
    %c0_48 = arith.constant 0 : index
    %65 = vector.load %arg4[%c0_47, %c0_48] : memref<24x24xbf16, #tpu.memory_space<vmem>>, vector<24x24xbf16>
    %66 = arith.truncf %64 : vector<24x128xf32> to vector<24x128xbf16>
    %cst = arith.constant dense<0.000000e+00> : vector<24x128xf32>
    %67 = tpu.matmul %65, %66, %cst {dimension_numbers = #tpu.dot_dimension_numbers<[1], [0], [0], [1], [0, 0, 1, 1], [], []>} : vector<24x24xbf16>, vector<24x128xbf16>, vector<24x128xf32> -> vector<24x128xf32>
    %c0_49 = arith.constant 0 : index
    %c0_50 = arith.constant 0 : index
    %68 = vector.load %arg5[%c0_49, %c0_50] : memref<24x1xf32, #tpu.memory_space<vmem>>, vector<24x1xf32>
    %69 = vector.broadcast %68 : vector<24x1xf32> to vector<24x128xf32>
    %70 = arith.addf %67, %69 : vector<24x128xf32>
    %cst_51 = arith.constant 0.000000e+00 : f32
    %71 = vector.broadcast %cst_51 : f32 to vector<24x128xf32>
    %72 = arith.maximumf %70, %71 : vector<24x128xf32>
    %c0_52 = arith.constant 0 : index
    %c0_53 = arith.constant 0 : index
    %73 = vector.load %arg6[%c0_52, %c0_53] : memref<24x128xf32, #tpu.memory_space<vmem>>, vector<24x128xf32>
    tpu.vector_store %arg6[%c0_52, %c0_53], %72 {strides = array<i32>} : memref<24x128xf32, #tpu.memory_space<vmem>>, vector<24x128xf32>,
    return
  }
  func.func @transform_0(%arg0: i32) -> (i32, i32, i32) {
    %c0_i32 = arith.constant 0 : i32
    %c0_i32_0 = arith.constant 0 : i32
    %c0_i32_1 = arith.constant 0 : i32
    return %c0_i32, %c0_i32_0, %arg0 : i32, i32, i32
  }
  func.func @transform_1(%arg0: i32) -> (i32, i32, i32) {
    %c0_i32 = arith.constant 0 : i32
    %c0_i32_0 = arith.constant 0 : i32
    %c0_i32_1 = arith.constant 0 : i32
    %c0_i32_2 = arith.constant 0 : i32
    return %c0_i32, %c0_i32_0, %c0_i32_1 : i32, i32, i32
  }
  func.func @transform_2(%arg0: i32) -> (i32, i32) {
    %c0_i32 = arith.constant 0 : i32
    %c0_i32_0 = arith.constant 0 : i32
    %c0_i32_1 = arith.constant 0 : i32
    return %c0_i32, %c0_i32_0 : i32, i32
  }
  func.func @transform_3(%arg0: i32) -> (i32, i32) {
    %c0_i32 = arith.constant 0 : i32
    %c0_i32_0 = arith.constant 0 : i32
    %c0_i32_1 = arith.constant 0 : i32
    return %c0_i32, %c0_i32_0 : i32, i32
  }
  func.func @transform_4(%arg0: i32) -> (i32, i32) {
    %c0_i32 = arith.constant 0 : i32
    %c0_i32_0 = arith.constant 0 : i32
    %c0_i32_1 = arith.constant 0 : i32
    return %c0_i32, %c0_i32_0 : i32, i32
  }
  func.func @transform_5(%arg0: i32) -> (i32, i32) {
    %c0_i32 = arith.constant 0 : i32
    %c0_i32_0 = arith.constant 0 : i32
    return %c0_i32, %arg0 : i32, i32
  }
}

module attributes {stable_mosaic.version = 11 : i64} {
  func.func @_matmul_bias_act_kernel(%arg0: i32, %arg1: memref<48x128xbf16, #tpu.memory_space<vmem>>, %arg2: memref<48x48xbf16, #tpu.memory_space<vmem>>, %arg3: memref<48x1xf32, #tpu.memory_space<vmem>>, %arg4: memref<48x128xf32, #tpu.memory_space<vmem>>) attributes {dimension_semantics = [#tpu.dimension_semantics<parallel>], iteration_bounds = array<i64: 1>, scalar_prefetch = 0 : i64, scratch_operands = 0 : i64, tpu.core_type = #tpu.core_type<tc>, window_params = [{transform_indices = @transform_0, window_bounds = array<i64: 48, 128>}, {pipeline_mode = #tpu.pipeline_mode<synchronous>, transform_indices = @transform_1, window_bounds = array<i64: 48, 48>}, {pipeline_mode = #tpu.pipeline_mode<synchronous>, transform_indices = @transform_2, window_bounds = array<i64: 48, 1>}, {transform_indices = @transform_3, window_bounds = array<i64: 48, 128>}]} {
    %c0 = arith.constant 0 : index
    %c0_0 = arith.constant 0 : index
    %0 = vector.load %arg2[%c0, %c0_0] : memref<48x48xbf16, #tpu.memory_space<vmem>>, vector<48x48xbf16>
    %c0_1 = arith.constant 0 : index
    %c0_2 = arith.constant 0 : index
    %1 = vector.load %arg1[%c0_1, %c0_2] : memref<48x128xbf16, #tpu.memory_space<vmem>>, vector<48x128xbf16>
    %cst = arith.constant dense<0.000000e+00> : vector<48x128xf32>
    %2 = tpu.matmul %0, %1, %cst {dimension_numbers = #tpu.dot_dimension_numbers<[1], [0], [0], [1], [0, 0, 1, 1], [], []>} : vector<48x48xbf16>, vector<48x128xbf16>, vector<48x128xf32> -> vector<48x128xf32>
    %c0_3 = arith.constant 0 : index
    %c0_4 = arith.constant 0 : index
    %3 = vector.load %arg3[%c0_3, %c0_4] : memref<48x1xf32, #tpu.memory_space<vmem>>, vector<48x1xf32>
    %4 = vector.broadcast %3 : vector<48x1xf32> to vector<48x128xf32>
    %5 = arith.addf %2, %4 : vector<48x128xf32>
    %cst_5 = arith.constant 0.000000e+00 : f32
    %6 = vector.broadcast %cst_5 : f32 to vector<48x128xf32>
    %7 = arith.maximumf %5, %6 : vector<48x128xf32>
    %c0_6 = arith.constant 0 : index
    %c0_7 = arith.constant 0 : index
    %8 = vector.load %arg4[%c0_6, %c0_7] : memref<48x128xf32, #tpu.memory_space<vmem>>, vector<48x128xf32>
    tpu.vector_store %arg4[%c0_6, %c0_7], %7 {strides = array<i32>} : memref<48x128xf32, #tpu.memory_space<vmem>>, vector<48x128xf32>,
    return
  }
  func.func @transform_0(%arg0: i32) -> (i32, i32) {
    %c0_i32 = arith.constant 0 : i32
    %c0_i32_0 = arith.constant 0 : i32
    return %c0_i32, %arg0 : i32, i32
  }
  func.func @transform_1(%arg0: i32) -> (i32, i32) {
    %c0_i32 = arith.constant 0 : i32
    %c0_i32_0 = arith.constant 0 : i32
    %c0_i32_1 = arith.constant 0 : i32
    return %c0_i32, %c0_i32_0 : i32, i32
  }
  func.func @transform_2(%arg0: i32) -> (i32, i32) {
    %c0_i32 = arith.constant 0 : i32
    %c0_i32_0 = arith.constant 0 : i32
    %c0_i32_1 = arith.constant 0 : i32
    return %c0_i32, %c0_i32_0 : i32, i32
  }
  func.func @transform_3(%arg0: i32) -> (i32, i32) {
    %c0_i32 = arith.constant 0 : i32
    %c0_i32_0 = arith.constant 0 : i32
    return %c0_i32, %arg0 : i32, i32
  }
}

module attributes {stable_mosaic.version = 11 : i64} {
  func.func @_dw3x3_pw_bn_relu_kernel(%arg0: i32, %arg1: memref<9x48x128xf32, #tpu.memory_space<vmem>>, %arg2: memref<9x48x1xf32, #tpu.memory_space<vmem>>, %arg3: memref<48x1xf32, #tpu.memory_space<vmem>>, %arg4: memref<48x48xbf16, #tpu.memory_space<vmem>>, %arg5: memref<48x1xf32, #tpu.memory_space<vmem>>, %arg6: memref<48x128xf32, #tpu.memory_space<vmem>>) attributes {dimension_semantics = [#tpu.dimension_semantics<parallel>], iteration_bounds = array<i64: 1>, scalar_prefetch = 0 : i64, scratch_operands = 0 : i64, tpu.core_type = #tpu.core_type<tc>, window_params = [{transform_indices = @transform_0, window_bounds = array<i64: 9, 48, 128>}, {pipeline_mode = #tpu.pipeline_mode<synchronous>, transform_indices = @transform_1, window_bounds = array<i64: 9, 48, 1>}, {pipeline_mode = #tpu.pipeline_mode<synchronous>, transform_indices = @transform_2, window_bounds = array<i64: 48, 1>}, {pipeline_mode = #tpu.pipeline_mode<synchronous>, transform_indices = @transform_3, window_bounds = array<i64: 48, 48>}, {pipeline_mode = #tpu.pipeline_mode<synchronous>, transform_indices = @transform_4, window_bounds = array<i64: 48, 1>}, {transform_indices = @transform_5, window_bounds = array<i64: 48, 128>}]} {
    %c0 = arith.constant 0 : index
    %c0_0 = arith.constant 0 : index
    %c0_1 = arith.constant 0 : index
    %0 = vector.load %arg1[%c0, %c0_0, %c0_1] : memref<9x48x128xf32, #tpu.memory_space<vmem>>, vector<1x48x128xf32>
    %1 = vector.shape_cast %0 : vector<1x48x128xf32> to vector<48x128xf32>
    %c0_2 = arith.constant 0 : index
    %c0_3 = arith.constant 0 : index
    %c0_4 = arith.constant 0 : index
    %2 = vector.load %arg2[%c0_2, %c0_3, %c0_4] : memref<9x48x1xf32, #tpu.memory_space<vmem>>, vector<1x48x1xf32>
    %3 = vector.shape_cast %2 : vector<1x48x1xf32> to vector<48x1xf32>
    %4 = vector.broadcast %3 : vector<48x1xf32> to vector<48x128xf32>
    %5 = arith.mulf %1, %4 : vector<48x128xf32>
    %c1 = arith.constant 1 : index
    %c0_5 = arith.constant 0 : index
    %c0_6 = arith.constant 0 : index
    %6 = vector.load %arg1[%c1, %c0_5, %c0_6] : memref<9x48x128xf32, #tpu.memory_space<vmem>>, vector<1x48x128xf32>
    %7 = vector.shape_cast %6 : vector<1x48x128xf32> to vector<48x128xf32>
    %c1_7 = arith.constant 1 : index
    %c0_8 = arith.constant 0 : index
    %c0_9 = arith.constant 0 : index
    %8 = vector.load %arg2[%c1_7, %c0_8, %c0_9] : memref<9x48x1xf32, #tpu.memory_space<vmem>>, vector<1x48x1xf32>
    %9 = vector.shape_cast %8 : vector<1x48x1xf32> to vector<48x1xf32>
    %10 = vector.broadcast %9 : vector<48x1xf32> to vector<48x128xf32>
    %11 = arith.mulf %7, %10 : vector<48x128xf32>
    %12 = arith.addf %5, %11 : vector<48x128xf32>
    %c2 = arith.constant 2 : index
    %c0_10 = arith.constant 0 : index
    %c0_11 = arith.constant 0 : index
    %13 = vector.load %arg1[%c2, %c0_10, %c0_11] : memref<9x48x128xf32, #tpu.memory_space<vmem>>, vector<1x48x128xf32>
    %14 = vector.shape_cast %13 : vector<1x48x128xf32> to vector<48x128xf32>
    %c2_12 = arith.constant 2 : index
    %c0_13 = arith.constant 0 : index
    %c0_14 = arith.constant 0 : index
    %15 = vector.load %arg2[%c2_12, %c0_13, %c0_14] : memref<9x48x1xf32, #tpu.memory_space<vmem>>, vector<1x48x1xf32>
    %16 = vector.shape_cast %15 : vector<1x48x1xf32> to vector<48x1xf32>
    %17 = vector.broadcast %16 : vector<48x1xf32> to vector<48x128xf32>
    %18 = arith.mulf %14, %17 : vector<48x128xf32>
    %19 = arith.addf %12, %18 : vector<48x128xf32>
    %c3 = arith.constant 3 : index
    %c0_15 = arith.constant 0 : index
    %c0_16 = arith.constant 0 : index
    %20 = vector.load %arg1[%c3, %c0_15, %c0_16] : memref<9x48x128xf32, #tpu.memory_space<vmem>>, vector<1x48x128xf32>
    %21 = vector.shape_cast %20 : vector<1x48x128xf32> to vector<48x128xf32>
    %c3_17 = arith.constant 3 : index
    %c0_18 = arith.constant 0 : index
    %c0_19 = arith.constant 0 : index
    %22 = vector.load %arg2[%c3_17, %c0_18, %c0_19] : memref<9x48x1xf32, #tpu.memory_space<vmem>>, vector<1x48x1xf32>
    %23 = vector.shape_cast %22 : vector<1x48x1xf32> to vector<48x1xf32>
    %24 = vector.broadcast %23 : vector<48x1xf32> to vector<48x128xf32>
    %25 = arith.mulf %21, %24 : vector<48x128xf32>
    %26 = arith.addf %19, %25 : vector<48x128xf32>
    %c4 = arith.constant 4 : index
    %c0_20 = arith.constant 0 : index
    %c0_21 = arith.constant 0 : index
    %27 = vector.load %arg1[%c4, %c0_20, %c0_21] : memref<9x48x128xf32, #tpu.memory_space<vmem>>, vector<1x48x128xf32>
    %28 = vector.shape_cast %27 : vector<1x48x128xf32> to vector<48x128xf32>
    %c4_22 = arith.constant 4 : index
    %c0_23 = arith.constant 0 : index
    %c0_24 = arith.constant 0 : index
    %29 = vector.load %arg2[%c4_22, %c0_23, %c0_24] : memref<9x48x1xf32, #tpu.memory_space<vmem>>, vector<1x48x1xf32>
    %30 = vector.shape_cast %29 : vector<1x48x1xf32> to vector<48x1xf32>
    %31 = vector.broadcast %30 : vector<48x1xf32> to vector<48x128xf32>
    %32 = arith.mulf %28, %31 : vector<48x128xf32>
    %33 = arith.addf %26, %32 : vector<48x128xf32>
    %c5 = arith.constant 5 : index
    %c0_25 = arith.constant 0 : index
    %c0_26 = arith.constant 0 : index
    %34 = vector.load %arg1[%c5, %c0_25, %c0_26] : memref<9x48x128xf32, #tpu.memory_space<vmem>>, vector<1x48x128xf32>
    %35 = vector.shape_cast %34 : vector<1x48x128xf32> to vector<48x128xf32>
    %c5_27 = arith.constant 5 : index
    %c0_28 = arith.constant 0 : index
    %c0_29 = arith.constant 0 : index
    %36 = vector.load %arg2[%c5_27, %c0_28, %c0_29] : memref<9x48x1xf32, #tpu.memory_space<vmem>>, vector<1x48x1xf32>
    %37 = vector.shape_cast %36 : vector<1x48x1xf32> to vector<48x1xf32>
    %38 = vector.broadcast %37 : vector<48x1xf32> to vector<48x128xf32>
    %39 = arith.mulf %35, %38 : vector<48x128xf32>
    %40 = arith.addf %33, %39 : vector<48x128xf32>
    %c6 = arith.constant 6 : index
    %c0_30 = arith.constant 0 : index
    %c0_31 = arith.constant 0 : index
    %41 = vector.load %arg1[%c6, %c0_30, %c0_31] : memref<9x48x128xf32, #tpu.memory_space<vmem>>, vector<1x48x128xf32>
    %42 = vector.shape_cast %41 : vector<1x48x128xf32> to vector<48x128xf32>
    %c6_32 = arith.constant 6 : index
    %c0_33 = arith.constant 0 : index
    %c0_34 = arith.constant 0 : index
    %43 = vector.load %arg2[%c6_32, %c0_33, %c0_34] : memref<9x48x1xf32, #tpu.memory_space<vmem>>, vector<1x48x1xf32>
    %44 = vector.shape_cast %43 : vector<1x48x1xf32> to vector<48x1xf32>
    %45 = vector.broadcast %44 : vector<48x1xf32> to vector<48x128xf32>
    %46 = arith.mulf %42, %45 : vector<48x128xf32>
    %47 = arith.addf %40, %46 : vector<48x128xf32>
    %c7 = arith.constant 7 : index
    %c0_35 = arith.constant 0 : index
    %c0_36 = arith.constant 0 : index
    %48 = vector.load %arg1[%c7, %c0_35, %c0_36] : memref<9x48x128xf32, #tpu.memory_space<vmem>>, vector<1x48x128xf32>
    %49 = vector.shape_cast %48 : vector<1x48x128xf32> to vector<48x128xf32>
    %c7_37 = arith.constant 7 : index
    %c0_38 = arith.constant 0 : index
    %c0_39 = arith.constant 0 : index
    %50 = vector.load %arg2[%c7_37, %c0_38, %c0_39] : memref<9x48x1xf32, #tpu.memory_space<vmem>>, vector<1x48x1xf32>
    %51 = vector.shape_cast %50 : vector<1x48x1xf32> to vector<48x1xf32>
    %52 = vector.broadcast %51 : vector<48x1xf32> to vector<48x128xf32>
    %53 = arith.mulf %49, %52 : vector<48x128xf32>
    %54 = arith.addf %47, %53 : vector<48x128xf32>
    %c8 = arith.constant 8 : index
    %c0_40 = arith.constant 0 : index
    %c0_41 = arith.constant 0 : index
    %55 = vector.load %arg1[%c8, %c0_40, %c0_41] : memref<9x48x128xf32, #tpu.memory_space<vmem>>, vector<1x48x128xf32>
    %56 = vector.shape_cast %55 : vector<1x48x128xf32> to vector<48x128xf32>
    %c8_42 = arith.constant 8 : index
    %c0_43 = arith.constant 0 : index
    %c0_44 = arith.constant 0 : index
    %57 = vector.load %arg2[%c8_42, %c0_43, %c0_44] : memref<9x48x1xf32, #tpu.memory_space<vmem>>, vector<1x48x1xf32>
    %58 = vector.shape_cast %57 : vector<1x48x1xf32> to vector<48x1xf32>
    %59 = vector.broadcast %58 : vector<48x1xf32> to vector<48x128xf32>
    %60 = arith.mulf %56, %59 : vector<48x128xf32>
    %61 = arith.addf %54, %60 : vector<48x128xf32>
    %c0_45 = arith.constant 0 : index
    %c0_46 = arith.constant 0 : index
    %62 = vector.load %arg3[%c0_45, %c0_46] : memref<48x1xf32, #tpu.memory_space<vmem>>, vector<48x1xf32>
    %63 = vector.broadcast %62 : vector<48x1xf32> to vector<48x128xf32>
    %64 = arith.addf %61, %63 : vector<48x128xf32>
    %c0_47 = arith.constant 0 : index
    %c0_48 = arith.constant 0 : index
    %65 = vector.load %arg4[%c0_47, %c0_48] : memref<48x48xbf16, #tpu.memory_space<vmem>>, vector<48x48xbf16>
    %66 = arith.truncf %64 : vector<48x128xf32> to vector<48x128xbf16>
    %cst = arith.constant dense<0.000000e+00> : vector<48x128xf32>
    %67 = tpu.matmul %65, %66, %cst {dimension_numbers = #tpu.dot_dimension_numbers<[1], [0], [0], [1], [0, 0, 1, 1], [], []>} : vector<48x48xbf16>, vector<48x128xbf16>, vector<48x128xf32> -> vector<48x128xf32>
    %c0_49 = arith.constant 0 : index
    %c0_50 = arith.constant 0 : index
    %68 = vector.load %arg5[%c0_49, %c0_50] : memref<48x1xf32, #tpu.memory_space<vmem>>, vector<48x1xf32>
    %69 = vector.broadcast %68 : vector<48x1xf32> to vector<48x128xf32>
    %70 = arith.addf %67, %69 : vector<48x128xf32>
    %cst_51 = arith.constant 0.000000e+00 : f32
    %71 = vector.broadcast %cst_51 : f32 to vector<48x128xf32>
    %72 = arith.maximumf %70, %71 : vector<48x128xf32>
    %c0_52 = arith.constant 0 : index
    %c0_53 = arith.constant 0 : index
    %73 = vector.load %arg6[%c0_52, %c0_53] : memref<48x128xf32, #tpu.memory_space<vmem>>, vector<48x128xf32>
    tpu.vector_store %arg6[%c0_52, %c0_53], %72 {strides = array<i32>} : memref<48x128xf32, #tpu.memory_space<vmem>>, vector<48x128xf32>,
    return
  }
  func.func @transform_0(%arg0: i32) -> (i32, i32, i32) {
    %c0_i32 = arith.constant 0 : i32
    %c0_i32_0 = arith.constant 0 : i32
    %c0_i32_1 = arith.constant 0 : i32
    return %c0_i32, %c0_i32_0, %arg0 : i32, i32, i32
  }
  func.func @transform_1(%arg0: i32) -> (i32, i32, i32) {
    %c0_i32 = arith.constant 0 : i32
    %c0_i32_0 = arith.constant 0 : i32
    %c0_i32_1 = arith.constant 0 : i32
    %c0_i32_2 = arith.constant 0 : i32
    return %c0_i32, %c0_i32_0, %c0_i32_1 : i32, i32, i32
  }
  func.func @transform_2(%arg0: i32) -> (i32, i32) {
    %c0_i32 = arith.constant 0 : i32
    %c0_i32_0 = arith.constant 0 : i32
    %c0_i32_1 = arith.constant 0 : i32
    return %c0_i32, %c0_i32_0 : i32, i32
  }
  func.func @transform_3(%arg0: i32) -> (i32, i32) {
    %c0_i32 = arith.constant 0 : i32
    %c0_i32_0 = arith.constant 0 : i32
    %c0_i32_1 = arith.constant 0 : i32
    return %c0_i32, %c0_i32_0 : i32, i32
  }
  func.func @transform_4(%arg0: i32) -> (i32, i32) {
    %c0_i32 = arith.constant 0 : i32
    %c0_i32_0 = arith.constant 0 : i32
    %c0_i32_1 = arith.constant 0 : i32
    return %c0_i32, %c0_i32_0 : i32, i32
  }
  func.func @transform_5(%arg0: i32) -> (i32, i32) {
    %c0_i32 = arith.constant 0 : i32
    %c0_i32_0 = arith.constant 0 : i32
    return %c0_i32, %arg0 : i32, i32
  }
}

module attributes {stable_mosaic.version = 11 : i64} {
  func.func @_dw3x3_pw_bn_relu_kernel(%arg0: i32, %arg1: memref<9x96x128xf32, #tpu.memory_space<vmem>>, %arg2: memref<9x96x1xf32, #tpu.memory_space<vmem>>, %arg3: memref<96x1xf32, #tpu.memory_space<vmem>>, %arg4: memref<96x96xbf16, #tpu.memory_space<vmem>>, %arg5: memref<96x1xf32, #tpu.memory_space<vmem>>, %arg6: memref<96x128xf32, #tpu.memory_space<vmem>>) attributes {dimension_semantics = [#tpu.dimension_semantics<parallel>], iteration_bounds = array<i64: 1>, scalar_prefetch = 0 : i64, scratch_operands = 0 : i64, tpu.core_type = #tpu.core_type<tc>, window_params = [{transform_indices = @transform_0, window_bounds = array<i64: 9, 96, 128>}, {pipeline_mode = #tpu.pipeline_mode<synchronous>, transform_indices = @transform_1, window_bounds = array<i64: 9, 96, 1>}, {pipeline_mode = #tpu.pipeline_mode<synchronous>, transform_indices = @transform_2, window_bounds = array<i64: 96, 1>}, {pipeline_mode = #tpu.pipeline_mode<synchronous>, transform_indices = @transform_3, window_bounds = array<i64: 96, 96>}, {pipeline_mode = #tpu.pipeline_mode<synchronous>, transform_indices = @transform_4, window_bounds = array<i64: 96, 1>}, {transform_indices = @transform_5, window_bounds = array<i64: 96, 128>}]} {
    %c0 = arith.constant 0 : index
    %c0_0 = arith.constant 0 : index
    %c0_1 = arith.constant 0 : index
    %0 = vector.load %arg1[%c0, %c0_0, %c0_1] : memref<9x96x128xf32, #tpu.memory_space<vmem>>, vector<1x96x128xf32>
    %1 = vector.shape_cast %0 : vector<1x96x128xf32> to vector<96x128xf32>
    %c0_2 = arith.constant 0 : index
    %c0_3 = arith.constant 0 : index
    %c0_4 = arith.constant 0 : index
    %2 = vector.load %arg2[%c0_2, %c0_3, %c0_4] : memref<9x96x1xf32, #tpu.memory_space<vmem>>, vector<1x96x1xf32>
    %3 = vector.shape_cast %2 : vector<1x96x1xf32> to vector<96x1xf32>
    %4 = vector.broadcast %3 : vector<96x1xf32> to vector<96x128xf32>
    %5 = arith.mulf %1, %4 : vector<96x128xf32>
    %c1 = arith.constant 1 : index
    %c0_5 = arith.constant 0 : index
    %c0_6 = arith.constant 0 : index
    %6 = vector.load %arg1[%c1, %c0_5, %c0_6] : memref<9x96x128xf32, #tpu.memory_space<vmem>>, vector<1x96x128xf32>
    %7 = vector.shape_cast %6 : vector<1x96x128xf32> to vector<96x128xf32>
    %c1_7 = arith.constant 1 : index
    %c0_8 = arith.constant 0 : index
    %c0_9 = arith.constant 0 : index
    %8 = vector.load %arg2[%c1_7, %c0_8, %c0_9] : memref<9x96x1xf32, #tpu.memory_space<vmem>>, vector<1x96x1xf32>
    %9 = vector.shape_cast %8 : vector<1x96x1xf32> to vector<96x1xf32>
    %10 = vector.broadcast %9 : vector<96x1xf32> to vector<96x128xf32>
    %11 = arith.mulf %7, %10 : vector<96x128xf32>
    %12 = arith.addf %5, %11 : vector<96x128xf32>
    %c2 = arith.constant 2 : index
    %c0_10 = arith.constant 0 : index
    %c0_11 = arith.constant 0 : index
    %13 = vector.load %arg1[%c2, %c0_10, %c0_11] : memref<9x96x128xf32, #tpu.memory_space<vmem>>, vector<1x96x128xf32>
    %14 = vector.shape_cast %13 : vector<1x96x128xf32> to vector<96x128xf32>
    %c2_12 = arith.constant 2 : index
    %c0_13 = arith.constant 0 : index
    %c0_14 = arith.constant 0 : index
    %15 = vector.load %arg2[%c2_12, %c0_13, %c0_14] : memref<9x96x1xf32, #tpu.memory_space<vmem>>, vector<1x96x1xf32>
    %16 = vector.shape_cast %15 : vector<1x96x1xf32> to vector<96x1xf32>
    %17 = vector.broadcast %16 : vector<96x1xf32> to vector<96x128xf32>
    %18 = arith.mulf %14, %17 : vector<96x128xf32>
    %19 = arith.addf %12, %18 : vector<96x128xf32>
    %c3 = arith.constant 3 : index
    %c0_15 = arith.constant 0 : index
    %c0_16 = arith.constant 0 : index
    %20 = vector.load %arg1[%c3, %c0_15, %c0_16] : memref<9x96x128xf32, #tpu.memory_space<vmem>>, vector<1x96x128xf32>
    %21 = vector.shape_cast %20 : vector<1x96x128xf32> to vector<96x128xf32>
    %c3_17 = arith.constant 3 : index
    %c0_18 = arith.constant 0 : index
    %c0_19 = arith.constant 0 : index
    %22 = vector.load %arg2[%c3_17, %c0_18, %c0_19] : memref<9x96x1xf32, #tpu.memory_space<vmem>>, vector<1x96x1xf32>
    %23 = vector.shape_cast %22 : vector<1x96x1xf32> to vector<96x1xf32>
    %24 = vector.broadcast %23 : vector<96x1xf32> to vector<96x128xf32>
    %25 = arith.mulf %21, %24 : vector<96x128xf32>
    %26 = arith.addf %19, %25 : vector<96x128xf32>
    %c4 = arith.constant 4 : index
    %c0_20 = arith.constant 0 : index
    %c0_21 = arith.constant 0 : index
    %27 = vector.load %arg1[%c4, %c0_20, %c0_21] : memref<9x96x128xf32, #tpu.memory_space<vmem>>, vector<1x96x128xf32>
    %28 = vector.shape_cast %27 : vector<1x96x128xf32> to vector<96x128xf32>
    %c4_22 = arith.constant 4 : index
    %c0_23 = arith.constant 0 : index
    %c0_24 = arith.constant 0 : index
    %29 = vector.load %arg2[%c4_22, %c0_23, %c0_24] : memref<9x96x1xf32, #tpu.memory_space<vmem>>, vector<1x96x1xf32>
    %30 = vector.shape_cast %29 : vector<1x96x1xf32> to vector<96x1xf32>
    %31 = vector.broadcast %30 : vector<96x1xf32> to vector<96x128xf32>
    %32 = arith.mulf %28, %31 : vector<96x128xf32>
    %33 = arith.addf %26, %32 : vector<96x128xf32>
    %c5 = arith.constant 5 : index
    %c0_25 = arith.constant 0 : index
    %c0_26 = arith.constant 0 : index
    %34 = vector.load %arg1[%c5, %c0_25, %c0_26] : memref<9x96x128xf32, #tpu.memory_space<vmem>>, vector<1x96x128xf32>
    %35 = vector.shape_cast %34 : vector<1x96x128xf32> to vector<96x128xf32>
    %c5_27 = arith.constant 5 : index
    %c0_28 = arith.constant 0 : index
    %c0_29 = arith.constant 0 : index
    %36 = vector.load %arg2[%c5_27, %c0_28, %c0_29] : memref<9x96x1xf32, #tpu.memory_space<vmem>>, vector<1x96x1xf32>
    %37 = vector.shape_cast %36 : vector<1x96x1xf32> to vector<96x1xf32>
    %38 = vector.broadcast %37 : vector<96x1xf32> to vector<96x128xf32>
    %39 = arith.mulf %35, %38 : vector<96x128xf32>
    %40 = arith.addf %33, %39 : vector<96x128xf32>
    %c6 = arith.constant 6 : index
    %c0_30 = arith.constant 0 : index
    %c0_31 = arith.constant 0 : index
    %41 = vector.load %arg1[%c6, %c0_30, %c0_31] : memref<9x96x128xf32, #tpu.memory_space<vmem>>, vector<1x96x128xf32>
    %42 = vector.shape_cast %41 : vector<1x96x128xf32> to vector<96x128xf32>
    %c6_32 = arith.constant 6 : index
    %c0_33 = arith.constant 0 : index
    %c0_34 = arith.constant 0 : index
    %43 = vector.load %arg2[%c6_32, %c0_33, %c0_34] : memref<9x96x1xf32, #tpu.memory_space<vmem>>, vector<1x96x1xf32>
    %44 = vector.shape_cast %43 : vector<1x96x1xf32> to vector<96x1xf32>
    %45 = vector.broadcast %44 : vector<96x1xf32> to vector<96x128xf32>
    %46 = arith.mulf %42, %45 : vector<96x128xf32>
    %47 = arith.addf %40, %46 : vector<96x128xf32>
    %c7 = arith.constant 7 : index
    %c0_35 = arith.constant 0 : index
    %c0_36 = arith.constant 0 : index
    %48 = vector.load %arg1[%c7, %c0_35, %c0_36] : memref<9x96x128xf32, #tpu.memory_space<vmem>>, vector<1x96x128xf32>
    %49 = vector.shape_cast %48 : vector<1x96x128xf32> to vector<96x128xf32>
    %c7_37 = arith.constant 7 : index
    %c0_38 = arith.constant 0 : index
    %c0_39 = arith.constant 0 : index
    %50 = vector.load %arg2[%c7_37, %c0_38, %c0_39] : memref<9x96x1xf32, #tpu.memory_space<vmem>>, vector<1x96x1xf32>
    %51 = vector.shape_cast %50 : vector<1x96x1xf32> to vector<96x1xf32>
    %52 = vector.broadcast %51 : vector<96x1xf32> to vector<96x128xf32>
    %53 = arith.mulf %49, %52 : vector<96x128xf32>
    %54 = arith.addf %47, %53 : vector<96x128xf32>
    %c8 = arith.constant 8 : index
    %c0_40 = arith.constant 0 : index
    %c0_41 = arith.constant 0 : index
    %55 = vector.load %arg1[%c8, %c0_40, %c0_41] : memref<9x96x128xf32, #tpu.memory_space<vmem>>, vector<1x96x128xf32>
    %56 = vector.shape_cast %55 : vector<1x96x128xf32> to vector<96x128xf32>
    %c8_42 = arith.constant 8 : index
    %c0_43 = arith.constant 0 : index
    %c0_44 = arith.constant 0 : index
    %57 = vector.load %arg2[%c8_42, %c0_43, %c0_44] : memref<9x96x1xf32, #tpu.memory_space<vmem>>, vector<1x96x1xf32>
    %58 = vector.shape_cast %57 : vector<1x96x1xf32> to vector<96x1xf32>
    %59 = vector.broadcast %58 : vector<96x1xf32> to vector<96x128xf32>
    %60 = arith.mulf %56, %59 : vector<96x128xf32>
    %61 = arith.addf %54, %60 : vector<96x128xf32>
    %c0_45 = arith.constant 0 : index
    %c0_46 = arith.constant 0 : index
    %62 = vector.load %arg3[%c0_45, %c0_46] : memref<96x1xf32, #tpu.memory_space<vmem>>, vector<96x1xf32>
    %63 = vector.broadcast %62 : vector<96x1xf32> to vector<96x128xf32>
    %64 = arith.addf %61, %63 : vector<96x128xf32>
    %c0_47 = arith.constant 0 : index
    %c0_48 = arith.constant 0 : index
    %65 = vector.load %arg4[%c0_47, %c0_48] : memref<96x96xbf16, #tpu.memory_space<vmem>>, vector<96x96xbf16>
    %66 = arith.truncf %64 : vector<96x128xf32> to vector<96x128xbf16>
    %cst = arith.constant dense<0.000000e+00> : vector<96x128xf32>
    %67 = tpu.matmul %65, %66, %cst {dimension_numbers = #tpu.dot_dimension_numbers<[1], [0], [0], [1], [0, 0, 1, 1], [], []>} : vector<96x96xbf16>, vector<96x128xbf16>, vector<96x128xf32> -> vector<96x128xf32>
    %c0_49 = arith.constant 0 : index
    %c0_50 = arith.constant 0 : index
    %68 = vector.load %arg5[%c0_49, %c0_50] : memref<96x1xf32, #tpu.memory_space<vmem>>, vector<96x1xf32>
    %69 = vector.broadcast %68 : vector<96x1xf32> to vector<96x128xf32>
    %70 = arith.addf %67, %69 : vector<96x128xf32>
    %cst_51 = arith.constant 0.000000e+00 : f32
    %71 = vector.broadcast %cst_51 : f32 to vector<96x128xf32>
    %72 = arith.maximumf %70, %71 : vector<96x128xf32>
    %c0_52 = arith.constant 0 : index
    %c0_53 = arith.constant 0 : index
    %73 = vector.load %arg6[%c0_52, %c0_53] : memref<96x128xf32, #tpu.memory_space<vmem>>, vector<96x128xf32>
    tpu.vector_store %arg6[%c0_52, %c0_53], %72 {strides = array<i32>} : memref<96x128xf32, #tpu.memory_space<vmem>>, vector<96x128xf32>,
    return
  }
  func.func @transform_0(%arg0: i32) -> (i32, i32, i32) {
    %c0_i32 = arith.constant 0 : i32
    %c0_i32_0 = arith.constant 0 : i32
    %c0_i32_1 = arith.constant 0 : i32
    return %c0_i32, %c0_i32_0, %arg0 : i32, i32, i32
  }
  func.func @transform_1(%arg0: i32) -> (i32, i32, i32) {
    %c0_i32 = arith.constant 0 : i32
    %c0_i32_0 = arith.constant 0 : i32
    %c0_i32_1 = arith.constant 0 : i32
    %c0_i32_2 = arith.constant 0 : i32
    return %c0_i32, %c0_i32_0, %c0_i32_1 : i32, i32, i32
  }
  func.func @transform_2(%arg0: i32) -> (i32, i32) {
    %c0_i32 = arith.constant 0 : i32
    %c0_i32_0 = arith.constant 0 : i32
    %c0_i32_1 = arith.constant 0 : i32
    return %c0_i32, %c0_i32_0 : i32, i32
  }
  func.func @transform_3(%arg0: i32) -> (i32, i32) {
    %c0_i32 = arith.constant 0 : i32
    %c0_i32_0 = arith.constant 0 : i32
    %c0_i32_1 = arith.constant 0 : i32
    return %c0_i32, %c0_i32_0 : i32, i32
  }
  func.func @transform_4(%arg0: i32) -> (i32, i32) {
    %c0_i32 = arith.constant 0 : i32
    %c0_i32_0 = arith.constant 0 : i32
    %c0_i32_1 = arith.constant 0 : i32
    return %c0_i32, %c0_i32_0 : i32, i32
  }
  func.func @transform_5(%arg0: i32) -> (i32, i32) {
    %c0_i32 = arith.constant 0 : i32
    %c0_i32_0 = arith.constant 0 : i32
    return %c0_i32, %arg0 : i32, i32
  }
}

module attributes {stable_mosaic.version = 11 : i64} {
  func.func @_matmul_bias_act_kernel(%arg0: i32, %arg1: memref<96x128xbf16, #tpu.memory_space<vmem>>, %arg2: memref<96x96xbf16, #tpu.memory_space<vmem>>, %arg3: memref<96x1xf32, #tpu.memory_space<vmem>>, %arg4: memref<96x128xf32, #tpu.memory_space<vmem>>) attributes {dimension_semantics = [#tpu.dimension_semantics<parallel>], iteration_bounds = array<i64: 1>, scalar_prefetch = 0 : i64, scratch_operands = 0 : i64, tpu.core_type = #tpu.core_type<tc>, window_params = [{transform_indices = @transform_0, window_bounds = array<i64: 96, 128>}, {pipeline_mode = #tpu.pipeline_mode<synchronous>, transform_indices = @transform_1, window_bounds = array<i64: 96, 96>}, {pipeline_mode = #tpu.pipeline_mode<synchronous>, transform_indices = @transform_2, window_bounds = array<i64: 96, 1>}, {transform_indices = @transform_3, window_bounds = array<i64: 96, 128>}]} {
    %c0 = arith.constant 0 : index
    %c0_0 = arith.constant 0 : index
    %0 = vector.load %arg2[%c0, %c0_0] : memref<96x96xbf16, #tpu.memory_space<vmem>>, vector<96x96xbf16>
    %c0_1 = arith.constant 0 : index
    %c0_2 = arith.constant 0 : index
    %1 = vector.load %arg1[%c0_1, %c0_2] : memref<96x128xbf16, #tpu.memory_space<vmem>>, vector<96x128xbf16>
    %cst = arith.constant dense<0.000000e+00> : vector<96x128xf32>
    %2 = tpu.matmul %0, %1, %cst {dimension_numbers = #tpu.dot_dimension_numbers<[1], [0], [0], [1], [0, 0, 1, 1], [], []>} : vector<96x96xbf16>, vector<96x128xbf16>, vector<96x128xf32> -> vector<96x128xf32>
    %c0_3 = arith.constant 0 : index
    %c0_4 = arith.constant 0 : index
    %3 = vector.load %arg3[%c0_3, %c0_4] : memref<96x1xf32, #tpu.memory_space<vmem>>, vector<96x1xf32>
    %4 = vector.broadcast %3 : vector<96x1xf32> to vector<96x128xf32>
    %5 = arith.addf %2, %4 : vector<96x128xf32>
    %cst_5 = arith.constant 0.000000e+00 : f32
    %6 = vector.broadcast %cst_5 : f32 to vector<96x128xf32>
    %7 = arith.maximumf %5, %6 : vector<96x128xf32>
    %c0_6 = arith.constant 0 : index
    %c0_7 = arith.constant 0 : index
    %8 = vector.load %arg4[%c0_6, %c0_7] : memref<96x128xf32, #tpu.memory_space<vmem>>, vector<96x128xf32>
    tpu.vector_store %arg4[%c0_6, %c0_7], %7 {strides = array<i32>} : memref<96x128xf32, #tpu.memory_space<vmem>>, vector<96x128xf32>,
    return
  }
  func.func @transform_0(%arg0: i32) -> (i32, i32) {
    %c0_i32 = arith.constant 0 : i32
    %c0_i32_0 = arith.constant 0 : i32
    return %c0_i32, %arg0 : i32, i32
  }
  func.func @transform_1(%arg0: i32) -> (i32, i32) {
    %c0_i32 = arith.constant 0 : i32
    %c0_i32_0 = arith.constant 0 : i32
    %c0_i32_1 = arith.constant 0 : i32
    return %c0_i32, %c0_i32_0 : i32, i32
  }
  func.func @transform_2(%arg0: i32) -> (i32, i32) {
    %c0_i32 = arith.constant 0 : i32
    %c0_i32_0 = arith.constant 0 : i32
    %c0_i32_1 = arith.constant 0 : i32
    return %c0_i32, %c0_i32_0 : i32, i32
  }
  func.func @transform_3(%arg0: i32) -> (i32, i32) {
    %c0_i32 = arith.constant 0 : i32
    %c0_i32_0 = arith.constant 0 : i32
    return %c0_i32, %arg0 : i32, i32
  }
}

module attributes {stable_mosaic.version = 11 : i64} {
  func.func @_matmul_bias_act_kernel(%arg0: i32, %arg1: memref<192x128xbf16, #tpu.memory_space<vmem>>, %arg2: memref<1024x192xbf16, #tpu.memory_space<vmem>>, %arg3: memref<1024x1xf32, #tpu.memory_space<vmem>>, %arg4: memref<1024x128xf32, #tpu.memory_space<vmem>>) attributes {dimension_semantics = [#tpu.dimension_semantics<parallel>], iteration_bounds = array<i64: 1>, scalar_prefetch = 0 : i64, scratch_operands = 0 : i64, tpu.core_type = #tpu.core_type<tc>, window_params = [{transform_indices = @transform_0, window_bounds = array<i64: 192, 128>}, {pipeline_mode = #tpu.pipeline_mode<synchronous>, transform_indices = @transform_1, window_bounds = array<i64: 1024, 192>}, {pipeline_mode = #tpu.pipeline_mode<synchronous>, transform_indices = @transform_2, window_bounds = array<i64: 1024, 1>}, {transform_indices = @transform_3, window_bounds = array<i64: 1024, 128>}]} {
    %c0 = arith.constant 0 : index
    %c0_0 = arith.constant 0 : index
    %0 = vector.load %arg2[%c0, %c0_0] : memref<1024x192xbf16, #tpu.memory_space<vmem>>, vector<1024x192xbf16>
    %c0_1 = arith.constant 0 : index
    %c0_2 = arith.constant 0 : index
    %1 = vector.load %arg1[%c0_1, %c0_2] : memref<192x128xbf16, #tpu.memory_space<vmem>>, vector<192x128xbf16>
    %cst = arith.constant dense<0.000000e+00> : vector<1024x128xf32>
    %2 = tpu.matmul %0, %1, %cst {dimension_numbers = #tpu.dot_dimension_numbers<[1], [0], [0], [1], [0, 0, 1, 1], [], []>} : vector<1024x192xbf16>, vector<192x128xbf16>, vector<1024x128xf32> -> vector<1024x128xf32>
    %c0_3 = arith.constant 0 : index
    %c0_4 = arith.constant 0 : index
    %3 = vector.load %arg3[%c0_3, %c0_4] : memref<1024x1xf32, #tpu.memory_space<vmem>>, vector<1024x1xf32>
    %4 = vector.broadcast %3 : vector<1024x1xf32> to vector<1024x128xf32>
    %5 = arith.addf %2, %4 : vector<1024x128xf32>
    %cst_5 = arith.constant 0.000000e+00 : f32
    %6 = vector.broadcast %cst_5 : f32 to vector<1024x128xf32>
    %7 = arith.maximumf %5, %6 : vector<1024x128xf32>
    %c0_6 = arith.constant 0 : index
    %c0_7 = arith.constant 0 : index
    %8 = vector.load %arg4[%c0_6, %c0_7] : memref<1024x128xf32, #tpu.memory_space<vmem>>, vector<1024x128xf32>
    tpu.vector_store %arg4[%c0_6, %c0_7], %7 {strides = array<i32>} : memref<1024x128xf32, #tpu.memory_space<vmem>>, vector<1024x128xf32>,
    return
  }
  func.func @transform_0(%arg0: i32) -> (i32, i32) {
    %c0_i32 = arith.constant 0 : i32
    %c0_i32_0 = arith.constant 0 : i32
    return %c0_i32, %arg0 : i32, i32
  }
  func.func @transform_1(%arg0: i32) -> (i32, i32) {
    %c0_i32 = arith.constant 0 : i32
    %c0_i32_0 = arith.constant 0 : i32
    %c0_i32_1 = arith.constant 0 : i32
    return %c0_i32, %c0_i32_0 : i32, i32
  }
  func.func @transform_2(%arg0: i32) -> (i32, i32) {
    %c0_i32 = arith.constant 0 : i32
    %c0_i32_0 = arith.constant 0 : i32
    %c0_i32_1 = arith.constant 0 : i32
    return %c0_i32, %c0_i32_0 : i32, i32
  }
  func.func @transform_3(%arg0: i32) -> (i32, i32) {
    %c0_i32 = arith.constant 0 : i32
    %c0_i32_0 = arith.constant 0 : i32
    return %c0_i32, %arg0 : i32, i32
  }
}

module attributes {stable_mosaic.version = 11 : i64} {
  func.func @_matmul_bias_act_kernel(%arg0: i32, %arg1: memref<1024x128xbf16, #tpu.memory_space<vmem>>, %arg2: memref<16x1024xbf16, #tpu.memory_space<vmem>>, %arg3: memref<16x1xf32, #tpu.memory_space<vmem>>, %arg4: memref<16x128xf32, #tpu.memory_space<vmem>>) attributes {dimension_semantics = [#tpu.dimension_semantics<parallel>], iteration_bounds = array<i64: 1>, scalar_prefetch = 0 : i64, scratch_operands = 0 : i64, tpu.core_type = #tpu.core_type<tc>, window_params = [{transform_indices = @transform_0, window_bounds = array<i64: 1024, 128>}, {pipeline_mode = #tpu.pipeline_mode<synchronous>, transform_indices = @transform_1, window_bounds = array<i64: 16, 1024>}, {pipeline_mode = #tpu.pipeline_mode<synchronous>, transform_indices = @transform_2, window_bounds = array<i64: 16, 1>}, {transform_indices = @transform_3, window_bounds = array<i64: 16, 128>}]} {
    %c0 = arith.constant 0 : index
    %c0_0 = arith.constant 0 : index
    %0 = vector.load %arg2[%c0, %c0_0] : memref<16x1024xbf16, #tpu.memory_space<vmem>>, vector<16x1024xbf16>
    %c0_1 = arith.constant 0 : index
    %c0_2 = arith.constant 0 : index
    %1 = vector.load %arg1[%c0_1, %c0_2] : memref<1024x128xbf16, #tpu.memory_space<vmem>>, vector<1024x128xbf16>
    %cst = arith.constant dense<0.000000e+00> : vector<16x128xf32>
    %2 = tpu.matmul %0, %1, %cst {dimension_numbers = #tpu.dot_dimension_numbers<[1], [0], [0], [1], [0, 0, 1, 1], [], []>} : vector<16x1024xbf16>, vector<1024x128xbf16>, vector<16x128xf32> -> vector<16x128xf32>
    %c0_3 = arith.constant 0 : index
    %c0_4 = arith.constant 0 : index
    %3 = vector.load %arg3[%c0_3, %c0_4] : memref<16x1xf32, #tpu.memory_space<vmem>>, vector<16x1xf32>
    %4 = vector.broadcast %3 : vector<16x1xf32> to vector<16x128xf32>
    %5 = arith.addf %2, %4 : vector<16x128xf32>
    %c0_5 = arith.constant 0 : index
    %c0_6 = arith.constant 0 : index
    %6 = vector.load %arg4[%c0_5, %c0_6] : memref<16x128xf32, #tpu.memory_space<vmem>>, vector<16x128xf32>
    tpu.vector_store %arg4[%c0_5, %c0_6], %5 {strides = array<i32>} : memref<16x128xf32, #tpu.memory_space<vmem>>, vector<16x128xf32>,
    return
  }
  func.func @transform_0(%arg0: i32) -> (i32, i32) {
    %c0_i32 = arith.constant 0 : i32
    %c0_i32_0 = arith.constant 0 : i32
    return %c0_i32, %arg0 : i32, i32
  }
  func.func @transform_1(%arg0: i32) -> (i32, i32) {
    %c0_i32 = arith.constant 0 : i32
    %c0_i32_0 = arith.constant 0 : i32
    %c0_i32_1 = arith.constant 0 : i32
    return %c0_i32, %c0_i32_0 : i32, i32
  }
  func.func @transform_2(%arg0: i32) -> (i32, i32) {
    %c0_i32 = arith.constant 0 : i32
    %c0_i32_0 = arith.constant 0 : i32
    %c0_i32_1 = arith.constant 0 : i32
    return %c0_i32, %c0_i32_0 : i32, i32
  }
  func.func @transform_3(%arg0: i32) -> (i32, i32) {
    %c0_i32 = arith.constant 0 : i32
    %c0_i32_0 = arith.constant 0 : i32
    return %c0_i32, %arg0 : i32, i32
  }
}

</mosaic_0001>

<llo_original>
// kernel: _lambda_.39
$region0: #{_lambda_.39}
  #allocation0 [shape = 'u32[]', space=smem, size = 0x4, offset = 0x4, fixed_abs, tag = 'smem constant byte address 0x4 - core index']
  #allocation1 [shape = 'u32[144,128]{1,0:T(1,128)}', space=vmem, size = 0x12000, scoped, tag = 'internal scratch']
  %s0 = inlined_call_operand.vmem [shape: bf16[32,512], index: 0, kind: input, shape index: {}]
  %s1 = inlined_call_operand.vmem [shape: bf16[24,32], index: 1, kind: input, shape index: {}]
  %s2 = inlined_call_operand.vmem [shape: f32[24,1], index: 2, kind: input, shape index: {}]
  %s3 = inlined_call_operand.vmem [shape: f32[24,512], index: 3, kind: output, shape index: {}]
  %s4 = sld [smem:[#allocation0]]
  $region22: #{_lambda_.39} parent=0
    _
  %s6 = ssub.s32 1, %s4
  %s7 = scalar_select 0, %s6, %s4
  // Predicated region
  $region2: #{_lambda_.39} parent=0 // pred_check
    _
  $region3: #{_lambda_.39} parent=0 // pred_check_branch
    %9 = sbr.rel (0) target = $region5
  $region4: #{_lambda_.39} parent=0 // pred_region
    _
  $region5: #{_lambda_.39} parent=0 // pred_fallthru
    _
  // Predicated region
  $region6: #{_lambda_.39} parent=0 // pred_check
    _
  $region7: #{_lambda_.39} parent=0 // pred_check_branch
    %11 = sbr.rel (0) target = $region9
  $region8: #{_lambda_.39} parent=0 // pred_region
    _
  $region9: #{_lambda_.39} parent=0 // pred_fallthru
    _
  // Predicated region
  $region10: #{_lambda_.39} parent=0 // pred_check
    _
  $region11: #{_lambda_.39} parent=0 // pred_check_branch
    %13 = sbr.rel (0) target = $region13
  $region12: #{_lambda_.39} parent=0 // pred_region
    _
  $region13: #{_lambda_.39} parent=0 // pred_fallthru
    _
  %v15 = vld [vmem:[%s1] sm:$0xf]
  %v16 = vld [vmem:[%s1 + $0x4] sm:$0xf]
  %v17 = vld [vmem:[%s1 + $0x8] sm:$0xf]
  %v18 = vld [vmem:[%s0] sm:$0xff]
  %v19 = vld [vmem:[%s0 + $0x8] sm:$0xff]
  %v20 = vld [vmem:[%s0 + $0x10] sm:$0xff]
  %v21 = vld [vmem:[%s0 + $0x18] sm:$0xff]
  %v22 = vld [vmem:[%s0 + $0x20] sm:$0xff]
  %v23 = vld [vmem:[%s0 + $0x28] sm:$0xff]
  %v24 = vld [vmem:[%s0 + $0x30] sm:$0xff]
  %v25 = vld [vmem:[%s0 + $0x38] sm:$0xff]
  %v26 = vld [vmem:[%s2] sm:$0xff]
  %v27 = vld [vmem:[%s2 + $0x8] sm:$0xff]
  %v28 = vld [vmem:[%s2 + $0x10] sm:$0xff]
  %30 = vset.pattern.permute.xlu0 0
  %31 = vperm.xlu0 %30, %v26
  %v32 = vpop.permute.xlu0 %31
  %35 = vset.pattern.permute.xlu0 0
  %36 = vperm.xlu0 %35, %v27
  %v37 = vpop.permute.xlu0 %36
  %40 = vset.pattern.permute.xlu0 0
  %41 = vperm.xlu0 %40, %v28
  %v42 = vpop.permute.xlu0 %41
  %v47 = vunpack.c.l.b16 %v15
  %v48 = vunpack.c.l.b16 %v16
  %v49 = vunpack.c.l.b16 %v17
  %v50 = vpack.c.b16 %v48, %v47
  %v51 = vpack.c.b16 %v49, %v49
  %v60 = vunpack.c.l.b16 %v18
  %v61 = vunpack.c.h.b16 %v18
  %v62 = vunpack.c.l.b16 %v19
  %v63 = vunpack.c.h.b16 %v19
  %v64 = vunpack.c.l.b16 %v20
  %v65 = vunpack.c.h.b16 %v20
  %v66 = vunpack.c.l.b16 %v21
  %v67 = vunpack.c.h.b16 %v21
  %v68 = vunpack.c.l.b16 %v22
  %v69 = vunpack.c.h.b16 %v22
  %v70 = vunpack.c.l.b16 %v23
  %v71 = vunpack.c.h.b16 %v23
  %v72 = vunpack.c.l.b16 %v24
  %v73 = vunpack.c.h.b16 %v24
  %v74 = vunpack.c.l.b16 %v25
  %v75 = vunpack.c.h.b16 %v25
  %v76 = vpack.c.b16 %v64, %v60
  %v77 = vpack.c.b16 %v65, %v61
  %v78 = vpack.c.b16 %v66, %v62
  %v79 = vpack.c.b16 %v67, %v63
  %v80 = vpack.c.b16 %v72, %v68
  %v81 = vpack.c.b16 %v73, %v69
  %v82 = vpack.c.b16 %v74, %v70
  %v83 = vpack.c.b16 %v75, %v71
  %vm92 = vcmask 261120
  %v94 = vsel %vm92, %v50, 0
  %v97 = vsel %vm92, %v51, 0
  %99 = vmatprep.subr.bf16.mxu0 %v77
  %100 = vmatpush1.bf16.msra.mxu0 %v76
  %101 = vmatprep.subr.bf16.mxu0 %v81
  %102 = vmatpush1.bf16.msra.mxu0 %v80
  %103 = vmatprep.subr.bf16.mxu0 0
  %104 = vmatpush1.bf16.msra.mxu0 0
  %105 = vmatprep.subr.bf16.mxu0 0
  %106 = vmatpush1.bf16.msra.mxu0 0
  %107 = vmatprep.subr.bf16.mxu0 0
  %108 = vmatpush1.bf16.msra.mxu0 0
  %109 = vmatprep.subr.bf16.mxu0 0
  %110 = vmatpush1.bf16.msra.mxu0 0
  %111 = vmatprep.subr.bf16.mxu0 0
  %112 = vmatpush1.bf16.msra.mxu0 0
  %113 = vmatprep.subr.bf16.mxu0 0
  %114 = vmatpush1.bf16.msra.mxu0 0
  %115 = vmatprep.subr.bf16.mxu0 0
  %116 = vmatpush1.bf16.msra.mxu0 0
  %117 = vmatprep.subr.bf16.mxu0 0
  %118 = vmatpush1.bf16.msra.mxu0 0
  %119 = vmatprep.subr.bf16.mxu0 0
  %120 = vmatpush1.bf16.msra.mxu0 0
  %121 = vmatprep.subr.bf16.mxu0 0
  %122 = vmatpush1.bf16.msra.mxu0 0
  %123 = vmatprep.subr.bf16.mxu0 0
  %124 = vmatpush1.bf16.msra.mxu0 0
  %125 = vmatprep.subr.bf16.mxu0 0
  %126 = vmatpush1.bf16.msra.mxu0 0
  %127 = vmatprep.subr.bf16.mxu0 0
  %128 = vmatpush1.bf16.msra.mxu0 0
  %129 = vmatprep.subr.bf16.mxu0 0
  %130 = vmatpush1.bf16.msra.mxu0 0
  %131 = vmatprep.mubr.bf16.mxu0 0
  %132 = vmatmul.mubr.bf16.gmra.mrb[0].mxu0 %v94
  %v133 = vpop.f32.mrb[0].mxu0
  %v134 = vadd.f32 %v32, %v133
  %v135 = vpop.f32.mrb[0].mxu0
  %v136 = vadd.f32 %v32, %v135
  %v137 = vpop.f32.mrb[0].mxu0
  %v138 = vadd.f32 %v37, %v137
  %v139 = vpop.f32.mrb[0].mxu0
  %v140 = vadd.f32 %v37, %v139
  %141 = vmatprep.mubr.bf16.mxu0 0
  %142 = vmatmul.mubr.bf16.gmra.mrb[0].mxu0 %v97
  %v143 = vpop.f32.mrb[0].mxu0
  %v144 = vadd.f32 %v42, %v143
  %v145 = vpop.f32.mrb[0].mxu0
  %v146 = vadd.f32 %v42, %v145
  %v147 = vpop.f32.mrb[0].mxu0
  %v148 = vpop.f32.mrb[0].mxu0
  %149 = vdwg.mxu0
  %150 = vmatprep.subr.bf16.mxu0 %v79
  %151 = vmatpush1.bf16.msra.mxu0 %v78
  %152 = vmatprep.subr.bf16.mxu0 %v83
  %153 = vmatpush1.bf16.msra.mxu0 %v82
  %154 = vmatprep.subr.bf16.mxu0 0
  %155 = vmatpush1.bf16.msra.mxu0 0
  %156 = vmatprep.subr.bf16.mxu0 0
  %157 = vmatpush1.bf16.msra.mxu0 0
  %158 = vmatprep.subr.bf16.mxu0 0
  %159 = vmatpush1.bf16.msra.mxu0 0
  %160 = vmatprep.subr.bf16.mxu0 0
  %161 = vmatpush1.bf16.msra.mxu0 0
  %162 = vmatprep.subr.bf16.mxu0 0
  %163 = vmatpush1.bf16.msra.mxu0 0
  %164 = vmatprep.subr.bf16.mxu0 0
  %165 = vmatpush1.bf16.msra.mxu0 0
  %166 = vmatprep.subr.bf16.mxu0 0
  %167 = vmatpush1.bf16.msra.mxu0 0
  %168 = vmatprep.subr.bf16.mxu0 0
  %169 = vmatpush1.bf16.msra.mxu0 0
  %170 = vmatprep.subr.bf16.mxu0 0
  %171 = vmatpush1.bf16.msra.mxu0 0
  %172 = vmatprep.subr.bf16.mxu0 0
  %173 = vmatpush1.bf16.msra.mxu0 0
  %174 = vmatprep.subr.bf16.mxu0 0
  %175 = vmatpush1.bf16.msra.mxu0 0
  %176 = vmatprep.subr.bf16.mxu0 0
  %177 = vmatpush1.bf16.msra.mxu0 0
  %178 = vmatprep.subr.bf16.mxu0 0
  %179 = vmatpush1.bf16.msra.mxu0 0
  %180 = vmatprep.subr.bf16.mxu0 0
  %181 = vmatpush1.bf16.msra.mxu0 0
  %182 = vmatprep.mubr.bf16.mxu0 0
  %183 = vmatmul.mubr.bf16.gmra.mrb[0].mxu0 %v94
  %v184 = vpop.f32.mrb[0].mxu0
  %v185 = vadd.f32 %v32, %v184
  %v186 = vpop.f32.mrb[0].mxu0
  %v187 = vadd.f32 %v32, %v186
  %v188 = vpop.f32.mrb[0].mxu0
  %v189 = vadd.f32 %v37, %v188
  %v190 = vpop.f32.mrb[0].mxu0
  %v191 = vadd.f32 %v37, %v190
  %192 = vmatprep.mubr.bf16.mxu0 0
  %193 = vmatmul.mubr.bf16.gmra.mrb[0].mxu0 %v97
  %v194 = vpop.f32.mrb[0].mxu0
  %v195 = vadd.f32 %v42, %v194
  %v196 = vpop.f32.mrb[0].mxu0
  %v197 = vadd.f32 %v42, %v196
  %v198 = vpop.f32.mrb[0].mxu0
  %v199 = vpop.f32.mrb[0].mxu0
  %200 = vdwg.mxu0
  %v201 = vmax.f32 %v134, 0.0
  %v202 = vmax.f32 %v136, 0.0
  %v203 = vmax.f32 %v185, 0.0
  %v204 = vmax.f32 %v187, 0.0
  %v205 = vmax.f32 %v138, 0.0
  %v206 = vmax.f32 %v140, 0.0
  %v207 = vmax.f32 %v189, 0.0
  %v208 = vmax.f32 %v191, 0.0
  %v209 = vmax.f32 %v144, 0.0
  %v210 = vmax.f32 %v146, 0.0
  %v211 = vmax.f32 %v195, 0.0
  %v212 = vmax.f32 %v197, 0.0
  %213 = vst [vmem:[%s3] sm:$0xff] %v201
  %214 = vst [vmem:[%s3 + $0x8] sm:$0xff] %v202
  %215 = vst [vmem:[%s3 + $0x10] sm:$0xff] %v203
  %216 = vst [vmem:[%s3 + $0x18] sm:$0xff] %v204
  %217 = vst [vmem:[%s3 + $0x20] sm:$0xff] %v205
  %218 = vst [vmem:[%s3 + $0x28] sm:$0xff] %v206
  %219 = vst [vmem:[%s3 + $0x30] sm:$0xff] %v207
  %220 = vst [vmem:[%s3 + $0x38] sm:$0xff] %v208
  %221 = vst [vmem:[%s3 + $0x40] sm:$0xff] %v209
  %222 = vst [vmem:[%s3 + $0x48] sm:$0xff] %v210
  %223 = vst [vmem:[%s3 + $0x50] sm:$0xff] %v211
  %224 = vst [vmem:[%s3 + $0x58] sm:$0xff] %v212
  // Predicated region
  $region14: #{_lambda_.39} parent=0 // pred_check
    _
  $region15: #{_lambda_.39} parent=0 // pred_check_branch
    %226 = sbr.rel (0) target = $region17
  $region16: #{_lambda_.39} parent=0 // pred_region
    _
  $region17: #{_lambda_.39} parent=0 // pred_fallthru
    _
  // Predicated region
  $region18: #{_lambda_.39} parent=0 // pred_check
    _
  $region19: #{_lambda_.39} parent=0 // pred_check_branch
    %228 = sbr.rel (0) target = $region21
  $region20: #{_lambda_.39} parent=0 // pred_region
    _
  $region21: #{_lambda_.39} parent=0 // pred_fallthru
    _

// kernel: _lambda_.40
$region0: #{_lambda_.40}
  #allocation0 [shape = 'u32[]', space=smem, size = 0x4, offset = 0x4, fixed_abs, tag = 'smem constant byte address 0x4 - core index']
  #allocation1 [shape = 'u32[144,128]{1,0:T(1,128)}', space=vmem, size = 0x12000, scoped, tag = 'internal scratch']
  %s0 = inlined_call_operand.vmem [shape: f32[9,24,128], index: 0, kind: input, shape index: {}]
  %s1 = inlined_call_operand.vmem [shape: f32[24,128], index: 1, kind: output, shape index: {}]
  %s2 = sld [smem:[#allocation0]]
  $region14: #{_lambda_.40} parent=0
    _
  %s4 = ssub.s32 1, %s2
  %s5 = scalar_select 0, %s4, %s2
  // Predicated region
  $region2: #{_lambda_.40} parent=0 // pred_check
    _
  $region3: #{_lambda_.40} parent=0 // pred_check_branch
    %7 = sbr.rel (0) target = $region5
  $region4: #{_lambda_.40} parent=0 // pred_region
    _
  $region5: #{_lambda_.40} parent=0 // pred_fallthru
    _
  %v8 = vld [vmem:[%s0] sm:$0xff]
  %v9 = vld [vmem:[%s0 + $0x8] sm:$0xff]
  %v10 = vld [vmem:[%s0 + $0x10] sm:$0xff]
  %s11 = scalar_lea.vmem %s0, 24
  %v12 = vld [vmem:[%s11] sm:$0xff]
  %v13 = vld [vmem:[%s11 + $0x8] sm:$0xff]
  %v14 = vld [vmem:[%s11 + $0x10] sm:$0xff]
  %v15 = vmax.f32 %v8, %v12
  %v16 = vmax.f32 %v9, %v13
  %v17 = vmax.f32 %v10, %v14
  %s18 = scalar_lea.vmem %s0, 48
  %v19 = vld [vmem:[%s18] sm:$0xff]
  %v20 = vld [vmem:[%s18 + $0x8] sm:$0xff]
  %v21 = vld [vmem:[%s18 + $0x10] sm:$0xff]
  %v22 = vmax.f32 %v15, %v19
  %v23 = vmax.f32 %v16, %v20
  %v24 = vmax.f32 %v17, %v21
  %s25 = scalar_lea.vmem %s0, 72
  %v26 = vld [vmem:[%s25] sm:$0xff]
  %v27 = vld [vmem:[%s25 + $0x8] sm:$0xff]
  %v28 = vld [vmem:[%s25 + $0x10] sm:$0xff]
  %v29 = vmax.f32 %v22, %v26
  %v30 = vmax.f32 %v23, %v27
  %v31 = vmax.f32 %v24, %v28
  %s32 = scalar_lea.vmem %s0, 96
  %v33 = vld [vmem:[%s32] sm:$0xff]
  %v34 = vld [vmem:[%s32 + $0x8] sm:$0xff]
  %v35 = vld [vmem:[%s32 + $0x10] sm:$0xff]
  %v36 = vmax.f32 %v29, %v33
  %v37 = vmax.f32 %v30, %v34
  %v38 = vmax.f32 %v31, %v35
  %s39 = scalar_lea.vmem %s0, 120
  %v40 = vld [vmem:[%s39] sm:$0xff]
  %v41 = vld [vmem:[%s39 + $0x8] sm:$0xff]
  %v42 = vld [vmem:[%s39 + $0x10] sm:$0xff]
  %v43 = vmax.f32 %v36, %v40
  %v44 = vmax.f32 %v37, %v41
  %v45 = vmax.f32 %v38, %v42
  %s46 = scalar_lea.vmem %s0, 144
  %v47 = vld [vmem:[%s46] sm:$0xff]
  %v48 = vld [vmem:[%s46 + $0x8] sm:$0xff]
  %v49 = vld [vmem:[%s46 + $0x10] sm:$0xff]
  %v50 = vmax.f32 %v43, %v47
  %v51 = vmax.f32 %v44, %v48
  %v52 = vmax.f32 %v45, %v49
  %s53 = scalar_lea.vmem %s0, 168
  %v54 = vld [vmem:[%s53] sm:$0xff]
  %v55 = vld [vmem:[%s53 + $0x8] sm:$0xff]
  %v56 = vld [vmem:[%s53 + $0x10] sm:$0xff]
  %v57 = vmax.f32 %v50, %v54
  %v58 = vmax.f32 %v51, %v55
  %v59 = vmax.f32 %v52, %v56
  %s60 = scalar_lea.vmem %s0, 192
  %v61 = vld [vmem:[%s60] sm:$0xff]
  %v62 = vld [vmem:[%s60 + $0x8] sm:$0xff]
  %v63 = vld [vmem:[%s60 + $0x10] sm:$0xff]
  %v64 = vmax.f32 %v57, %v61
  %v65 = vmax.f32 %v58, %v62
  %v66 = vmax.f32 %v59, %v63
  %67 = vst [vmem:[%s1] sm:$0xff] %v64
  %68 = vst [vmem:[%s1 + $0x8] sm:$0xff] %v65
  %69 = vst [vmem:[%s1 + $0x10] sm:$0xff] %v66
  // Predicated region
  $region6: #{_lambda_.40} parent=0 // pred_check
    _
  $region7: #{_lambda_.40} parent=0 // pred_check_branch
    %71 = sbr.rel (0) target = $region9
  $region8: #{_lambda_.40} parent=0 // pred_region
    _
  $region9: #{_lambda_.40} parent=0 // pred_fallthru
    _
  // Predicated region
  $region10: #{_lambda_.40} parent=0 // pred_check
    _
  $region11: #{_lambda_.40} parent=0 // pred_check_branch
    %73 = sbr.rel (0) target = $region13
  $region12: #{_lambda_.40} parent=0 // pred_region
    _
  $region13: #{_lambda_.40} parent=0 // pred_fallthru
    _

// kernel: _lambda_.42
$region0: #{_lambda_.42}
  #allocation0 [shape = 'u32[]', space=smem, size = 0x4, offset = 0x4, fixed_abs, tag = 'smem constant byte address 0x4 - core index']
  #allocation1 [shape = 'u32[144,128]{1,0:T(1,128)}', space=vmem, size = 0x12000, scoped, tag = 'internal scratch']
  %s0 = inlined_call_operand.vmem [shape: bf16[32,128], index: 0, kind: input, shape index: {}]
  %s1 = inlined_call_operand.vmem [shape: bf16[24,32], index: 1, kind: input, shape index: {}]
  %s2 = inlined_call_operand.vmem [shape: f32[24,1], index: 2, kind: input, shape index: {}]
  %s3 = inlined_call_operand.vmem [shape: f32[24,128], index: 3, kind: output, shape index: {}]
  %s4 = sld [smem:[#allocation0]]
  $region22: #{_lambda_.42} parent=0
    _
  %s6 = ssub.s32 1, %s4
  %s7 = scalar_select 0, %s6, %s4
  // Predicated region
  $region2: #{_lambda_.42} parent=0 // pred_check
    _
  $region3: #{_lambda_.42} parent=0 // pred_check_branch
    %9 = sbr.rel (0) target = $region5
  $region4: #{_lambda_.42} parent=0 // pred_region
    _
  $region5: #{_lambda_.42} parent=0 // pred_fallthru
    _
  // Predicated region
  $region6: #{_lambda_.42} parent=0 // pred_check
    _
  $region7: #{_lambda_.42} parent=0 // pred_check_branch
    %11 = sbr.rel (0) target = $region9
  $region8: #{_lambda_.42} parent=0 // pred_region
    _
  $region9: #{_lambda_.42} parent=0 // pred_fallthru
    _
  // Predicated region
  $region10: #{_lambda_.42} parent=0 // pred_check
    _
  $region11: #{_lambda_.42} parent=0 // pred_check_branch
    %13 = sbr.rel (0) target = $region13
  $region12: #{_lambda_.42} parent=0 // pred_region
    _
  $region13: #{_lambda_.42} parent=0 // pred_fallthru
    _
  %v15 = vld [vmem:[%s1] sm:$0xf]
  %v16 = vld [vmem:[%s1 + $0x4] sm:$0xf]
  %v17 = vld [vmem:[%s1 + $0x8] sm:$0xf]
  %v18 = vld [vmem:[%s0] sm:$0xf]
  %v19 = vld [vmem:[%s0 + $0x4] sm:$0xf]
  %v20 = vld [vmem:[%s0 + $0x8] sm:$0xf]
  %v21 = vld [vmem:[%s0 + $0xc] sm:$0xf]
  %v22 = vld [vmem:[%s2] sm:$0xff]
  %v23 = vld [vmem:[%s2 + $0x8] sm:$0xff]
  %v24 = vld [vmem:[%s2 + $0x10] sm:$0xff]
  %26 = vset.pattern.permute.xlu0 0
  %27 = vperm.xlu0 %26, %v22
  %v28 = vpop.permute.xlu0 %27
  %31 = vset.pattern.permute.xlu0 0
  %32 = vperm.xlu0 %31, %v23
  %v33 = vpop.permute.xlu0 %32
  %36 = vset.pattern.permute.xlu0 0
  %37 = vperm.xlu0 %36, %v24
  %v38 = vpop.permute.xlu0 %37
  %v43 = vunpack.c.l.b16 %v15
  %v44 = vunpack.c.l.b16 %v16
  %v45 = vunpack.c.l.b16 %v17
  %v46 = vpack.c.b16 %v44, %v43
  %v47 = vpack.c.b16 %v45, %v45
  %v52 = vunpack.c.l.b16 %v18
  %v53 = vunpack.c.l.b16 %v19
  %v54 = vunpack.c.l.b16 %v20
  %v55 = vunpack.c.l.b16 %v21
  %v56 = vpack.c.b16 %v53, %v52
  %v57 = vpack.c.b16 %v55, %v54
  %vm60 = vcmask 261120
  %v62 = vsel %vm60, %v46, 0
  %v65 = vsel %vm60, %v47, 0
  %67 = vmatprep.subr.bf16.mxu0 0
  %68 = vmatpush1.bf16.msra.mxu0 %v56
  %69 = vmatprep.subr.bf16.mxu0 0
  %70 = vmatpush1.bf16.msra.mxu0 %v57
  %71 = vmatprep.subr.bf16.mxu0 0
  %72 = vmatpush1.bf16.msra.mxu0 0
  %73 = vmatprep.subr.bf16.mxu0 0
  %74 = vmatpush1.bf16.msra.mxu0 0
  %75 = vmatprep.subr.bf16.mxu0 0
  %76 = vmatpush1.bf16.msra.mxu0 0
  %77 = vmatprep.subr.bf16.mxu0 0
  %78 = vmatpush1.bf16.msra.mxu0 0
  %79 = vmatprep.subr.bf16.mxu0 0
  %80 = vmatpush1.bf16.msra.mxu0 0
  %81 = vmatprep.subr.bf16.mxu0 0
  %82 = vmatpush1.bf16.msra.mxu0 0
  %83 = vmatprep.subr.bf16.mxu0 0
  %84 = vmatpush1.bf16.msra.mxu0 0
  %85 = vmatprep.subr.bf16.mxu0 0
  %86 = vmatpush1.bf16.msra.mxu0 0
  %87 = vmatprep.subr.bf16.mxu0 0
  %88 = vmatpush1.bf16.msra.mxu0 0
  %89 = vmatprep.subr.bf16.mxu0 0
  %90 = vmatpush1.bf16.msra.mxu0 0
  %91 = vmatprep.subr.bf16.mxu0 0
  %92 = vmatpush1.bf16.msra.mxu0 0
  %93 = vmatprep.subr.bf16.mxu0 0
  %94 = vmatpush1.bf16.msra.mxu0 0
  %95 = vmatprep.subr.bf16.mxu0 0
  %96 = vmatpush1.bf16.msra.mxu0 0
  %97 = vmatprep.subr.bf16.mxu0 0
  %98 = vmatpush1.bf16.msra.mxu0 0
  %99 = vmatprep.mubr.bf16.mxu0 0
  %100 = vmatmul.mubr.bf16.gmra.mrb[0].mxu0 %v62
  %v101 = vpop.f32.mrb[0].mxu0
  %v102 = vadd.f32 %v28, %v101
  %v103 = vpop.f32.mrb[0].mxu0
  %v104 = vpop.f32.mrb[0].mxu0
  %v105 = vadd.f32 %v33, %v104
  %v106 = vpop.f32.mrb[0].mxu0
  %107 = vmatprep.mubr.bf16.mxu0 0
  %108 = vmatmul.mubr.bf16.gmra.mrb[0].mxu0 %v65
  %v109 = vpop.f32.mrb[0].mxu0
  %v110 = vadd.f32 %v38, %v109
  %v111 = vpop.f32.mrb[0].mxu0
  %v112 = vpop.f32.mrb[0].mxu0
  %v113 = vpop.f32.mrb[0].mxu0
  %114 = vdwg.mxu0
  %v115 = vmax.f32 %v102, 0.0
  %v116 = vmax.f32 %v105, 0.0
  %v117 = vmax.f32 %v110, 0.0
  %118 = vst [vmem:[%s3] sm:$0xff] %v115
  %119 = vst [vmem:[%s3 + $0x8] sm:$0xff] %v116
  %120 = vst [vmem:[%s3 + $0x10] sm:$0xff] %v117
  // Predicated region
  $region14: #{_lambda_.42} parent=0 // pred_check
    _
  $region15: #{_lambda_.42} parent=0 // pred_check_branch
    %122 = sbr.rel (0) target = $region17
  $region16: #{_lambda_.42} parent=0 // pred_region
    _
  $region17: #{_lambda_.42} parent=0 // pred_fallthru
    _
  // Predicated region
  $region18: #{_lambda_.42} parent=0 // pred_check
    _
  $region19: #{_lambda_.42} parent=0 // pred_check_branch
    %124 = sbr.rel (0) target = $region21
  $region20: #{_lambda_.42} parent=0 // pred_region
    _
  $region21: #{_lambda_.42} parent=0 // pred_fallthru
    _

// kernel: _lambda_.41
$region0: #{_lambda_.41}
  #allocation0 [shape = 'u32[]', space=smem, size = 0x4, offset = 0x4, fixed_abs, tag = 'smem constant byte address 0x4 - core index']
  #allocation1 [shape = 'u32[144,128]{1,0:T(1,128)}', space=vmem, size = 0x12000, scoped, tag = 'internal scratch']
  %s0 = inlined_call_operand.vmem [shape: f32[9,24,128], index: 0, kind: input, shape index: {}]
  %s1 = inlined_call_operand.vmem [shape: f32[9,24,1], index: 1, kind: input, shape index: {}]
  %s2 = inlined_call_operand.vmem [shape: f32[24,1], index: 2, kind: input, shape index: {}]
  %s3 = inlined_call_operand.vmem [shape: bf16[24,24], index: 3, kind: input, shape index: {}]
  %s4 = inlined_call_operand.vmem [shape: f32[24,1], index: 4, kind: input, shape index: {}]
  %s5 = inlined_call_operand.vmem [shape: f32[24,128], index: 5, kind: output, shape index: {}]
  %s6 = sld [smem:[#allocation0]]
  $region30: #{_lambda_.41} parent=0
    _
  %s8 = ssub.s32 1, %s6
  %s9 = scalar_select 0, %s8, %s6
  // Predicated region
  $region2: #{_lambda_.41} parent=0 // pred_check
    _
  $region3: #{_lambda_.41} parent=0 // pred_check_branch
    %11 = sbr.rel (0) target = $region5
  $region4: #{_lambda_.41} parent=0 // pred_region
    _
  $region5: #{_lambda_.41} parent=0 // pred_fallthru
    _
  // Predicated region
  $region6: #{_lambda_.41} parent=0 // pred_check
    _
  $region7: #{_lambda_.41} parent=0 // pred_check_branch
    %13 = sbr.rel (0) target = $region9
  $region8: #{_lambda_.41} parent=0 // pred_region
    _
  $region9: #{_lambda_.41} parent=0 // pred_fallthru
    _
  // Predicated region
  $region10: #{_lambda_.41} parent=0 // pred_check
    _
  $region11: #{_lambda_.41} parent=0 // pred_check_branch
    %15 = sbr.rel (0) target = $region13
  $region12: #{_lambda_.41} parent=0 // pred_region
    _
  $region13: #{_lambda_.41} parent=0 // pred_fallthru
    _
  // Predicated region
  $region14: #{_lambda_.41} parent=0 // pred_check
    _
  $region15: #{_lambda_.41} parent=0 // pred_check_branch
    %17 = sbr.rel (0) target = $region17
  $region16: #{_lambda_.41} parent=0 // pred_region
    _
  $region17: #{_lambda_.41} parent=0 // pred_fallthru
    _
  // Predicated region
  $region18: #{_lambda_.41} parent=0 // pred_check
    _
  $region19: #{_lambda_.41} parent=0 // pred_check_branch
    %19 = sbr.rel (0) target = $region21
  $region20: #{_lambda_.41} parent=0 // pred_region
    _
  $region21: #{_lambda_.41} parent=0 // pred_fallthru
    _
  %v21 = vld [vmem:[%s0] sm:$0xff]
  %v22 = vld [vmem:[%s0 + $0x8] sm:$0xff]
  %v23 = vld [vmem:[%s0 + $0x10] sm:$0xff]
  %v24 = vld [vmem:[%s1] sm:$0xff]
  %v25 = vld [vmem:[%s1 + $0x8] sm:$0xff]
  %v26 = vld [vmem:[%s1 + $0x10] sm:$0xff]
  %28 = vset.pattern.permute.xlu0 0
  %29 = vperm.xlu0 %28, %v24
  %v30 = vpop.permute.xlu0 %29
  %33 = vset.pattern.permute.xlu0 0
  %34 = vperm.xlu0 %33, %v25
  %v35 = vpop.permute.xlu0 %34
  %38 = vset.pattern.permute.xlu0 0
  %39 = vperm.xlu0 %38, %v26
  %v40 = vpop.permute.xlu0 %39
  %v42 = vmul.f32 %v21, %v30
  %v43 = vmul.f32 %v22, %v35
  %v44 = vmul.f32 %v23, %v40
  %s45 = scalar_lea.vmem %s0, 24
  %v46 = vld [vmem:[%s45] sm:$0xff]
  %v47 = vld [vmem:[%s45 + $0x8] sm:$0xff]
  %v48 = vld [vmem:[%s45 + $0x10] sm:$0xff]
  %s49 = scalar_lea.vmem %s1, 24
  %v50 = vld [vmem:[%s49] sm:$0xff]
  %v51 = vld [vmem:[%s49 + $0x8] sm:$0xff]
  %v52 = vld [vmem:[%s49 + $0x10] sm:$0xff]
  %54 = vset.pattern.permute.xlu0 0
  %55 = vperm.xlu0 %54, %v50
  %v56 = vpop.permute.xlu0 %55
  %59 = vset.pattern.permute.xlu0 0
  %60 = vperm.xlu0 %59, %v51
  %v61 = vpop.permute.xlu0 %60
  %64 = vset.pattern.permute.xlu0 0
  %65 = vperm.xlu0 %64, %v52
  %v66 = vpop.permute.xlu0 %65
  %v68 = vmul.f32 %v46, %v56
  %v69 = vmul.f32 %v47, %v61
  %v70 = vmul.f32 %v48, %v66
  %v71 = vadd.f32 %v42, %v68
  %v72 = vadd.f32 %v43, %v69
  %v73 = vadd.f32 %v44, %v70
  %s74 = scalar_lea.vmem %s0, 48
  %v75 = vld [vmem:[%s74] sm:$0xff]
  %v76 = vld [vmem:[%s74 + $0x8] sm:$0xff]
  %v77 = vld [vmem:[%s74 + $0x10] sm:$0xff]
  %s78 = scalar_lea.vmem %s1, 48
  %v79 = vld [vmem:[%s78] sm:$0xff]
  %v80 = vld [vmem:[%s78 + $0x8] sm:$0xff]
  %v81 = vld [vmem:[%s78 + $0x10] sm:$0xff]
  %83 = vset.pattern.permute.xlu0 0
  %84 = vperm.xlu0 %83, %v79
  %v85 = vpop.permute.xlu0 %84
  %88 = vset.pattern.permute.xlu0 0
  %89 = vperm.xlu0 %88, %v80
  %v90 = vpop.permute.xlu0 %89
  %93 = vset.pattern.permute.xlu0 0
  %94 = vperm.xlu0 %93, %v81
  %v95 = vpop.permute.xlu0 %94
  %v97 = vmul.f32 %v75, %v85
  %v98 = vmul.f32 %v76, %v90
  %v99 = vmul.f32 %v77, %v95
  %v100 = vadd.f32 %v71, %v97
  %v101 = vadd.f32 %v72, %v98
  %v102 = vadd.f32 %v73, %v99
  %s103 = scalar_lea.vmem %s0, 72
  %v104 = vld [vmem:[%s103] sm:$0xff]
  %v105 = vld [vmem:[%s103 + $0x8] sm:$0xff]
  %v106 = vld [vmem:[%s103 + $0x10] sm:$0xff]
  %s107 = scalar_lea.vmem %s1, 72
  %v108 = vld [vmem:[%s107] sm:$0xff]
  %v109 = vld [vmem:[%s107 + $0x8] sm:$0xff]
  %v110 = vld [vmem:[%s107 + $0x10] sm:$0xff]
  %112 = vset.pattern.permute.xlu0 0
  %113 = vperm.xlu0 %112, %v108
  %v114 = vpop.permute.xlu0 %113
  %117 = vset.pattern.permute.xlu0 0
  %118 = vperm.xlu0 %117, %v109
  %v119 = vpop.permute.xlu0 %118
  %122 = vset.pattern.permute.xlu0 0
  %123 = vperm.xlu0 %122, %v110
  %v124 = vpop.permute.xlu0 %123
  %v126 = vmul.f32 %v104, %v114
  %v127 = vmul.f32 %v105, %v119
  %v128 = vmul.f32 %v106, %v124
  %v129 = vadd.f32 %v100, %v126
  %v130 = vadd.f32 %v101, %v127
  %v131 = vadd.f32 %v102, %v128
  %s132 = scalar_lea.vmem %s0, 96
  %v133 = vld [vmem:[%s132] sm:$0xff]
  %v134 = vld [vmem:[%s132 + $0x8] sm:$0xff]
  %v135 = vld [vmem:[%s132 + $0x10] sm:$0xff]
  %s136 = scalar_lea.vmem %s1, 96
  %v137 = vld [vmem:[%s136] sm:$0xff]
  %v138 = vld [vmem:[%s136 + $0x8] sm:$0xff]
  %v139 = vld [vmem:[%s136 + $0x10] sm:$0xff]
  %141 = vset.pattern.permute.xlu0 0
  %142 = vperm.xlu0 %141, %v137
  %v143 = vpop.permute.xlu0 %142
  %146 = vset.pattern.permute.xlu0 0
  %147 = vperm.xlu0 %146, %v138
  %v148 = vpop.permute.xlu0 %147
  %151 = vset.pattern.permute.xlu0 0
  %152 = vperm.xlu0 %151, %v139
  %v153 = vpop.permute.xlu0 %152
  %v155 = vmul.f32 %v133, %v143
  %v156 = vmul.f32 %v134, %v148
  %v157 = vmul.f32 %v135, %v153
  %v158 = vadd.f32 %v129, %v155
  %v159 = vadd.f32 %v130, %v156
  %v160 = vadd.f32 %v131, %v157
  %s161 = scalar_lea.vmem %s0, 120
  %v162 = vld [vmem:[%s161] sm:$0xff]
  %v163 = vld [vmem:[%s161 + $0x8] sm:$0xff]
  %v164 = vld [vmem:[%s161 + $0x10] sm:$0xff]
  %s165 = scalar_lea.vmem %s1, 120
  %v166 = vld [vmem:[%s165] sm:$0xff]
  %v167 = vld [vmem:[%s165 + $0x8] sm:$0xff]
  %v168 = vld [vmem:[%s165 + $0x10] sm:$0xff]
  %170 = vset.pattern.permute.xlu0 0
  %171 = vperm.xlu0 %170, %v166
  %v172 = vpop.permute.xlu0 %171
  %175 = vset.pattern.permute.xlu0 0
  %176 = vperm.xlu0 %175, %v167
  %v177 = vpop.permute.xlu0 %176
  %180 = vset.pattern.permute.xlu0 0
  %181 = vperm.xlu0 %180, %v168
  %v182 = vpop.permute.xlu0 %181
  %v184 = vmul.f32 %v162, %v172
  %v185 = vmul.f32 %v163, %v177
  %v186 = vmul.f32 %v164, %v182
  %v187 = vadd.f32 %v158, %v184
  %v188 = vadd.f32 %v159, %v185
  %v189 = vadd.f32 %v160, %v186
  %s190 = scalar_lea.vmem %s0, 144
  %v191 = vld [vmem:[%s190] sm:$0xff]
  %v192 = vld [vmem:[%s190 + $0x8] sm:$0xff]
  %v193 = vld [vmem:[%s190 + $0x10] sm:$0xff]
  %s194 = scalar_lea.vmem %s1, 144
  %v195 = vld [vmem:[%s194] sm:$0xff]
  %v196 = vld [vmem:[%s194 + $0x8] sm:$0xff]
  %v197 = vld [vmem:[%s194 + $0x10] sm:$0xff]
  %199 = vset.pattern.permute.xlu0 0
  %200 = vperm.xlu0 %199, %v195
  %v201 = vpop.permute.xlu0 %200
  %204 = vset.pattern.permute.xlu0 0
  %205 = vperm.xlu0 %204, %v196
  %v206 = vpop.permute.xlu0 %205
  %209 = vset.pattern.permute.xlu0 0
  %210 = vperm.xlu0 %209, %v197
  %v211 = vpop.permute.xlu0 %210
  %v213 = vmul.f32 %v191, %v201
  %v214 = vmul.f32 %v192, %v206
  %v215 = vmul.f32 %v193, %v211
  %v216 = vadd.f32 %v187, %v213
  %v217 = vadd.f32 %v188, %v214
  %v218 = vadd.f32 %v189, %v215
  %s219 = scalar_lea.vmem %s0, 168
  %v220 = vld [vmem:[%s219] sm:$0xff]
  %v221 = vld [vmem:[%s219 + $0x8] sm:$0xff]
  %v222 = vld [vmem:[%s219 + $0x10] sm:$0xff]
  %s223 = scalar_lea.vmem %s1, 168
  %v224 = vld [vmem:[%s223] sm:$0xff]
  %v225 = vld [vmem:[%s223 + $0x8] sm:$0xff]
  %v226 = vld [vmem:[%s223 + $0x10] sm:$0xff]
  %228 = vset.pattern.permute.xlu0 0
  %229 = vperm.xlu0 %228, %v224
  %v230 = vpop.permute.xlu0 %229
  %233 = vset.pattern.permute.xlu0 0
  %234 = vperm.xlu0 %233, %v225
  %v235 = vpop.permute.xlu0 %234
  %238 = vset.pattern.permute.xlu0 0
  %239 = vperm.xlu0 %238, %v226
  %v240 = vpop.permute.xlu0 %239
  %v242 = vmul.f32 %v220, %v230
  %v243 = vmul.f32 %v221, %v235
  %v244 = vmul.f32 %v222, %v240
  %v245 = vadd.f32 %v216, %v242
  %v246 = vadd.f32 %v217, %v243
  %v247 = vadd.f32 %v218, %v244
  %s248 = scalar_lea.vmem %s0, 192
  %v249 = vld [vmem:[%s248] sm:$0xff]
  %v250 = vld [vmem:[%s248 + $0x8] sm:$0xff]
  %v251 = vld [vmem:[%s248 + $0x10] sm:$0xff]
  %s252 = scalar_lea.vmem %s1, 192
  %v253 = vld [vmem:[%s252] sm:$0xff]
  %v254 = vld [vmem:[%s252 + $0x8] sm:$0xff]
  %v255 = vld [vmem:[%s252 + $0x10] sm:$0xff]
  %257 = vset.pattern.permute.xlu0 0
  %258 = vperm.xlu0 %257, %v253
  %v259 = vpop.permute.xlu0 %258
  %262 = vset.pattern.permute.xlu0 0
  %263 = vperm.xlu0 %262, %v254
  %v264 = vpop.permute.xlu0 %263
  %267 = vset.pattern.permute.xlu0 0
  %268 = vperm.xlu0 %267, %v255
  %v269 = vpop.permute.xlu0 %268
  %v271 = vmul.f32 %v249, %v259
  %v272 = vmul.f32 %v250, %v264
  %v273 = vmul.f32 %v251, %v269
  %v274 = vadd.f32 %v245, %v271
  %v275 = vadd.f32 %v246, %v272
  %v276 = vadd.f32 %v247, %v273
  %v277 = vld [vmem:[%s2] sm:$0xff]
  %v278 = vld [vmem:[%s2 + $0x8] sm:$0xff]
  %v279 = vld [vmem:[%s2 + $0x10] sm:$0xff]
  %281 = vset.pattern.permute.xlu0 0
  %282 = vperm.xlu0 %281, %v277
  %v283 = vpop.permute.xlu0 %282
  %286 = vset.pattern.permute.xlu0 0
  %287 = vperm.xlu0 %286, %v278
  %v288 = vpop.permute.xlu0 %287
  %291 = vset.pattern.permute.xlu0 0
  %292 = vperm.xlu0 %291, %v279
  %v293 = vpop.permute.xlu0 %292
  %v295 = vadd.f32 %v274, %v283
  %v296 = vadd.f32 %v275, %v288
  %v297 = vadd.f32 %v276, %v293
  %v298 = vld [vmem:[%s3] sm:$0xf]
  %v299 = vld [vmem:[%s3 + $0x4] sm:$0xf]
  %v300 = vld [vmem:[%s3 + $0x8] sm:$0xf]
  %v301 = vpack.c.bf16 %v296, %v295
  %v302 = vpack.c.bf16 %v297, %v297
  %v303 = vld [vmem:[%s4] sm:$0xff]
  %v304 = vld [vmem:[%s4 + $0x8] sm:$0xff]
  %v305 = vld [vmem:[%s4 + $0x10] sm:$0xff]
  %307 = vset.pattern.permute.xlu0 0
  %308 = vperm.xlu0 %307, %v303
  %v309 = vpop.permute.xlu0 %308
  %312 = vset.pattern.permute.xlu0 0
  %313 = vperm.xlu0 %312, %v304
  %v314 = vpop.permute.xlu0 %313
  %317 = vset.pattern.permute.xlu0 0
  %318 = vperm.xlu0 %317, %v305
  %v319 = vpop.permute.xlu0 %318
  %v324 = vunpack.c.l.b16 %v298
  %v325 = vunpack.c.l.b16 %v299
  %v326 = vunpack.c.l.b16 %v300
  %v327 = vpack.c.b16 %v325, %v324
  %v328 = vpack.c.b16 %v326, %v326
  %vm329 = vcmask 195584
  %v331 = vsel %vm329, %v327, 0
  %v334 = vsel %vm329, %v328, 0
  %vm336 = vcmask 1043456
  %v338 = vsel %vm336, %v302, 0
  %340 = vmatprep.subr.bf16.mxu0 0
  %341 = vmatpush1.bf16.msra.mxu0 %v301
  %342 = vmatprep.subr.bf16.mxu0 0
  %343 = vmatpush1.bf16.msra.mxu0 %v338
  %344 = vmatprep.subr.bf16.mxu0 0
  %345 = vmatpush1.bf16.msra.mxu0 0
  %346 = vmatprep.subr.bf16.mxu0 0
  %347 = vmatpush1.bf16.msra.mxu0 0
  %348 = vmatprep.subr.bf16.mxu0 0
  %349 = vmatpush1.bf16.msra.mxu0 0
  %350 = vmatprep.subr.bf16.mxu0 0
  %351 = vmatpush1.bf16.msra.mxu0 0
  %352 = vmatprep.subr.bf16.mxu0 0
  %353 = vmatpush1.bf16.msra.mxu0 0
  %354 = vmatprep.subr.bf16.mxu0 0
  %355 = vmatpush1.bf16.msra.mxu0 0
  %356 = vmatprep.subr.bf16.mxu0 0
  %357 = vmatpush1.bf16.msra.mxu0 0
  %358 = vmatprep.subr.bf16.mxu0 0
  %359 = vmatpush1.bf16.msra.mxu0 0
  %360 = vmatprep.subr.bf16.mxu0 0
  %361 = vmatpush1.bf16.msra.mxu0 0
  %362 = vmatprep.subr.bf16.mxu0 0
  %363 = vmatpush1.bf16.msra.mxu0 0
  %364 = vmatprep.subr.bf16.mxu0 0
  %365 = vmatpush1.bf16.msra.mxu0 0
  %366 = vmatprep.subr.bf16.mxu0 0
  %367 = vmatpush1.bf16.msra.mxu0 0
  %368 = vmatprep.subr.bf16.mxu0 0
  %369 = vmatpush1.bf16.msra.mxu0 0
  %370 = vmatprep.subr.bf16.mxu0 0
  %371 = vmatpush1.bf16.msra.mxu0 0
  %372 = vmatprep.mubr.bf16.mxu0 0
  %373 = vmatmul.mubr.bf16.gmra.mrb[0].mxu0 %v331
  %v374 = vpop.f32.mrb[0].mxu0
  %v375 = vadd.f32 %v309, %v374
  %v376 = vpop.f32.mrb[0].mxu0
  %v377 = vpop.f32.mrb[0].mxu0
  %v378 = vadd.f32 %v314, %v377
  %v379 = vpop.f32.mrb[0].mxu0
  %380 = vmatprep.mubr.bf16.mxu0 0
  %381 = vmatmul.mubr.bf16.gmra.mrb[0].mxu0 %v334
  %v382 = vpop.f32.mrb[0].mxu0
  %v383 = vadd.f32 %v319, %v382
  %v384 = vpop.f32.mrb[0].mxu0
  %v385 = vpop.f32.mrb[0].mxu0
  %v386 = vpop.f32.mrb[0].mxu0
  %387 = vdwg.mxu0
  %v388 = vmax.f32 %v375, 0.0
  %v389 = vmax.f32 %v378, 0.0
  %v390 = vmax.f32 %v383, 0.0
  %391 = vst [vmem:[%s5] sm:$0xff] %v388
  %392 = vst [vmem:[%s5 + $0x8] sm:$0xff] %v389
  %393 = vst [vmem:[%s5 + $0x10] sm:$0xff] %v390
  // Predicated region
  $region22: #{_lambda_.41} parent=0 // pred_check
    _
  $region23: #{_lambda_.41} parent=0 // pred_check_branch
    %395 = sbr.rel (0) target = $region25
  $region24: #{_lambda_.41} parent=0 // pred_region
    _
  $region25: #{_lambda_.41} parent=0 // pred_fallthru
    _
  // Predicated region
  $region26: #{_lambda_.41} parent=0 // pred_check
    _
  $region27: #{_lambda_.41} parent=0 // pred_check_branch
    %397 = sbr.rel (0) target = $region29
  $region28: #{_lambda_.41} parent=0 // pred_region
    _
  $region29: #{_lambda_.41} parent=0 // pred_fallthru
    _

// kernel: _lambda_.51
$region0: #{_lambda_.51}
  #allocation0 [shape = 'u32[]', space=smem, size = 0x4, offset = 0x4, fixed_abs, tag = 'smem constant byte address 0x4 - core index']
  #allocation1 [shape = 'u32[144,128]{1,0:T(1,128)}', space=vmem, size = 0x12000, scoped, tag = 'internal scratch']
  %s0 = inlined_call_operand.vmem [shape: bf16[48,128], index: 0, kind: input, shape index: {}]
  %s1 = inlined_call_operand.vmem [shape: bf16[48,48], index: 1, kind: input, shape index: {}]
  %s2 = inlined_call_operand.vmem [shape: f32[48,1], index: 2, kind: input, shape index: {}]
  %s3 = inlined_call_operand.vmem [shape: f32[48,128], index: 3, kind: output, shape index: {}]
  %s4 = sld [smem:[#allocation0]]
  $region22: #{_lambda_.51} parent=0
    _
  %s6 = ssub.s32 1, %s4
  %s7 = scalar_select 0, %s6, %s4
  // Predicated region
  $region2: #{_lambda_.51} parent=0 // pred_check
    _
  $region3: #{_lambda_.51} parent=0 // pred_check_branch
    %9 = sbr.rel (0) target = $region5
  $region4: #{_lambda_.51} parent=0 // pred_region
    _
  $region5: #{_lambda_.51} parent=0 // pred_fallthru
    _
  // Predicated region
  $region6: #{_lambda_.51} parent=0 // pred_check
    _
  $region7: #{_lambda_.51} parent=0 // pred_check_branch
    %11 = sbr.rel (0) target = $region9
  $region8: #{_lambda_.51} parent=0 // pred_region
    _
  $region9: #{_lambda_.51} parent=0 // pred_fallthru
    _
  // Predicated region
  $region10: #{_lambda_.51} parent=0 // pred_check
    _
  $region11: #{_lambda_.51} parent=0 // pred_check_branch
    %13 = sbr.rel (0) target = $region13
  $region12: #{_lambda_.51} parent=0 // pred_region
    _
  $region13: #{_lambda_.51} parent=0 // pred_fallthru
    _
  %v15 = vld [vmem:[%s1] sm:$0xf]
  %v16 = vld [vmem:[%s1 + $0x4] sm:$0xf]
  %v17 = vld [vmem:[%s1 + $0x8] sm:$0xf]
  %v18 = vld [vmem:[%s1 + $0xc] sm:$0xf]
  %v19 = vld [vmem:[%s1 + $0x10] sm:$0xf]
  %v20 = vld [vmem:[%s1 + $0x14] sm:$0xf]
  %v21 = vld [vmem:[%s0] sm:$0xf]
  %v22 = vld [vmem:[%s0 + $0x4] sm:$0xf]
  %v23 = vld [vmem:[%s0 + $0x8] sm:$0xf]
  %v24 = vld [vmem:[%s0 + $0xc] sm:$0xf]
  %v25 = vld [vmem:[%s0 + $0x10] sm:$0xf]
  %v26 = vld [vmem:[%s0 + $0x14] sm:$0xf]
  %v27 = vld [vmem:[%s2] sm:$0xff]
  %v28 = vld [vmem:[%s2 + $0x8] sm:$0xff]
  %v29 = vld [vmem:[%s2 + $0x10] sm:$0xff]
  %v30 = vld [vmem:[%s2 + $0x18] sm:$0xff]
  %v31 = vld [vmem:[%s2 + $0x20] sm:$0xff]
  %v32 = vld [vmem:[%s2 + $0x28] sm:$0xff]
  %34 = vset.pattern.permute.xlu0 0
  %35 = vperm.xlu0 %34, %v27
  %v36 = vpop.permute.xlu0 %35
  %39 = vset.pattern.permute.xlu0 0
  %40 = vperm.xlu0 %39, %v28
  %v41 = vpop.permute.xlu0 %40
  %44 = vset.pattern.permute.xlu0 0
  %45 = vperm.xlu0 %44, %v29
  %v46 = vpop.permute.xlu0 %45
  %49 = vset.pattern.permute.xlu0 0
  %50 = vperm.xlu0 %49, %v30
  %v51 = vpop.permute.xlu0 %50
  %54 = vset.pattern.permute.xlu0 0
  %55 = vperm.xlu0 %54, %v31
  %v56 = vpop.permute.xlu0 %55
  %59 = vset.pattern.permute.xlu0 0
  %60 = vperm.xlu0 %59, %v32
  %v61 = vpop.permute.xlu0 %60
  %v69 = vunpack.c.l.b16 %v15
  %v70 = vunpack.c.l.b16 %v16
  %v71 = vunpack.c.l.b16 %v17
  %v72 = vunpack.c.l.b16 %v18
  %v73 = vunpack.c.l.b16 %v19
  %v74 = vunpack.c.l.b16 %v20
  %v75 = vpack.c.b16 %v70, %v69
  %v76 = vpack.c.b16 %v72, %v71
  %v77 = vpack.c.b16 %v74, %v73
  %v84 = vunpack.c.l.b16 %v21
  %v85 = vunpack.c.l.b16 %v22
  %v86 = vunpack.c.l.b16 %v23
  %v87 = vunpack.c.l.b16 %v24
  %v88 = vunpack.c.l.b16 %v25
  %v89 = vunpack.c.l.b16 %v26
  %v90 = vpack.c.b16 %v85, %v84
  %v91 = vpack.c.b16 %v87, %v86
  %v92 = vpack.c.b16 %v89, %v88
  %vm96 = vcmask 392192
  %v98 = vsel %vm96, %v75, 0
  %v101 = vsel %vm96, %v76, 0
  %v104 = vsel %vm96, %v77, 0
  %106 = vmatprep.subr.bf16.mxu0 0
  %107 = vmatpush1.bf16.msra.mxu0 %v90
  %108 = vmatprep.subr.bf16.mxu0 0
  %109 = vmatpush1.bf16.msra.mxu0 %v91
  %110 = vmatprep.subr.bf16.mxu0 0
  %111 = vmatpush1.bf16.msra.mxu0 %v92
  %112 = vmatprep.subr.bf16.mxu0 0
  %113 = vmatpush1.bf16.msra.mxu0 0
  %114 = vmatprep.subr.bf16.mxu0 0
  %115 = vmatpush1.bf16.msra.mxu0 0
  %116 = vmatprep.subr.bf16.mxu0 0
  %117 = vmatpush1.bf16.msra.mxu0 0
  %118 = vmatprep.subr.bf16.mxu0 0
  %119 = vmatpush1.bf16.msra.mxu0 0
  %120 = vmatprep.subr.bf16.mxu0 0
  %121 = vmatpush1.bf16.msra.mxu0 0
  %122 = vmatprep.subr.bf16.mxu0 0
  %123 = vmatpush1.bf16.msra.mxu0 0
  %124 = vmatprep.subr.bf16.mxu0 0
  %125 = vmatpush1.bf16.msra.mxu0 0
  %126 = vmatprep.subr.bf16.mxu0 0
  %127 = vmatpush1.bf16.msra.mxu0 0
  %128 = vmatprep.subr.bf16.mxu0 0
  %129 = vmatpush1.bf16.msra.mxu0 0
  %130 = vmatprep.subr.bf16.mxu0 0
  %131 = vmatpush1.bf16.msra.mxu0 0
  %132 = vmatprep.subr.bf16.mxu0 0
  %133 = vmatpush1.bf16.msra.mxu0 0
  %134 = vmatprep.subr.bf16.mxu0 0
  %135 = vmatpush1.bf16.msra.mxu0 0
  %136 = vmatprep.subr.bf16.mxu0 0
  %137 = vmatpush1.bf16.msra.mxu0 0
  %138 = vmatprep.mubr.bf16.mxu0 0
  %139 = vmatmul.mubr.bf16.gmra.mrb[0].mxu0 %v98
  %v140 = vpop.f32.mrb[0].mxu0
  %v141 = vadd.f32 %v36, %v140
  %v142 = vpop.f32.mrb[0].mxu0
  %v143 = vpop.f32.mrb[0].mxu0
  %v144 = vadd.f32 %v41, %v143
  %v145 = vpop.f32.mrb[0].mxu0
  %146 = vmatprep.mubr.bf16.mxu0 0
  %147 = vmatmul.mubr.bf16.gmra.mrb[0].mxu0 %v101
  %v148 = vpop.f32.mrb[0].mxu0
  %v149 = vadd.f32 %v46, %v148
  %v150 = vpop.f32.mrb[0].mxu0
  %v151 = vpop.f32.mrb[0].mxu0
  %v152 = vadd.f32 %v51, %v151
  %v153 = vpop.f32.mrb[0].mxu0
  %154 = vmatprep.mubr.bf16.mxu0 0
  %155 = vmatmul.mubr.bf16.gmra.mrb[0].mxu0 %v104
  %v156 = vpop.f32.mrb[0].mxu0
  %v157 = vadd.f32 %v56, %v156
  %v158 = vpop.f32.mrb[0].mxu0
  %v159 = vpop.f32.mrb[0].mxu0
  %v160 = vadd.f32 %v61, %v159
  %v161 = vpop.f32.mrb[0].mxu0
  %162 = vdwg.mxu0
  %v163 = vmax.f32 %v141, 0.0
  %v164 = vmax.f32 %v144, 0.0
  %v165 = vmax.f32 %v149, 0.0
  %v166 = vmax.f32 %v152, 0.0
  %v167 = vmax.f32 %v157, 0.0
  %v168 = vmax.f32 %v160, 0.0
  %169 = vst [vmem:[%s3] sm:$0xff] %v163
  %170 = vst [vmem:[%s3 + $0x8] sm:$0xff] %v164
  %171 = vst [vmem:[%s3 + $0x10] sm:$0xff] %v165
  %172 = vst [vmem:[%s3 + $0x18] sm:$0xff] %v166
  %173 = vst [vmem:[%s3 + $0x20] sm:$0xff] %v167
  %174 = vst [vmem:[%s3 + $0x28] sm:$0xff] %v168
  // Predicated region
  $region14: #{_lambda_.51} parent=0 // pred_check
    _
  $region15: #{_lambda_.51} parent=0 // pred_check_branch
    %176 = sbr.rel (0) target = $region17
  $region16: #{_lambda_.51} parent=0 // pred_region
    _
  $region17: #{_lambda_.51} parent=0 // pred_fallthru
    _
  // Predicated region
  $region18: #{_lambda_.51} parent=0 // pred_check
    _
  $region19: #{_lambda_.51} parent=0 // pred_check_branch
    %178 = sbr.rel (0) target = $region21
  $region20: #{_lambda_.51} parent=0 // pred_region
    _
  $region21: #{_lambda_.51} parent=0 // pred_fallthru
    _

// kernel: _lambda_.50
$region0: #{_lambda_.50}
  #allocation0 [shape = 'u32[]', space=smem, size = 0x4, offset = 0x4, fixed_abs, tag = 'smem constant byte address 0x4 - core index']
  #allocation1 [shape = 'u32[144,128]{1,0:T(1,128)}', space=vmem, size = 0x12000, scoped, tag = 'internal scratch']
  %s0 = inlined_call_operand.vmem [shape: f32[9,48,128], index: 0, kind: input, shape index: {}]
  %s1 = inlined_call_operand.vmem [shape: f32[9,48,1], index: 1, kind: input, shape index: {}]
  %s2 = inlined_call_operand.vmem [shape: f32[48,1], index: 2, kind: input, shape index: {}]
  %s3 = inlined_call_operand.vmem [shape: bf16[48,48], index: 3, kind: input, shape index: {}]
  %s4 = inlined_call_operand.vmem [shape: f32[48,1], index: 4, kind: input, shape index: {}]
  %s5 = inlined_call_operand.vmem [shape: f32[48,128], index: 5, kind: output, shape index: {}]
  %s6 = sld [smem:[#allocation0]]
  $region30: #{_lambda_.50} parent=0
    _
  %s8 = ssub.s32 1, %s6
  %s9 = scalar_select 0, %s8, %s6
  // Predicated region
  $region2: #{_lambda_.50} parent=0 // pred_check
    _
  $region3: #{_lambda_.50} parent=0 // pred_check_branch
    %11 = sbr.rel (0) target = $region5
  $region4: #{_lambda_.50} parent=0 // pred_region
    _
  $region5: #{_lambda_.50} parent=0 // pred_fallthru
    _
  // Predicated region
  $region6: #{_lambda_.50} parent=0 // pred_check
    _
  $region7: #{_lambda_.50} parent=0 // pred_check_branch
    %13 = sbr.rel (0) target = $region9
  $region8: #{_lambda_.50} parent=0 // pred_region
    _
  $region9: #{_lambda_.50} parent=0 // pred_fallthru
    _
  // Predicated region
  $region10: #{_lambda_.50} parent=0 // pred_check
    _
  $region11: #{_lambda_.50} parent=0 // pred_check_branch
    %15 = sbr.rel (0) target = $region13
  $region12: #{_lambda_.50} parent=0 // pred_region
    _
  $region13: #{_lambda_.50} parent=0 // pred_fallthru
    _
  // Predicated region
  $region14: #{_lambda_.50} parent=0 // pred_check
    _
  $region15: #{_lambda_.50} parent=0 // pred_check_branch
    %17 = sbr.rel (0) target = $region17
  $region16: #{_lambda_.50} parent=0 // pred_region
    _
  $region17: #{_lambda_.50} parent=0 // pred_fallthru
    _
  // Predicated region
  $region18: #{_lambda_.50} parent=0 // pred_check
    _
  $region19: #{_lambda_.50} parent=0 // pred_check_branch
    %19 = sbr.rel (0) target = $region21
  $region20: #{_lambda_.50} parent=0 // pred_region
    _
  $region21: #{_lambda_.50} parent=0 // pred_fallthru
    _
  %v21 = vld [vmem:[%s0] sm:$0xff]
  %v22 = vld [vmem:[%s0 + $0x8] sm:$0xff]
  %v23 = vld [vmem:[%s0 + $0x10] sm:$0xff]
  %v24 = vld [vmem:[%s0 + $0x18] sm:$0xff]
  %v25 = vld [vmem:[%s0 + $0x20] sm:$0xff]
  %v26 = vld [vmem:[%s0 + $0x28] sm:$0xff]
  %v27 = vld [vmem:[%s1] sm:$0xff]
  %v28 = vld [vmem:[%s1 + $0x8] sm:$0xff]
  %v29 = vld [vmem:[%s1 + $0x10] sm:$0xff]
  %v30 = vld [vmem:[%s1 + $0x18] sm:$0xff]
  %v31 = vld [vmem:[%s1 + $0x20] sm:$0xff]
  %v32 = vld [vmem:[%s1 + $0x28] sm:$0xff]
  %34 = vset.pattern.permute.xlu0 0
  %35 = vperm.xlu0 %34, %v27
  %v36 = vpop.permute.xlu0 %35
  %39 = vset.pattern.permute.xlu0 0
  %40 = vperm.xlu0 %39, %v28
  %v41 = vpop.permute.xlu0 %40
  %44 = vset.pattern.permute.xlu0 0
  %45 = vperm.xlu0 %44, %v29
  %v46 = vpop.permute.xlu0 %45
  %49 = vset.pattern.permute.xlu0 0
  %50 = vperm.xlu0 %49, %v30
  %v51 = vpop.permute.xlu0 %50
  %54 = vset.pattern.permute.xlu0 0
  %55 = vperm.xlu0 %54, %v31
  %v56 = vpop.permute.xlu0 %55
  %59 = vset.pattern.permute.xlu0 0
  %60 = vperm.xlu0 %59, %v32
  %v61 = vpop.permute.xlu0 %60
  %v63 = vmul.f32 %v21, %v36
  %v64 = vmul.f32 %v22, %v41
  %v65 = vmul.f32 %v23, %v46
  %v66 = vmul.f32 %v24, %v51
  %v67 = vmul.f32 %v25, %v56
  %v68 = vmul.f32 %v26, %v61
  %s69 = scalar_lea.vmem %s0, 48
  %v70 = vld [vmem:[%s69] sm:$0xff]
  %v71 = vld [vmem:[%s69 + $0x8] sm:$0xff]
  %v72 = vld [vmem:[%s69 + $0x10] sm:$0xff]
  %v73 = vld [vmem:[%s69 + $0x18] sm:$0xff]
  %v74 = vld [vmem:[%s69 + $0x20] sm:$0xff]
  %v75 = vld [vmem:[%s69 + $0x28] sm:$0xff]
  %s76 = scalar_lea.vmem %s1, 48
  %v77 = vld [vmem:[%s76] sm:$0xff]
  %v78 = vld [vmem:[%s76 + $0x8] sm:$0xff]
  %v79 = vld [vmem:[%s76 + $0x10] sm:$0xff]
  %v80 = vld [vmem:[%s76 + $0x18] sm:$0xff]
  %v81 = vld [vmem:[%s76 + $0x20] sm:$0xff]
  %v82 = vld [vmem:[%s76 + $0x28] sm:$0xff]
  %84 = vset.pattern.permute.xlu0 0
  %85 = vperm.xlu0 %84, %v77
  %v86 = vpop.permute.xlu0 %85
  %89 = vset.pattern.permute.xlu0 0
  %90 = vperm.xlu0 %89, %v78
  %v91 = vpop.permute.xlu0 %90
  %94 = vset.pattern.permute.xlu0 0
  %95 = vperm.xlu0 %94, %v79
  %v96 = vpop.permute.xlu0 %95
  %99 = vset.pattern.permute.xlu0 0
  %100 = vperm.xlu0 %99, %v80
  %v101 = vpop.permute.xlu0 %100
  %104 = vset.pattern.permute.xlu0 0
  %105 = vperm.xlu0 %104, %v81
  %v106 = vpop.permute.xlu0 %105
  %109 = vset.pattern.permute.xlu0 0
  %110 = vperm.xlu0 %109, %v82
  %v111 = vpop.permute.xlu0 %110
  %v113 = vmul.f32 %v70, %v86
  %v114 = vmul.f32 %v71, %v91
  %v115 = vmul.f32 %v72, %v96
  %v116 = vmul.f32 %v73, %v101
  %v117 = vmul.f32 %v74, %v106
  %v118 = vmul.f32 %v75, %v111
  %v119 = vadd.f32 %v63, %v113
  %v120 = vadd.f32 %v64, %v114
  %v121 = vadd.f32 %v65, %v115
  %v122 = vadd.f32 %v66, %v116
  %v123 = vadd.f32 %v67, %v117
  %v124 = vadd.f32 %v68, %v118
  %s125 = scalar_lea.vmem %s0, 96
  %v126 = vld [vmem:[%s125] sm:$0xff]
  %v127 = vld [vmem:[%s125 + $0x8] sm:$0xff]
  %v128 = vld [vmem:[%s125 + $0x10] sm:$0xff]
  %v129 = vld [vmem:[%s125 + $0x18] sm:$0xff]
  %v130 = vld [vmem:[%s125 + $0x20] sm:$0xff]
  %v131 = vld [vmem:[%s125 + $0x28] sm:$0xff]
  %s132 = scalar_lea.vmem %s1, 96
  %v133 = vld [vmem:[%s132] sm:$0xff]
  %v134 = vld [vmem:[%s132 + $0x8] sm:$0xff]
  %v135 = vld [vmem:[%s132 + $0x10] sm:$0xff]
  %v136 = vld [vmem:[%s132 + $0x18] sm:$0xff]
  %v137 = vld [vmem:[%s132 + $0x20] sm:$0xff]
  %v138 = vld [vmem:[%s132 + $0x28] sm:$0xff]
  %140 = vset.pattern.permute.xlu0 0
  %141 = vperm.xlu0 %140, %v133
  %v142 = vpop.permute.xlu0 %141
  %145 = vset.pattern.permute.xlu0 0
  %146 = vperm.xlu0 %145, %v134
  %v147 = vpop.permute.xlu0 %146
  %150 = vset.pattern.permute.xlu0 0
  %151 = vperm.xlu0 %150, %v135
  %v152 = vpop.permute.xlu0 %151
  %155 = vset.pattern.permute.xlu0 0
  %156 = vperm.xlu0 %155, %v136
  %v157 = vpop.permute.xlu0 %156
  %160 = vset.pattern.permute.xlu0 0
  %161 = vperm.xlu0 %160, %v137
  %v162 = vpop.permute.xlu0 %161
  %165 = vset.pattern.permute.xlu0 0
  %166 = vperm.xlu0 %165, %v138
  %v167 = vpop.permute.xlu0 %166
  %v169 = vmul.f32 %v126, %v142
  %v170 = vmul.f32 %v127, %v147
  %v171 = vmul.f32 %v128, %v152
  %v172 = vmul.f32 %v129, %v157
  %v173 = vmul.f32 %v130, %v162
  %v174 = vmul.f32 %v131, %v167
  %v175 = vadd.f32 %v119, %v169
  %v176 = vadd.f32 %v120, %v170
  %v177 = vadd.f32 %v121, %v171
  %v178 = vadd.f32 %v122, %v172
  %v179 = vadd.f32 %v123, %v173
  %v180 = vadd.f32 %v124, %v174
  %s181 = scalar_lea.vmem %s0, 144
  %v182 = vld [vmem:[%s181] sm:$0xff]
  %v183 = vld [vmem:[%s181 + $0x8] sm:$0xff]
  %v184 = vld [vmem:[%s181 + $0x10] sm:$0xff]
  %v185 = vld [vmem:[%s181 + $0x18] sm:$0xff]
  %v186 = vld [vmem:[%s181 + $0x20] sm:$0xff]
  %v187 = vld [vmem:[%s181 + $0x28] sm:$0xff]
  %s188 = scalar_lea.vmem %s1, 144
  %v189 = vld [vmem:[%s188] sm:$0xff]
  %v190 = vld [vmem:[%s188 + $0x8] sm:$0xff]
  %v191 = vld [vmem:[%s188 + $0x10] sm:$0xff]
  %v192 = vld [vmem:[%s188 + $0x18] sm:$0xff]
  %v193 = vld [vmem:[%s188 + $0x20] sm:$0xff]
  %v194 = vld [vmem:[%s188 + $0x28] sm:$0xff]
  %196 = vset.pattern.permute.xlu0 0
  %197 = vperm.xlu0 %196, %v189
  %v198 = vpop.permute.xlu0 %197
  %201 = vset.pattern.permute.xlu0 0
  %202 = vperm.xlu0 %201, %v190
  %v203 = vpop.permute.xlu0 %202
  %206 = vset.pattern.permute.xlu0 0
  %207 = vperm.xlu0 %206, %v191
  %v208 = vpop.permute.xlu0 %207
  %211 = vset.pattern.permute.xlu0 0
  %212 = vperm.xlu0 %211, %v192
  %v213 = vpop.permute.xlu0 %212
  %216 = vset.pattern.permute.xlu0 0
  %217 = vperm.xlu0 %216, %v193
  %v218 = vpop.permute.xlu0 %217
  %221 = vset.pattern.permute.xlu0 0
  %222 = vperm.xlu0 %221, %v194
  %v223 = vpop.permute.xlu0 %222
  %v225 = vmul.f32 %v182, %v198
  %v226 = vmul.f32 %v183, %v203
  %v227 = vmul.f32 %v184, %v208
  %v228 = vmul.f32 %v185, %v213
  %v229 = vmul.f32 %v186, %v218
  %v230 = vmul.f32 %v187, %v223
  %v231 = vadd.f32 %v175, %v225
  %v232 = vadd.f32 %v176, %v226
  %v233 = vadd.f32 %v177, %v227
  %v234 = vadd.f32 %v178, %v228
  %v235 = vadd.f32 %v179, %v229
  %v236 = vadd.f32 %v180, %v230
  %s237 = scalar_lea.vmem %s0, 192
  %v238 = vld [vmem:[%s237] sm:$0xff]
  %v239 = vld [vmem:[%s237 + $0x8] sm:$0xff]
  %v240 = vld [vmem:[%s237 + $0x10] sm:$0xff]
  %v241 = vld [vmem:[%s237 + $0x18] sm:$0xff]
  %v242 = vld [vmem:[%s237 + $0x20] sm:$0xff]
  %v243 = vld [vmem:[%s237 + $0x28] sm:$0xff]
  %s244 = scalar_lea.vmem %s1, 192
  %v245 = vld [vmem:[%s244] sm:$0xff]
  %v246 = vld [vmem:[%s244 + $0x8] sm:$0xff]
  %v247 = vld [vmem:[%s244 + $0x10] sm:$0xff]
  %v248 = vld [vmem:[%s244 + $0x18] sm:$0xff]
  %v249 = vld [vmem:[%s244 + $0x20] sm:$0xff]
  %v250 = vld [vmem:[%s244 + $0x28] sm:$0xff]
  %252 = vset.pattern.permute.xlu0 0
  %253 = vperm.xlu0 %252, %v245
  %v254 = vpop.permute.xlu0 %253
  %257 = vset.pattern.permute.xlu0 0
  %258 = vperm.xlu0 %257, %v246
  %v259 = vpop.permute.xlu0 %258
  %262 = vset.pattern.permute.xlu0 0
  %263 = vperm.xlu0 %262, %v247
  %v264 = vpop.permute.xlu0 %263
  %267 = vset.pattern.permute.xlu0 0
  %268 = vperm.xlu0 %267, %v248
  %v269 = vpop.permute.xlu0 %268
  %272 = vset.pattern.permute.xlu0 0
  %273 = vperm.xlu0 %272, %v249
  %v274 = vpop.permute.xlu0 %273
  %277 = vset.pattern.permute.xlu0 0
  %278 = vperm.xlu0 %277, %v250
  %v279 = vpop.permute.xlu0 %278
  %v281 = vmul.f32 %v238, %v254
  %v282 = vmul.f32 %v239, %v259
  %v283 = vmul.f32 %v240, %v264
  %v284 = vmul.f32 %v241, %v269
  %v285 = vmul.f32 %v242, %v274
  %v286 = vmul.f32 %v243, %v279
  %v287 = vadd.f32 %v231, %v281
  %v288 = vadd.f32 %v232, %v282
  %v289 = vadd.f32 %v233, %v283
  %v290 = vadd.f32 %v234, %v284
  %v291 = vadd.f32 %v235, %v285
  %v292 = vadd.f32 %v236, %v286
  %s293 = scalar_lea.vmem %s0, 240
  %v294 = vld [vmem:[%s293] sm:$0xff]
  %v295 = vld [vmem:[%s293 + $0x8] sm:$0xff]
  %v296 = vld [vmem:[%s293 + $0x10] sm:$0xff]
  %v297 = vld [vmem:[%s293 + $0x18] sm:$0xff]
  %v298 = vld [vmem:[%s293 + $0x20] sm:$0xff]
  %v299 = vld [vmem:[%s293 + $0x28] sm:$0xff]
  %s300 = scalar_lea.vmem %s1, 240
  %v301 = vld [vmem:[%s300] sm:$0xff]
  %v302 = vld [vmem:[%s300 + $0x8] sm:$0xff]
  %v303 = vld [vmem:[%s300 + $0x10] sm:$0xff]
  %v304 = vld [vmem:[%s300 + $0x18] sm:$0xff]
  %v305 = vld [vmem:[%s300 + $0x20] sm:$0xff]
  %v306 = vld [vmem:[%s300 + $0x28] sm:$0xff]
  %308 = vset.pattern.permute.xlu0 0
  %309 = vperm.xlu0 %308, %v301
  %v310 = vpop.permute.xlu0 %309
  %313 = vset.pattern.permute.xlu0 0
  %314 = vperm.xlu0 %313, %v302
  %v315 = vpop.permute.xlu0 %314
  %318 = vset.pattern.permute.xlu0 0
  %319 = vperm.xlu0 %318, %v303
  %v320 = vpop.permute.xlu0 %319
  %323 = vset.pattern.permute.xlu0 0
  %324 = vperm.xlu0 %323, %v304
  %v325 = vpop.permute.xlu0 %324
  %328 = vset.pattern.permute.xlu0 0
  %329 = vperm.xlu0 %328, %v305
  %v330 = vpop.permute.xlu0 %329
  %333 = vset.pattern.permute.xlu0 0
  %334 = vperm.xlu0 %333, %v306
  %v335 = vpop.permute.xlu0 %334
  %v337 = vmul.f32 %v294, %v310
  %v338 = vmul.f32 %v295, %v315
  %v339 = vmul.f32 %v296, %v320
  %v340 = vmul.f32 %v297, %v325
  %v341 = vmul.f32 %v298, %v330
  %v342 = vmul.f32 %v299, %v335
  %v343 = vadd.f32 %v287, %v337
  %v344 = vadd.f32 %v288, %v338
  %v345 = vadd.f32 %v289, %v339
  %v346 = vadd.f32 %v290, %v340
  %v347 = vadd.f32 %v291, %v341
  %v348 = vadd.f32 %v292, %v342
  %s349 = scalar_lea.vmem %s0, 288
  %v350 = vld [vmem:[%s349] sm:$0xff]
  %v351 = vld [vmem:[%s349 + $0x8] sm:$0xff]
  %v352 = vld [vmem:[%s349 + $0x10] sm:$0xff]
  %v353 = vld [vmem:[%s349 + $0x18] sm:$0xff]
  %v354 = vld [vmem:[%s349 + $0x20] sm:$0xff]
  %v355 = vld [vmem:[%s349 + $0x28] sm:$0xff]
  %s356 = scalar_lea.vmem %s1, 288
  %v357 = vld [vmem:[%s356] sm:$0xff]
  %v358 = vld [vmem:[%s356 + $0x8] sm:$0xff]
  %v359 = vld [vmem:[%s356 + $0x10] sm:$0xff]
  %v360 = vld [vmem:[%s356 + $0x18] sm:$0xff]
  %v361 = vld [vmem:[%s356 + $0x20] sm:$0xff]
  %v362 = vld [vmem:[%s356 + $0x28] sm:$0xff]
  %364 = vset.pattern.permute.xlu0 0
  %365 = vperm.xlu0 %364, %v357
  %v366 = vpop.permute.xlu0 %365
  %369 = vset.pattern.permute.xlu0 0
  %370 = vperm.xlu0 %369, %v358
  %v371 = vpop.permute.xlu0 %370
  %374 = vset.pattern.permute.xlu0 0
  %375 = vperm.xlu0 %374, %v359
  %v376 = vpop.permute.xlu0 %375
  %379 = vset.pattern.permute.xlu0 0
  %380 = vperm.xlu0 %379, %v360
  %v381 = vpop.permute.xlu0 %380
  %384 = vset.pattern.permute.xlu0 0
  %385 = vperm.xlu0 %384, %v361
  %v386 = vpop.permute.xlu0 %385
  %389 = vset.pattern.permute.xlu0 0
  %390 = vperm.xlu0 %389, %v362
  %v391 = vpop.permute.xlu0 %390
  %v393 = vmul.f32 %v350, %v366
  %v394 = vmul.f32 %v351, %v371
  %v395 = vmul.f32 %v352, %v376
  %v396 = vmul.f32 %v353, %v381
  %v397 = vmul.f32 %v354, %v386
  %v398 = vmul.f32 %v355, %v391
  %v399 = vadd.f32 %v343, %v393
  %v400 = vadd.f32 %v344, %v394
  %v401 = vadd.f32 %v345, %v395
  %v402 = vadd.f32 %v346, %v396
  %v403 = vadd.f32 %v347, %v397
  %v404 = vadd.f32 %v348, %v398
  %s405 = scalar_lea.vmem %s0, 336
  %v406 = vld [vmem:[%s405] sm:$0xff]
  %v407 = vld [vmem:[%s405 + $0x8] sm:$0xff]
  %v408 = vld [vmem:[%s405 + $0x10] sm:$0xff]
  %v409 = vld [vmem:[%s405 + $0x18] sm:$0xff]
  %v410 = vld [vmem:[%s405 + $0x20] sm:$0xff]
  %v411 = vld [vmem:[%s405 + $0x28] sm:$0xff]
  %s412 = scalar_lea.vmem %s1, 336
  %v413 = vld [vmem:[%s412] sm:$0xff]
  %v414 = vld [vmem:[%s412 + $0x8] sm:$0xff]
  %v415 = vld [vmem:[%s412 + $0x10] sm:$0xff]
  %v416 = vld [vmem:[%s412 + $0x18] sm:$0xff]
  %v417 = vld [vmem:[%s412 + $0x20] sm:$0xff]
  %v418 = vld [vmem:[%s412 + $0x28] sm:$0xff]
  %420 = vset.pattern.permute.xlu0 0
  %421 = vperm.xlu0 %420, %v413
  %v422 = vpop.permute.xlu0 %421
  %425 = vset.pattern.permute.xlu0 0
  %426 = vperm.xlu0 %425, %v414
  %v427 = vpop.permute.xlu0 %426
  %430 = vset.pattern.permute.xlu0 0
  %431 = vperm.xlu0 %430, %v415
  %v432 = vpop.permute.xlu0 %431
  %435 = vset.pattern.permute.xlu0 0
  %436 = vperm.xlu0 %435, %v416
  %v437 = vpop.permute.xlu0 %436
  %440 = vset.pattern.permute.xlu0 0
  %441 = vperm.xlu0 %440, %v417
  %v442 = vpop.permute.xlu0 %441
  %445 = vset.pattern.permute.xlu0 0
  %446 = vperm.xlu0 %445, %v418
  %v447 = vpop.permute.xlu0 %446
  %v449 = vmul.f32 %v406, %v422
  %v450 = vmul.f32 %v407, %v427
  %v451 = vmul.f32 %v408, %v432
  %v452 = vmul.f32 %v409, %v437
  %v453 = vmul.f32 %v410, %v442
  %v454 = vmul.f32 %v411, %v447
  %v455 = vadd.f32 %v399, %v449
  %v456 = vadd.f32 %v400, %v450
  %v457 = vadd.f32 %v401, %v451
  %v458 = vadd.f32 %v402, %v452
  %v459 = vadd.f32 %v403, %v453
  %v460 = vadd.f32 %v404, %v454
  %s461 = scalar_lea.vmem %s0, 384
  %v462 = vld [vmem:[%s461] sm:$0xff]
  %v463 = vld [vmem:[%s461 + $0x8] sm:$0xff]
  %v464 = vld [vmem:[%s461 + $0x10] sm:$0xff]
  %v465 = vld [vmem:[%s461 + $0x18] sm:$0xff]
  %v466 = vld [vmem:[%s461 + $0x20] sm:$0xff]
  %v467 = vld [vmem:[%s461 + $0x28] sm:$0xff]
  %s468 = scalar_lea.vmem %s1, 384
  %v469 = vld [vmem:[%s468] sm:$0xff]
  %v470 = vld [vmem:[%s468 + $0x8] sm:$0xff]
  %v471 = vld [vmem:[%s468 + $0x10] sm:$0xff]
  %v472 = vld [vmem:[%s468 + $0x18] sm:$0xff]
  %v473 = vld [vmem:[%s468 + $0x20] sm:$0xff]
  %v474 = vld [vmem:[%s468 + $0x28] sm:$0xff]
  %476 = vset.pattern.permute.xlu0 0
  %477 = vperm.xlu0 %476, %v469
  %v478 = vpop.permute.xlu0 %477
  %481 = vset.pattern.permute.xlu0 0
  %482 = vperm.xlu0 %481, %v470
  %v483 = vpop.permute.xlu0 %482
  %486 = vset.pattern.permute.xlu0 0
  %487 = vperm.xlu0 %486, %v471
  %v488 = vpop.permute.xlu0 %487
  %491 = vset.pattern.permute.xlu0 0
  %492 = vperm.xlu0 %491, %v472
  %v493 = vpop.permute.xlu0 %492
  %496 = vset.pattern.permute.xlu0 0
  %497 = vperm.xlu0 %496, %v473
  %v498 = vpop.permute.xlu0 %497
  %501 = vset.pattern.permute.xlu0 0
  %502 = vperm.xlu0 %501, %v474
  %v503 = vpop.permute.xlu0 %502
  %v505 = vmul.f32 %v462, %v478
  %v506 = vmul.f32 %v463, %v483
  %v507 = vmul.f32 %v464, %v488
  %v508 = vmul.f32 %v465, %v493
  %v509 = vmul.f32 %v466, %v498
  %v510 = vmul.f32 %v467, %v503
  %v511 = vadd.f32 %v455, %v505
  %v512 = vadd.f32 %v456, %v506
  %v513 = vadd.f32 %v457, %v507
  %v514 = vadd.f32 %v458, %v508
  %v515 = vadd.f32 %v459, %v509
  %v516 = vadd.f32 %v460, %v510
  %v517 = vld [vmem:[%s2] sm:$0xff]
  %v518 = vld [vmem:[%s2 + $0x8] sm:$0xff]
  %v519 = vld [vmem:[%s2 + $0x10] sm:$0xff]
  %v520 = vld [vmem:[%s2 + $0x18] sm:$0xff]
  %v521 = vld [vmem:[%s2 + $0x20] sm:$0xff]
  %v522 = vld [vmem:[%s2 + $0x28] sm:$0xff]
  %524 = vset.pattern.permute.xlu0 0
  %525 = vperm.xlu0 %524, %v517
  %v526 = vpop.permute.xlu0 %525
  %529 = vset.pattern.permute.xlu0 0
  %530 = vperm.xlu0 %529, %v518
  %v531 = vpop.permute.xlu0 %530
  %534 = vset.pattern.permute.xlu0 0
  %535 = vperm.xlu0 %534, %v519
  %v536 = vpop.permute.xlu0 %535
  %539 = vset.pattern.permute.xlu0 0
  %540 = vperm.xlu0 %539, %v520
  %v541 = vpop.permute.xlu0 %540
  %544 = vset.pattern.permute.xlu0 0
  %545 = vperm.xlu0 %544, %v521
  %v546 = vpop.permute.xlu0 %545
  %549 = vset.pattern.permute.xlu0 0
  %550 = vperm.xlu0 %549, %v522
  %v551 = vpop.permute.xlu0 %550
  %v553 = vadd.f32 %v511, %v526
  %v554 = vadd.f32 %v512, %v531
  %v555 = vadd.f32 %v513, %v536
  %v556 = vadd.f32 %v514, %v541
  %v557 = vadd.f32 %v515, %v546
  %v558 = vadd.f32 %v516, %v551
  %v559 = vld [vmem:[%s3] sm:$0xf]
  %v560 = vld [vmem:[%s3 + $0x4] sm:$0xf]
  %v561 = vld [vmem:[%s3 + $0x8] sm:$0xf]
  %v562 = vld [vmem:[%s3 + $0xc] sm:$0xf]
  %v563 = vld [vmem:[%s3 + $0x10] sm:$0xf]
  %v564 = vld [vmem:[%s3 + $0x14] sm:$0xf]
  %v565 = vpack.c.bf16 %v554, %v553
  %v566 = vpack.c.bf16 %v556, %v555
  %v567 = vpack.c.bf16 %v558, %v557
  %v568 = vld [vmem:[%s4] sm:$0xff]
  %v569 = vld [vmem:[%s4 + $0x8] sm:$0xff]
  %v570 = vld [vmem:[%s4 + $0x10] sm:$0xff]
  %v571 = vld [vmem:[%s4 + $0x18] sm:$0xff]
  %v572 = vld [vmem:[%s4 + $0x20] sm:$0xff]
  %v573 = vld [vmem:[%s4 + $0x28] sm:$0xff]
  %575 = vset.pattern.permute.xlu0 0
  %576 = vperm.xlu0 %575, %v568
  %v577 = vpop.permute.xlu0 %576
  %580 = vset.pattern.permute.xlu0 0
  %581 = vperm.xlu0 %580, %v569
  %v582 = vpop.permute.xlu0 %581
  %585 = vset.pattern.permute.xlu0 0
  %586 = vperm.xlu0 %585, %v570
  %v587 = vpop.permute.xlu0 %586
  %590 = vset.pattern.permute.xlu0 0
  %591 = vperm.xlu0 %590, %v571
  %v592 = vpop.permute.xlu0 %591
  %595 = vset.pattern.permute.xlu0 0
  %596 = vperm.xlu0 %595, %v572
  %v597 = vpop.permute.xlu0 %596
  %600 = vset.pattern.permute.xlu0 0
  %601 = vperm.xlu0 %600, %v573
  %v602 = vpop.permute.xlu0 %601
  %v610 = vunpack.c.l.b16 %v559
  %v611 = vunpack.c.l.b16 %v560
  %v612 = vunpack.c.l.b16 %v561
  %v613 = vunpack.c.l.b16 %v562
  %v614 = vunpack.c.l.b16 %v563
  %v615 = vunpack.c.l.b16 %v564
  %v616 = vpack.c.b16 %v611, %v610
  %v617 = vpack.c.b16 %v613, %v612
  %v618 = vpack.c.b16 %v615, %v614
  %vm619 = vcmask 392192
  %v621 = vsel %vm619, %v616, 0
  %v624 = vsel %vm619, %v617, 0
  %v627 = vsel %vm619, %v618, 0
  %629 = vmatprep.subr.bf16.mxu0 0
  %630 = vmatpush1.bf16.msra.mxu0 %v565
  %631 = vmatprep.subr.bf16.mxu0 0
  %632 = vmatpush1.bf16.msra.mxu0 %v566
  %633 = vmatprep.subr.bf16.mxu0 0
  %634 = vmatpush1.bf16.msra.mxu0 %v567
  %635 = vmatprep.subr.bf16.mxu0 0
  %636 = vmatpush1.bf16.msra.mxu0 0
  %637 = vmatprep.subr.bf16.mxu0 0
  %638 = vmatpush1.bf16.msra.mxu0 0
  %639 = vmatprep.subr.bf16.mxu0 0
  %640 = vmatpush1.bf16.msra.mxu0 0
  %641 = vmatprep.subr.bf16.mxu0 0
  %642 = vmatpush1.bf16.msra.mxu0 0
  %643 = vmatprep.subr.bf16.mxu0 0
  %644 = vmatpush1.bf16.msra.mxu0 0
  %645 = vmatprep.subr.bf16.mxu0 0
  %646 = vmatpush1.bf16.msra.mxu0 0
  %647 = vmatprep.subr.bf16.mxu0 0
  %648 = vmatpush1.bf16.msra.mxu0 0
  %649 = vmatprep.subr.bf16.mxu0 0
  %650 = vmatpush1.bf16.msra.mxu0 0
  %651 = vmatprep.subr.bf16.mxu0 0
  %652 = vmatpush1.bf16.msra.mxu0 0
  %653 = vmatprep.subr.bf16.mxu0 0
  %654 = vmatpush1.bf16.msra.mxu0 0
  %655 = vmatprep.subr.bf16.mxu0 0
  %656 = vmatpush1.bf16.msra.mxu0 0
  %657 = vmatprep.subr.bf16.mxu0 0
  %658 = vmatpush1.bf16.msra.mxu0 0
  %659 = vmatprep.subr.bf16.mxu0 0
  %660 = vmatpush1.bf16.msra.mxu0 0
  %661 = vmatprep.mubr.bf16.mxu0 0
  %662 = vmatmul.mubr.bf16.gmra.mrb[0].mxu0 %v621
  %v663 = vpop.f32.mrb[0].mxu0
  %v664 = vadd.f32 %v577, %v663
  %v665 = vpop.f32.mrb[0].mxu0
  %v666 = vpop.f32.mrb[0].mxu0
  %v667 = vadd.f32 %v582, %v666
  %v668 = vpop.f32.mrb[0].mxu0
  %669 = vmatprep.mubr.bf16.mxu0 0
  %670 = vmatmul.mubr.bf16.gmra.mrb[0].mxu0 %v624
  %v671 = vpop.f32.mrb[0].mxu0
  %v672 = vadd.f32 %v587, %v671
  %v673 = vpop.f32.mrb[0].mxu0
  %v674 = vpop.f32.mrb[0].mxu0
  %v675 = vadd.f32 %v592, %v674
  %v676 = vpop.f32.mrb[0].mxu0
  %677 = vmatprep.mubr.bf16.mxu0 0
  %678 = vmatmul.mubr.bf16.gmra.mrb[0].mxu0 %v627
  %v679 = vpop.f32.mrb[0].mxu0
  %v680 = vadd.f32 %v597, %v679
  %v681 = vpop.f32.mrb[0].mxu0
  %v682 = vpop.f32.mrb[0].mxu0
  %v683 = vadd.f32 %v602, %v682
  %v684 = vpop.f32.mrb[0].mxu0
  %685 = vdwg.mxu0
  %v686 = vmax.f32 %v664, 0.0
  %v687 = vmax.f32 %v667, 0.0
  %v688 = vmax.f32 %v672, 0.0
  %v689 = vmax.f32 %v675, 0.0
  %v690 = vmax.f32 %v680, 0.0
  %v691 = vmax.f32 %v683, 0.0
  %692 = vst [vmem:[%s5] sm:$0xff] %v686
  %693 = vst [vmem:[%s5 + $0x8] sm:$0xff] %v687
  %694 = vst [vmem:[%s5 + $0x10] sm:$0xff] %v688
  %695 = vst [vmem:[%s5 + $0x18] sm:$0xff] %v689
  %696 = vst [vmem:[%s5 + $0x20] sm:$0xff] %v690
  %697 = vst [vmem:[%s5 + $0x28] sm:$0xff] %v691
  // Predicated region
  $region22: #{_lambda_.50} parent=0 // pred_check
    _
  $region23: #{_lambda_.50} parent=0 // pred_check_branch
    %699 = sbr.rel (0) target = $region25
  $region24: #{_lambda_.50} parent=0 // pred_region
    _
  $region25: #{_lambda_.50} parent=0 // pred_fallthru
    _
  // Predicated region
  $region26: #{_lambda_.50} parent=0 // pred_check
    _
  $region27: #{_lambda_.50} parent=0 // pred_check_branch
    %701 = sbr.rel (0) target = $region29
  $region28: #{_lambda_.50} parent=0 // pred_region
    _
  $region29: #{_lambda_.50} parent=0 // pred_fallthru
    _

// kernel: _lambda_.68
$region0: #{_lambda_.68}
  #allocation0 [shape = 'u32[]', space=smem, size = 0x4, offset = 0x4, fixed_abs, tag = 'smem constant byte address 0x4 - core index']
  #allocation1 [shape = 'u32[144,128]{1,0:T(1,128)}', space=vmem, size = 0x12000, scoped, tag = 'internal scratch']
  %s0 = inlined_call_operand.vmem [shape: bf16[96,128], index: 0, kind: input, shape index: {}]
  %s1 = inlined_call_operand.vmem [shape: bf16[96,96], index: 1, kind: input, shape index: {}]
  %s2 = inlined_call_operand.vmem [shape: f32[96,1], index: 2, kind: input, shape index: {}]
  %s3 = inlined_call_operand.vmem [shape: f32[96,128], index: 3, kind: output, shape index: {}]
  %s4 = sld [smem:[#allocation0]]
  $region22: #{_lambda_.68} parent=0
    _
  %s6 = ssub.s32 1, %s4
  %s7 = scalar_select 0, %s6, %s4
  // Predicated region
  $region2: #{_lambda_.68} parent=0 // pred_check
    _
  $region3: #{_lambda_.68} parent=0 // pred_check_branch
    %9 = sbr.rel (0) target = $region5
  $region4: #{_lambda_.68} parent=0 // pred_region
    _
  $region5: #{_lambda_.68} parent=0 // pred_fallthru
    _
  // Predicated region
  $region6: #{_lambda_.68} parent=0 // pred_check
    _
  $region7: #{_lambda_.68} parent=0 // pred_check_branch
    %11 = sbr.rel (0) target = $region9
  $region8: #{_lambda_.68} parent=0 // pred_region
    _
  $region9: #{_lambda_.68} parent=0 // pred_fallthru
    _
  // Predicated region
  $region10: #{_lambda_.68} parent=0 // pred_check
    _
  $region11: #{_lambda_.68} parent=0 // pred_check_branch
    %13 = sbr.rel (0) target = $region13
  $region12: #{_lambda_.68} parent=0 // pred_region
    _
  $region13: #{_lambda_.68} parent=0 // pred_fallthru
    _
  %v15 = vld [vmem:[%s1] sm:$0xf]
  %v16 = vld [vmem:[%s1 + $0x4] sm:$0xf]
  %v17 = vld [vmem:[%s1 + $0x8] sm:$0xf]
  %v18 = vld [vmem:[%s1 + $0xc] sm:$0xf]
  %v19 = vld [vmem:[%s1 + $0x10] sm:$0xf]
  %v20 = vld [vmem:[%s1 + $0x14] sm:$0xf]
  %v21 = vld [vmem:[%s1 + $0x18] sm:$0xf]
  %v22 = vld [vmem:[%s1 + $0x1c] sm:$0xf]
  %v23 = vld [vmem:[%s1 + $0x20] sm:$0xf]
  %v24 = vld [vmem:[%s1 + $0x24] sm:$0xf]
  %v25 = vld [vmem:[%s1 + $0x28] sm:$0xf]
  %v26 = vld [vmem:[%s1 + $0x2c] sm:$0xf]
  %v27 = vld [vmem:[%s0] sm:$0xf]
  %v28 = vld [vmem:[%s0 + $0x4] sm:$0xf]
  %v29 = vld [vmem:[%s0 + $0x8] sm:$0xf]
  %v30 = vld [vmem:[%s0 + $0xc] sm:$0xf]
  %v31 = vld [vmem:[%s0 + $0x10] sm:$0xf]
  %v32 = vld [vmem:[%s0 + $0x14] sm:$0xf]
  %v33 = vld [vmem:[%s0 + $0x18] sm:$0xf]
  %v34 = vld [vmem:[%s0 + $0x1c] sm:$0xf]
  %v35 = vld [vmem:[%s0 + $0x20] sm:$0xf]
  %v36 = vld [vmem:[%s0 + $0x24] sm:$0xf]
  %v37 = vld [vmem:[%s0 + $0x28] sm:$0xf]
  %v38 = vld [vmem:[%s0 + $0x2c] sm:$0xf]
  %v39 = vld [vmem:[%s2] sm:$0xff]
  %v40 = vld [vmem:[%s2 + $0x8] sm:$0xff]
  %v41 = vld [vmem:[%s2 + $0x10] sm:$0xff]
  %v42 = vld [vmem:[%s2 + $0x18] sm:$0xff]
  %v43 = vld [vmem:[%s2 + $0x20] sm:$0xff]
  %v44 = vld [vmem:[%s2 + $0x28] sm:$0xff]
  %v45 = vld [vmem:[%s2 + $0x30] sm:$0xff]
  %v46 = vld [vmem:[%s2 + $0x38] sm:$0xff]
  %v47 = vld [vmem:[%s2 + $0x40] sm:$0xff]
  %v48 = vld [vmem:[%s2 + $0x48] sm:$0xff]
  %v49 = vld [vmem:[%s2 + $0x50] sm:$0xff]
  %v50 = vld [vmem:[%s2 + $0x58] sm:$0xff]
  %52 = vset.pattern.permute.xlu0 0
  %53 = vperm.xlu0 %52, %v39
  %v54 = vpop.permute.xlu0 %53
  %57 = vset.pattern.permute.xlu0 0
  %58 = vperm.xlu0 %57, %v40
  %v59 = vpop.permute.xlu0 %58
  %62 = vset.pattern.permute.xlu0 0
  %63 = vperm.xlu0 %62, %v41
  %v64 = vpop.permute.xlu0 %63
  %67 = vset.pattern.permute.xlu0 0
  %68 = vperm.xlu0 %67, %v42
  %v69 = vpop.permute.xlu0 %68
  %72 = vset.pattern.permute.xlu0 0
  %73 = vperm.xlu0 %72, %v43
  %v74 = vpop.permute.xlu0 %73
  %77 = vset.pattern.permute.xlu0 0
  %78 = vperm.xlu0 %77, %v44
  %v79 = vpop.permute.xlu0 %78
  %82 = vset.pattern.permute.xlu0 0
  %83 = vperm.xlu0 %82, %v45
  %v84 = vpop.permute.xlu0 %83
  %87 = vset.pattern.permute.xlu0 0
  %88 = vperm.xlu0 %87, %v46
  %v89 = vpop.permute.xlu0 %88
  %92 = vset.pattern.permute.xlu0 0
  %93 = vperm.xlu0 %92, %v47
  %v94 = vpop.permute.xlu0 %93
  %97 = vset.pattern.permute.xlu0 0
  %98 = vperm.xlu0 %97, %v48
  %v99 = vpop.permute.xlu0 %98
  %102 = vset.pattern.permute.xlu0 0
  %103 = vperm.xlu0 %102, %v49
  %v104 = vpop.permute.xlu0 %103
  %107 = vset.pattern.permute.xlu0 0
  %108 = vperm.xlu0 %107, %v50
  %v109 = vpop.permute.xlu0 %108
  %v123 = vunpack.c.l.b16 %v15
  %v124 = vunpack.c.l.b16 %v16
  %v125 = vunpack.c.l.b16 %v17
  %v126 = vunpack.c.l.b16 %v18
  %v127 = vunpack.c.l.b16 %v19
  %v128 = vunpack.c.l.b16 %v20
  %v129 = vunpack.c.l.b16 %v21
  %v130 = vunpack.c.l.b16 %v22
  %v131 = vunpack.c.l.b16 %v23
  %v132 = vunpack.c.l.b16 %v24
  %v133 = vunpack.c.l.b16 %v25
  %v134 = vunpack.c.l.b16 %v26
  %v135 = vpack.c.b16 %v124, %v123
  %v136 = vpack.c.b16 %v126, %v125
  %v137 = vpack.c.b16 %v128, %v127
  %v138 = vpack.c.b16 %v130, %v129
  %v139 = vpack.c.b16 %v132, %v131
  %v140 = vpack.c.b16 %v134, %v133
  %v153 = vunpack.c.l.b16 %v27
  %v154 = vunpack.c.l.b16 %v28
  %v155 = vunpack.c.l.b16 %v29
  %v156 = vunpack.c.l.b16 %v30
  %v157 = vunpack.c.l.b16 %v31
  %v158 = vunpack.c.l.b16 %v32
  %v159 = vunpack.c.l.b16 %v33
  %v160 = vunpack.c.l.b16 %v34
  %v161 = vunpack.c.l.b16 %v35
  %v162 = vunpack.c.l.b16 %v36
  %v163 = vunpack.c.l.b16 %v37
  %v164 = vunpack.c.l.b16 %v38
  %v165 = vpack.c.b16 %v154, %v153
  %v166 = vpack.c.b16 %v156, %v155
  %v167 = vpack.c.b16 %v158, %v157
  %v168 = vpack.c.b16 %v160, %v159
  %v169 = vpack.c.b16 %v162, %v161
  %v170 = vpack.c.b16 %v164, %v163
  %vm177 = vcmask 785408
  %v179 = vsel %vm177, %v135, 0
  %v182 = vsel %vm177, %v136, 0
  %v185 = vsel %vm177, %v137, 0
  %v188 = vsel %vm177, %v138, 0
  %v191 = vsel %vm177, %v139, 0
  %v194 = vsel %vm177, %v140, 0
  %196 = vmatprep.subr.bf16.mxu0 0
  %197 = vmatpush1.bf16.msra.mxu0 %v165
  %198 = vmatprep.subr.bf16.mxu0 0
  %199 = vmatpush1.bf16.msra.mxu0 %v166
  %200 = vmatprep.subr.bf16.mxu0 0
  %201 = vmatpush1.bf16.msra.mxu0 %v167
  %202 = vmatprep.subr.bf16.mxu0 0
  %203 = vmatpush1.bf16.msra.mxu0 %v168
  %204 = vmatprep.subr.bf16.mxu0 0
  %205 = vmatpush1.bf16.msra.mxu0 %v169
  %206 = vmatprep.subr.bf16.mxu0 0
  %207 = vmatpush1.bf16.msra.mxu0 %v170
  %208 = vmatprep.subr.bf16.mxu0 0
  %209 = vmatpush1.bf16.msra.mxu0 0
  %210 = vmatprep.subr.bf16.mxu0 0
  %211 = vmatpush1.bf16.msra.mxu0 0
  %212 = vmatprep.subr.bf16.mxu0 0
  %213 = vmatpush1.bf16.msra.mxu0 0
  %214 = vmatprep.subr.bf16.mxu0 0
  %215 = vmatpush1.bf16.msra.mxu0 0
  %216 = vmatprep.subr.bf16.mxu0 0
  %217 = vmatpush1.bf16.msra.mxu0 0
  %218 = vmatprep.subr.bf16.mxu0 0
  %219 = vmatpush1.bf16.msra.mxu0 0
  %220 = vmatprep.subr.bf16.mxu0 0
  %221 = vmatpush1.bf16.msra.mxu0 0
  %222 = vmatprep.subr.bf16.mxu0 0
  %223 = vmatpush1.bf16.msra.mxu0 0
  %224 = vmatprep.subr.bf16.mxu0 0
  %225 = vmatpush1.bf16.msra.mxu0 0
  %226 = vmatprep.subr.bf16.mxu0 0
  %227 = vmatpush1.bf16.msra.mxu0 0
  %228 = vmatprep.mubr.bf16.mxu0 0
  %229 = vmatmul.mubr.bf16.gmra.mrb[0].mxu0 %v179
  %v230 = vpop.f32.mrb[0].mxu0
  %v231 = vadd.f32 %v54, %v230
  %v232 = vpop.f32.mrb[0].mxu0
  %v233 = vpop.f32.mrb[0].mxu0
  %v234 = vadd.f32 %v59, %v233
  %v235 = vpop.f32.mrb[0].mxu0
  %236 = vmatprep.mubr.bf16.mxu0 0
  %237 = vmatmul.mubr.bf16.gmra.mrb[0].mxu0 %v182
  %v238 = vpop.f32.mrb[0].mxu0
  %v239 = vadd.f32 %v64, %v238
  %v240 = vpop.f32.mrb[0].mxu0
  %v241 = vpop.f32.mrb[0].mxu0
  %v242 = vadd.f32 %v69, %v241
  %v243 = vpop.f32.mrb[0].mxu0
  %244 = vmatprep.mubr.bf16.mxu0 0
  %245 = vmatmul.mubr.bf16.gmra.mrb[0].mxu0 %v185
  %v246 = vpop.f32.mrb[0].mxu0
  %v247 = vadd.f32 %v74, %v246
  %v248 = vpop.f32.mrb[0].mxu0
  %v249 = vpop.f32.mrb[0].mxu0
  %v250 = vadd.f32 %v79, %v249
  %v251 = vpop.f32.mrb[0].mxu0
  %252 = vmatprep.mubr.bf16.mxu0 0
  %253 = vmatmul.mubr.bf16.gmra.mrb[0].mxu0 %v188
  %v254 = vpop.f32.mrb[0].mxu0
  %v255 = vadd.f32 %v84, %v254
  %v256 = vpop.f32.mrb[0].mxu0
  %v257 = vpop.f32.mrb[0].mxu0
  %v258 = vadd.f32 %v89, %v257
  %v259 = vpop.f32.mrb[0].mxu0
  %260 = vmatprep.mubr.bf16.mxu0 0
  %261 = vmatmul.mubr.bf16.gmra.mrb[0].mxu0 %v191
  %v262 = vpop.f32.mrb[0].mxu0
  %v263 = vadd.f32 %v94, %v262
  %v264 = vpop.f32.mrb[0].mxu0
  %v265 = vpop.f32.mrb[0].mxu0
  %v266 = vadd.f32 %v99, %v265
  %v267 = vpop.f32.mrb[0].mxu0
  %268 = vmatprep.mubr.bf16.mxu0 0
  %269 = vmatmul.mubr.bf16.gmra.mrb[0].mxu0 %v194
  %v270 = vpop.f32.mrb[0].mxu0
  %v271 = vadd.f32 %v104, %v270
  %v272 = vpop.f32.mrb[0].mxu0
  %v273 = vpop.f32.mrb[0].mxu0
  %v274 = vadd.f32 %v109, %v273
  %v275 = vpop.f32.mrb[0].mxu0
  %276 = vdwg.mxu0
  %v277 = vmax.f32 %v231, 0.0
  %v278 = vmax.f32 %v234, 0.0
  %v279 = vmax.f32 %v239, 0.0
  %v280 = vmax.f32 %v242, 0.0
  %v281 = vmax.f32 %v247, 0.0
  %v282 = vmax.f32 %v250, 0.0
  %v283 = vmax.f32 %v255, 0.0
  %v284 = vmax.f32 %v258, 0.0
  %v285 = vmax.f32 %v263, 0.0
  %v286 = vmax.f32 %v266, 0.0
  %v287 = vmax.f32 %v271, 0.0
  %v288 = vmax.f32 %v274, 0.0
  %289 = vst [vmem:[%s3] sm:$0xff] %v277
  %290 = vst [vmem:[%s3 + $0x8] sm:$0xff] %v278
  %291 = vst [vmem:[%s3 + $0x10] sm:$0xff] %v279
  %292 = vst [vmem:[%s3 + $0x18] sm:$0xff] %v280
  %293 = vst [vmem:[%s3 + $0x20] sm:$0xff] %v281
  %294 = vst [vmem:[%s3 + $0x28] sm:$0xff] %v282
  %295 = vst [vmem:[%s3 + $0x30] sm:$0xff] %v283
  %296 = vst [vmem:[%s3 + $0x38] sm:$0xff] %v284
  %297 = vst [vmem:[%s3 + $0x40] sm:$0xff] %v285
  %298 = vst [vmem:[%s3 + $0x48] sm:$0xff] %v286
  %299 = vst [vmem:[%s3 + $0x50] sm:$0xff] %v287
  %300 = vst [vmem:[%s3 + $0x58] sm:$0xff] %v288
  // Predicated region
  $region14: #{_lambda_.68} parent=0 // pred_check
    _
  $region15: #{_lambda_.68} parent=0 // pred_check_branch
    %302 = sbr.rel (0) target = $region17
  $region16: #{_lambda_.68} parent=0 // pred_region
    _
  $region17: #{_lambda_.68} parent=0 // pred_fallthru
    _
  // Predicated region
  $region18: #{_lambda_.68} parent=0 // pred_check
    _
  $region19: #{_lambda_.68} parent=0 // pred_check_branch
    %304 = sbr.rel (0) target = $region21
  $region20: #{_lambda_.68} parent=0 // pred_region
    _
  $region21: #{_lambda_.68} parent=0 // pred_fallthru
    _

// kernel: _lambda_.67
$region0: #{_lambda_.67}
  #allocation0 [shape = 'u32[]', space=smem, size = 0x4, offset = 0x4, fixed_abs, tag = 'smem constant byte address 0x4 - core index']
  #allocation1 [shape = 'u32[144,128]{1,0:T(1,128)}', space=vmem, size = 0x12000, scoped, tag = 'internal scratch']
  %s0 = inlined_call_operand.vmem [shape: f32[9,96,128], index: 0, kind: input, shape index: {}]
  %s1 = inlined_call_operand.vmem [shape: f32[9,96,1], index: 1, kind: input, shape index: {}]
  %s2 = inlined_call_operand.vmem [shape: f32[96,1], index: 2, kind: input, shape index: {}]
  %s3 = inlined_call_operand.vmem [shape: bf16[96,96], index: 3, kind: input, shape index: {}]
  %s4 = inlined_call_operand.vmem [shape: f32[96,1], index: 4, kind: input, shape index: {}]
  %s5 = inlined_call_operand.vmem [shape: f32[96,128], index: 5, kind: output, shape index: {}]
  %s6 = sld [smem:[#allocation0]]
  $region30: #{_lambda_.67} parent=0
    _
  %s8 = ssub.s32 1, %s6
  %s9 = scalar_select 0, %s8, %s6
  // Predicated region
  $region2: #{_lambda_.67} parent=0 // pred_check
    _
  $region3: #{_lambda_.67} parent=0 // pred_check_branch
    %11 = sbr.rel (0) target = $region5
  $region4: #{_lambda_.67} parent=0 // pred_region
    _
  $region5: #{_lambda_.67} parent=0 // pred_fallthru
    _
  // Predicated region
  $region6: #{_lambda_.67} parent=0 // pred_check
    _
  $region7: #{_lambda_.67} parent=0 // pred_check_branch
    %13 = sbr.rel (0) target = $region9
  $region8: #{_lambda_.67} parent=0 // pred_region
    _
  $region9: #{_lambda_.67} parent=0 // pred_fallthru
    _
  // Predicated region
  $region10: #{_lambda_.67} parent=0 // pred_check
    _
  $region11: #{_lambda_.67} parent=0 // pred_check_branch
    %15 = sbr.rel (0) target = $region13
  $region12: #{_lambda_.67} parent=0 // pred_region
    _
  $region13: #{_lambda_.67} parent=0 // pred_fallthru
    _
  // Predicated region
  $region14: #{_lambda_.67} parent=0 // pred_check
    _
  $region15: #{_lambda_.67} parent=0 // pred_check_branch
    %17 = sbr.rel (0) target = $region17
  $region16: #{_lambda_.67} parent=0 // pred_region
    _
  $region17: #{_lambda_.67} parent=0 // pred_fallthru
    _
  // Predicated region
  $region18: #{_lambda_.67} parent=0 // pred_check
    _
  $region19: #{_lambda_.67} parent=0 // pred_check_branch
    %19 = sbr.rel (0) target = $region21
  $region20: #{_lambda_.67} parent=0 // pred_region
    _
  $region21: #{_lambda_.67} parent=0 // pred_fallthru
    _
  %v21 = vld [vmem:[%s0] sm:$0xff]
  %v22 = vld [vmem:[%s0 + $0x8] sm:$0xff]
  %v23 = vld [vmem:[%s0 + $0x10] sm:$0xff]
  %v24 = vld [vmem:[%s0 + $0x18] sm:$0xff]
  %v25 = vld [vmem:[%s0 + $0x20] sm:$0xff]
  %v26 = vld [vmem:[%s0 + $0x28] sm:$0xff]
  %v27 = vld [vmem:[%s0 + $0x30] sm:$0xff]
  %v28 = vld [vmem:[%s0 + $0x38] sm:$0xff]
  %v29 = vld [vmem:[%s0 + $0x40] sm:$0xff]
  %v30 = vld [vmem:[%s0 + $0x48] sm:$0xff]
  %v31 = vld [vmem:[%s0 + $0x50] sm:$0xff]
  %v32 = vld [vmem:[%s0 + $0x58] sm:$0xff]
  %v33 = vld [vmem:[%s1] sm:$0xff]
  %v34 = vld [vmem:[%s1 + $0x8] sm:$0xff]
  %v35 = vld [vmem:[%s1 + $0x10] sm:$0xff]
  %v36 = vld [vmem:[%s1 + $0x18] sm:$0xff]
  %v37 = vld [vmem:[%s1 + $0x20] sm:$0xff]
  %v38 = vld [vmem:[%s1 + $0x28] sm:$0xff]
  %v39 = vld [vmem:[%s1 + $0x30] sm:$0xff]
  %v40 = vld [vmem:[%s1 + $0x38] sm:$0xff]
  %v41 = vld [vmem:[%s1 + $0x40] sm:$0xff]
  %v42 = vld [vmem:[%s1 + $0x48] sm:$0xff]
  %v43 = vld [vmem:[%s1 + $0x50] sm:$0xff]
  %v44 = vld [vmem:[%s1 + $0x58] sm:$0xff]
  %46 = vset.pattern.permute.xlu0 0
  %47 = vperm.xlu0 %46, %v33
  %v48 = vpop.permute.xlu0 %47
  %51 = vset.pattern.permute.xlu0 0
  %52 = vperm.xlu0 %51, %v34
  %v53 = vpop.permute.xlu0 %52
  %56 = vset.pattern.permute.xlu0 0
  %57 = vperm.xlu0 %56, %v35
  %v58 = vpop.permute.xlu0 %57
  %61 = vset.pattern.permute.xlu0 0
  %62 = vperm.xlu0 %61, %v36
  %v63 = vpop.permute.xlu0 %62
  %66 = vset.pattern.permute.xlu0 0
  %67 = vperm.xlu0 %66, %v37
  %v68 = vpop.permute.xlu0 %67
  %71 = vset.pattern.permute.xlu0 0
  %72 = vperm.xlu0 %71, %v38
  %v73 = vpop.permute.xlu0 %72
  %76 = vset.pattern.permute.xlu0 0
  %77 = vperm.xlu0 %76, %v39
  %v78 = vpop.permute.xlu0 %77
  %81 = vset.pattern.permute.xlu0 0
  %82 = vperm.xlu0 %81, %v40
  %v83 = vpop.permute.xlu0 %82
  %86 = vset.pattern.permute.xlu0 0
  %87 = vperm.xlu0 %86, %v41
  %v88 = vpop.permute.xlu0 %87
  %91 = vset.pattern.permute.xlu0 0
  %92 = vperm.xlu0 %91, %v42
  %v93 = vpop.permute.xlu0 %92
  %96 = vset.pattern.permute.xlu0 0
  %97 = vperm.xlu0 %96, %v43
  %v98 = vpop.permute.xlu0 %97
  %101 = vset.pattern.permute.xlu0 0
  %102 = vperm.xlu0 %101, %v44
  %v103 = vpop.permute.xlu0 %102
  %v105 = vmul.f32 %v21, %v48
  %v106 = vmul.f32 %v22, %v53
  %v107 = vmul.f32 %v23, %v58
  %v108 = vmul.f32 %v24, %v63
  %v109 = vmul.f32 %v25, %v68
  %v110 = vmul.f32 %v26, %v73
  %v111 = vmul.f32 %v27, %v78
  %v112 = vmul.f32 %v28, %v83
  %v113 = vmul.f32 %v29, %v88
  %v114 = vmul.f32 %v30, %v93
  %v115 = vmul.f32 %v31, %v98
  %v116 = vmul.f32 %v32, %v103
  %s117 = scalar_lea.vmem %s0, 96
  %v118 = vld [vmem:[%s117] sm:$0xff]
  %v119 = vld [vmem:[%s117 + $0x8] sm:$0xff]
  %v120 = vld [vmem:[%s117 + $0x10] sm:$0xff]
  %v121 = vld [vmem:[%s117 + $0x18] sm:$0xff]
  %v122 = vld [vmem:[%s117 + $0x20] sm:$0xff]
  %v123 = vld [vmem:[%s117 + $0x28] sm:$0xff]
  %v124 = vld [vmem:[%s117 + $0x30] sm:$0xff]
  %v125 = vld [vmem:[%s117 + $0x38] sm:$0xff]
  %v126 = vld [vmem:[%s117 + $0x40] sm:$0xff]
  %v127 = vld [vmem:[%s117 + $0x48] sm:$0xff]
  %v128 = vld [vmem:[%s117 + $0x50] sm:$0xff]
  %v129 = vld [vmem:[%s117 + $0x58] sm:$0xff]
  %s130 = scalar_lea.vmem %s1, 96
  %v131 = vld [vmem:[%s130] sm:$0xff]
  %v132 = vld [vmem:[%s130 + $0x8] sm:$0xff]
  %v133 = vld [vmem:[%s130 + $0x10] sm:$0xff]
  %v134 = vld [vmem:[%s130 + $0x18] sm:$0xff]
  %v135 = vld [vmem:[%s130 + $0x20] sm:$0xff]
  %v136 = vld [vmem:[%s130 + $0x28] sm:$0xff]
  %v137 = vld [vmem:[%s130 + $0x30] sm:$0xff]
  %v138 = vld [vmem:[%s130 + $0x38] sm:$0xff]
  %v139 = vld [vmem:[%s130 + $0x40] sm:$0xff]
  %v140 = vld [vmem:[%s130 + $0x48] sm:$0xff]
  %v141 = vld [vmem:[%s130 + $0x50] sm:$0xff]
  %v142 = vld [vmem:[%s130 + $0x58] sm:$0xff]
  %144 = vset.pattern.permute.xlu0 0
  %145 = vperm.xlu0 %144, %v131
  %v146 = vpop.permute.xlu0 %145
  %149 = vset.pattern.permute.xlu0 0
  %150 = vperm.xlu0 %149, %v132
  %v151 = vpop.permute.xlu0 %150
  %154 = vset.pattern.permute.xlu0 0
  %155 = vperm.xlu0 %154, %v133
  %v156 = vpop.permute.xlu0 %155
  %159 = vset.pattern.permute.xlu0 0
  %160 = vperm.xlu0 %159, %v134
  %v161 = vpop.permute.xlu0 %160
  %164 = vset.pattern.permute.xlu0 0
  %165 = vperm.xlu0 %164, %v135
  %v166 = vpop.permute.xlu0 %165
  %169 = vset.pattern.permute.xlu0 0
  %170 = vperm.xlu0 %169, %v136
  %v171 = vpop.permute.xlu0 %170
  %174 = vset.pattern.permute.xlu0 0
  %175 = vperm.xlu0 %174, %v137
  %v176 = vpop.permute.xlu0 %175
  %179 = vset.pattern.permute.xlu0 0
  %180 = vperm.xlu0 %179, %v138
  %v181 = vpop.permute.xlu0 %180
  %184 = vset.pattern.permute.xlu0 0
  %185 = vperm.xlu0 %184, %v139
  %v186 = vpop.permute.xlu0 %185
  %189 = vset.pattern.permute.xlu0 0
  %190 = vperm.xlu0 %189, %v140
  %v191 = vpop.permute.xlu0 %190
  %194 = vset.pattern.permute.xlu0 0
  %195 = vperm.xlu0 %194, %v141
  %v196 = vpop.permute.xlu0 %195
  %199 = vset.pattern.permute.xlu0 0
  %200 = vperm.xlu0 %199, %v142
  %v201 = vpop.permute.xlu0 %200
  %v203 = vmul.f32 %v118, %v146
  %v204 = vmul.f32 %v119, %v151
  %v205 = vmul.f32 %v120, %v156
  %v206 = vmul.f32 %v121, %v161
  %v207 = vmul.f32 %v122, %v166
  %v208 = vmul.f32 %v123, %v171
  %v209 = vmul.f32 %v124, %v176
  %v210 = vmul.f32 %v125, %v181
  %v211 = vmul.f32 %v126, %v186
  %v212 = vmul.f32 %v127, %v191
  %v213 = vmul.f32 %v128, %v196
  %v214 = vmul.f32 %v129, %v201
  %v215 = vadd.f32 %v105, %v203
  %v216 = vadd.f32 %v106, %v204
  %v217 = vadd.f32 %v107, %v205
  %v218 = vadd.f32 %v108, %v206
  %v219 = vadd.f32 %v109, %v207
  %v220 = vadd.f32 %v110, %v208
  %v221 = vadd.f32 %v111, %v209
  %v222 = vadd.f32 %v112, %v210
  %v223 = vadd.f32 %v113, %v211
  %v224 = vadd.f32 %v114, %v212
  %v225 = vadd.f32 %v115, %v213
  %v226 = vadd.f32 %v116, %v214
  %s227 = scalar_lea.vmem %s0, 192
  %v228 = vld [vmem:[%s227] sm:$0xff]
  %v229 = vld [vmem:[%s227 + $0x8] sm:$0xff]
  %v230 = vld [vmem:[%s227 + $0x10] sm:$0xff]
  %v231 = vld [vmem:[%s227 + $0x18] sm:$0xff]
  %v232 = vld [vmem:[%s227 + $0x20] sm:$0xff]
  %v233 = vld [vmem:[%s227 + $0x28] sm:$0xff]
  %v234 = vld [vmem:[%s227 + $0x30] sm:$0xff]
  %v235 = vld [vmem:[%s227 + $0x38] sm:$0xff]
  %v236 = vld [vmem:[%s227 + $0x40] sm:$0xff]
  %v237 = vld [vmem:[%s227 + $0x48] sm:$0xff]
  %v238 = vld [vmem:[%s227 + $0x50] sm:$0xff]
  %v239 = vld [vmem:[%s227 + $0x58] sm:$0xff]
  %s240 = scalar_lea.vmem %s1, 192
  %v241 = vld [vmem:[%s240] sm:$0xff]
  %v242 = vld [vmem:[%s240 + $0x8] sm:$0xff]
  %v243 = vld [vmem:[%s240 + $0x10] sm:$0xff]
  %v244 = vld [vmem:[%s240 + $0x18] sm:$0xff]
  %v245 = vld [vmem:[%s240 + $0x20] sm:$0xff]
  %v246 = vld [vmem:[%s240 + $0x28] sm:$0xff]
  %v247 = vld [vmem:[%s240 + $0x30] sm:$0xff]
  %v248 = vld [vmem:[%s240 + $0x38] sm:$0xff]
  %v249 = vld [vmem:[%s240 + $0x40] sm:$0xff]
  %v250 = vld [vmem:[%s240 + $0x48] sm:$0xff]
  %v251 = vld [vmem:[%s240 + $0x50] sm:$0xff]
  %v252 = vld [vmem:[%s240 + $0x58] sm:$0xff]
  %254 = vset.pattern.permute.xlu0 0
  %255 = vperm.xlu0 %254, %v241
  %v256 = vpop.permute.xlu0 %255
  %259 = vset.pattern.permute.xlu0 0
  %260 = vperm.xlu0 %259, %v242
  %v261 = vpop.permute.xlu0 %260
  %264 = vset.pattern.permute.xlu0 0
  %265 = vperm.xlu0 %264, %v243
  %v266 = vpop.permute.xlu0 %265
  %269 = vset.pattern.permute.xlu0 0
  %270 = vperm.xlu0 %269, %v244
  %v271 = vpop.permute.xlu0 %270
  %274 = vset.pattern.permute.xlu0 0
  %275 = vperm.xlu0 %274, %v245
  %v276 = vpop.permute.xlu0 %275
  %279 = vset.pattern.permute.xlu0 0
  %280 = vperm.xlu0 %279, %v246
  %v281 = vpop.permute.xlu0 %280
  %284 = vset.pattern.permute.xlu0 0
  %285 = vperm.xlu0 %284, %v247
  %v286 = vpop.permute.xlu0 %285
  %289 = vset.pattern.permute.xlu0 0
  %290 = vperm.xlu0 %289, %v248
  %v291 = vpop.permute.xlu0 %290
  %294 = vset.pattern.permute.xlu0 0
  %295 = vperm.xlu0 %294, %v249
  %v296 = vpop.permute.xlu0 %295
  %299 = vset.pattern.permute.xlu0 0
  %300 = vperm.xlu0 %299, %v250
  %v301 = vpop.permute.xlu0 %300
  %304 = vset.pattern.permute.xlu0 0
  %305 = vperm.xlu0 %304, %v251
  %v306 = vpop.permute.xlu0 %305
  %309 = vset.pattern.permute.xlu0 0
  %310 = vperm.xlu0 %309, %v252
  %v311 = vpop.permute.xlu0 %310
  %v313 = vmul.f32 %v228, %v256
  %v314 = vmul.f32 %v229, %v261
  %v315 = vmul.f32 %v230, %v266
  %v316 = vmul.f32 %v231, %v271
  %v317 = vmul.f32 %v232, %v276
  %v318 = vmul.f32 %v233, %v281
  %v319 = vmul.f32 %v234, %v286
  %v320 = vmul.f32 %v235, %v291
  %v321 = vmul.f32 %v236, %v296
  %v322 = vmul.f32 %v237, %v301
  %v323 = vmul.f32 %v238, %v306
  %v324 = vmul.f32 %v239, %v311
  %v325 = vadd.f32 %v215, %v313
  %v326 = vadd.f32 %v216, %v314
  %v327 = vadd.f32 %v217, %v315
  %v328 = vadd.f32 %v218, %v316
  %v329 = vadd.f32 %v219, %v317
  %v330 = vadd.f32 %v220, %v318
  %v331 = vadd.f32 %v221, %v319
  %v332 = vadd.f32 %v222, %v320
  %v333 = vadd.f32 %v223, %v321
  %v334 = vadd.f32 %v224, %v322
  %v335 = vadd.f32 %v225, %v323
  %v336 = vadd.f32 %v226, %v324
  %s337 = scalar_lea.vmem %s0, 288
  %v338 = vld [vmem:[%s337] sm:$0xff]
  %v339 = vld [vmem:[%s337 + $0x8] sm:$0xff]
  %v340 = vld [vmem:[%s337 + $0x10] sm:$0xff]
  %v341 = vld [vmem:[%s337 + $0x18] sm:$0xff]
  %v342 = vld [vmem:[%s337 + $0x20] sm:$0xff]
  %v343 = vld [vmem:[%s337 + $0x28] sm:$0xff]
  %v344 = vld [vmem:[%s337 + $0x30] sm:$0xff]
  %v345 = vld [vmem:[%s337 + $0x38] sm:$0xff]
  %v346 = vld [vmem:[%s337 + $0x40] sm:$0xff]
  %v347 = vld [vmem:[%s337 + $0x48] sm:$0xff]
  %v348 = vld [vmem:[%s337 + $0x50] sm:$0xff]
  %v349 = vld [vmem:[%s337 + $0x58] sm:$0xff]
  %s350 = scalar_lea.vmem %s1, 288
  %v351 = vld [vmem:[%s350] sm:$0xff]
  %v352 = vld [vmem:[%s350 + $0x8] sm:$0xff]
  %v353 = vld [vmem:[%s350 + $0x10] sm:$0xff]
  %v354 = vld [vmem:[%s350 + $0x18] sm:$0xff]
  %v355 = vld [vmem:[%s350 + $0x20] sm:$0xff]
  %v356 = vld [vmem:[%s350 + $0x28] sm:$0xff]
  %v357 = vld [vmem:[%s350 + $0x30] sm:$0xff]
  %v358 = vld [vmem:[%s350 + $0x38] sm:$0xff]
  %v359 = vld [vmem:[%s350 + $0x40] sm:$0xff]
  %v360 = vld [vmem:[%s350 + $0x48] sm:$0xff]
  %v361 = vld [vmem:[%s350 + $0x50] sm:$0xff]
  %v362 = vld [vmem:[%s350 + $0x58] sm:$0xff]
  %364 = vset.pattern.permute.xlu0 0
  %365 = vperm.xlu0 %364, %v351
  %v366 = vpop.permute.xlu0 %365
  %369 = vset.pattern.permute.xlu0 0
  %370 = vperm.xlu0 %369, %v352
  %v371 = vpop.permute.xlu0 %370
  %374 = vset.pattern.permute.xlu0 0
  %375 = vperm.xlu0 %374, %v353
  %v376 = vpop.permute.xlu0 %375
  %379 = vset.pattern.permute.xlu0 0
  %380 = vperm.xlu0 %379, %v354
  %v381 = vpop.permute.xlu0 %380
  %384 = vset.pattern.permute.xlu0 0
  %385 = vperm.xlu0 %384, %v355
  %v386 = vpop.permute.xlu0 %385
  %389 = vset.pattern.permute.xlu0 0
  %390 = vperm.xlu0 %389, %v356
  %v391 = vpop.permute.xlu0 %390
  %394 = vset.pattern.permute.xlu0 0
  %395 = vperm.xlu0 %394, %v357
  %v396 = vpop.permute.xlu0 %395
  %399 = vset.pattern.permute.xlu0 0
  %400 = vperm.xlu0 %399, %v358
  %v401 = vpop.permute.xlu0 %400
  %404 = vset.pattern.permute.xlu0 0
  %405 = vperm.xlu0 %404, %v359
  %v406 = vpop.permute.xlu0 %405
  %409 = vset.pattern.permute.xlu0 0
  %410 = vperm.xlu0 %409, %v360
  %v411 = vpop.permute.xlu0 %410
  %414 = vset.pattern.permute.xlu0 0
  %415 = vperm.xlu0 %414, %v361
  %v416 = vpop.permute.xlu0 %415
  %419 = vset.pattern.permute.xlu0 0
  %420 = vperm.xlu0 %419, %v362
  %v421 = vpop.permute.xlu0 %420
  %v423 = vmul.f32 %v338, %v366
  %v424 = vmul.f32 %v339, %v371
  %v425 = vmul.f32 %v340, %v376
  %v426 = vmul.f32 %v341, %v381
  %v427 = vmul.f32 %v342, %v386
  %v428 = vmul.f32 %v343, %v391
  %v429 = vmul.f32 %v344, %v396
  %v430 = vmul.f32 %v345, %v401
  %v431 = vmul.f32 %v346, %v406
  %v432 = vmul.f32 %v347, %v411
  %v433 = vmul.f32 %v348, %v416
  %v434 = vmul.f32 %v349, %v421
  %v435 = vadd.f32 %v325, %v423
  %v436 = vadd.f32 %v326, %v424
  %v437 = vadd.f32 %v327, %v425
  %v438 = vadd.f32 %v328, %v426
  %v439 = vadd.f32 %v329, %v427
  %v440 = vadd.f32 %v330, %v428
  %v441 = vadd.f32 %v331, %v429
  %v442 = vadd.f32 %v332, %v430
  %v443 = vadd.f32 %v333, %v431
  %v444 = vadd.f32 %v334, %v432
  %v445 = vadd.f32 %v335, %v433
  %v446 = vadd.f32 %v336, %v434
  %s447 = scalar_lea.vmem %s0, 384
  %v448 = vld [vmem:[%s447] sm:$0xff]
  %v449 = vld [vmem:[%s447 + $0x8] sm:$0xff]
  %v450 = vld [vmem:[%s447 + $0x10] sm:$0xff]
  %v451 = vld [vmem:[%s447 + $0x18] sm:$0xff]
  %v452 = vld [vmem:[%s447 + $0x20] sm:$0xff]
  %v453 = vld [vmem:[%s447 + $0x28] sm:$0xff]
  %v454 = vld [vmem:[%s447 + $0x30] sm:$0xff]
  %v455 = vld [vmem:[%s447 + $0x38] sm:$0xff]
  %v456 = vld [vmem:[%s447 + $0x40] sm:$0xff]
  %v457 = vld [vmem:[%s447 + $0x48] sm:$0xff]
  %v458 = vld [vmem:[%s447 + $0x50] sm:$0xff]
  %v459 = vld [vmem:[%s447 + $0x58] sm:$0xff]
  %s460 = scalar_lea.vmem %s1, 384
  %v461 = vld [vmem:[%s460] sm:$0xff]
  %v462 = vld [vmem:[%s460 + $0x8] sm:$0xff]
  %v463 = vld [vmem:[%s460 + $0x10] sm:$0xff]
  %v464 = vld [vmem:[%s460 + $0x18] sm:$0xff]
  %v465 = vld [vmem:[%s460 + $0x20] sm:$0xff]
  %v466 = vld [vmem:[%s460 + $0x28] sm:$0xff]
  %v467 = vld [vmem:[%s460 + $0x30] sm:$0xff]
  %v468 = vld [vmem:[%s460 + $0x38] sm:$0xff]
  %v469 = vld [vmem:[%s460 + $0x40] sm:$0xff]
  %v470 = vld [vmem:[%s460 + $0x48] sm:$0xff]
  %v471 = vld [vmem:[%s460 + $0x50] sm:$0xff]
  %v472 = vld [vmem:[%s460 + $0x58] sm:$0xff]
  %474 = vset.pattern.permute.xlu0 0
  %475 = vperm.xlu0 %474, %v461
  %v476 = vpop.permute.xlu0 %475
  %479 = vset.pattern.permute.xlu0 0
  %480 = vperm.xlu0 %479, %v462
  %v481 = vpop.permute.xlu0 %480
  %484 = vset.pattern.permute.xlu0 0
  %485 = vperm.xlu0 %484, %v463
  %v486 = vpop.permute.xlu0 %485
  %489 = vset.pattern.permute.xlu0 0
  %490 = vperm.xlu0 %489, %v464
  %v491 = vpop.permute.xlu0 %490
  %494 = vset.pattern.permute.xlu0 0
  %495 = vperm.xlu0 %494, %v465
  %v496 = vpop.permute.xlu0 %495
  %499 = vset.pattern.permute.xlu0 0
  %500 = vperm.xlu0 %499, %v466
  %v501 = vpop.permute.xlu0 %500
  %504 = vset.pattern.permute.xlu0 0
  %505 = vperm.xlu0 %504, %v467
  %v506 = vpop.permute.xlu0 %505
  %509 = vset.pattern.permute.xlu0 0
  %510 = vperm.xlu0 %509, %v468
  %v511 = vpop.permute.xlu0 %510
  %514 = vset.pattern.permute.xlu0 0
  %515 = vperm.xlu0 %514, %v469
  %v516 = vpop.permute.xlu0 %515
  %519 = vset.pattern.permute.xlu0 0
  %520 = vperm.xlu0 %519, %v470
  %v521 = vpop.permute.xlu0 %520
  %524 = vset.pattern.permute.xlu0 0
  %525 = vperm.xlu0 %524, %v471
  %v526 = vpop.permute.xlu0 %525
  %529 = vset.pattern.permute.xlu0 0
  %530 = vperm.xlu0 %529, %v472
  %v531 = vpop.permute.xlu0 %530
  %v533 = vmul.f32 %v448, %v476
  %v534 = vmul.f32 %v449, %v481
  %v535 = vmul.f32 %v450, %v486
  %v536 = vmul.f32 %v451, %v491
  %v537 = vmul.f32 %v452, %v496
  %v538 = vmul.f32 %v453, %v501
  %v539 = vmul.f32 %v454, %v506
  %v540 = vmul.f32 %v455, %v511
  %v541 = vmul.f32 %v456, %v516
  %v542 = vmul.f32 %v457, %v521
  %v543 = vmul.f32 %v458, %v526
  %v544 = vmul.f32 %v459, %v531
  %v545 = vadd.f32 %v435, %v533
  %v546 = vadd.f32 %v436, %v534
  %v547 = vadd.f32 %v437, %v535
  %v548 = vadd.f32 %v438, %v536
  %v549 = vadd.f32 %v439, %v537
  %v550 = vadd.f32 %v440, %v538
  %v551 = vadd.f32 %v441, %v539
  %v552 = vadd.f32 %v442, %v540
  %v553 = vadd.f32 %v443, %v541
  %v554 = vadd.f32 %v444, %v542
  %v555 = vadd.f32 %v445, %v543
  %v556 = vadd.f32 %v446, %v544
  %s557 = scalar_lea.vmem %s0, 480
  %v558 = vld [vmem:[%s557] sm:$0xff]
  %v559 = vld [vmem:[%s557 + $0x8] sm:$0xff]
  %v560 = vld [vmem:[%s557 + $0x10] sm:$0xff]
  %v561 = vld [vmem:[%s557 + $0x18] sm:$0xff]
  %v562 = vld [vmem:[%s557 + $0x20] sm:$0xff]
  %v563 = vld [vmem:[%s557 + $0x28] sm:$0xff]
  %v564 = vld [vmem:[%s557 + $0x30] sm:$0xff]
  %v565 = vld [vmem:[%s557 + $0x38] sm:$0xff]
  %v566 = vld [vmem:[%s557 + $0x40] sm:$0xff]
  %v567 = vld [vmem:[%s557 + $0x48] sm:$0xff]
  %v568 = vld [vmem:[%s557 + $0x50] sm:$0xff]
  %v569 = vld [vmem:[%s557 + $0x58] sm:$0xff]
  %s570 = scalar_lea.vmem %s1, 480
  %v571 = vld [vmem:[%s570] sm:$0xff]
  %v572 = vld [vmem:[%s570 + $0x8] sm:$0xff]
  %v573 = vld [vmem:[%s570 + $0x10] sm:$0xff]
  %v574 = vld [vmem:[%s570 + $0x18] sm:$0xff]
  %v575 = vld [vmem:[%s570 + $0x20] sm:$0xff]
  %v576 = vld [vmem:[%s570 + $0x28] sm:$0xff]
  %v577 = vld [vmem:[%s570 + $0x30] sm:$0xff]
  %v578 = vld [vmem:[%s570 + $0x38] sm:$0xff]
  %v579 = vld [vmem:[%s570 + $0x40] sm:$0xff]
  %v580 = vld [vmem:[%s570 + $0x48] sm:$0xff]
  %v581 = vld [vmem:[%s570 + $0x50] sm:$0xff]
  %v582 = vld [vmem:[%s570 + $0x58] sm:$0xff]
  %584 = vset.pattern.permute.xlu0 0
  %585 = vperm.xlu0 %584, %v571
  %v586 = vpop.permute.xlu0 %585
  %589 = vset.pattern.permute.xlu0 0
  %590 = vperm.xlu0 %589, %v572
  %v591 = vpop.permute.xlu0 %590
  %594 = vset.pattern.permute.xlu0 0
  %595 = vperm.xlu0 %594, %v573
  %v596 = vpop.permute.xlu0 %595
  %599 = vset.pattern.permute.xlu0 0
  %600 = vperm.xlu0 %599, %v574
  %v601 = vpop.permute.xlu0 %600
  %604 = vset.pattern.permute.xlu0 0
  %605 = vperm.xlu0 %604, %v575
  %v606 = vpop.permute.xlu0 %605
  %609 = vset.pattern.permute.xlu0 0
  %610 = vperm.xlu0 %609, %v576
  %v611 = vpop.permute.xlu0 %610
  %614 = vset.pattern.permute.xlu0 0
  %615 = vperm.xlu0 %614, %v577
  %v616 = vpop.permute.xlu0 %615
  %619 = vset.pattern.permute.xlu0 0
  %620 = vperm.xlu0 %619, %v578
  %v621 = vpop.permute.xlu0 %620
  %624 = vset.pattern.permute.xlu0 0
  %625 = vperm.xlu0 %624, %v579
  %v626 = vpop.permute.xlu0 %625
  %629 = vset.pattern.permute.xlu0 0
  %630 = vperm.xlu0 %629, %v580
  %v631 = vpop.permute.xlu0 %630
  %634 = vset.pattern.permute.xlu0 0
  %635 = vperm.xlu0 %634, %v581
  %v636 = vpop.permute.xlu0 %635
  %639 = vset.pattern.permute.xlu0 0
  %640 = vperm.xlu0 %639, %v582
  %v641 = vpop.permute.xlu0 %640
  %v643 = vmul.f32 %v558, %v586
  %v644 = vmul.f32 %v559, %v591
  %v645 = vmul.f32 %v560, %v596
  %v646 = vmul.f32 %v561, %v601
  %v647 = vmul.f32 %v562, %v606
  %v648 = vmul.f32 %v563, %v611
  %v649 = vmul.f32 %v564, %v616
  %v650 = vmul.f32 %v565, %v621
  %v651 = vmul.f32 %v566, %v626
  %v652 = vmul.f32 %v567, %v631
  %v653 = vmul.f32 %v568, %v636
  %v654 = vmul.f32 %v569, %v641
  %v655 = vadd.f32 %v545, %v643
  %v656 = vadd.f32 %v546, %v644
  %v657 = vadd.f32 %v547, %v645
  %v658 = vadd.f32 %v548, %v646
  %v659 = vadd.f32 %v549, %v647
  %v660 = vadd.f32 %v550, %v648
  %v661 = vadd.f32 %v551, %v649
  %v662 = vadd.f32 %v552, %v650
  %v663 = vadd.f32 %v553, %v651
  %v664 = vadd.f32 %v554, %v652
  %v665 = vadd.f32 %v555, %v653
  %v666 = vadd.f32 %v556, %v654
  %s667 = scalar_lea.vmem %s0, 576
  %v668 = vld [vmem:[%s667] sm:$0xff]
  %v669 = vld [vmem:[%s667 + $0x8] sm:$0xff]
  %v670 = vld [vmem:[%s667 + $0x10] sm:$0xff]
  %v671 = vld [vmem:[%s667 + $0x18] sm:$0xff]
  %v672 = vld [vmem:[%s667 + $0x20] sm:$0xff]
  %v673 = vld [vmem:[%s667 + $0x28] sm:$0xff]
  %v674 = vld [vmem:[%s667 + $0x30] sm:$0xff]
  %v675 = vld [vmem:[%s667 + $0x38] sm:$0xff]
  %v676 = vld [vmem:[%s667 + $0x40] sm:$0xff]
  %v677 = vld [vmem:[%s667 + $0x48] sm:$0xff]
  %v678 = vld [vmem:[%s667 + $0x50] sm:$0xff]
  %v679 = vld [vmem:[%s667 + $0x58] sm:$0xff]
  %s680 = scalar_lea.vmem %s1, 576
  %v681 = vld [vmem:[%s680] sm:$0xff]
  %v682 = vld [vmem:[%s680 + $0x8] sm:$0xff]
  %v683 = vld [vmem:[%s680 + $0x10] sm:$0xff]
  %v684 = vld [vmem:[%s680 + $0x18] sm:$0xff]
  %v685 = vld [vmem:[%s680 + $0x20] sm:$0xff]
  %v686 = vld [vmem:[%s680 + $0x28] sm:$0xff]
  %v687 = vld [vmem:[%s680 + $0x30] sm:$0xff]
  %v688 = vld [vmem:[%s680 + $0x38] sm:$0xff]
  %v689 = vld [vmem:[%s680 + $0x40] sm:$0xff]
  %v690 = vld [vmem:[%s680 + $0x48] sm:$0xff]
  %v691 = vld [vmem:[%s680 + $0x50] sm:$0xff]
  %v692 = vld [vmem:[%s680 + $0x58] sm:$0xff]
  %694 = vset.pattern.permute.xlu0 0
  %695 = vperm.xlu0 %694, %v681
  %v696 = vpop.permute.xlu0 %695
  %699 = vset.pattern.permute.xlu0 0
  %700 = vperm.xlu0 %699, %v682
  %v701 = vpop.permute.xlu0 %700
  %704 = vset.pattern.permute.xlu0 0
  %705 = vperm.xlu0 %704, %v683
  %v706 = vpop.permute.xlu0 %705
  %709 = vset.pattern.permute.xlu0 0
  %710 = vperm.xlu0 %709, %v684
  %v711 = vpop.permute.xlu0 %710
  %714 = vset.pattern.permute.xlu0 0
  %715 = vperm.xlu0 %714, %v685
  %v716 = vpop.permute.xlu0 %715
  %719 = vset.pattern.permute.xlu0 0
  %720 = vperm.xlu0 %719, %v686
  %v721 = vpop.permute.xlu0 %720
  %724 = vset.pattern.permute.xlu0 0
  %725 = vperm.xlu0 %724, %v687
  %v726 = vpop.permute.xlu0 %725
  %729 = vset.pattern.permute.xlu0 0
  %730 = vperm.xlu0 %729, %v688
  %v731 = vpop.permute.xlu0 %730
  %734 = vset.pattern.permute.xlu0 0
  %735 = vperm.xlu0 %734, %v689
  %v736 = vpop.permute.xlu0 %735
  %739 = vset.pattern.permute.xlu0 0
  %740 = vperm.xlu0 %739, %v690
  %v741 = vpop.permute.xlu0 %740
  %744 = vset.pattern.permute.xlu0 0
  %745 = vperm.xlu0 %744, %v691
  %v746 = vpop.permute.xlu0 %745
  %749 = vset.pattern.permute.xlu0 0
  %750 = vperm.xlu0 %749, %v692
  %v751 = vpop.permute.xlu0 %750
  %v753 = vmul.f32 %v668, %v696
  %v754 = vmul.f32 %v669, %v701
  %v755 = vmul.f32 %v670, %v706
  %v756 = vmul.f32 %v671, %v711
  %v757 = vmul.f32 %v672, %v716
  %v758 = vmul.f32 %v673, %v721
  %v759 = vmul.f32 %v674, %v726
  %v760 = vmul.f32 %v675, %v731
  %v761 = vmul.f32 %v676, %v736
  %v762 = vmul.f32 %v677, %v741
  %v763 = vmul.f32 %v678, %v746
  %v764 = vmul.f32 %v679, %v751
  %v765 = vadd.f32 %v655, %v753
  %v766 = vadd.f32 %v656, %v754
  %v767 = vadd.f32 %v657, %v755
  %v768 = vadd.f32 %v658, %v756
  %v769 = vadd.f32 %v659, %v757
  %v770 = vadd.f32 %v660, %v758
  %v771 = vadd.f32 %v661, %v759
  %v772 = vadd.f32 %v662, %v760
  %v773 = vadd.f32 %v663, %v761
  %v774 = vadd.f32 %v664, %v762
  %v775 = vadd.f32 %v665, %v763
  %v776 = vadd.f32 %v666, %v764
  %s777 = scalar_lea.vmem %s0, 672
  %v778 = vld [vmem:[%s777] sm:$0xff]
  %v779 = vld [vmem:[%s777 + $0x8] sm:$0xff]
  %v780 = vld [vmem:[%s777 + $0x10] sm:$0xff]
  %v781 = vld [vmem:[%s777 + $0x18] sm:$0xff]
  %v782 = vld [vmem:[%s777 + $0x20] sm:$0xff]
  %v783 = vld [vmem:[%s777 + $0x28] sm:$0xff]
  %v784 = vld [vmem:[%s777 + $0x30] sm:$0xff]
  %v785 = vld [vmem:[%s777 + $0x38] sm:$0xff]
  %v786 = vld [vmem:[%s777 + $0x40] sm:$0xff]
  %v787 = vld [vmem:[%s777 + $0x48] sm:$0xff]
  %v788 = vld [vmem:[%s777 + $0x50] sm:$0xff]
  %v789 = vld [vmem:[%s777 + $0x58] sm:$0xff]
  %s790 = scalar_lea.vmem %s1, 672
  %v791 = vld [vmem:[%s790] sm:$0xff]
  %v792 = vld [vmem:[%s790 + $0x8] sm:$0xff]
  %v793 = vld [vmem:[%s790 + $0x10] sm:$0xff]
  %v794 = vld [vmem:[%s790 + $0x18] sm:$0xff]
  %v795 = vld [vmem:[%s790 + $0x20] sm:$0xff]
  %v796 = vld [vmem:[%s790 + $0x28] sm:$0xff]
  %v797 = vld [vmem:[%s790 + $0x30] sm:$0xff]
  %v798 = vld [vmem:[%s790 + $0x38] sm:$0xff]
  %v799 = vld [vmem:[%s790 + $0x40] sm:$0xff]
  %v800 = vld [vmem:[%s790 + $0x48] sm:$0xff]
  %v801 = vld [vmem:[%s790 + $0x50] sm:$0xff]
  %v802 = vld [vmem:[%s790 + $0x58] sm:$0xff]
  %804 = vset.pattern.permute.xlu0 0
  %805 = vperm.xlu0 %804, %v791
  %v806 = vpop.permute.xlu0 %805
  %809 = vset.pattern.permute.xlu0 0
  %810 = vperm.xlu0 %809, %v792
  %v811 = vpop.permute.xlu0 %810
  %814 = vset.pattern.permute.xlu0 0
  %815 = vperm.xlu0 %814, %v793
  %v816 = vpop.permute.xlu0 %815
  %819 = vset.pattern.permute.xlu0 0
  %820 = vperm.xlu0 %819, %v794
  %v821 = vpop.permute.xlu0 %820
  %824 = vset.pattern.permute.xlu0 0
  %825 = vperm.xlu0 %824, %v795
  %v826 = vpop.permute.xlu0 %825
  %829 = vset.pattern.permute.xlu0 0
  %830 = vperm.xlu0 %829, %v796
  %v831 = vpop.permute.xlu0 %830
  %834 = vset.pattern.permute.xlu0 0
  %835 = vperm.xlu0 %834, %v797
  %v836 = vpop.permute.xlu0 %835
  %839 = vset.pattern.permute.xlu0 0
  %840 = vperm.xlu0 %839, %v798
  %v841 = vpop.permute.xlu0 %840
  %844 = vset.pattern.permute.xlu0 0
  %845 = vperm.xlu0 %844, %v799
  %v846 = vpop.permute.xlu0 %845
  %849 = vset.pattern.permute.xlu0 0
  %850 = vperm.xlu0 %849, %v800
  %v851 = vpop.permute.xlu0 %850
  %854 = vset.pattern.permute.xlu0 0
  %855 = vperm.xlu0 %854, %v801
  %v856 = vpop.permute.xlu0 %855
  %859 = vset.pattern.permute.xlu0 0
  %860 = vperm.xlu0 %859, %v802
  %v861 = vpop.permute.xlu0 %860
  %v863 = vmul.f32 %v778, %v806
  %v864 = vmul.f32 %v779, %v811
  %v865 = vmul.f32 %v780, %v816
  %v866 = vmul.f32 %v781, %v821
  %v867 = vmul.f32 %v782, %v826
  %v868 = vmul.f32 %v783, %v831
  %v869 = vmul.f32 %v784, %v836
  %v870 = vmul.f32 %v785, %v841
  %v871 = vmul.f32 %v786, %v846
  %v872 = vmul.f32 %v787, %v851
  %v873 = vmul.f32 %v788, %v856
  %v874 = vmul.f32 %v789, %v861
  %v875 = vadd.f32 %v765, %v863
  %v876 = vadd.f32 %v766, %v864
  %v877 = vadd.f32 %v767, %v865
  %v878 = vadd.f32 %v768, %v866
  %v879 = vadd.f32 %v769, %v867
  %v880 = vadd.f32 %v770, %v868
  %v881 = vadd.f32 %v771, %v869
  %v882 = vadd.f32 %v772, %v870
  %v883 = vadd.f32 %v773, %v871
  %v884 = vadd.f32 %v774, %v872
  %v885 = vadd.f32 %v775, %v873
  %v886 = vadd.f32 %v776, %v874
  %s887 = scalar_lea.vmem %s0, 768
  %v888 = vld [vmem:[%s887] sm:$0xff]
  %v889 = vld [vmem:[%s887 + $0x8] sm:$0xff]
  %v890 = vld [vmem:[%s887 + $0x10] sm:$0xff]
  %v891 = vld [vmem:[%s887 + $0x18] sm:$0xff]
  %v892 = vld [vmem:[%s887 + $0x20] sm:$0xff]
  %v893 = vld [vmem:[%s887 + $0x28] sm:$0xff]
  %v894 = vld [vmem:[%s887 + $0x30] sm:$0xff]
  %v895 = vld [vmem:[%s887 + $0x38] sm:$0xff]
  %v896 = vld [vmem:[%s887 + $0x40] sm:$0xff]
  %v897 = vld [vmem:[%s887 + $0x48] sm:$0xff]
  %v898 = vld [vmem:[%s887 + $0x50] sm:$0xff]
  %v899 = vld [vmem:[%s887 + $0x58] sm:$0xff]
  %s900 = scalar_lea.vmem %s1, 768
  %v901 = vld [vmem:[%s900] sm:$0xff]
  %v902 = vld [vmem:[%s900 + $0x8] sm:$0xff]
  %v903 = vld [vmem:[%s900 + $0x10] sm:$0xff]
  %v904 = vld [vmem:[%s900 + $0x18] sm:$0xff]
  %v905 = vld [vmem:[%s900 + $0x20] sm:$0xff]
  %v906 = vld [vmem:[%s900 + $0x28] sm:$0xff]
  %v907 = vld [vmem:[%s900 + $0x30] sm:$0xff]
  %v908 = vld [vmem:[%s900 + $0x38] sm:$0xff]
  %v909 = vld [vmem:[%s900 + $0x40] sm:$0xff]
  %v910 = vld [vmem:[%s900 + $0x48] sm:$0xff]
  %v911 = vld [vmem:[%s900 + $0x50] sm:$0xff]
  %v912 = vld [vmem:[%s900 + $0x58] sm:$0xff]
  %914 = vset.pattern.permute.xlu0 0
  %915 = vperm.xlu0 %914, %v901
  %v916 = vpop.permute.xlu0 %915
  %919 = vset.pattern.permute.xlu0 0
  %920 = vperm.xlu0 %919, %v902
  %v921 = vpop.permute.xlu0 %920
  %924 = vset.pattern.permute.xlu0 0
  %925 = vperm.xlu0 %924, %v903
  %v926 = vpop.permute.xlu0 %925
  %929 = vset.pattern.permute.xlu0 0
  %930 = vperm.xlu0 %929, %v904
  %v931 = vpop.permute.xlu0 %930
  %934 = vset.pattern.permute.xlu0 0
  %935 = vperm.xlu0 %934, %v905
  %v936 = vpop.permute.xlu0 %935
  %939 = vset.pattern.permute.xlu0 0
  %940 = vperm.xlu0 %939, %v906
  %v941 = vpop.permute.xlu0 %940
  %944 = vset.pattern.permute.xlu0 0
  %945 = vperm.xlu0 %944, %v907
  %v946 = vpop.permute.xlu0 %945
  %949 = vset.pattern.permute.xlu0 0
  %950 = vperm.xlu0 %949, %v908
  %v951 = vpop.permute.xlu0 %950
  %954 = vset.pattern.permute.xlu0 0
  %955 = vperm.xlu0 %954, %v909
  %v956 = vpop.permute.xlu0 %955
  %959 = vset.pattern.permute.xlu0 0
  %960 = vperm.xlu0 %959, %v910
  %v961 = vpop.permute.xlu0 %960
  %964 = vset.pattern.permute.xlu0 0
  %965 = vperm.xlu0 %964, %v911
  %v966 = vpop.permute.xlu0 %965
  %969 = vset.pattern.permute.xlu0 0
  %970 = vperm.xlu0 %969, %v912
  %v971 = vpop.permute.xlu0 %970
  %v973 = vmul.f32 %v888, %v916
  %v974 = vmul.f32 %v889, %v921
  %v975 = vmul.f32 %v890, %v926
  %v976 = vmul.f32 %v891, %v931
  %v977 = vmul.f32 %v892, %v936
  %v978 = vmul.f32 %v893, %v941
  %v979 = vmul.f32 %v894, %v946
  %v980 = vmul.f32 %v895, %v951
  %v981 = vmul.f32 %v896, %v956
  %v982 = vmul.f32 %v897, %v961
  %v983 = vmul.f32 %v898, %v966
  %v984 = vmul.f32 %v899, %v971
  %v985 = vadd.f32 %v875, %v973
  %v986 = vadd.f32 %v876, %v974
  %v987 = vadd.f32 %v877, %v975
  %v988 = vadd.f32 %v878, %v976
  %v989 = vadd.f32 %v879, %v977
  %v990 = vadd.f32 %v880, %v978
  %v991 = vadd.f32 %v881, %v979
  %v992 = vadd.f32 %v882, %v980
  %v993 = vadd.f32 %v883, %v981
  %v994 = vadd.f32 %v884, %v982
  %v995 = vadd.f32 %v885, %v983
  %v996 = vadd.f32 %v886, %v984
  %v997 = vld [vmem:[%s2] sm:$0xff]
  %v998 = vld [vmem:[%s2 + $0x8] sm:$0xff]
  %v999 = vld [vmem:[%s2 + $0x10] sm:$0xff]
  %v1000 = vld [vmem:[%s2 + $0x18] sm:$0xff]
  %v1001 = vld [vmem:[%s2 + $0x20] sm:$0xff]
  %v1002 = vld [vmem:[%s2 + $0x28] sm:$0xff]
  %v1003 = vld [vmem:[%s2 + $0x30] sm:$0xff]
  %v1004 = vld [vmem:[%s2 + $0x38] sm:$0xff]
  %v1005 = vld [vmem:[%s2 + $0x40] sm:$0xff]
  %v1006 = vld [vmem:[%s2 + $0x48] sm:$0xff]
  %v1007 = vld [vmem:[%s2 + $0x50] sm:$0xff]
  %v1008 = vld [vmem:[%s2 + $0x58] sm:$0xff]
  %1010 = vset.pattern.permute.xlu0 0
  %1011 = vperm.xlu0 %1010, %v997
  %v1012 = vpop.permute.xlu0 %1011
  %1015 = vset.pattern.permute.xlu0 0
  %1016 = vperm.xlu0 %1015, %v998
  %v1017 = vpop.permute.xlu0 %1016
  %1020 = vset.pattern.permute.xlu0 0
  %1021 = vperm.xlu0 %1020, %v999
  %v1022 = vpop.permute.xlu0 %1021
  %1025 = vset.pattern.permute.xlu0 0
  %1026 = vperm.xlu0 %1025, %v1000
  %v1027 = vpop.permute.xlu0 %1026
  %1030 = vset.pattern.permute.xlu0 0
  %1031 = vperm.xlu0 %1030, %v1001
  %v1032 = vpop.permute.xlu0 %1031
  %1035 = vset.pattern.permute.xlu0 0
  %1036 = vperm.xlu0 %1035, %v1002
  %v1037 = vpop.permute.xlu0 %1036
  %1040 = vset.pattern.permute.xlu0 0
  %1041 = vperm.xlu0 %1040, %v1003
  %v1042 = vpop.permute.xlu0 %1041
  %1045 = vset.pattern.permute.xlu0 0
  %1046 = vperm.xlu0 %1045, %v1004
  %v1047 = vpop.permute.xlu0 %1046
  %1050 = vset.pattern.permute.xlu0 0
  %1051 = vperm.xlu0 %1050, %v1005
  %v1052 = vpop.permute.xlu0 %1051
  %1055 = vset.pattern.permute.xlu0 0
  %1056 = vperm.xlu0 %1055, %v1006
  %v1057 = vpop.permute.xlu0 %1056
  %1060 = vset.pattern.permute.xlu0 0
  %1061 = vperm.xlu0 %1060, %v1007
  %v1062 = vpop.permute.xlu0 %1061
  %1065 = vset.pattern.permute.xlu0 0
  %1066 = vperm.xlu0 %1065, %v1008
  %v1067 = vpop.permute.xlu0 %1066
  %v1069 = vadd.f32 %v985, %v1012
  %v1070 = vadd.f32 %v986, %v1017
  %v1071 = vadd.f32 %v987, %v1022
  %v1072 = vadd.f32 %v988, %v1027
  %v1073 = vadd.f32 %v989, %v1032
  %v1074 = vadd.f32 %v990, %v1037
  %v1075 = vadd.f32 %v991, %v1042
  %v1076 = vadd.f32 %v992, %v1047
  %v1077 = vadd.f32 %v993, %v1052
  %v1078 = vadd.f32 %v994, %v1057
  %v1079 = vadd.f32 %v995, %v1062
  %v1080 = vadd.f32 %v996, %v1067
  %v1081 = vld [vmem:[%s3] sm:$0xf]
  %v1082 = vld [vmem:[%s3 + $0x4] sm:$0xf]
  %v1083 = vld [vmem:[%s3 + $0x8] sm:$0xf]
  %v1084 = vld [vmem:[%s3 + $0xc] sm:$0xf]
  %v1085 = vld [vmem:[%s3 + $0x10] sm:$0xf]
  %v1086 = vld [vmem:[%s3 + $0x14] sm:$0xf]
  %v1087 = vld [vmem:[%s3 + $0x18] sm:$0xf]
  %v1088 = vld [vmem:[%s3 + $0x1c] sm:$0xf]
  %v1089 = vld [vmem:[%s3 + $0x20] sm:$0xf]
  %v1090 = vld [vmem:[%s3 + $0x24] sm:$0xf]
  %v1091 = vld [vmem:[%s3 + $0x28] sm:$0xf]
  %v1092 = vld [vmem:[%s3 + $0x2c] sm:$0xf]
  %v1093 = vpack.c.bf16 %v1070, %v1069
  %v1094 = vpack.c.bf16 %v1072, %v1071
  %v1095 = vpack.c.bf16 %v1074, %v1073
  %v1096 = vpack.c.bf16 %v1076, %v1075
  %v1097 = vpack.c.bf16 %v1078, %v1077
  %v1098 = vpack.c.bf16 %v1080, %v1079
  %v1099 = vld [vmem:[%s4] sm:$0xff]
  %v1100 = vld [vmem:[%s4 + $0x8] sm:$0xff]
  %v1101 = vld [vmem:[%s4 + $0x10] sm:$0xff]
  %v1102 = vld [vmem:[%s4 + $0x18] sm:$0xff]
  %v1103 = vld [vmem:[%s4 + $0x20] sm:$0xff]
  %v1104 = vld [vmem:[%s4 + $0x28] sm:$0xff]
  %v1105 = vld [vmem:[%s4 + $0x30] sm:$0xff]
  %v1106 = vld [vmem:[%s4 + $0x38] sm:$0xff]
  %v1107 = vld [vmem:[%s4 + $0x40] sm:$0xff]
  %v1108 = vld [vmem:[%s4 + $0x48] sm:$0xff]
  %v1109 = vld [vmem:[%s4 + $0x50] sm:$0xff]
  %v1110 = vld [vmem:[%s4 + $0x58] sm:$0xff]
  %1112 = vset.pattern.permute.xlu0 0
  %1113 = vperm.xlu0 %1112, %v1099
  %v1114 = vpop.permute.xlu0 %1113
  %1117 = vset.pattern.permute.xlu0 0
  %1118 = vperm.xlu0 %1117, %v1100
  %v1119 = vpop.permute.xlu0 %1118
  %1122 = vset.pattern.permute.xlu0 0
  %1123 = vperm.xlu0 %1122, %v1101
  %v1124 = vpop.permute.xlu0 %1123
  %1127 = vset.pattern.permute.xlu0 0
  %1128 = vperm.xlu0 %1127, %v1102
  %v1129 = vpop.permute.xlu0 %1128
  %1132 = vset.pattern.permute.xlu0 0
  %1133 = vperm.xlu0 %1132, %v1103
  %v1134 = vpop.permute.xlu0 %1133
  %1137 = vset.pattern.permute.xlu0 0
  %1138 = vperm.xlu0 %1137, %v1104
  %v1139 = vpop.permute.xlu0 %1138
  %1142 = vset.pattern.permute.xlu0 0
  %1143 = vperm.xlu0 %1142, %v1105
  %v1144 = vpop.permute.xlu0 %1143
  %1147 = vset.pattern.permute.xlu0 0
  %1148 = vperm.xlu0 %1147, %v1106
  %v1149 = vpop.permute.xlu0 %1148
  %1152 = vset.pattern.permute.xlu0 0
  %1153 = vperm.xlu0 %1152, %v1107
  %v1154 = vpop.permute.xlu0 %1153
  %1157 = vset.pattern.permute.xlu0 0
  %1158 = vperm.xlu0 %1157, %v1108
  %v1159 = vpop.permute.xlu0 %1158
  %1162 = vset.pattern.permute.xlu0 0
  %1163 = vperm.xlu0 %1162, %v1109
  %v1164 = vpop.permute.xlu0 %1163
  %1167 = vset.pattern.permute.xlu0 0
  %1168 = vperm.xlu0 %1167, %v1110
  %v1169 = vpop.permute.xlu0 %1168
  %v1183 = vunpack.c.l.b16 %v1081
  %v1184 = vunpack.c.l.b16 %v1082
  %v1185 = vunpack.c.l.b16 %v1083
  %v1186 = vunpack.c.l.b16 %v1084
  %v1187 = vunpack.c.l.b16 %v1085
  %v1188 = vunpack.c.l.b16 %v1086
  %v1189 = vunpack.c.l.b16 %v1087
  %v1190 = vunpack.c.l.b16 %v1088
  %v1191 = vunpack.c.l.b16 %v1089
  %v1192 = vunpack.c.l.b16 %v1090
  %v1193 = vunpack.c.l.b16 %v1091
  %v1194 = vunpack.c.l.b16 %v1092
  %v1195 = vpack.c.b16 %v1184, %v1183
  %v1196 = vpack.c.b16 %v1186, %v1185
  %v1197 = vpack.c.b16 %v1188, %v1187
  %v1198 = vpack.c.b16 %v1190, %v1189
  %v1199 = vpack.c.b16 %v1192, %v1191
  %v1200 = vpack.c.b16 %v1194, %v1193
  %vm1201 = vcmask 785408
  %v1203 = vsel %vm1201, %v1195, 0
  %v1206 = vsel %vm1201, %v1196, 0
  %v1209 = vsel %vm1201, %v1197, 0
  %v1212 = vsel %vm1201, %v1198, 0
  %v1215 = vsel %vm1201, %v1199, 0
  %v1218 = vsel %vm1201, %v1200, 0
  %1220 = vmatprep.subr.bf16.mxu0 0
  %1221 = vmatpush1.bf16.msra.mxu0 %v1093
  %1222 = vmatprep.subr.bf16.mxu0 0
  %1223 = vmatpush1.bf16.msra.mxu0 %v1094
  %1224 = vmatprep.subr.bf16.mxu0 0
  %1225 = vmatpush1.bf16.msra.mxu0 %v1095
  %1226 = vmatprep.subr.bf16.mxu0 0
  %1227 = vmatpush1.bf16.msra.mxu0 %v1096
  %1228 = vmatprep.subr.bf16.mxu0 0
  %1229 = vmatpush1.bf16.msra.mxu0 %v1097
  %1230 = vmatprep.subr.bf16.mxu0 0
  %1231 = vmatpush1.bf16.msra.mxu0 %v1098
  %1232 = vmatprep.subr.bf16.mxu0 0
  %1233 = vmatpush1.bf16.msra.mxu0 0
  %1234 = vmatprep.subr.bf16.mxu0 0
  %1235 = vmatpush1.bf16.msra.mxu0 0
  %1236 = vmatprep.subr.bf16.mxu0 0
  %1237 = vmatpush1.bf16.msra.mxu0 0
  %1238 = vmatprep.subr.bf16.mxu0 0
  %1239 = vmatpush1.bf16.msra.mxu0 0
  %1240 = vmatprep.subr.bf16.mxu0 0
  %1241 = vmatpush1.bf16.msra.mxu0 0
  %1242 = vmatprep.subr.bf16.mxu0 0
  %1243 = vmatpush1.bf16.msra.mxu0 0
  %1244 = vmatprep.subr.bf16.mxu0 0
  %1245 = vmatpush1.bf16.msra.mxu0 0
  %1246 = vmatprep.subr.bf16.mxu0 0
  %1247 = vmatpush1.bf16.msra.mxu0 0
  %1248 = vmatprep.subr.bf16.mxu0 0
  %1249 = vmatpush1.bf16.msra.mxu0 0
  %1250 = vmatprep.subr.bf16.mxu0 0
  %1251 = vmatpush1.bf16.msra.mxu0 0
  %1252 = vmatprep.mubr.bf16.mxu0 0
  %1253 = vmatmul.mubr.bf16.gmra.mrb[0].mxu0 %v1203
  %v1254 = vpop.f32.mrb[0].mxu0
  %v1255 = vadd.f32 %v1114, %v1254
  %v1256 = vpop.f32.mrb[0].mxu0
  %v1257 = vpop.f32.mrb[0].mxu0
  %v1258 = vadd.f32 %v1119, %v1257
  %v1259 = vpop.f32.mrb[0].mxu0
  %1260 = vmatprep.mubr.bf16.mxu0 0
  %1261 = vmatmul.mubr.bf16.gmra.mrb[0].mxu0 %v1206
  %v1262 = vpop.f32.mrb[0].mxu0
  %v1263 = vadd.f32 %v1124, %v1262
  %v1264 = vpop.f32.mrb[0].mxu0
  %v1265 = vpop.f32.mrb[0].mxu0
  %v1266 = vadd.f32 %v1129, %v1265
  %v1267 = vpop.f32.mrb[0].mxu0
  %1268 = vmatprep.mubr.bf16.mxu0 0
  %1269 = vmatmul.mubr.bf16.gmra.mrb[0].mxu0 %v1209
  %v1270 = vpop.f32.mrb[0].mxu0
  %v1271 = vadd.f32 %v1134, %v1270
  %v1272 = vpop.f32.mrb[0].mxu0
  %v1273 = vpop.f32.mrb[0].mxu0
  %v1274 = vadd.f32 %v1139, %v1273
  %v1275 = vpop.f32.mrb[0].mxu0
  %1276 = vmatprep.mubr.bf16.mxu0 0
  %1277 = vmatmul.mubr.bf16.gmra.mrb[0].mxu0 %v1212
  %v1278 = vpop.f32.mrb[0].mxu0
  %v1279 = vadd.f32 %v1144, %v1278
  %v1280 = vpop.f32.mrb[0].mxu0
  %v1281 = vpop.f32.mrb[0].mxu0
  %v1282 = vadd.f32 %v1149, %v1281
  %v1283 = vpop.f32.mrb[0].mxu0
  %1284 = vmatprep.mubr.bf16.mxu0 0
  %1285 = vmatmul.mubr.bf16.gmra.mrb[0].mxu0 %v1215
  %v1286 = vpop.f32.mrb[0].mxu0
  %v1287 = vadd.f32 %v1154, %v1286
  %v1288 = vpop.f32.mrb[0].mxu0
  %v1289 = vpop.f32.mrb[0].mxu0
  %v1290 = vadd.f32 %v1159, %v1289
  %v1291 = vpop.f32.mrb[0].mxu0
  %1292 = vmatprep.mubr.bf16.mxu0 0
  %1293 = vmatmul.mubr.bf16.gmra.mrb[0].mxu0 %v1218
  %v1294 = vpop.f32.mrb[0].mxu0
  %v1295 = vadd.f32 %v1164, %v1294
  %v1296 = vpop.f32.mrb[0].mxu0
  %v1297 = vpop.f32.mrb[0].mxu0
  %v1298 = vadd.f32 %v1169, %v1297
  %v1299 = vpop.f32.mrb[0].mxu0
  %1300 = vdwg.mxu0
  %v1301 = vmax.f32 %v1255, 0.0
  %v1302 = vmax.f32 %v1258, 0.0
  %v1303 = vmax.f32 %v1263, 0.0
  %v1304 = vmax.f32 %v1266, 0.0
  %v1305 = vmax.f32 %v1271, 0.0
  %v1306 = vmax.f32 %v1274, 0.0
  %v1307 = vmax.f32 %v1279, 0.0
  %v1308 = vmax.f32 %v1282, 0.0
  %v1309 = vmax.f32 %v1287, 0.0
  %v1310 = vmax.f32 %v1290, 0.0
  %v1311 = vmax.f32 %v1295, 0.0
  %v1312 = vmax.f32 %v1298, 0.0
  %1313 = vst [vmem:[%s5] sm:$0xff] %v1301
  %1314 = vst [vmem:[%s5 + $0x8] sm:$0xff] %v1302
  %1315 = vst [vmem:[%s5 + $0x10] sm:$0xff] %v1303
  %1316 = vst [vmem:[%s5 + $0x18] sm:$0xff] %v1304
  %1317 = vst [vmem:[%s5 + $0x20] sm:$0xff] %v1305
  %1318 = vst [vmem:[%s5 + $0x28] sm:$0xff] %v1306
  %1319 = vst [vmem:[%s5 + $0x30] sm:$0xff] %v1307
  %1320 = vst [vmem:[%s5 + $0x38] sm:$0xff] %v1308
  %1321 = vst [vmem:[%s5 + $0x40] sm:$0xff] %v1309
  %1322 = vst [vmem:[%s5 + $0x48] sm:$0xff] %v1310
  %1323 = vst [vmem:[%s5 + $0x50] sm:$0xff] %v1311
  %1324 = vst [vmem:[%s5 + $0x58] sm:$0xff] %v1312
  // Predicated region
  $region22: #{_lambda_.67} parent=0 // pred_check
    _
  $region23: #{_lambda_.67} parent=0 // pred_check_branch
    %1326 = sbr.rel (0) target = $region25
  $region24: #{_lambda_.67} parent=0 // pred_region
    _
  $region25: #{_lambda_.67} parent=0 // pred_fallthru
    _
  // Predicated region
  $region26: #{_lambda_.67} parent=0 // pred_check
    _
  $region27: #{_lambda_.67} parent=0 // pred_check_branch
    %1328 = sbr.rel (0) target = $region29
  $region28: #{_lambda_.67} parent=0 // pred_region
    _
  $region29: #{_lambda_.67} parent=0 // pred_fallthru
    _

// kernel: _lambda_.76
$region0: #{_lambda_.76}
  #allocation0 [shape = 'u32[]', space=smem, size = 0x4, offset = 0x4, fixed_abs, tag = 'smem constant byte address 0x4 - core index']
  #allocation1 [shape = 'u32[144,128]{1,0:T(1,128)}', space=vmem, size = 0x12000, scoped, tag = 'internal scratch']
  %s0 = inlined_call_operand.vmem [shape: bf16[192,128], index: 0, kind: input, shape index: {}]
  %s1 = inlined_call_operand.vmem [shape: bf16[1024,192], index: 1, kind: input, shape index: {}]
  %s2 = inlined_call_operand.vmem [shape: f32[1024,1], index: 2, kind: input, shape index: {}]
  %s3 = inlined_call_operand.vmem [shape: f32[1024,128], index: 3, kind: output, shape index: {}]
  %s4 = sld [smem:[#allocation0]]
  $region22: #{_lambda_.76} parent=0
    _
  %s6 = ssub.s32 1, %s4
  %s7 = scalar_select 0, %s6, %s4
  // Predicated region
  $region2: #{_lambda_.76} parent=0 // pred_check
    _
  $region3: #{_lambda_.76} parent=0 // pred_check_branch
    %9 = sbr.rel (0) target = $region5
  $region4: #{_lambda_.76} parent=0 // pred_region
    _
  $region5: #{_lambda_.76} parent=0 // pred_fallthru
    _
  // Predicated region
  $region6: #{_lambda_.76} parent=0 // pred_check
    _
  $region7: #{_lambda_.76} parent=0 // pred_check_branch
    %11 = sbr.rel (0) target = $region9
  $region8: #{_lambda_.76} parent=0 // pred_region
    _
  $region9: #{_lambda_.76} parent=0 // pred_fallthru
    _
  // Predicated region
  $region10: #{_lambda_.76} parent=0 // pred_check
    _
  $region11: #{_lambda_.76} parent=0 // pred_check_branch
    %13 = sbr.rel (0) target = $region13
  $region12: #{_lambda_.76} parent=0 // pred_region
    _
  $region13: #{_lambda_.76} parent=0 // pred_fallthru
    _
  %v15 = vld [vmem:[%s1] sm:$0xff]
  %v16 = vld [vmem:[%s1 + $0x8] sm:$0xff]
  %v17 = vld [vmem:[%s1 + $0x10] sm:$0xff]
  %v18 = vld [vmem:[%s1 + $0x18] sm:$0xff]
  %v19 = vld [vmem:[%s1 + $0x20] sm:$0xff]
  %v20 = vld [vmem:[%s1 + $0x28] sm:$0xff]
  %v21 = vld [vmem:[%s1 + $0x30] sm:$0xff]
  %v22 = vld [vmem:[%s1 + $0x38] sm:$0xff]
  %v23 = vld [vmem:[%s1 + $0x40] sm:$0xff]
  %v24 = vld [vmem:[%s1 + $0x48] sm:$0xff]
  %v25 = vld [vmem:[%s1 + $0x50] sm:$0xff]
  %v26 = vld [vmem:[%s1 + $0x58] sm:$0xff]
  %v27 = vld [vmem:[%s1 + $0x60] sm:$0xff]
  %v28 = vld [vmem:[%s1 + $0x68] sm:$0xff]
  %v29 = vld [vmem:[%s1 + $0x70] sm:$0xff]
  %v30 = vld [vmem:[%s1 + $0x78] sm:$0xff]
  %v31 = vld [vmem:[%s1 + $0x80] sm:$0xff]
  %v32 = vld [vmem:[%s1 + $0x88] sm:$0xff]
  %v33 = vld [vmem:[%s1 + $0x90] sm:$0xff]
  %v34 = vld [vmem:[%s1 + $0x98] sm:$0xff]
  %v35 = vld [vmem:[%s1 + $0xa0] sm:$0xff]
  %v36 = vld [vmem:[%s1 + $0xa8] sm:$0xff]
  %v37 = vld [vmem:[%s1 + $0xb0] sm:$0xff]
  %v38 = vld [vmem:[%s1 + $0xb8] sm:$0xff]
  %v39 = vld [vmem:[%s1 + $0xc0] sm:$0xff]
  %v40 = vld [vmem:[%s1 + $0xc8] sm:$0xff]
  %v41 = vld [vmem:[%s1 + $0xd0] sm:$0xff]
  %v42 = vld [vmem:[%s1 + $0xd8] sm:$0xff]
  %v43 = vld [vmem:[%s1 + $0xe0] sm:$0xff]
  %v44 = vld [vmem:[%s1 + $0xe8] sm:$0xff]
  %v45 = vld [vmem:[%s1 + $0xf0] sm:$0xff]
  %v46 = vld [vmem:[%s1 + $0xf8] sm:$0xff]
  %v47 = vld [vmem:[%s1 + $0x100] sm:$0xff]
  %v48 = vld [vmem:[%s1 + $0x108] sm:$0xff]
  %v49 = vld [vmem:[%s1 + $0x110] sm:$0xff]
  %v50 = vld [vmem:[%s1 + $0x118] sm:$0xff]
  %v51 = vld [vmem:[%s1 + $0x120] sm:$0xff]
  %v52 = vld [vmem:[%s1 + $0x128] sm:$0xff]
  %v53 = vld [vmem:[%s1 + $0x130] sm:$0xff]
  %v54 = vld [vmem:[%s1 + $0x138] sm:$0xff]
  %v55 = vld [vmem:[%s1 + $0x140] sm:$0xff]
  %v56 = vld [vmem:[%s1 + $0x148] sm:$0xff]
  %v57 = vld [vmem:[%s1 + $0x150] sm:$0xff]
  %v58 = vld [vmem:[%s1 + $0x158] sm:$0xff]
  %v59 = vld [vmem:[%s1 + $0x160] sm:$0xff]
  %v60 = vld [vmem:[%s1 + $0x168] sm:$0xff]
  %v61 = vld [vmem:[%s1 + $0x170] sm:$0xff]
  %v62 = vld [vmem:[%s1 + $0x178] sm:$0xff]
  %v63 = vld [vmem:[%s1 + $0x180] sm:$0xff]
  %v64 = vld [vmem:[%s1 + $0x188] sm:$0xff]
  %v65 = vld [vmem:[%s1 + $0x190] sm:$0xff]
  %v66 = vld [vmem:[%s1 + $0x198] sm:$0xff]
  %v67 = vld [vmem:[%s1 + $0x1a0] sm:$0xff]
  %v68 = vld [vmem:[%s1 + $0x1a8] sm:$0xff]
  %v69 = vld [vmem:[%s1 + $0x1b0] sm:$0xff]
  %v70 = vld [vmem:[%s1 + $0x1b8] sm:$0xff]
  %v71 = vld [vmem:[%s1 + $0x1c0] sm:$0xff]
  %v72 = vld [vmem:[%s1 + $0x1c8] sm:$0xff]
  %v73 = vld [vmem:[%s1 + $0x1d0] sm:$0xff]
  %v74 = vld [vmem:[%s1 + $0x1d8] sm:$0xff]
  %v75 = vld [vmem:[%s1 + $0x1e0] sm:$0xff]
  %v76 = vld [vmem:[%s1 + $0x1e8] sm:$0xff]
  %v77 = vld [vmem:[%s1 + $0x1f0] sm:$0xff]
  %v78 = vld [vmem:[%s1 + $0x1f8] sm:$0xff]
  %v79 = vld [vmem:[%s1 + $0x200] sm:$0xff]
  %v80 = vld [vmem:[%s1 + $0x208] sm:$0xff]
  %v81 = vld [vmem:[%s1 + $0x210] sm:$0xff]
  %v82 = vld [vmem:[%s1 + $0x218] sm:$0xff]
  %v83 = vld [vmem:[%s1 + $0x220] sm:$0xff]
  %v84 = vld [vmem:[%s1 + $0x228] sm:$0xff]
  %v85 = vld [vmem:[%s1 + $0x230] sm:$0xff]
  %v86 = vld [vmem:[%s1 + $0x238] sm:$0xff]
  %v87 = vld [vmem:[%s1 + $0x240] sm:$0xff]
  %v88 = vld [vmem:[%s1 + $0x248] sm:$0xff]
  %v89 = vld [vmem:[%s1 + $0x250] sm:$0xff]
  %v90 = vld [vmem:[%s1 + $0x258] sm:$0xff]
  %v91 = vld [vmem:[%s1 + $0x260] sm:$0xff]
  %v92 = vld [vmem:[%s1 + $0x268] sm:$0xff]
  %v93 = vld [vmem:[%s1 + $0x270] sm:$0xff]
  %v94 = vld [vmem:[%s1 + $0x278] sm:$0xff]
  %v95 = vld [vmem:[%s1 + $0x280] sm:$0xff]
  %v96 = vld [vmem:[%s1 + $0x288] sm:$0xff]
  %v97 = vld [vmem:[%s1 + $0x290] sm:$0xff]
  %v98 = vld [vmem:[%s1 + $0x298] sm:$0xff]
  %v99 = vld [vmem:[%s1 + $0x2a0] sm:$0xff]
  %v100 = vld [vmem:[%s1 + $0x2a8] sm:$0xff]
  %v101 = vld [vmem:[%s1 + $0x2b0] sm:$0xff]
  %v102 = vld [vmem:[%s1 + $0x2b8] sm:$0xff]
  %v103 = vld [vmem:[%s1 + $0x2c0] sm:$0xff]
  %v104 = vld [vmem:[%s1 + $0x2c8] sm:$0xff]
  %v105 = vld [vmem:[%s1 + $0x2d0] sm:$0xff]
  %v106 = vld [vmem:[%s1 + $0x2d8] sm:$0xff]
  %v107 = vld [vmem:[%s1 + $0x2e0] sm:$0xff]
  %v108 = vld [vmem:[%s1 + $0x2e8] sm:$0xff]
  %v109 = vld [vmem:[%s1 + $0x2f0] sm:$0xff]
  %v110 = vld [vmem:[%s1 + $0x2f8] sm:$0xff]
  %v111 = vld [vmem:[%s1 + $0x300] sm:$0xff]
  %v112 = vld [vmem:[%s1 + $0x308] sm:$0xff]
  %v113 = vld [vmem:[%s1 + $0x310] sm:$0xff]
  %v114 = vld [vmem:[%s1 + $0x318] sm:$0xff]
  %v115 = vld [vmem:[%s1 + $0x320] sm:$0xff]
  %v116 = vld [vmem:[%s1 + $0x328] sm:$0xff]
  %v117 = vld [vmem:[%s1 + $0x330] sm:$0xff]
  %v118 = vld [vmem:[%s1 + $0x338] sm:$0xff]
  %v119 = vld [vmem:[%s1 + $0x340] sm:$0xff]
  %v120 = vld [vmem:[%s1 + $0x348] sm:$0xff]
  %v121 = vld [vmem:[%s1 + $0x350] sm:$0xff]
  %v122 = vld [vmem:[%s1 + $0x358] sm:$0xff]
  %v123 = vld [vmem:[%s1 + $0x360] sm:$0xff]
  %v124 = vld [vmem:[%s1 + $0x368] sm:$0xff]
  %v125 = vld [vmem:[%s1 + $0x370] sm:$0xff]
  %v126 = vld [vmem:[%s1 + $0x378] sm:$0xff]
  %v127 = vld [vmem:[%s1 + $0x380] sm:$0xff]
  %v128 = vld [vmem:[%s1 + $0x388] sm:$0xff]
  %v129 = vld [vmem:[%s1 + $0x390] sm:$0xff]
  %v130 = vld [vmem:[%s1 + $0x398] sm:$0xff]
  %v131 = vld [vmem:[%s1 + $0x3a0] sm:$0xff]
  %v132 = vld [vmem:[%s1 + $0x3a8] sm:$0xff]
  %v133 = vld [vmem:[%s1 + $0x3b0] sm:$0xff]
  %v134 = vld [vmem:[%s1 + $0x3b8] sm:$0xff]
  %v135 = vld [vmem:[%s1 + $0x3c0] sm:$0xff]
  %v136 = vld [vmem:[%s1 + $0x3c8] sm:$0xff]
  %v137 = vld [vmem:[%s1 + $0x3d0] sm:$0xff]
  %v138 = vld [vmem:[%s1 + $0x3d8] sm:$0xff]
  %v139 = vld [vmem:[%s1 + $0x3e0] sm:$0xff]
  %v140 = vld [vmem:[%s1 + $0x3e8] sm:$0xff]
  %v141 = vld [vmem:[%s1 + $0x3f0] sm:$0xff]
  %v142 = vld [vmem:[%s1 + $0x3f8] sm:$0xff]
  %v143 = vld [vmem:[%s0] sm:$0xf]
  %v144 = vld [vmem:[%s0 + $0x4] sm:$0xf]
  %v145 = vld [vmem:[%s0 + $0x8] sm:$0xf]
  %v146 = vld [vmem:[%s0 + $0xc] sm:$0xf]
  %v147 = vld [vmem:[%s0 + $0x10] sm:$0xf]
  %v148 = vld [vmem:[%s0 + $0x14] sm:$0xf]
  %v149 = vld [vmem:[%s0 + $0x18] sm:$0xf]
  %v150 = vld [vmem:[%s0 + $0x1c] sm:$0xf]
  %v151 = vld [vmem:[%s0 + $0x20] sm:$0xf]
  %v152 = vld [vmem:[%s0 + $0x24] sm:$0xf]
  %v153 = vld [vmem:[%s0 + $0x28] sm:$0xf]
  %v154 = vld [vmem:[%s0 + $0x2c] sm:$0xf]
  %v155 = vld [vmem:[%s0 + $0x30] sm:$0xf]
  %v156 = vld [vmem:[%s0 + $0x34] sm:$0xf]
  %v157 = vld [vmem:[%s0 + $0x38] sm:$0xf]
  %v158 = vld [vmem:[%s0 + $0x3c] sm:$0xf]
  %v159 = vld [vmem:[%s0 + $0x40] sm:$0xf]
  %v160 = vld [vmem:[%s0 + $0x44] sm:$0xf]
  %v161 = vld [vmem:[%s0 + $0x48] sm:$0xf]
  %v162 = vld [vmem:[%s0 + $0x4c] sm:$0xf]
  %v163 = vld [vmem:[%s0 + $0x50] sm:$0xf]
  %v164 = vld [vmem:[%s0 + $0x54] sm:$0xf]
  %v165 = vld [vmem:[%s0 + $0x58] sm:$0xf]
  %v166 = vld [vmem:[%s0 + $0x5c] sm:$0xf]
  %v167 = vld [vmem:[%s2] sm:$0xff]
  %v168 = vld [vmem:[%s2 + $0x8] sm:$0xff]
  %v169 = vld [vmem:[%s2 + $0x10] sm:$0xff]
  %v170 = vld [vmem:[%s2 + $0x18] sm:$0xff]
  %v171 = vld [vmem:[%s2 + $0x20] sm:$0xff]
  %v172 = vld [vmem:[%s2 + $0x28] sm:$0xff]
  %v173 = vld [vmem:[%s2 + $0x30] sm:$0xff]
  %v174 = vld [vmem:[%s2 + $0x38] sm:$0xff]
  %v175 = vld [vmem:[%s2 + $0x40] sm:$0xff]
  %v176 = vld [vmem:[%s2 + $0x48] sm:$0xff]
  %v177 = vld [vmem:[%s2 + $0x50] sm:$0xff]
  %v178 = vld [vmem:[%s2 + $0x58] sm:$0xff]
  %v179 = vld [vmem:[%s2 + $0x60] sm:$0xff]
  %v180 = vld [vmem:[%s2 + $0x68] sm:$0xff]
  %v181 = vld [vmem:[%s2 + $0x70] sm:$0xff]
  %v182 = vld [vmem:[%s2 + $0x78] sm:$0xff]
  %v183 = vld [vmem:[%s2 + $0x80] sm:$0xff]
  %v184 = vld [vmem:[%s2 + $0x88] sm:$0xff]
  %v185 = vld [vmem:[%s2 + $0x90] sm:$0xff]
  %v186 = vld [vmem:[%s2 + $0x98] sm:$0xff]
  %v187 = vld [vmem:[%s2 + $0xa0] sm:$0xff]
  %v188 = vld [vmem:[%s2 + $0xa8] sm:$0xff]
  %v189 = vld [vmem:[%s2 + $0xb0] sm:$0xff]
  %v190 = vld [vmem:[%s2 + $0xb8] sm:$0xff]
  %v191 = vld [vmem:[%s2 + $0xc0] sm:$0xff]
  %v192 = vld [vmem:[%s2 + $0xc8] sm:$0xff]
  %v193 = vld [vmem:[%s2 + $0xd0] sm:$0xff]
  %v194 = vld [vmem:[%s2 + $0xd8] sm:$0xff]
  %v195 = vld [vmem:[%s2 + $0xe0] sm:$0xff]
  %v196 = vld [vmem:[%s2 + $0xe8] sm:$0xff]
  %v197 = vld [vmem:[%s2 + $0xf0] sm:$0xff]
  %v198 = vld [vmem:[%s2 + $0xf8] sm:$0xff]
  %v199 = vld [vmem:[%s2 + $0x100] sm:$0xff]
  %v200 = vld [vmem:[%s2 + $0x108] sm:$0xff]
  %v201 = vld [vmem:[%s2 + $0x110] sm:$0xff]
  %v202 = vld [vmem:[%s2 + $0x118] sm:$0xff]
  %v203 = vld [vmem:[%s2 + $0x120] sm:$0xff]
  %v204 = vld [vmem:[%s2 + $0x128] sm:$0xff]
  %v205 = vld [vmem:[%s2 + $0x130] sm:$0xff]
  %v206 = vld [vmem:[%s2 + $0x138] sm:$0xff]
  %v207 = vld [vmem:[%s2 + $0x140] sm:$0xff]
  %v208 = vld [vmem:[%s2 + $0x148] sm:$0xff]
  %v209 = vld [vmem:[%s2 + $0x150] sm:$0xff]
  %v210 = vld [vmem:[%s2 + $0x158] sm:$0xff]
  %v211 = vld [vmem:[%s2 + $0x160] sm:$0xff]
  %v212 = vld [vmem:[%s2 + $0x168] sm:$0xff]
  %v213 = vld [vmem:[%s2 + $0x170] sm:$0xff]
  %v214 = vld [vmem:[%s2 + $0x178] sm:$0xff]
  %v215 = vld [vmem:[%s2 + $0x180] sm:$0xff]
  %v216 = vld [vmem:[%s2 + $0x188] sm:$0xff]
  %v217 = vld [vmem:[%s2 + $0x190] sm:$0xff]
  %v218 = vld [vmem:[%s2 + $0x198] sm:$0xff]
  %v219 = vld [vmem:[%s2 + $0x1a0] sm:$0xff]
  %v220 = vld [vmem:[%s2 + $0x1a8] sm:$0xff]
  %v221 = vld [vmem:[%s2 + $0x1b0] sm:$0xff]
  %v222 = vld [vmem:[%s2 + $0x1b8] sm:$0xff]
  %v223 = vld [vmem:[%s2 + $0x1c0] sm:$0xff]
  %v224 = vld [vmem:[%s2 + $0x1c8] sm:$0xff]
  %v225 = vld [vmem:[%s2 + $0x1d0] sm:$0xff]
  %v226 = vld [vmem:[%s2 + $0x1d8] sm:$0xff]
  %v227 = vld [vmem:[%s2 + $0x1e0] sm:$0xff]
  %v228 = vld [vmem:[%s2 + $0x1e8] sm:$0xff]
  %v229 = vld [vmem:[%s2 + $0x1f0] sm:$0xff]
  %v230 = vld [vmem:[%s2 + $0x1f8] sm:$0xff]
  %v231 = vld [vmem:[%s2 + $0x200] sm:$0xff]
  %v232 = vld [vmem:[%s2 + $0x208] sm:$0xff]
  %v233 = vld [vmem:[%s2 + $0x210] sm:$0xff]
  %v234 = vld [vmem:[%s2 + $0x218] sm:$0xff]
  %v235 = vld [vmem:[%s2 + $0x220] sm:$0xff]
  %v236 = vld [vmem:[%s2 + $0x228] sm:$0xff]
  %v237 = vld [vmem:[%s2 + $0x230] sm:$0xff]
  %v238 = vld [vmem:[%s2 + $0x238] sm:$0xff]
  %v239 = vld [vmem:[%s2 + $0x240] sm:$0xff]
  %v240 = vld [vmem:[%s2 + $0x248] sm:$0xff]
  %v241 = vld [vmem:[%s2 + $0x250] sm:$0xff]
  %v242 = vld [vmem:[%s2 + $0x258] sm:$0xff]
  %v243 = vld [vmem:[%s2 + $0x260] sm:$0xff]
  %v244 = vld [vmem:[%s2 + $0x268] sm:$0xff]
  %v245 = vld [vmem:[%s2 + $0x270] sm:$0xff]
  %v246 = vld [vmem:[%s2 + $0x278] sm:$0xff]
  %v247 = vld [vmem:[%s2 + $0x280] sm:$0xff]
  %v248 = vld [vmem:[%s2 + $0x288] sm:$0xff]
  %v249 = vld [vmem:[%s2 + $0x290] sm:$0xff]
  %v250 = vld [vmem:[%s2 + $0x298] sm:$0xff]
  %v251 = vld [vmem:[%s2 + $0x2a0] sm:$0xff]
  %v252 = vld [vmem:[%s2 + $0x2a8] sm:$0xff]
  %v253 = vld [vmem:[%s2 + $0x2b0] sm:$0xff]
  %v254 = vld [vmem:[%s2 + $0x2b8] sm:$0xff]
  %v255 = vld [vmem:[%s2 + $0x2c0] sm:$0xff]
  %v256 = vld [vmem:[%s2 + $0x2c8] sm:$0xff]
  %v257 = vld [vmem:[%s2 + $0x2d0] sm:$0xff]
  %v258 = vld [vmem:[%s2 + $0x2d8] sm:$0xff]
  %v259 = vld [vmem:[%s2 + $0x2e0] sm:$0xff]
  %v260 = vld [vmem:[%s2 + $0x2e8] sm:$0xff]
  %v261 = vld [vmem:[%s2 + $0x2f0] sm:$0xff]
  %v262 = vld [vmem:[%s2 + $0x2f8] sm:$0xff]
  %v263 = vld [vmem:[%s2 + $0x300] sm:$0xff]
  %v264 = vld [vmem:[%s2 + $0x308] sm:$0xff]
  %v265 = vld [vmem:[%s2 + $0x310] sm:$0xff]
  %v266 = vld [vmem:[%s2 + $0x318] sm:$0xff]
  %v267 = vld [vmem:[%s2 + $0x320] sm:$0xff]
  %v268 = vld [vmem:[%s2 + $0x328] sm:$0xff]
  %v269 = vld [vmem:[%s2 + $0x330] sm:$0xff]
  %v270 = vld [vmem:[%s2 + $0x338] sm:$0xff]
  %v271 = vld [vmem:[%s2 + $0x340] sm:$0xff]
  %v272 = vld [vmem:[%s2 + $0x348] sm:$0xff]
  %v273 = vld [vmem:[%s2 + $0x350] sm:$0xff]
  %v274 = vld [vmem:[%s2 + $0x358] sm:$0xff]
  %v275 = vld [vmem:[%s2 + $0x360] sm:$0xff]
  %v276 = vld [vmem:[%s2 + $0x368] sm:$0xff]
  %v277 = vld [vmem:[%s2 + $0x370] sm:$0xff]
  %v278 = vld [vmem:[%s2 + $0x378] sm:$0xff]
  %v279 = vld [vmem:[%s2 + $0x380] sm:$0xff]
  %v280 = vld [vmem:[%s2 + $0x388] sm:$0xff]
  %v281 = vld [vmem:[%s2 + $0x390] sm:$0xff]
  %v282 = vld [vmem:[%s2 + $0x398] sm:$0xff]
  %v283 = vld [vmem:[%s2 + $0x3a0] sm:$0xff]
  %v284 = vld [vmem:[%s2 + $0x3a8] sm:$0xff]
  %v285 = vld [vmem:[%s2 + $0x3b0] sm:$0xff]
  %v286 = vld [vmem:[%s2 + $0x3b8] sm:$0xff]
  %v287 = vld [vmem:[%s2 + $0x3c0] sm:$0xff]
  %v288 = vld [vmem:[%s2 + $0x3c8] sm:$0xff]
  %v289 = vld [vmem:[%s2 + $0x3d0] sm:$0xff]
  %v290 = vld [vmem:[%s2 + $0x3d8] sm:$0xff]
  %v291 = vld [vmem:[%s2 + $0x3e0] sm:$0xff]
  %v292 = vld [vmem:[%s2 + $0x3e8] sm:$0xff]
  %v293 = vld [vmem:[%s2 + $0x3f0] sm:$0xff]
  %v294 = vld [vmem:[%s2 + $0x3f8] sm:$0xff]
  %296 = vset.pattern.permute.xlu0 0
  %297 = vperm.xlu0 %296, %v167
  %v298 = vpop.permute.xlu0 %297
  %301 = vset.pattern.permute.xlu0 0
  %302 = vperm.xlu0 %301, %v168
  %v303 = vpop.permute.xlu0 %302
  %306 = vset.pattern.permute.xlu0 0
  %307 = vperm.xlu0 %306, %v169
  %v308 = vpop.permute.xlu0 %307
  %311 = vset.pattern.permute.xlu0 0
  %312 = vperm.xlu0 %311, %v170
  %v313 = vpop.permute.xlu0 %312
  %316 = vset.pattern.permute.xlu0 0
  %317 = vperm.xlu0 %316, %v171
  %v318 = vpop.permute.xlu0 %317
  %321 = vset.pattern.permute.xlu0 0
  %322 = vperm.xlu0 %321, %v172
  %v323 = vpop.permute.xlu0 %322
  %326 = vset.pattern.permute.xlu0 0
  %327 = vperm.xlu0 %326, %v173
  %v328 = vpop.permute.xlu0 %327
  %331 = vset.pattern.permute.xlu0 0
  %332 = vperm.xlu0 %331, %v174
  %v333 = vpop.permute.xlu0 %332
  %336 = vset.pattern.permute.xlu0 0
  %337 = vperm.xlu0 %336, %v175
  %v338 = vpop.permute.xlu0 %337
  %341 = vset.pattern.permute.xlu0 0
  %342 = vperm.xlu0 %341, %v176
  %v343 = vpop.permute.xlu0 %342
  %346 = vset.pattern.permute.xlu0 0
  %347 = vperm.xlu0 %346, %v177
  %v348 = vpop.permute.xlu0 %347
  %351 = vset.pattern.permute.xlu0 0
  %352 = vperm.xlu0 %351, %v178
  %v353 = vpop.permute.xlu0 %352
  %356 = vset.pattern.permute.xlu0 0
  %357 = vperm.xlu0 %356, %v179
  %v358 = vpop.permute.xlu0 %357
  %361 = vset.pattern.permute.xlu0 0
  %362 = vperm.xlu0 %361, %v180
  %v363 = vpop.permute.xlu0 %362
  %366 = vset.pattern.permute.xlu0 0
  %367 = vperm.xlu0 %366, %v181
  %v368 = vpop.permute.xlu0 %367
  %371 = vset.pattern.permute.xlu0 0
  %372 = vperm.xlu0 %371, %v182
  %v373 = vpop.permute.xlu0 %372
  %376 = vset.pattern.permute.xlu0 0
  %377 = vperm.xlu0 %376, %v183
  %v378 = vpop.permute.xlu0 %377
  %381 = vset.pattern.permute.xlu0 0
  %382 = vperm.xlu0 %381, %v184
  %v383 = vpop.permute.xlu0 %382
  %386 = vset.pattern.permute.xlu0 0
  %387 = vperm.xlu0 %386, %v185
  %v388 = vpop.permute.xlu0 %387
  %391 = vset.pattern.permute.xlu0 0
  %392 = vperm.xlu0 %391, %v186
  %v393 = vpop.permute.xlu0 %392
  %396 = vset.pattern.permute.xlu0 0
  %397 = vperm.xlu0 %396, %v187
  %v398 = vpop.permute.xlu0 %397
  %401 = vset.pattern.permute.xlu0 0
  %402 = vperm.xlu0 %401, %v188
  %v403 = vpop.permute.xlu0 %402
  %406 = vset.pattern.permute.xlu0 0
  %407 = vperm.xlu0 %406, %v189
  %v408 = vpop.permute.xlu0 %407
  %411 = vset.pattern.permute.xlu0 0
  %412 = vperm.xlu0 %411, %v190
  %v413 = vpop.permute.xlu0 %412
  %416 = vset.pattern.permute.xlu0 0
  %417 = vperm.xlu0 %416, %v191
  %v418 = vpop.permute.xlu0 %417
  %421 = vset.pattern.permute.xlu0 0
  %422 = vperm.xlu0 %421, %v192
  %v423 = vpop.permute.xlu0 %422
  %426 = vset.pattern.permute.xlu0 0
  %427 = vperm.xlu0 %426, %v193
  %v428 = vpop.permute.xlu0 %427
  %431 = vset.pattern.permute.xlu0 0
  %432 = vperm.xlu0 %431, %v194
  %v433 = vpop.permute.xlu0 %432
  %436 = vset.pattern.permute.xlu0 0
  %437 = vperm.xlu0 %436, %v195
  %v438 = vpop.permute.xlu0 %437
  %441 = vset.pattern.permute.xlu0 0
  %442 = vperm.xlu0 %441, %v196
  %v443 = vpop.permute.xlu0 %442
  %446 = vset.pattern.permute.xlu0 0
  %447 = vperm.xlu0 %446, %v197
  %v448 = vpop.permute.xlu0 %447
  %451 = vset.pattern.permute.xlu0 0
  %452 = vperm.xlu0 %451, %v198
  %v453 = vpop.permute.xlu0 %452
  %456 = vset.pattern.permute.xlu0 0
  %457 = vperm.xlu0 %456, %v199
  %v458 = vpop.permute.xlu0 %457
  %461 = vset.pattern.permute.xlu0 0
  %462 = vperm.xlu0 %461, %v200
  %v463 = vpop.permute.xlu0 %462
  %466 = vset.pattern.permute.xlu0 0
  %467 = vperm.xlu0 %466, %v201
  %v468 = vpop.permute.xlu0 %467
  %471 = vset.pattern.permute.xlu0 0
  %472 = vperm.xlu0 %471, %v202
  %v473 = vpop.permute.xlu0 %472
  %476 = vset.pattern.permute.xlu0 0
  %477 = vperm.xlu0 %476, %v203
  %v478 = vpop.permute.xlu0 %477
  %481 = vset.pattern.permute.xlu0 0
  %482 = vperm.xlu0 %481, %v204
  %v483 = vpop.permute.xlu0 %482
  %486 = vset.pattern.permute.xlu0 0
  %487 = vperm.xlu0 %486, %v205
  %v488 = vpop.permute.xlu0 %487
  %491 = vset.pattern.permute.xlu0 0
  %492 = vperm.xlu0 %491, %v206
  %v493 = vpop.permute.xlu0 %492
  %496 = vset.pattern.permute.xlu0 0
  %497 = vperm.xlu0 %496, %v207
  %v498 = vpop.permute.xlu0 %497
  %501 = vset.pattern.permute.xlu0 0
  %502 = vperm.xlu0 %501, %v208
  %v503 = vpop.permute.xlu0 %502
  %506 = vset.pattern.permute.xlu0 0
  %507 = vperm.xlu0 %506, %v209
  %v508 = vpop.permute.xlu0 %507
  %511 = vset.pattern.permute.xlu0 0
  %512 = vperm.xlu0 %511, %v210
  %v513 = vpop.permute.xlu0 %512
  %516 = vset.pattern.permute.xlu0 0
  %517 = vperm.xlu0 %516, %v211
  %v518 = vpop.permute.xlu0 %517
  %521 = vset.pattern.permute.xlu0 0
  %522 = vperm.xlu0 %521, %v212
  %v523 = vpop.permute.xlu0 %522
  %526 = vset.pattern.permute.xlu0 0
  %527 = vperm.xlu0 %526, %v213
  %v528 = vpop.permute.xlu0 %527
  %531 = vset.pattern.permute.xlu0 0
  %532 = vperm.xlu0 %531, %v214
  %v533 = vpop.permute.xlu0 %532
  %536 = vset.pattern.permute.xlu0 0
  %537 = vperm.xlu0 %536, %v215
  %v538 = vpop.permute.xlu0 %537
  %541 = vset.pattern.permute.xlu0 0
  %542 = vperm.xlu0 %541, %v216
  %v543 = vpop.permute.xlu0 %542
  %546 = vset.pattern.permute.xlu0 0
  %547 = vperm.xlu0 %546, %v217
  %v548 = vpop.permute.xlu0 %547
  %551 = vset.pattern.permute.xlu0 0
  %552 = vperm.xlu0 %551, %v218
  %v553 = vpop.permute.xlu0 %552
  %556 = vset.pattern.permute.xlu0 0
  %557 = vperm.xlu0 %556, %v219
  %v558 = vpop.permute.xlu0 %557
  %561 = vset.pattern.permute.xlu0 0
  %562 = vperm.xlu0 %561, %v220
  %v563 = vpop.permute.xlu0 %562
  %566 = vset.pattern.permute.xlu0 0
  %567 = vperm.xlu0 %566, %v221
  %v568 = vpop.permute.xlu0 %567
  %571 = vset.pattern.permute.xlu0 0
  %572 = vperm.xlu0 %571, %v222
  %v573 = vpop.permute.xlu0 %572
  %576 = vset.pattern.permute.xlu0 0
  %577 = vperm.xlu0 %576, %v223
  %v578 = vpop.permute.xlu0 %577
  %581 = vset.pattern.permute.xlu0 0
  %582 = vperm.xlu0 %581, %v224
  %v583 = vpop.permute.xlu0 %582
  %586 = vset.pattern.permute.xlu0 0
  %587 = vperm.xlu0 %586, %v225
  %v588 = vpop.permute.xlu0 %587
  %591 = vset.pattern.permute.xlu0 0
  %592 = vperm.xlu0 %591, %v226
  %v593 = vpop.permute.xlu0 %592
  %596 = vset.pattern.permute.xlu0 0
  %597 = vperm.xlu0 %596, %v227
  %v598 = vpop.permute.xlu0 %597
  %601 = vset.pattern.permute.xlu0 0
  %602 = vperm.xlu0 %601, %v228
  %v603 = vpop.permute.xlu0 %602
  %606 = vset.pattern.permute.xlu0 0
  %607 = vperm.xlu0 %606, %v229
  %v608 = vpop.permute.xlu0 %607
  %611 = vset.pattern.permute.xlu0 0
  %612 = vperm.xlu0 %611, %v230
  %v613 = vpop.permute.xlu0 %612
  %616 = vset.pattern.permute.xlu0 0
  %617 = vperm.xlu0 %616, %v231
  %v618 = vpop.permute.xlu0 %617
  %621 = vset.pattern.permute.xlu0 0
  %622 = vperm.xlu0 %621, %v232
  %v623 = vpop.permute.xlu0 %622
  %626 = vset.pattern.permute.xlu0 0
  %627 = vperm.xlu0 %626, %v233
  %v628 = vpop.permute.xlu0 %627
  %631 = vset.pattern.permute.xlu0 0
  %632 = vperm.xlu0 %631, %v234
  %v633 = vpop.permute.xlu0 %632
  %636 = vset.pattern.permute.xlu0 0
  %637 = vperm.xlu0 %636, %v235
  %v638 = vpop.permute.xlu0 %637
  %641 = vset.pattern.permute.xlu0 0
  %642 = vperm.xlu0 %641, %v236
  %v643 = vpop.permute.xlu0 %642
  %646 = vset.pattern.permute.xlu0 0
  %647 = vperm.xlu0 %646, %v237
  %v648 = vpop.permute.xlu0 %647
  %651 = vset.pattern.permute.xlu0 0
  %652 = vperm.xlu0 %651, %v238
  %v653 = vpop.permute.xlu0 %652
  %656 = vset.pattern.permute.xlu0 0
  %657 = vperm.xlu0 %656, %v239
  %v658 = vpop.permute.xlu0 %657
  %661 = vset.pattern.permute.xlu0 0
  %662 = vperm.xlu0 %661, %v240
  %v663 = vpop.permute.xlu0 %662
  %666 = vset.pattern.permute.xlu0 0
  %667 = vperm.xlu0 %666, %v241
  %v668 = vpop.permute.xlu0 %667
  %671 = vset.pattern.permute.xlu0 0
  %672 = vperm.xlu0 %671, %v242
  %v673 = vpop.permute.xlu0 %672
  %676 = vset.pattern.permute.xlu0 0
  %677 = vperm.xlu0 %676, %v243
  %v678 = vpop.permute.xlu0 %677
  %681 = vset.pattern.permute.xlu0 0
  %682 = vperm.xlu0 %681, %v244
  %v683 = vpop.permute.xlu0 %682
  %686 = vset.pattern.permute.xlu0 0
  %687 = vperm.xlu0 %686, %v245
  %v688 = vpop.permute.xlu0 %687
  %691 = vset.pattern.permute.xlu0 0
  %692 = vperm.xlu0 %691, %v246
  %v693 = vpop.permute.xlu0 %692
  %696 = vset.pattern.permute.xlu0 0
  %697 = vperm.xlu0 %696, %v247
  %v698 = vpop.permute.xlu0 %697
  %701 = vset.pattern.permute.xlu0 0
  %702 = vperm.xlu0 %701, %v248
  %v703 = vpop.permute.xlu0 %702
  %706 = vset.pattern.permute.xlu0 0
  %707 = vperm.xlu0 %706, %v249
  %v708 = vpop.permute.xlu0 %707
  %711 = vset.pattern.permute.xlu0 0
  %712 = vperm.xlu0 %711, %v250
  %v713 = vpop.permute.xlu0 %712
  %716 = vset.pattern.permute.xlu0 0
  %717 = vperm.xlu0 %716, %v251
  %v718 = vpop.permute.xlu0 %717
  %721 = vset.pattern.permute.xlu0 0
  %722 = vperm.xlu0 %721, %v252
  %v723 = vpop.permute.xlu0 %722
  %726 = vset.pattern.permute.xlu0 0
  %727 = vperm.xlu0 %726, %v253
  %v728 = vpop.permute.xlu0 %727
  %731 = vset.pattern.permute.xlu0 0
  %732 = vperm.xlu0 %731, %v254
  %v733 = vpop.permute.xlu0 %732
  %736 = vset.pattern.permute.xlu0 0
  %737 = vperm.xlu0 %736, %v255
  %v738 = vpop.permute.xlu0 %737
  %741 = vset.pattern.permute.xlu0 0
  %742 = vperm.xlu0 %741, %v256
  %v743 = vpop.permute.xlu0 %742
  %746 = vset.pattern.permute.xlu0 0
  %747 = vperm.xlu0 %746, %v257
  %v748 = vpop.permute.xlu0 %747
  %751 = vset.pattern.permute.xlu0 0
  %752 = vperm.xlu0 %751, %v258
  %v753 = vpop.permute.xlu0 %752
  %756 = vset.pattern.permute.xlu0 0
  %757 = vperm.xlu0 %756, %v259
  %v758 = vpop.permute.xlu0 %757
  %761 = vset.pattern.permute.xlu0 0
  %762 = vperm.xlu0 %761, %v260
  %v763 = vpop.permute.xlu0 %762
  %766 = vset.pattern.permute.xlu0 0
  %767 = vperm.xlu0 %766, %v261
  %v768 = vpop.permute.xlu0 %767
  %771 = vset.pattern.permute.xlu0 0
  %772 = vperm.xlu0 %771, %v262
  %v773 = vpop.permute.xlu0 %772
  %776 = vset.pattern.permute.xlu0 0
  %777 = vperm.xlu0 %776, %v263
  %v778 = vpop.permute.xlu0 %777
  %781 = vset.pattern.permute.xlu0 0
  %782 = vperm.xlu0 %781, %v264
  %v783 = vpop.permute.xlu0 %782
  %786 = vset.pattern.permute.xlu0 0
  %787 = vperm.xlu0 %786, %v265
  %v788 = vpop.permute.xlu0 %787
  %791 = vset.pattern.permute.xlu0 0
  %792 = vperm.xlu0 %791, %v266
  %v793 = vpop.permute.xlu0 %792
  %796 = vset.pattern.permute.xlu0 0
  %797 = vperm.xlu0 %796, %v267
  %v798 = vpop.permute.xlu0 %797
  %801 = vset.pattern.permute.xlu0 0
  %802 = vperm.xlu0 %801, %v268
  %v803 = vpop.permute.xlu0 %802
  %806 = vset.pattern.permute.xlu0 0
  %807 = vperm.xlu0 %806, %v269
  %v808 = vpop.permute.xlu0 %807
  %811 = vset.pattern.permute.xlu0 0
  %812 = vperm.xlu0 %811, %v270
  %v813 = vpop.permute.xlu0 %812
  %816 = vset.pattern.permute.xlu0 0
  %817 = vperm.xlu0 %816, %v271
  %v818 = vpop.permute.xlu0 %817
  %821 = vset.pattern.permute.xlu0 0
  %822 = vperm.xlu0 %821, %v272
  %v823 = vpop.permute.xlu0 %822
  %826 = vset.pattern.permute.xlu0 0
  %827 = vperm.xlu0 %826, %v273
  %v828 = vpop.permute.xlu0 %827
  %831 = vset.pattern.permute.xlu0 0
  %832 = vperm.xlu0 %831, %v274
  %v833 = vpop.permute.xlu0 %832
  %836 = vset.pattern.permute.xlu0 0
  %837 = vperm.xlu0 %836, %v275
  %v838 = vpop.permute.xlu0 %837
  %841 = vset.pattern.permute.xlu0 0
  %842 = vperm.xlu0 %841, %v276
  %v843 = vpop.permute.xlu0 %842
  %846 = vset.pattern.permute.xlu0 0
  %847 = vperm.xlu0 %846, %v277
  %v848 = vpop.permute.xlu0 %847
  %851 = vset.pattern.permute.xlu0 0
  %852 = vperm.xlu0 %851, %v278
  %v853 = vpop.permute.xlu0 %852
  %856 = vset.pattern.permute.xlu0 0
  %857 = vperm.xlu0 %856, %v279
  %v858 = vpop.permute.xlu0 %857
  %861 = vset.pattern.permute.xlu0 0
  %862 = vperm.xlu0 %861, %v280
  %v863 = vpop.permute.xlu0 %862
  %866 = vset.pattern.permute.xlu0 0
  %867 = vperm.xlu0 %866, %v281
  %v868 = vpop.permute.xlu0 %867
  %871 = vset.pattern.permute.xlu0 0
  %872 = vperm.xlu0 %871, %v282
  %v873 = vpop.permute.xlu0 %872
  %876 = vset.pattern.permute.xlu0 0
  %877 = vperm.xlu0 %876, %v283
  %v878 = vpop.permute.xlu0 %877
  %881 = vset.pattern.permute.xlu0 0
  %882 = vperm.xlu0 %881, %v284
  %v883 = vpop.permute.xlu0 %882
  %886 = vset.pattern.permute.xlu0 0
  %887 = vperm.xlu0 %886, %v285
  %v888 = vpop.permute.xlu0 %887
  %891 = vset.pattern.permute.xlu0 0
  %892 = vperm.xlu0 %891, %v286
  %v893 = vpop.permute.xlu0 %892
  %896 = vset.pattern.permute.xlu0 0
  %897 = vperm.xlu0 %896, %v287
  %v898 = vpop.permute.xlu0 %897
  %901 = vset.pattern.permute.xlu0 0
  %902 = vperm.xlu0 %901, %v288
  %v903 = vpop.permute.xlu0 %902
  %906 = vset.pattern.permute.xlu0 0
  %907 = vperm.xlu0 %906, %v289
  %v908 = vpop.permute.xlu0 %907
  %911 = vset.pattern.permute.xlu0 0
  %912 = vperm.xlu0 %911, %v290
  %v913 = vpop.permute.xlu0 %912
  %916 = vset.pattern.permute.xlu0 0
  %917 = vperm.xlu0 %916, %v291
  %v918 = vpop.permute.xlu0 %917
  %921 = vset.pattern.permute.xlu0 0
  %922 = vperm.xlu0 %921, %v292
  %v923 = vpop.permute.xlu0 %922
  %926 = vset.pattern.permute.xlu0 0
  %927 = vperm.xlu0 %926, %v293
  %v928 = vpop.permute.xlu0 %927
  %931 = vset.pattern.permute.xlu0 0
  %932 = vperm.xlu0 %931, %v294
  %v933 = vpop.permute.xlu0 %932
  %v1063 = vunpack.c.l.b16 %v15
  %v1064 = vunpack.c.h.b16 %v15
  %v1065 = vunpack.c.l.b16 %v16
  %v1066 = vunpack.c.h.b16 %v16
  %v1067 = vunpack.c.l.b16 %v17
  %v1068 = vunpack.c.h.b16 %v17
  %v1069 = vunpack.c.l.b16 %v18
  %v1070 = vunpack.c.h.b16 %v18
  %v1071 = vunpack.c.l.b16 %v19
  %v1072 = vunpack.c.h.b16 %v19
  %v1073 = vunpack.c.l.b16 %v20
  %v1074 = vunpack.c.h.b16 %v20
  %v1075 = vunpack.c.l.b16 %v21
  %v1076 = vunpack.c.h.b16 %v21
  %v1077 = vunpack.c.l.b16 %v22
  %v1078 = vunpack.c.h.b16 %v22
  %v1079 = vunpack.c.l.b16 %v23
  %v1080 = vunpack.c.h.b16 %v23
  %v1081 = vunpack.c.l.b16 %v24
  %v1082 = vunpack.c.h.b16 %v24
  %v1083 = vunpack.c.l.b16 %v25
  %v1084 = vunpack.c.h.b16 %v25
  %v1085 = vunpack.c.l.b16 %v26
  %v1086 = vunpack.c.h.b16 %v26
  %v1087 = vunpack.c.l.b16 %v27
  %v1088 = vunpack.c.h.b16 %v27
  %v1089 = vunpack.c.l.b16 %v28
  %v1090 = vunpack.c.h.b16 %v28
  %v1091 = vunpack.c.l.b16 %v29
  %v1092 = vunpack.c.h.b16 %v29
  %v1093 = vunpack.c.l.b16 %v30
  %v1094 = vunpack.c.h.b16 %v30
  %v1095 = vunpack.c.l.b16 %v31
  %v1096 = vunpack.c.h.b16 %v31
  %v1097 = vunpack.c.l.b16 %v32
  %v1098 = vunpack.c.h.b16 %v32
  %v1099 = vunpack.c.l.b16 %v33
  %v1100 = vunpack.c.h.b16 %v33
  %v1101 = vunpack.c.l.b16 %v34
  %v1102 = vunpack.c.h.b16 %v34
  %v1103 = vunpack.c.l.b16 %v35
  %v1104 = vunpack.c.h.b16 %v35
  %v1105 = vunpack.c.l.b16 %v36
  %v1106 = vunpack.c.h.b16 %v36
  %v1107 = vunpack.c.l.b16 %v37
  %v1108 = vunpack.c.h.b16 %v37
  %v1109 = vunpack.c.l.b16 %v38
  %v1110 = vunpack.c.h.b16 %v38
  %v1111 = vunpack.c.l.b16 %v39
  %v1112 = vunpack.c.h.b16 %v39
  %v1113 = vunpack.c.l.b16 %v40
  %v1114 = vunpack.c.h.b16 %v40
  %v1115 = vunpack.c.l.b16 %v41
  %v1116 = vunpack.c.h.b16 %v41
  %v1117 = vunpack.c.l.b16 %v42
  %v1118 = vunpack.c.h.b16 %v42
  %v1119 = vunpack.c.l.b16 %v43
  %v1120 = vunpack.c.h.b16 %v43
  %v1121 = vunpack.c.l.b16 %v44
  %v1122 = vunpack.c.h.b16 %v44
  %v1123 = vunpack.c.l.b16 %v45
  %v1124 = vunpack.c.h.b16 %v45
  %v1125 = vunpack.c.l.b16 %v46
  %v1126 = vunpack.c.h.b16 %v46
  %v1127 = vunpack.c.l.b16 %v47
  %v1128 = vunpack.c.h.b16 %v47
  %v1129 = vunpack.c.l.b16 %v48
  %v1130 = vunpack.c.h.b16 %v48
  %v1131 = vunpack.c.l.b16 %v49
  %v1132 = vunpack.c.h.b16 %v49
  %v1133 = vunpack.c.l.b16 %v50
  %v1134 = vunpack.c.h.b16 %v50
  %v1135 = vunpack.c.l.b16 %v51
  %v1136 = vunpack.c.h.b16 %v51
  %v1137 = vunpack.c.l.b16 %v52
  %v1138 = vunpack.c.h.b16 %v52
  %v1139 = vunpack.c.l.b16 %v53
  %v1140 = vunpack.c.h.b16 %v53
  %v1141 = vunpack.c.l.b16 %v54
  %v1142 = vunpack.c.h.b16 %v54
  %v1143 = vunpack.c.l.b16 %v55
  %v1144 = vunpack.c.h.b16 %v55
  %v1145 = vunpack.c.l.b16 %v56
  %v1146 = vunpack.c.h.b16 %v56
  %v1147 = vunpack.c.l.b16 %v57
  %v1148 = vunpack.c.h.b16 %v57
  %v1149 = vunpack.c.l.b16 %v58
  %v1150 = vunpack.c.h.b16 %v58
  %v1151 = vunpack.c.l.b16 %v59
  %v1152 = vunpack.c.h.b16 %v59
  %v1153 = vunpack.c.l.b16 %v60
  %v1154 = vunpack.c.h.b16 %v60
  %v1155 = vunpack.c.l.b16 %v61
  %v1156 = vunpack.c.h.b16 %v61
  %v1157 = vunpack.c.l.b16 %v62
  %v1158 = vunpack.c.h.b16 %v62
  %v1159 = vunpack.c.l.b16 %v63
  %v1160 = vunpack.c.h.b16 %v63
  %v1161 = vunpack.c.l.b16 %v64
  %v1162 = vunpack.c.h.b16 %v64
  %v1163 = vunpack.c.l.b16 %v65
  %v1164 = vunpack.c.h.b16 %v65
  %v1165 = vunpack.c.l.b16 %v66
  %v1166 = vunpack.c.h.b16 %v66
  %v1167 = vunpack.c.l.b16 %v67
  %v1168 = vunpack.c.h.b16 %v67
  %v1169 = vunpack.c.l.b16 %v68
  %v1170 = vunpack.c.h.b16 %v68
  %v1171 = vunpack.c.l.b16 %v69
  %v1172 = vunpack.c.h.b16 %v69
  %v1173 = vunpack.c.l.b16 %v70
  %v1174 = vunpack.c.h.b16 %v70
  %v1175 = vunpack.c.l.b16 %v71
  %v1176 = vunpack.c.h.b16 %v71
  %v1177 = vunpack.c.l.b16 %v72
  %v1178 = vunpack.c.h.b16 %v72
  %v1179 = vunpack.c.l.b16 %v73
  %v1180 = vunpack.c.h.b16 %v73
  %v1181 = vunpack.c.l.b16 %v74
  %v1182 = vunpack.c.h.b16 %v74
  %v1183 = vunpack.c.l.b16 %v75
  %v1184 = vunpack.c.h.b16 %v75
  %v1185 = vunpack.c.l.b16 %v76
  %v1186 = vunpack.c.h.b16 %v76
  %v1187 = vunpack.c.l.b16 %v77
  %v1188 = vunpack.c.h.b16 %v77
  %v1189 = vunpack.c.l.b16 %v78
  %v1190 = vunpack.c.h.b16 %v78
  %v1191 = vunpack.c.l.b16 %v79
  %v1192 = vunpack.c.h.b16 %v79
  %v1193 = vunpack.c.l.b16 %v80
  %v1194 = vunpack.c.h.b16 %v80
  %v1195 = vunpack.c.l.b16 %v81
  %v1196 = vunpack.c.h.b16 %v81
  %v1197 = vunpack.c.l.b16 %v82
  %v1198 = vunpack.c.h.b16 %v82
  %v1199 = vunpack.c.l.b16 %v83
  %v1200 = vunpack.c.h.b16 %v83
  %v1201 = vunpack.c.l.b16 %v84
  %v1202 = vunpack.c.h.b16 %v84
  %v1203 = vunpack.c.l.b16 %v85
  %v1204 = vunpack.c.h.b16 %v85
  %v1205 = vunpack.c.l.b16 %v86
  %v1206 = vunpack.c.h.b16 %v86
  %v1207 = vunpack.c.l.b16 %v87
  %v1208 = vunpack.c.h.b16 %v87
  %v1209 = vunpack.c.l.b16 %v88
  %v1210 = vunpack.c.h.b16 %v88
  %v1211 = vunpack.c.l.b16 %v89
  %v1212 = vunpack.c.h.b16 %v89
  %v1213 = vunpack.c.l.b16 %v90
  %v1214 = vunpack.c.h.b16 %v90
  %v1215 = vunpack.c.l.b16 %v91
  %v1216 = vunpack.c.h.b16 %v91
  %v1217 = vunpack.c.l.b16 %v92
  %v1218 = vunpack.c.h.b16 %v92
  %v1219 = vunpack.c.l.b16 %v93
  %v1220 = vunpack.c.h.b16 %v93
  %v1221 = vunpack.c.l.b16 %v94
  %v1222 = vunpack.c.h.b16 %v94
  %v1223 = vunpack.c.l.b16 %v95
  %v1224 = vunpack.c.h.b16 %v95
  %v1225 = vunpack.c.l.b16 %v96
  %v1226 = vunpack.c.h.b16 %v96
  %v1227 = vunpack.c.l.b16 %v97
  %v1228 = vunpack.c.h.b16 %v97
  %v1229 = vunpack.c.l.b16 %v98
  %v1230 = vunpack.c.h.b16 %v98
  %v1231 = vunpack.c.l.b16 %v99
  %v1232 = vunpack.c.h.b16 %v99
  %v1233 = vunpack.c.l.b16 %v100
  %v1234 = vunpack.c.h.b16 %v100
  %v1235 = vunpack.c.l.b16 %v101
  %v1236 = vunpack.c.h.b16 %v101
  %v1237 = vunpack.c.l.b16 %v102
  %v1238 = vunpack.c.h.b16 %v102
  %v1239 = vunpack.c.l.b16 %v103
  %v1240 = vunpack.c.h.b16 %v103
  %v1241 = vunpack.c.l.b16 %v104
  %v1242 = vunpack.c.h.b16 %v104
  %v1243 = vunpack.c.l.b16 %v105
  %v1244 = vunpack.c.h.b16 %v105
  %v1245 = vunpack.c.l.b16 %v106
  %v1246 = vunpack.c.h.b16 %v106
  %v1247 = vunpack.c.l.b16 %v107
  %v1248 = vunpack.c.h.b16 %v107
  %v1249 = vunpack.c.l.b16 %v108
  %v1250 = vunpack.c.h.b16 %v108
  %v1251 = vunpack.c.l.b16 %v109
  %v1252 = vunpack.c.h.b16 %v109
  %v1253 = vunpack.c.l.b16 %v110
  %v1254 = vunpack.c.h.b16 %v110
  %v1255 = vunpack.c.l.b16 %v111
  %v1256 = vunpack.c.h.b16 %v111
  %v1257 = vunpack.c.l.b16 %v112
  %v1258 = vunpack.c.h.b16 %v112
  %v1259 = vunpack.c.l.b16 %v113
  %v1260 = vunpack.c.h.b16 %v113
  %v1261 = vunpack.c.l.b16 %v114
  %v1262 = vunpack.c.h.b16 %v114
  %v1263 = vunpack.c.l.b16 %v115
  %v1264 = vunpack.c.h.b16 %v115
  %v1265 = vunpack.c.l.b16 %v116
  %v1266 = vunpack.c.h.b16 %v116
  %v1267 = vunpack.c.l.b16 %v117
  %v1268 = vunpack.c.h.b16 %v117
  %v1269 = vunpack.c.l.b16 %v118
  %v1270 = vunpack.c.h.b16 %v118
  %v1271 = vunpack.c.l.b16 %v119
  %v1272 = vunpack.c.h.b16 %v119
  %v1273 = vunpack.c.l.b16 %v120
  %v1274 = vunpack.c.h.b16 %v120
  %v1275 = vunpack.c.l.b16 %v121
  %v1276 = vunpack.c.h.b16 %v121
  %v1277 = vunpack.c.l.b16 %v122
  %v1278 = vunpack.c.h.b16 %v122
  %v1279 = vunpack.c.l.b16 %v123
  %v1280 = vunpack.c.h.b16 %v123
  %v1281 = vunpack.c.l.b16 %v124
  %v1282 = vunpack.c.h.b16 %v124
  %v1283 = vunpack.c.l.b16 %v125
  %v1284 = vunpack.c.h.b16 %v125
  %v1285 = vunpack.c.l.b16 %v126
  %v1286 = vunpack.c.h.b16 %v126
  %v1287 = vunpack.c.l.b16 %v127
  %v1288 = vunpack.c.h.b16 %v127
  %v1289 = vunpack.c.l.b16 %v128
  %v1290 = vunpack.c.h.b16 %v128
  %v1291 = vunpack.c.l.b16 %v129
  %v1292 = vunpack.c.h.b16 %v129
  %v1293 = vunpack.c.l.b16 %v130
  %v1294 = vunpack.c.h.b16 %v130
  %v1295 = vunpack.c.l.b16 %v131
  %v1296 = vunpack.c.h.b16 %v131
  %v1297 = vunpack.c.l.b16 %v132
  %v1298 = vunpack.c.h.b16 %v132
  %v1299 = vunpack.c.l.b16 %v133
  %v1300 = vunpack.c.h.b16 %v133
  %v1301 = vunpack.c.l.b16 %v134
  %v1302 = vunpack.c.h.b16 %v134
  %v1303 = vunpack.c.l.b16 %v135
  %v1304 = vunpack.c.h.b16 %v135
  %v1305 = vunpack.c.l.b16 %v136
  %v1306 = vunpack.c.h.b16 %v136
  %v1307 = vunpack.c.l.b16 %v137
  %v1308 = vunpack.c.h.b16 %v137
  %v1309 = vunpack.c.l.b16 %v138
  %v1310 = vunpack.c.h.b16 %v138
  %v1311 = vunpack.c.l.b16 %v139
  %v1312 = vunpack.c.h.b16 %v139
  %v1313 = vunpack.c.l.b16 %v140
  %v1314 = vunpack.c.h.b16 %v140
  %v1315 = vunpack.c.l.b16 %v141
  %v1316 = vunpack.c.h.b16 %v141
  %v1317 = vunpack.c.l.b16 %v142
  %v1318 = vunpack.c.h.b16 %v142
  %v1319 = vpack.c.b16 %v1065, %v1063
  %v1320 = vpack.c.b16 %v1066, %v1064
  %v1321 = vpack.c.b16 %v1069, %v1067
  %v1322 = vpack.c.b16 %v1070, %v1068
  %v1323 = vpack.c.b16 %v1073, %v1071
  %v1324 = vpack.c.b16 %v1074, %v1072
  %v1325 = vpack.c.b16 %v1077, %v1075
  %v1326 = vpack.c.b16 %v1078, %v1076
  %v1327 = vpack.c.b16 %v1081, %v1079
  %v1328 = vpack.c.b16 %v1082, %v1080
  %v1329 = vpack.c.b16 %v1085, %v1083
  %v1330 = vpack.c.b16 %v1086, %v1084
  %v1331 = vpack.c.b16 %v1089, %v1087
  %v1332 = vpack.c.b16 %v1090, %v1088
  %v1333 = vpack.c.b16 %v1093, %v1091
  %v1334 = vpack.c.b16 %v1094, %v1092
  %v1335 = vpack.c.b16 %v1097, %v1095
  %v1336 = vpack.c.b16 %v1098, %v1096
  %v1337 = vpack.c.b16 %v1101, %v1099
  %v1338 = vpack.c.b16 %v1102, %v1100
  %v1339 = vpack.c.b16 %v1105, %v1103
  %v1340 = vpack.c.b16 %v1106, %v1104
  %v1341 = vpack.c.b16 %v1109, %v1107
  %v1342 = vpack.c.b16 %v1110, %v1108
  %v1343 = vpack.c.b16 %v1113, %v1111
  %v1344 = vpack.c.b16 %v1114, %v1112
  %v1345 = vpack.c.b16 %v1117, %v1115
  %v1346 = vpack.c.b16 %v1118, %v1116
  %v1347 = vpack.c.b16 %v1121, %v1119
  %v1348 = vpack.c.b16 %v1122, %v1120
  %v1349 = vpack.c.b16 %v1125, %v1123
  %v1350 = vpack.c.b16 %v1126, %v1124
  %v1351 = vpack.c.b16 %v1129, %v1127
  %v1352 = vpack.c.b16 %v1130, %v1128
  %v1353 = vpack.c.b16 %v1133, %v1131
  %v1354 = vpack.c.b16 %v1134, %v1132
  %v1355 = vpack.c.b16 %v1137, %v1135
  %v1356 = vpack.c.b16 %v1138, %v1136
  %v1357 = vpack.c.b16 %v1141, %v1139
  %v1358 = vpack.c.b16 %v1142, %v1140
  %v1359 = vpack.c.b16 %v1145, %v1143
  %v1360 = vpack.c.b16 %v1146, %v1144
  %v1361 = vpack.c.b16 %v1149, %v1147
  %v1362 = vpack.c.b16 %v1150, %v1148
  %v1363 = vpack.c.b16 %v1153, %v1151
  %v1364 = vpack.c.b16 %v1154, %v1152
  %v1365 = vpack.c.b16 %v1157, %v1155
  %v1366 = vpack.c.b16 %v1158, %v1156
  %v1367 = vpack.c.b16 %v1161, %v1159
  %v1368 = vpack.c.b16 %v1162, %v1160
  %v1369 = vpack.c.b16 %v1165, %v1163
  %v1370 = vpack.c.b16 %v1166, %v1164
  %v1371 = vpack.c.b16 %v1169, %v1167
  %v1372 = vpack.c.b16 %v1170, %v1168
  %v1373 = vpack.c.b16 %v1173, %v1171
  %v1374 = vpack.c.b16 %v1174, %v1172
  %v1375 = vpack.c.b16 %v1177, %v1175
  %v1376 = vpack.c.b16 %v1178, %v1176
  %v1377 = vpack.c.b16 %v1181, %v1179
  %v1378 = vpack.c.b16 %v1182, %v1180
  %v1379 = vpack.c.b16 %v1185, %v1183
  %v1380 = vpack.c.b16 %v1186, %v1184
  %v1381 = vpack.c.b16 %v1189, %v1187
  %v1382 = vpack.c.b16 %v1190, %v1188
  %v1383 = vpack.c.b16 %v1193, %v1191
  %v1384 = vpack.c.b16 %v1194, %v1192
  %v1385 = vpack.c.b16 %v1197, %v1195
  %v1386 = vpack.c.b16 %v1198, %v1196
  %v1387 = vpack.c.b16 %v1201, %v1199
  %v1388 = vpack.c.b16 %v1202, %v1200
  %v1389 = vpack.c.b16 %v1205, %v1203
  %v1390 = vpack.c.b16 %v1206, %v1204
  %v1391 = vpack.c.b16 %v1209, %v1207
  %v1392 = vpack.c.b16 %v1210, %v1208
  %v1393 = vpack.c.b16 %v1213, %v1211
  %v1394 = vpack.c.b16 %v1214, %v1212
  %v1395 = vpack.c.b16 %v1217, %v1215
  %v1396 = vpack.c.b16 %v1218, %v1216
  %v1397 = vpack.c.b16 %v1221, %v1219
  %v1398 = vpack.c.b16 %v1222, %v1220
  %v1399 = vpack.c.b16 %v1225, %v1223
  %v1400 = vpack.c.b16 %v1226, %v1224
  %v1401 = vpack.c.b16 %v1229, %v1227
  %v1402 = vpack.c.b16 %v1230, %v1228
  %v1403 = vpack.c.b16 %v1233, %v1231
  %v1404 = vpack.c.b16 %v1234, %v1232
  %v1405 = vpack.c.b16 %v1237, %v1235
  %v1406 = vpack.c.b16 %v1238, %v1236
  %v1407 = vpack.c.b16 %v1241, %v1239
  %v1408 = vpack.c.b16 %v1242, %v1240
  %v1409 = vpack.c.b16 %v1245, %v1243
  %v1410 = vpack.c.b16 %v1246, %v1244
  %v1411 = vpack.c.b16 %v1249, %v1247
  %v1412 = vpack.c.b16 %v1250, %v1248
  %v1413 = vpack.c.b16 %v1253, %v1251
  %v1414 = vpack.c.b16 %v1254, %v1252
  %v1415 = vpack.c.b16 %v1257, %v1255
  %v1416 = vpack.c.b16 %v1258, %v1256
  %v1417 = vpack.c.b16 %v1261, %v1259
  %v1418 = vpack.c.b16 %v1262, %v1260
  %v1419 = vpack.c.b16 %v1265, %v1263
  %v1420 = vpack.c.b16 %v1266, %v1264
  %v1421 = vpack.c.b16 %v1269, %v1267
  %v1422 = vpack.c.b16 %v1270, %v1268
  %v1423 = vpack.c.b16 %v1273, %v1271
  %v1424 = vpack.c.b16 %v1274, %v1272
  %v1425 = vpack.c.b16 %v1277, %v1275
  %v1426 = vpack.c.b16 %v1278, %v1276
  %v1427 = vpack.c.b16 %v1281, %v1279
  %v1428 = vpack.c.b16 %v1282, %v1280
  %v1429 = vpack.c.b16 %v1285, %v1283
  %v1430 = vpack.c.b16 %v1286, %v1284
  %v1431 = vpack.c.b16 %v1289, %v1287
  %v1432 = vpack.c.b16 %v1290, %v1288
  %v1433 = vpack.c.b16 %v1293, %v1291
  %v1434 = vpack.c.b16 %v1294, %v1292
  %v1435 = vpack.c.b16 %v1297, %v1295
  %v1436 = vpack.c.b16 %v1298, %v1296
  %v1437 = vpack.c.b16 %v1301, %v1299
  %v1438 = vpack.c.b16 %v1302, %v1300
  %v1439 = vpack.c.b16 %v1305, %v1303
  %v1440 = vpack.c.b16 %v1306, %v1304
  %v1441 = vpack.c.b16 %v1309, %v1307
  %v1442 = vpack.c.b16 %v1310, %v1308
  %v1443 = vpack.c.b16 %v1313, %v1311
  %v1444 = vpack.c.b16 %v1314, %v1312
  %v1445 = vpack.c.b16 %v1317, %v1315
  %v1446 = vpack.c.b16 %v1318, %v1316
  %v1535 = vunpack.c.l.b16 %v143
  %v1536 = vunpack.c.l.b16 %v144
  %v1537 = vunpack.c.l.b16 %v145
  %v1538 = vunpack.c.l.b16 %v146
  %v1539 = vunpack.c.l.b16 %v147
  %v1540 = vunpack.c.l.b16 %v148
  %v1541 = vunpack.c.l.b16 %v149
  %v1542 = vunpack.c.l.b16 %v150
  %v1543 = vunpack.c.l.b16 %v151
  %v1544 = vunpack.c.l.b16 %v152
  %v1545 = vunpack.c.l.b16 %v153
  %v1546 = vunpack.c.l.b16 %v154
  %v1547 = vunpack.c.l.b16 %v155
  %v1548 = vunpack.c.l.b16 %v156
  %v1549 = vunpack.c.l.b16 %v157
  %v1550 = vunpack.c.l.b16 %v158
  %v1551 = vunpack.c.l.b16 %v159
  %v1552 = vunpack.c.l.b16 %v160
  %v1553 = vunpack.c.l.b16 %v161
  %v1554 = vunpack.c.l.b16 %v162
  %v1555 = vunpack.c.l.b16 %v163
  %v1556 = vunpack.c.l.b16 %v164
  %v1557 = vunpack.c.l.b16 %v165
  %v1558 = vunpack.c.l.b16 %v166
  %v1559 = vpack.c.b16 %v1536, %v1535
  %v1560 = vpack.c.b16 %v1538, %v1537
  %v1561 = vpack.c.b16 %v1540, %v1539
  %v1562 = vpack.c.b16 %v1542, %v1541
  %v1563 = vpack.c.b16 %v1544, %v1543
  %v1564 = vpack.c.b16 %v1546, %v1545
  %v1565 = vpack.c.b16 %v1548, %v1547
  %v1566 = vpack.c.b16 %v1550, %v1549
  %v1567 = vpack.c.b16 %v1552, %v1551
  %v1568 = vpack.c.b16 %v1554, %v1553
  %v1569 = vpack.c.b16 %v1556, %v1555
  %v1570 = vpack.c.b16 %v1558, %v1557
  %vm1583 = vcmask 523264
  %v1585 = vsel %vm1583, %v1320, 0
  %v1588 = vsel %vm1583, %v1322, 0
  %v1591 = vsel %vm1583, %v1324, 0
  %v1594 = vsel %vm1583, %v1326, 0
  %v1597 = vsel %vm1583, %v1328, 0
  %v1600 = vsel %vm1583, %v1330, 0
  %v1603 = vsel %vm1583, %v1332, 0
  %v1606 = vsel %vm1583, %v1334, 0
  %v1609 = vsel %vm1583, %v1336, 0
  %v1612 = vsel %vm1583, %v1338, 0
  %v1615 = vsel %vm1583, %v1340, 0
  %v1618 = vsel %vm1583, %v1342, 0
  %v1621 = vsel %vm1583, %v1344, 0
  %v1624 = vsel %vm1583, %v1346, 0
  %v1627 = vsel %vm1583, %v1348, 0
  %v1630 = vsel %vm1583, %v1350, 0
  %v1633 = vsel %vm1583, %v1352, 0
  %v1636 = vsel %vm1583, %v1354, 0
  %v1639 = vsel %vm1583, %v1356, 0
  %v1642 = vsel %vm1583, %v1358, 0
  %v1645 = vsel %vm1583, %v1360, 0
  %v1648 = vsel %vm1583, %v1362, 0
  %v1651 = vsel %vm1583, %v1364, 0
  %v1654 = vsel %vm1583, %v1366, 0
  %v1657 = vsel %vm1583, %v1368, 0
  %v1660 = vsel %vm1583, %v1370, 0
  %v1663 = vsel %vm1583, %v1372, 0
  %v1666 = vsel %vm1583, %v1374, 0
  %v1669 = vsel %vm1583, %v1376, 0
  %v1672 = vsel %vm1583, %v1378, 0
  %v1675 = vsel %vm1583, %v1380, 0
  %v1678 = vsel %vm1583, %v1382, 0
  %v1681 = vsel %vm1583, %v1384, 0
  %v1684 = vsel %vm1583, %v1386, 0
  %v1687 = vsel %vm1583, %v1388, 0
  %v1690 = vsel %vm1583, %v1390, 0
  %v1693 = vsel %vm1583, %v1392, 0
  %v1696 = vsel %vm1583, %v1394, 0
  %v1699 = vsel %vm1583, %v1396, 0
  %v1702 = vsel %vm1583, %v1398, 0
  %v1705 = vsel %vm1583, %v1400, 0
  %v1708 = vsel %vm1583, %v1402, 0
  %v1711 = vsel %vm1583, %v1404, 0
  %v1714 = vsel %vm1583, %v1406, 0
  %v1717 = vsel %vm1583, %v1408, 0
  %v1720 = vsel %vm1583, %v1410, 0
  %v1723 = vsel %vm1583, %v1412, 0
  %v1726 = vsel %vm1583, %v1414, 0
  %v1729 = vsel %vm1583, %v1416, 0
  %v1732 = vsel %vm1583, %v1418, 0
  %v1735 = vsel %vm1583, %v1420, 0
  %v1738 = vsel %vm1583, %v1422, 0
  %v1741 = vsel %vm1583, %v1424, 0
  %v1744 = vsel %vm1583, %v1426, 0
  %v1747 = vsel %vm1583, %v1428, 0
  %v1750 = vsel %vm1583, %v1430, 0
  %v1753 = vsel %vm1583, %v1432, 0
  %v1756 = vsel %vm1583, %v1434, 0
  %v1759 = vsel %vm1583, %v1436, 0
  %v1762 = vsel %vm1583, %v1438, 0
  %v1765 = vsel %vm1583, %v1440, 0
  %v1768 = vsel %vm1583, %v1442, 0
  %v1771 = vsel %vm1583, %v1444, 0
  %v1774 = vsel %vm1583, %v1446, 0
  %1776 = vmatprep.subr.bf16.mxu0 0
  %1777 = vmatpush1.bf16.msra.mxu0 %v1559
  %1778 = vmatprep.subr.bf16.mxu0 0
  %1779 = vmatpush1.bf16.msra.mxu0 %v1560
  %1780 = vmatprep.subr.bf16.mxu0 0
  %1781 = vmatpush1.bf16.msra.mxu0 %v1561
  %1782 = vmatprep.subr.bf16.mxu0 0
  %1783 = vmatpush1.bf16.msra.mxu0 %v1562
  %1784 = vmatprep.subr.bf16.mxu0 0
  %1785 = vmatpush1.bf16.msra.mxu0 %v1563
  %1786 = vmatprep.subr.bf16.mxu0 0
  %1787 = vmatpush1.bf16.msra.mxu0 %v1564
  %1788 = vmatprep.subr.bf16.mxu0 0
  %1789 = vmatpush1.bf16.msra.mxu0 %v1565
  %1790 = vmatprep.subr.bf16.mxu0 0
  %1791 = vmatpush1.bf16.msra.mxu0 %v1566
  %1792 = vmatprep.subr.bf16.mxu0 0
  %1793 = vmatpush1.bf16.msra.mxu0 %v1567
  %1794 = vmatprep.subr.bf16.mxu0 0
  %1795 = vmatpush1.bf16.msra.mxu0 %v1568
  %1796 = vmatprep.subr.bf16.mxu0 0
  %1797 = vmatpush1.bf16.msra.mxu0 %v1569
  %1798 = vmatprep.subr.bf16.mxu0 0
  %1799 = vmatpush1.bf16.msra.mxu0 %v1570
  %1800 = vmatprep.subr.bf16.mxu0 0
  %1801 = vmatpush1.bf16.msra.mxu0 0
  %1802 = vmatprep.subr.bf16.mxu0 0
  %1803 = vmatpush1.bf16.msra.mxu0 0
  %1804 = vmatprep.subr.bf16.mxu0 0
  %1805 = vmatpush1.bf16.msra.mxu0 0
  %1806 = vmatprep.subr.bf16.mxu0 0
  %1807 = vmatpush1.bf16.msra.mxu0 0
  %1808 = vmatprep.mubr.bf16.mxu0 %v1585
  %1809 = vmatmul.mubr.bf16.gmra.mrb[0].mxu0 %v1319
  %v1810 = vpop.f32.mrb[0].mxu0
  %v1811 = vadd.f32 %v298, %v1810
  %v1812 = vpop.f32.mrb[0].mxu0
  %v1813 = vpop.f32.mrb[0].mxu0
  %v1814 = vadd.f32 %v303, %v1813
  %v1815 = vpop.f32.mrb[0].mxu0
  %1816 = vmatprep.mubr.bf16.mxu0 %v1588
  %1817 = vmatmul.mubr.bf16.gmra.mrb[0].mxu0 %v1321
  %v1818 = vpop.f32.mrb[0].mxu0
  %v1819 = vadd.f32 %v308, %v1818
  %v1820 = vpop.f32.mrb[0].mxu0
  %v1821 = vpop.f32.mrb[0].mxu0
  %v1822 = vadd.f32 %v313, %v1821
  %v1823 = vpop.f32.mrb[0].mxu0
  %1824 = vmatprep.mubr.bf16.mxu0 %v1591
  %1825 = vmatmul.mubr.bf16.gmra.mrb[0].mxu0 %v1323
  %v1826 = vpop.f32.mrb[0].mxu0
  %v1827 = vadd.f32 %v318, %v1826
  %v1828 = vpop.f32.mrb[0].mxu0
  %v1829 = vpop.f32.mrb[0].mxu0
  %v1830 = vadd.f32 %v323, %v1829
  %v1831 = vpop.f32.mrb[0].mxu0
  %1832 = vmatprep.mubr.bf16.mxu0 %v1594
  %1833 = vmatmul.mubr.bf16.gmra.mrb[0].mxu0 %v1325
  %v1834 = vpop.f32.mrb[0].mxu0
  %v1835 = vadd.f32 %v328, %v1834
  %v1836 = vpop.f32.mrb[0].mxu0
  %v1837 = vpop.f32.mrb[0].mxu0
  %v1838 = vadd.f32 %v333, %v1837
  %v1839 = vpop.f32.mrb[0].mxu0
  %1840 = vmatprep.mubr.bf16.mxu0 %v1597
  %1841 = vmatmul.mubr.bf16.gmra.mrb[0].mxu0 %v1327
  %v1842 = vpop.f32.mrb[0].mxu0
  %v1843 = vadd.f32 %v338, %v1842
  %v1844 = vpop.f32.mrb[0].mxu0
  %v1845 = vpop.f32.mrb[0].mxu0
  %v1846 = vadd.f32 %v343, %v1845
  %v1847 = vpop.f32.mrb[0].mxu0
  %1848 = vmatprep.mubr.bf16.mxu0 %v1600
  %1849 = vmatmul.mubr.bf16.gmra.mrb[0].mxu0 %v1329
  %v1850 = vpop.f32.mrb[0].mxu0
  %v1851 = vadd.f32 %v348, %v1850
  %v1852 = vpop.f32.mrb[0].mxu0
  %v1853 = vpop.f32.mrb[0].mxu0
  %v1854 = vadd.f32 %v353, %v1853
  %v1855 = vpop.f32.mrb[0].mxu0
  %1856 = vmatprep.mubr.bf16.mxu0 %v1603
  %1857 = vmatmul.mubr.bf16.gmra.mrb[0].mxu0 %v1331
  %v1858 = vpop.f32.mrb[0].mxu0
  %v1859 = vadd.f32 %v358, %v1858
  %v1860 = vpop.f32.mrb[0].mxu0
  %v1861 = vpop.f32.mrb[0].mxu0
  %v1862 = vadd.f32 %v363, %v1861
  %v1863 = vpop.f32.mrb[0].mxu0
  %1864 = vmatprep.mubr.bf16.mxu0 %v1606
  %1865 = vmatmul.mubr.bf16.gmra.mrb[0].mxu0 %v1333
  %v1866 = vpop.f32.mrb[0].mxu0
  %v1867 = vadd.f32 %v368, %v1866
  %v1868 = vpop.f32.mrb[0].mxu0
  %v1869 = vpop.f32.mrb[0].mxu0
  %v1870 = vadd.f32 %v373, %v1869
  %v1871 = vpop.f32.mrb[0].mxu0
  %1872 = vmatprep.mubr.bf16.mxu0 %v1609
  %1873 = vmatmul.mubr.bf16.gmra.mrb[0].mxu0 %v1335
  %v1874 = vpop.f32.mrb[0].mxu0
  %v1875 = vadd.f32 %v378, %v1874
  %v1876 = vpop.f32.mrb[0].mxu0
  %v1877 = vpop.f32.mrb[0].mxu0
  %v1878 = vadd.f32 %v383, %v1877
  %v1879 = vpop.f32.mrb[0].mxu0
  %1880 = vmatprep.mubr.bf16.mxu0 %v1612
  %1881 = vmatmul.mubr.bf16.gmra.mrb[0].mxu0 %v1337
  %v1882 = vpop.f32.mrb[0].mxu0
  %v1883 = vadd.f32 %v388, %v1882
  %v1884 = vpop.f32.mrb[0].mxu0
  %v1885 = vpop.f32.mrb[0].mxu0
  %v1886 = vadd.f32 %v393, %v1885
  %v1887 = vpop.f32.mrb[0].mxu0
  %1888 = vmatprep.mubr.bf16.mxu0 %v1615
  %1889 = vmatmul.mubr.bf16.gmra.mrb[0].mxu0 %v1339
  %v1890 = vpop.f32.mrb[0].mxu0
  %v1891 = vadd.f32 %v398, %v1890
  %v1892 = vpop.f32.mrb[0].mxu0
  %v1893 = vpop.f32.mrb[0].mxu0
  %v1894 = vadd.f32 %v403, %v1893
  %v1895 = vpop.f32.mrb[0].mxu0
  %1896 = vmatprep.mubr.bf16.mxu0 %v1618
  %1897 = vmatmul.mubr.bf16.gmra.mrb[0].mxu0 %v1341
  %v1898 = vpop.f32.mrb[0].mxu0
  %v1899 = vadd.f32 %v408, %v1898
  %v1900 = vpop.f32.mrb[0].mxu0
  %v1901 = vpop.f32.mrb[0].mxu0
  %v1902 = vadd.f32 %v413, %v1901
  %v1903 = vpop.f32.mrb[0].mxu0
  %1904 = vmatprep.mubr.bf16.mxu0 %v1621
  %1905 = vmatmul.mubr.bf16.gmra.mrb[0].mxu0 %v1343
  %v1906 = vpop.f32.mrb[0].mxu0
  %v1907 = vadd.f32 %v418, %v1906
  %v1908 = vpop.f32.mrb[0].mxu0
  %v1909 = vpop.f32.mrb[0].mxu0
  %v1910 = vadd.f32 %v423, %v1909
  %v1911 = vpop.f32.mrb[0].mxu0
  %1912 = vmatprep.mubr.bf16.mxu0 %v1624
  %1913 = vmatmul.mubr.bf16.gmra.mrb[0].mxu0 %v1345
  %v1914 = vpop.f32.mrb[0].mxu0
  %v1915 = vadd.f32 %v428, %v1914
  %v1916 = vpop.f32.mrb[0].mxu0
  %v1917 = vpop.f32.mrb[0].mxu0
  %v1918 = vadd.f32 %v433, %v1917
  %v1919 = vpop.f32.mrb[0].mxu0
  %1920 = vmatprep.mubr.bf16.mxu0 %v1627
  %1921 = vmatmul.mubr.bf16.gmra.mrb[0].mxu0 %v1347
  %v1922 = vpop.f32.mrb[0].mxu0
  %v1923 = vadd.f32 %v438, %v1922
  %v1924 = vpop.f32.mrb[0].mxu0
  %v1925 = vpop.f32.mrb[0].mxu0
  %v1926 = vadd.f32 %v443, %v1925
  %v1927 = vpop.f32.mrb[0].mxu0
  %1928 = vmatprep.mubr.bf16.mxu0 %v1630
  %1929 = vmatmul.mubr.bf16.gmra.mrb[0].mxu0 %v1349
  %v1930 = vpop.f32.mrb[0].mxu0
  %v1931 = vadd.f32 %v448, %v1930
  %v1932 = vpop.f32.mrb[0].mxu0
  %v1933 = vpop.f32.mrb[0].mxu0
  %v1934 = vadd.f32 %v453, %v1933
  %v1935 = vpop.f32.mrb[0].mxu0
  %1936 = vmatprep.mubr.bf16.mxu0 %v1633
  %1937 = vmatmul.mubr.bf16.gmra.mrb[0].mxu0 %v1351
  %v1938 = vpop.f32.mrb[0].mxu0
  %v1939 = vadd.f32 %v458, %v1938
  %v1940 = vpop.f32.mrb[0].mxu0
  %v1941 = vpop.f32.mrb[0].mxu0
  %v1942 = vadd.f32 %v463, %v1941
  %v1943 = vpop.f32.mrb[0].mxu0
  %1944 = vmatprep.mubr.bf16.mxu0 %v1636
  %1945 = vmatmul.mubr.bf16.gmra.mrb[0].mxu0 %v1353
  %v1946 = vpop.f32.mrb[0].mxu0
  %v1947 = vadd.f32 %v468, %v1946
  %v1948 = vpop.f32.mrb[0].mxu0
  %v1949 = vpop.f32.mrb[0].mxu0
  %v1950 = vadd.f32 %v473, %v1949
  %v1951 = vpop.f32.mrb[0].mxu0
  %1952 = vmatprep.mubr.bf16.mxu0 %v1639
  %1953 = vmatmul.mubr.bf16.gmra.mrb[0].mxu0 %v1355
  %v1954 = vpop.f32.mrb[0].mxu0
  %v1955 = vadd.f32 %v478, %v1954
  %v1956 = vpop.f32.mrb[0].mxu0
  %v1957 = vpop.f32.mrb[0].mxu0
  %v1958 = vadd.f32 %v483, %v1957
  %v1959 = vpop.f32.mrb[0].mxu0
  %1960 = vmatprep.mubr.bf16.mxu0 %v1642
  %1961 = vmatmul.mubr.bf16.gmra.mrb[0].mxu0 %v1357
  %v1962 = vpop.f32.mrb[0].mxu0
  %v1963 = vadd.f32 %v488, %v1962
  %v1964 = vpop.f32.mrb[0].mxu0
  %v1965 = vpop.f32.mrb[0].mxu0
  %v1966 = vadd.f32 %v493, %v1965
  %v1967 = vpop.f32.mrb[0].mxu0
  %1968 = vmatprep.mubr.bf16.mxu0 %v1645
  %1969 = vmatmul.mubr.bf16.gmra.mrb[0].mxu0 %v1359
  %v1970 = vpop.f32.mrb[0].mxu0
  %v1971 = vadd.f32 %v498, %v1970
  %v1972 = vpop.f32.mrb[0].mxu0
  %v1973 = vpop.f32.mrb[0].mxu0
  %v1974 = vadd.f32 %v503, %v1973
  %v1975 = vpop.f32.mrb[0].mxu0
  %1976 = vmatprep.mubr.bf16.mxu0 %v1648
  %1977 = vmatmul.mubr.bf16.gmra.mrb[0].mxu0 %v1361
  %v1978 = vpop.f32.mrb[0].mxu0
  %v1979 = vadd.f32 %v508, %v1978
  %v1980 = vpop.f32.mrb[0].mxu0
  %v1981 = vpop.f32.mrb[0].mxu0
  %v1982 = vadd.f32 %v513, %v1981
  %v1983 = vpop.f32.mrb[0].mxu0
  %1984 = vmatprep.mubr.bf16.mxu0 %v1651
  %1985 = vmatmul.mubr.bf16.gmra.mrb[0].mxu0 %v1363
  %v1986 = vpop.f32.mrb[0].mxu0
  %v1987 = vadd.f32 %v518, %v1986
  %v1988 = vpop.f32.mrb[0].mxu0
  %v1989 = vpop.f32.mrb[0].mxu0
  %v1990 = vadd.f32 %v523, %v1989
  %v1991 = vpop.f32.mrb[0].mxu0
  %1992 = vmatprep.mubr.bf16.mxu0 %v1654
  %1993 = vmatmul.mubr.bf16.gmra.mrb[0].mxu0 %v1365
  %v1994 = vpop.f32.mrb[0].mxu0
  %v1995 = vadd.f32 %v528, %v1994
  %v1996 = vpop.f32.mrb[0].mxu0
  %v1997 = vpop.f32.mrb[0].mxu0
  %v1998 = vadd.f32 %v533, %v1997
  %v1999 = vpop.f32.mrb[0].mxu0
  %2000 = vmatprep.mubr.bf16.mxu0 %v1657
  %2001 = vmatmul.mubr.bf16.gmra.mrb[0].mxu0 %v1367
  %v2002 = vpop.f32.mrb[0].mxu0
  %v2003 = vadd.f32 %v538, %v2002
  %v2004 = vpop.f32.mrb[0].mxu0
  %v2005 = vpop.f32.mrb[0].mxu0
  %v2006 = vadd.f32 %v543, %v2005
  %v2007 = vpop.f32.mrb[0].mxu0
  %2008 = vmatprep.mubr.bf16.mxu0 %v1660
  %2009 = vmatmul.mubr.bf16.gmra.mrb[0].mxu0 %v1369
  %v2010 = vpop.f32.mrb[0].mxu0
  %v2011 = vadd.f32 %v548, %v2010
  %v2012 = vpop.f32.mrb[0].mxu0
  %v2013 = vpop.f32.mrb[0].mxu0
  %v2014 = vadd.f32 %v553, %v2013
  %v2015 = vpop.f32.mrb[0].mxu0
  %2016 = vmatprep.mubr.bf16.mxu0 %v1663
  %2017 = vmatmul.mubr.bf16.gmra.mrb[0].mxu0 %v1371
  %v2018 = vpop.f32.mrb[0].mxu0
  %v2019 = vadd.f32 %v558, %v2018
  %v2020 = vpop.f32.mrb[0].mxu0
  %v2021 = vpop.f32.mrb[0].mxu0
  %v2022 = vadd.f32 %v563, %v2021
  %v2023 = vpop.f32.mrb[0].mxu0
  %2024 = vmatprep.mubr.bf16.mxu0 %v1666
  %2025 = vmatmul.mubr.bf16.gmra.mrb[0].mxu0 %v1373
  %v2026 = vpop.f32.mrb[0].mxu0
  %v2027 = vadd.f32 %v568, %v2026
  %v2028 = vpop.f32.mrb[0].mxu0
  %v2029 = vpop.f32.mrb[0].mxu0
  %v2030 = vadd.f32 %v573, %v2029
  %v2031 = vpop.f32.mrb[0].mxu0
  %2032 = vmatprep.mubr.bf16.mxu0 %v1669
  %2033 = vmatmul.mubr.bf16.gmra.mrb[0].mxu0 %v1375
  %v2034 = vpop.f32.mrb[0].mxu0
  %v2035 = vadd.f32 %v578, %v2034
  %v2036 = vpop.f32.mrb[0].mxu0
  %v2037 = vpop.f32.mrb[0].mxu0
  %v2038 = vadd.f32 %v583, %v2037
  %v2039 = vpop.f32.mrb[0].mxu0
  %2040 = vmatprep.mubr.bf16.mxu0 %v1672
  %2041 = vmatmul.mubr.bf16.gmra.mrb[0].mxu0 %v1377
  %v2042 = vpop.f32.mrb[0].mxu0
  %v2043 = vadd.f32 %v588, %v2042
  %v2044 = vpop.f32.mrb[0].mxu0
  %v2045 = vpop.f32.mrb[0].mxu0
  %v2046 = vadd.f32 %v593, %v2045
  %v2047 = vpop.f32.mrb[0].mxu0
  %2048 = vmatprep.mubr.bf16.mxu0 %v1675
  %2049 = vmatmul.mubr.bf16.gmra.mrb[0].mxu0 %v1379
  %v2050 = vpop.f32.mrb[0].mxu0
  %v2051 = vadd.f32 %v598, %v2050
  %v2052 = vpop.f32.mrb[0].mxu0
  %v2053 = vpop.f32.mrb[0].mxu0
  %v2054 = vadd.f32 %v603, %v2053
  %v2055 = vpop.f32.mrb[0].mxu0
  %2056 = vmatprep.mubr.bf16.mxu0 %v1678
  %2057 = vmatmul.mubr.bf16.gmra.mrb[0].mxu0 %v1381
  %v2058 = vpop.f32.mrb[0].mxu0
  %v2059 = vadd.f32 %v608, %v2058
  %v2060 = vpop.f32.mrb[0].mxu0
  %v2061 = vpop.f32.mrb[0].mxu0
  %v2062 = vadd.f32 %v613, %v2061
  %v2063 = vpop.f32.mrb[0].mxu0
  %2064 = vmatprep.mubr.bf16.mxu0 %v1681
  %2065 = vmatmul.mubr.bf16.gmra.mrb[0].mxu0 %v1383
  %v2066 = vpop.f32.mrb[0].mxu0
  %v2067 = vadd.f32 %v618, %v2066
  %v2068 = vpop.f32.mrb[0].mxu0
  %v2069 = vpop.f32.mrb[0].mxu0
  %v2070 = vadd.f32 %v623, %v2069
  %v2071 = vpop.f32.mrb[0].mxu0
  %2072 = vmatprep.mubr.bf16.mxu0 %v1684
  %2073 = vmatmul.mubr.bf16.gmra.mrb[0].mxu0 %v1385
  %v2074 = vpop.f32.mrb[0].mxu0
  %v2075 = vadd.f32 %v628, %v2074
  %v2076 = vpop.f32.mrb[0].mxu0
  %v2077 = vpop.f32.mrb[0].mxu0
  %v2078 = vadd.f32 %v633, %v2077
  %v2079 = vpop.f32.mrb[0].mxu0
  %2080 = vmatprep.mubr.bf16.mxu0 %v1687
  %2081 = vmatmul.mubr.bf16.gmra.mrb[0].mxu0 %v1387
  %v2082 = vpop.f32.mrb[0].mxu0
  %v2083 = vadd.f32 %v638, %v2082
  %v2084 = vpop.f32.mrb[0].mxu0
  %v2085 = vpop.f32.mrb[0].mxu0
  %v2086 = vadd.f32 %v643, %v2085
  %v2087 = vpop.f32.mrb[0].mxu0
  %2088 = vmatprep.mubr.bf16.mxu0 %v1690
  %2089 = vmatmul.mubr.bf16.gmra.mrb[0].mxu0 %v1389
  %v2090 = vpop.f32.mrb[0].mxu0
  %v2091 = vadd.f32 %v648, %v2090
  %v2092 = vpop.f32.mrb[0].mxu0
  %v2093 = vpop.f32.mrb[0].mxu0
  %v2094 = vadd.f32 %v653, %v2093
  %v2095 = vpop.f32.mrb[0].mxu0
  %2096 = vmatprep.mubr.bf16.mxu0 %v1693
  %2097 = vmatmul.mubr.bf16.gmra.mrb[0].mxu0 %v1391
  %v2098 = vpop.f32.mrb[0].mxu0
  %v2099 = vadd.f32 %v658, %v2098
  %v2100 = vpop.f32.mrb[0].mxu0
  %v2101 = vpop.f32.mrb[0].mxu0
  %v2102 = vadd.f32 %v663, %v2101
  %v2103 = vpop.f32.mrb[0].mxu0
  %2104 = vmatprep.mubr.bf16.mxu0 %v1696
  %2105 = vmatmul.mubr.bf16.gmra.mrb[0].mxu0 %v1393
  %v2106 = vpop.f32.mrb[0].mxu0
  %v2107 = vadd.f32 %v668, %v2106
  %v2108 = vpop.f32.mrb[0].mxu0
  %v2109 = vpop.f32.mrb[0].mxu0
  %v2110 = vadd.f32 %v673, %v2109
  %v2111 = vpop.f32.mrb[0].mxu0
  %2112 = vmatprep.mubr.bf16.mxu0 %v1699
  %2113 = vmatmul.mubr.bf16.gmra.mrb[0].mxu0 %v1395
  %v2114 = vpop.f32.mrb[0].mxu0
  %v2115 = vadd.f32 %v678, %v2114
  %v2116 = vpop.f32.mrb[0].mxu0
  %v2117 = vpop.f32.mrb[0].mxu0
  %v2118 = vadd.f32 %v683, %v2117
  %v2119 = vpop.f32.mrb[0].mxu0
  %2120 = vmatprep.mubr.bf16.mxu0 %v1702
  %2121 = vmatmul.mubr.bf16.gmra.mrb[0].mxu0 %v1397
  %v2122 = vpop.f32.mrb[0].mxu0
  %v2123 = vadd.f32 %v688, %v2122
  %v2124 = vpop.f32.mrb[0].mxu0
  %v2125 = vpop.f32.mrb[0].mxu0
  %v2126 = vadd.f32 %v693, %v2125
  %v2127 = vpop.f32.mrb[0].mxu0
  %2128 = vmatprep.mubr.bf16.mxu0 %v1705
  %2129 = vmatmul.mubr.bf16.gmra.mrb[0].mxu0 %v1399
  %v2130 = vpop.f32.mrb[0].mxu0
  %v2131 = vadd.f32 %v698, %v2130
  %v2132 = vpop.f32.mrb[0].mxu0
  %v2133 = vpop.f32.mrb[0].mxu0
  %v2134 = vadd.f32 %v703, %v2133
  %v2135 = vpop.f32.mrb[0].mxu0
  %2136 = vmatprep.mubr.bf16.mxu0 %v1708
  %2137 = vmatmul.mubr.bf16.gmra.mrb[0].mxu0 %v1401
  %v2138 = vpop.f32.mrb[0].mxu0
  %v2139 = vadd.f32 %v708, %v2138
  %v2140 = vpop.f32.mrb[0].mxu0
  %v2141 = vpop.f32.mrb[0].mxu0
  %v2142 = vadd.f32 %v713, %v2141
  %v2143 = vpop.f32.mrb[0].mxu0
  %2144 = vmatprep.mubr.bf16.mxu0 %v1711
  %2145 = vmatmul.mubr.bf16.gmra.mrb[0].mxu0 %v1403
  %v2146 = vpop.f32.mrb[0].mxu0
  %v2147 = vadd.f32 %v718, %v2146
  %v2148 = vpop.f32.mrb[0].mxu0
  %v2149 = vpop.f32.mrb[0].mxu0
  %v2150 = vadd.f32 %v723, %v2149
  %v2151 = vpop.f32.mrb[0].mxu0
  %2152 = vmatprep.mubr.bf16.mxu0 %v1714
  %2153 = vmatmul.mubr.bf16.gmra.mrb[0].mxu0 %v1405
  %v2154 = vpop.f32.mrb[0].mxu0
  %v2155 = vadd.f32 %v728, %v2154
  %v2156 = vpop.f32.mrb[0].mxu0
  %v2157 = vpop.f32.mrb[0].mxu0
  %v2158 = vadd.f32 %v733, %v2157
  %v2159 = vpop.f32.mrb[0].mxu0
  %2160 = vmatprep.mubr.bf16.mxu0 %v1717
  %2161 = vmatmul.mubr.bf16.gmra.mrb[0].mxu0 %v1407
  %v2162 = vpop.f32.mrb[0].mxu0
  %v2163 = vadd.f32 %v738, %v2162
  %v2164 = vpop.f32.mrb[0].mxu0
  %v2165 = vpop.f32.mrb[0].mxu0
  %v2166 = vadd.f32 %v743, %v2165
  %v2167 = vpop.f32.mrb[0].mxu0
  %2168 = vmatprep.mubr.bf16.mxu0 %v1720
  %2169 = vmatmul.mubr.bf16.gmra.mrb[0].mxu0 %v1409
  %v2170 = vpop.f32.mrb[0].mxu0
  %v2171 = vadd.f32 %v748, %v2170
  %v2172 = vpop.f32.mrb[0].mxu0
  %v2173 = vpop.f32.mrb[0].mxu0
  %v2174 = vadd.f32 %v753, %v2173
  %v2175 = vpop.f32.mrb[0].mxu0
  %2176 = vmatprep.mubr.bf16.mxu0 %v1723
  %2177 = vmatmul.mubr.bf16.gmra.mrb[0].mxu0 %v1411
  %v2178 = vpop.f32.mrb[0].mxu0
  %v2179 = vadd.f32 %v758, %v2178
  %v2180 = vpop.f32.mrb[0].mxu0
  %v2181 = vpop.f32.mrb[0].mxu0
  %v2182 = vadd.f32 %v763, %v2181
  %v2183 = vpop.f32.mrb[0].mxu0
  %2184 = vmatprep.mubr.bf16.mxu0 %v1726
  %2185 = vmatmul.mubr.bf16.gmra.mrb[0].mxu0 %v1413
  %v2186 = vpop.f32.mrb[0].mxu0
  %v2187 = vadd.f32 %v768, %v2186
  %v2188 = vpop.f32.mrb[0].mxu0
  %v2189 = vpop.f32.mrb[0].mxu0
  %v2190 = vadd.f32 %v773, %v2189
  %v2191 = vpop.f32.mrb[0].mxu0
  %2192 = vmatprep.mubr.bf16.mxu0 %v1729
  %2193 = vmatmul.mubr.bf16.gmra.mrb[0].mxu0 %v1415
  %v2194 = vpop.f32.mrb[0].mxu0
  %v2195 = vadd.f32 %v778, %v2194
  %v2196 = vpop.f32.mrb[0].mxu0
  %v2197 = vpop.f32.mrb[0].mxu0
  %v2198 = vadd.f32 %v783, %v2197
  %v2199 = vpop.f32.mrb[0].mxu0
  %2200 = vmatprep.mubr.bf16.mxu0 %v1732
  %2201 = vmatmul.mubr.bf16.gmra.mrb[0].mxu0 %v1417
  %v2202 = vpop.f32.mrb[0].mxu0
  %v2203 = vadd.f32 %v788, %v2202
  %v2204 = vpop.f32.mrb[0].mxu0
  %v2205 = vpop.f32.mrb[0].mxu0
  %v2206 = vadd.f32 %v793, %v2205
  %v2207 = vpop.f32.mrb[0].mxu0
  %2208 = vmatprep.mubr.bf16.mxu0 %v1735
  %2209 = vmatmul.mubr.bf16.gmra.mrb[0].mxu0 %v1419
  %v2210 = vpop.f32.mrb[0].mxu0
  %v2211 = vadd.f32 %v798, %v2210
  %v2212 = vpop.f32.mrb[0].mxu0
  %v2213 = vpop.f32.mrb[0].mxu0
  %v2214 = vadd.f32 %v803, %v2213
  %v2215 = vpop.f32.mrb[0].mxu0
  %2216 = vmatprep.mubr.bf16.mxu0 %v1738
  %2217 = vmatmul.mubr.bf16.gmra.mrb[0].mxu0 %v1421
  %v2218 = vpop.f32.mrb[0].mxu0
  %v2219 = vadd.f32 %v808, %v2218
  %v2220 = vpop.f32.mrb[0].mxu0
  %v2221 = vpop.f32.mrb[0].mxu0
  %v2222 = vadd.f32 %v813, %v2221
  %v2223 = vpop.f32.mrb[0].mxu0
  %2224 = vmatprep.mubr.bf16.mxu0 %v1741
  %2225 = vmatmul.mubr.bf16.gmra.mrb[0].mxu0 %v1423
  %v2226 = vpop.f32.mrb[0].mxu0
  %v2227 = vadd.f32 %v818, %v2226
  %v2228 = vpop.f32.mrb[0].mxu0
  %v2229 = vpop.f32.mrb[0].mxu0
  %v2230 = vadd.f32 %v823, %v2229
  %v2231 = vpop.f32.mrb[0].mxu0
  %2232 = vmatprep.mubr.bf16.mxu0 %v1744
  %2233 = vmatmul.mubr.bf16.gmra.mrb[0].mxu0 %v1425
  %v2234 = vpop.f32.mrb[0].mxu0
  %v2235 = vadd.f32 %v828, %v2234
  %v2236 = vpop.f32.mrb[0].mxu0
  %v2237 = vpop.f32.mrb[0].mxu0
  %v2238 = vadd.f32 %v833, %v2237
  %v2239 = vpop.f32.mrb[0].mxu0
  %2240 = vmatprep.mubr.bf16.mxu0 %v1747
  %2241 = vmatmul.mubr.bf16.gmra.mrb[0].mxu0 %v1427
  %v2242 = vpop.f32.mrb[0].mxu0
  %v2243 = vadd.f32 %v838, %v2242
  %v2244 = vpop.f32.mrb[0].mxu0
  %v2245 = vpop.f32.mrb[0].mxu0
  %v2246 = vadd.f32 %v843, %v2245
  %v2247 = vpop.f32.mrb[0].mxu0
  %2248 = vmatprep.mubr.bf16.mxu0 %v1750
  %2249 = vmatmul.mubr.bf16.gmra.mrb[0].mxu0 %v1429
  %v2250 = vpop.f32.mrb[0].mxu0
  %v2251 = vadd.f32 %v848, %v2250
  %v2252 = vpop.f32.mrb[0].mxu0
  %v2253 = vpop.f32.mrb[0].mxu0
  %v2254 = vadd.f32 %v853, %v2253
  %v2255 = vpop.f32.mrb[0].mxu0
  %2256 = vmatprep.mubr.bf16.mxu0 %v1753
  %2257 = vmatmul.mubr.bf16.gmra.mrb[0].mxu0 %v1431
  %v2258 = vpop.f32.mrb[0].mxu0
  %v2259 = vadd.f32 %v858, %v2258
  %v2260 = vpop.f32.mrb[0].mxu0
  %v2261 = vpop.f32.mrb[0].mxu0
  %v2262 = vadd.f32 %v863, %v2261
  %v2263 = vpop.f32.mrb[0].mxu0
  %2264 = vmatprep.mubr.bf16.mxu0 %v1756
  %2265 = vmatmul.mubr.bf16.gmra.mrb[0].mxu0 %v1433
  %v2266 = vpop.f32.mrb[0].mxu0
  %v2267 = vadd.f32 %v868, %v2266
  %v2268 = vpop.f32.mrb[0].mxu0
  %v2269 = vpop.f32.mrb[0].mxu0
  %v2270 = vadd.f32 %v873, %v2269
  %v2271 = vpop.f32.mrb[0].mxu0
  %2272 = vmatprep.mubr.bf16.mxu0 %v1759
  %2273 = vmatmul.mubr.bf16.gmra.mrb[0].mxu0 %v1435
  %v2274 = vpop.f32.mrb[0].mxu0
  %v2275 = vadd.f32 %v878, %v2274
  %v2276 = vpop.f32.mrb[0].mxu0
  %v2277 = vpop.f32.mrb[0].mxu0
  %v2278 = vadd.f32 %v883, %v2277
  %v2279 = vpop.f32.mrb[0].mxu0
  %2280 = vmatprep.mubr.bf16.mxu0 %v1762
  %2281 = vmatmul.mubr.bf16.gmra.mrb[0].mxu0 %v1437
  %v2282 = vpop.f32.mrb[0].mxu0
  %v2283 = vadd.f32 %v888, %v2282
  %v2284 = vpop.f32.mrb[0].mxu0
  %v2285 = vpop.f32.mrb[0].mxu0
  %v2286 = vadd.f32 %v893, %v2285
  %v2287 = vpop.f32.mrb[0].mxu0
  %2288 = vmatprep.mubr.bf16.mxu0 %v1765
  %2289 = vmatmul.mubr.bf16.gmra.mrb[0].mxu0 %v1439
  %v2290 = vpop.f32.mrb[0].mxu0
  %v2291 = vadd.f32 %v898, %v2290
  %v2292 = vpop.f32.mrb[0].mxu0
  %v2293 = vpop.f32.mrb[0].mxu0
  %v2294 = vadd.f32 %v903, %v2293
  %v2295 = vpop.f32.mrb[0].mxu0
  %2296 = vmatprep.mubr.bf16.mxu0 %v1768
  %2297 = vmatmul.mubr.bf16.gmra.mrb[0].mxu0 %v1441
  %v2298 = vpop.f32.mrb[0].mxu0
  %v2299 = vadd.f32 %v908, %v2298
  %v2300 = vpop.f32.mrb[0].mxu0
  %v2301 = vpop.f32.mrb[0].mxu0
  %v2302 = vadd.f32 %v913, %v2301
  %v2303 = vpop.f32.mrb[0].mxu0
  %2304 = vmatprep.mubr.bf16.mxu0 %v1771
  %2305 = vmatmul.mubr.bf16.gmra.mrb[0].mxu0 %v1443
  %v2306 = vpop.f32.mrb[0].mxu0
  %v2307 = vadd.f32 %v918, %v2306
  %v2308 = vpop.f32.mrb[0].mxu0
  %v2309 = vpop.f32.mrb[0].mxu0
  %v2310 = vadd.f32 %v923, %v2309
  %v2311 = vpop.f32.mrb[0].mxu0
  %2312 = vmatprep.mubr.bf16.mxu0 %v1774
  %2313 = vmatmul.mubr.bf16.gmra.mrb[0].mxu0 %v1445
  %v2314 = vpop.f32.mrb[0].mxu0
  %v2315 = vadd.f32 %v928, %v2314
  %v2316 = vpop.f32.mrb[0].mxu0
  %v2317 = vpop.f32.mrb[0].mxu0
  %v2318 = vadd.f32 %v933, %v2317
  %v2319 = vpop.f32.mrb[0].mxu0
  %2320 = vdwg.mxu0
  %v2321 = vmax.f32 %v1811, 0.0
  %v2322 = vmax.f32 %v1814, 0.0
  %v2323 = vmax.f32 %v1819, 0.0
  %v2324 = vmax.f32 %v1822, 0.0
  %v2325 = vmax.f32 %v1827, 0.0
  %v2326 = vmax.f32 %v1830, 0.0
  %v2327 = vmax.f32 %v1835, 0.0
  %v2328 = vmax.f32 %v1838, 0.0
  %v2329 = vmax.f32 %v1843, 0.0
  %v2330 = vmax.f32 %v1846, 0.0
  %v2331 = vmax.f32 %v1851, 0.0
  %v2332 = vmax.f32 %v1854, 0.0
  %v2333 = vmax.f32 %v1859, 0.0
  %v2334 = vmax.f32 %v1862, 0.0
  %v2335 = vmax.f32 %v1867, 0.0
  %v2336 = vmax.f32 %v1870, 0.0
  %v2337 = vmax.f32 %v1875, 0.0
  %v2338 = vmax.f32 %v1878, 0.0
  %v2339 = vmax.f32 %v1883, 0.0
  %v2340 = vmax.f32 %v1886, 0.0
  %v2341 = vmax.f32 %v1891, 0.0
  %v2342 = vmax.f32 %v1894, 0.0
  %v2343 = vmax.f32 %v1899, 0.0
  %v2344 = vmax.f32 %v1902, 0.0
  %v2345 = vmax.f32 %v1907, 0.0
  %v2346 = vmax.f32 %v1910, 0.0
  %v2347 = vmax.f32 %v1915, 0.0
  %v2348 = vmax.f32 %v1918, 0.0
  %v2349 = vmax.f32 %v1923, 0.0
  %v2350 = vmax.f32 %v1926, 0.0
  %v2351 = vmax.f32 %v1931, 0.0
  %v2352 = vmax.f32 %v1934, 0.0
  %v2353 = vmax.f32 %v1939, 0.0
  %v2354 = vmax.f32 %v1942, 0.0
  %v2355 = vmax.f32 %v1947, 0.0
  %v2356 = vmax.f32 %v1950, 0.0
  %v2357 = vmax.f32 %v1955, 0.0
  %v2358 = vmax.f32 %v1958, 0.0
  %v2359 = vmax.f32 %v1963, 0.0
  %v2360 = vmax.f32 %v1966, 0.0
  %v2361 = vmax.f32 %v1971, 0.0
  %v2362 = vmax.f32 %v1974, 0.0
  %v2363 = vmax.f32 %v1979, 0.0
  %v2364 = vmax.f32 %v1982, 0.0
  %v2365 = vmax.f32 %v1987, 0.0
  %v2366 = vmax.f32 %v1990, 0.0
  %v2367 = vmax.f32 %v1995, 0.0
  %v2368 = vmax.f32 %v1998, 0.0
  %v2369 = vmax.f32 %v2003, 0.0
  %v2370 = vmax.f32 %v2006, 0.0
  %v2371 = vmax.f32 %v2011, 0.0
  %v2372 = vmax.f32 %v2014, 0.0
  %v2373 = vmax.f32 %v2019, 0.0
  %v2374 = vmax.f32 %v2022, 0.0
  %v2375 = vmax.f32 %v2027, 0.0
  %v2376 = vmax.f32 %v2030, 0.0
  %v2377 = vmax.f32 %v2035, 0.0
  %v2378 = vmax.f32 %v2038, 0.0
  %v2379 = vmax.f32 %v2043, 0.0
  %v2380 = vmax.f32 %v2046, 0.0
  %v2381 = vmax.f32 %v2051, 0.0
  %v2382 = vmax.f32 %v2054, 0.0
  %v2383 = vmax.f32 %v2059, 0.0
  %v2384 = vmax.f32 %v2062, 0.0
  %v2385 = vmax.f32 %v2067, 0.0
  %v2386 = vmax.f32 %v2070, 0.0
  %v2387 = vmax.f32 %v2075, 0.0
  %v2388 = vmax.f32 %v2078, 0.0
  %v2389 = vmax.f32 %v2083, 0.0
  %v2390 = vmax.f32 %v2086, 0.0
  %v2391 = vmax.f32 %v2091, 0.0
  %v2392 = vmax.f32 %v2094, 0.0
  %v2393 = vmax.f32 %v2099, 0.0
  %v2394 = vmax.f32 %v2102, 0.0
  %v2395 = vmax.f32 %v2107, 0.0
  %v2396 = vmax.f32 %v2110, 0.0
  %v2397 = vmax.f32 %v2115, 0.0
  %v2398 = vmax.f32 %v2118, 0.0
  %v2399 = vmax.f32 %v2123, 0.0
  %v2400 = vmax.f32 %v2126, 0.0
  %v2401 = vmax.f32 %v2131, 0.0
  %v2402 = vmax.f32 %v2134, 0.0
  %v2403 = vmax.f32 %v2139, 0.0
  %v2404 = vmax.f32 %v2142, 0.0
  %v2405 = vmax.f32 %v2147, 0.0
  %v2406 = vmax.f32 %v2150, 0.0
  %v2407 = vmax.f32 %v2155, 0.0
  %v2408 = vmax.f32 %v2158, 0.0
  %v2409 = vmax.f32 %v2163, 0.0
  %v2410 = vmax.f32 %v2166, 0.0
  %v2411 = vmax.f32 %v2171, 0.0
  %v2412 = vmax.f32 %v2174, 0.0
  %v2413 = vmax.f32 %v2179, 0.0
  %v2414 = vmax.f32 %v2182, 0.0
  %v2415 = vmax.f32 %v2187, 0.0
  %v2416 = vmax.f32 %v2190, 0.0
  %v2417 = vmax.f32 %v2195, 0.0
  %v2418 = vmax.f32 %v2198, 0.0
  %v2419 = vmax.f32 %v2203, 0.0
  %v2420 = vmax.f32 %v2206, 0.0
  %v2421 = vmax.f32 %v2211, 0.0
  %v2422 = vmax.f32 %v2214, 0.0
  %v2423 = vmax.f32 %v2219, 0.0
  %v2424 = vmax.f32 %v2222, 0.0
  %v2425 = vmax.f32 %v2227, 0.0
  %v2426 = vmax.f32 %v2230, 0.0
  %v2427 = vmax.f32 %v2235, 0.0
  %v2428 = vmax.f32 %v2238, 0.0
  %v2429 = vmax.f32 %v2243, 0.0
  %v2430 = vmax.f32 %v2246, 0.0
  %v2431 = vmax.f32 %v2251, 0.0
  %v2432 = vmax.f32 %v2254, 0.0
  %v2433 = vmax.f32 %v2259, 0.0
  %v2434 = vmax.f32 %v2262, 0.0
  %v2435 = vmax.f32 %v2267, 0.0
  %v2436 = vmax.f32 %v2270, 0.0
  %v2437 = vmax.f32 %v2275, 0.0
  %v2438 = vmax.f32 %v2278, 0.0
  %v2439 = vmax.f32 %v2283, 0.0
  %v2440 = vmax.f32 %v2286, 0.0
  %v2441 = vmax.f32 %v2291, 0.0
  %v2442 = vmax.f32 %v2294, 0.0
  %v2443 = vmax.f32 %v2299, 0.0
  %v2444 = vmax.f32 %v2302, 0.0
  %v2445 = vmax.f32 %v2307, 0.0
  %v2446 = vmax.f32 %v2310, 0.0
  %v2447 = vmax.f32 %v2315, 0.0
  %v2448 = vmax.f32 %v2318, 0.0
  %2449 = vst [vmem:[%s3] sm:$0xff] %v2321
  %2450 = vst [vmem:[%s3 + $0x8] sm:$0xff] %v2322
  %2451 = vst [vmem:[%s3 + $0x10] sm:$0xff] %v2323
  %2452 = vst [vmem:[%s3 + $0x18] sm:$0xff] %v2324
  %2453 = vst [vmem:[%s3 + $0x20] sm:$0xff] %v2325
  %2454 = vst [vmem:[%s3 + $0x28] sm:$0xff] %v2326
  %2455 = vst [vmem:[%s3 + $0x30] sm:$0xff] %v2327
  %2456 = vst [vmem:[%s3 + $0x38] sm:$0xff] %v2328
  %2457 = vst [vmem:[%s3 + $0x40] sm:$0xff] %v2329
  %2458 = vst [vmem:[%s3 + $0x48] sm:$0xff] %v2330
  %2459 = vst [vmem:[%s3 + $0x50] sm:$0xff] %v2331
  %2460 = vst [vmem:[%s3 + $0x58] sm:$0xff] %v2332
  %2461 = vst [vmem:[%s3 + $0x60] sm:$0xff] %v2333
  %2462 = vst [vmem:[%s3 + $0x68] sm:$0xff] %v2334
  %2463 = vst [vmem:[%s3 + $0x70] sm:$0xff] %v2335
  %2464 = vst [vmem:[%s3 + $0x78] sm:$0xff] %v2336
  %2465 = vst [vmem:[%s3 + $0x80] sm:$0xff] %v2337
  %2466 = vst [vmem:[%s3 + $0x88] sm:$0xff] %v2338
  %2467 = vst [vmem:[%s3 + $0x90] sm:$0xff] %v2339
  %2468 = vst [vmem:[%s3 + $0x98] sm:$0xff] %v2340
  %2469 = vst [vmem:[%s3 + $0xa0] sm:$0xff] %v2341
  %2470 = vst [vmem:[%s3 + $0xa8] sm:$0xff] %v2342
  %2471 = vst [vmem:[%s3 + $0xb0] sm:$0xff] %v2343
  %2472 = vst [vmem:[%s3 + $0xb8] sm:$0xff] %v2344
  %2473 = vst [vmem:[%s3 + $0xc0] sm:$0xff] %v2345
  %2474 = vst [vmem:[%s3 + $0xc8] sm:$0xff] %v2346
  %2475 = vst [vmem:[%s3 + $0xd0] sm:$0xff] %v2347
  %2476 = vst [vmem:[%s3 + $0xd8] sm:$0xff] %v2348
  %2477 = vst [vmem:[%s3 + $0xe0] sm:$0xff] %v2349
  %2478 = vst [vmem:[%s3 + $0xe8] sm:$0xff] %v2350
  %2479 = vst [vmem:[%s3 + $0xf0] sm:$0xff] %v2351
  %2480 = vst [vmem:[%s3 + $0xf8] sm:$0xff] %v2352
  %2481 = vst [vmem:[%s3 + $0x100] sm:$0xff] %v2353
  %2482 = vst [vmem:[%s3 + $0x108] sm:$0xff] %v2354
  %2483 = vst [vmem:[%s3 + $0x110] sm:$0xff] %v2355
  %2484 = vst [vmem:[%s3 + $0x118] sm:$0xff] %v2356
  %2485 = vst [vmem:[%s3 + $0x120] sm:$0xff] %v2357
  %2486 = vst [vmem:[%s3 + $0x128] sm:$0xff] %v2358
  %2487 = vst [vmem:[%s3 + $0x130] sm:$0xff] %v2359
  %2488 = vst [vmem:[%s3 + $0x138] sm:$0xff] %v2360
  %2489 = vst [vmem:[%s3 + $0x140] sm:$0xff] %v2361
  %2490 = vst [vmem:[%s3 + $0x148] sm:$0xff] %v2362
  %2491 = vst [vmem:[%s3 + $0x150] sm:$0xff] %v2363
  %2492 = vst [vmem:[%s3 + $0x158] sm:$0xff] %v2364
  %2493 = vst [vmem:[%s3 + $0x160] sm:$0xff] %v2365
  %2494 = vst [vmem:[%s3 + $0x168] sm:$0xff] %v2366
  %2495 = vst [vmem:[%s3 + $0x170] sm:$0xff] %v2367
  %2496 = vst [vmem:[%s3 + $0x178] sm:$0xff] %v2368
  %2497 = vst [vmem:[%s3 + $0x180] sm:$0xff] %v2369
  %2498 = vst [vmem:[%s3 + $0x188] sm:$0xff] %v2370
  %2499 = vst [vmem:[%s3 + $0x190] sm:$0xff] %v2371
  %2500 = vst [vmem:[%s3 + $0x198] sm:$0xff] %v2372
  %2501 = vst [vmem:[%s3 + $0x1a0] sm:$0xff] %v2373
  %2502 = vst [vmem:[%s3 + $0x1a8] sm:$0xff] %v2374
  %2503 = vst [vmem:[%s3 + $0x1b0] sm:$0xff] %v2375
  %2504 = vst [vmem:[%s3 + $0x1b8] sm:$0xff] %v2376
  %2505 = vst [vmem:[%s3 + $0x1c0] sm:$0xff] %v2377
  %2506 = vst [vmem:[%s3 + $0x1c8] sm:$0xff] %v2378
  %2507 = vst [vmem:[%s3 + $0x1d0] sm:$0xff] %v2379
  %2508 = vst [vmem:[%s3 + $0x1d8] sm:$0xff] %v2380
  %2509 = vst [vmem:[%s3 + $0x1e0] sm:$0xff] %v2381
  %2510 = vst [vmem:[%s3 + $0x1e8] sm:$0xff] %v2382
  %2511 = vst [vmem:[%s3 + $0x1f0] sm:$0xff] %v2383
  %2512 = vst [vmem:[%s3 + $0x1f8] sm:$0xff] %v2384
  %2513 = vst [vmem:[%s3 + $0x200] sm:$0xff] %v2385
  %2514 = vst [vmem:[%s3 + $0x208] sm:$0xff] %v2386
  %2515 = vst [vmem:[%s3 + $0x210] sm:$0xff] %v2387
  %2516 = vst [vmem:[%s3 + $0x218] sm:$0xff] %v2388
  %2517 = vst [vmem:[%s3 + $0x220] sm:$0xff] %v2389
  %2518 = vst [vmem:[%s3 + $0x228] sm:$0xff] %v2390
  %2519 = vst [vmem:[%s3 + $0x230] sm:$0xff] %v2391
  %2520 = vst [vmem:[%s3 + $0x238] sm:$0xff] %v2392
  %2521 = vst [vmem:[%s3 + $0x240] sm:$0xff] %v2393
  %2522 = vst [vmem:[%s3 + $0x248] sm:$0xff] %v2394
  %2523 = vst [vmem:[%s3 + $0x250] sm:$0xff] %v2395
  %2524 = vst [vmem:[%s3 + $0x258] sm:$0xff] %v2396
  %2525 = vst [vmem:[%s3 + $0x260] sm:$0xff] %v2397
  %2526 = vst [vmem:[%s3 + $0x268] sm:$0xff] %v2398
  %2527 = vst [vmem:[%s3 + $0x270] sm:$0xff] %v2399
  %2528 = vst [vmem:[%s3 + $0x278] sm:$0xff] %v2400
  %2529 = vst [vmem:[%s3 + $0x280] sm:$0xff] %v2401
  %2530 = vst [vmem:[%s3 + $0x288] sm:$0xff] %v2402
  %2531 = vst [vmem:[%s3 + $0x290] sm:$0xff] %v2403
  %2532 = vst [vmem:[%s3 + $0x298] sm:$0xff] %v2404
  %2533 = vst [vmem:[%s3 + $0x2a0] sm:$0xff] %v2405
  %2534 = vst [vmem:[%s3 + $0x2a8] sm:$0xff] %v2406
  %2535 = vst [vmem:[%s3 + $0x2b0] sm:$0xff] %v2407
  %2536 = vst [vmem:[%s3 + $0x2b8] sm:$0xff] %v2408
  %2537 = vst [vmem:[%s3 + $0x2c0] sm:$0xff] %v2409
  %2538 = vst [vmem:[%s3 + $0x2c8] sm:$0xff] %v2410
  %2539 = vst [vmem:[%s3 + $0x2d0] sm:$0xff] %v2411
  %2540 = vst [vmem:[%s3 + $0x2d8] sm:$0xff] %v2412
  %2541 = vst [vmem:[%s3 + $0x2e0] sm:$0xff] %v2413
  %2542 = vst [vmem:[%s3 + $0x2e8] sm:$0xff] %v2414
  %2543 = vst [vmem:[%s3 + $0x2f0] sm:$0xff] %v2415
  %2544 = vst [vmem:[%s3 + $0x2f8] sm:$0xff] %v2416
  %2545 = vst [vmem:[%s3 + $0x300] sm:$0xff] %v2417
  %2546 = vst [vmem:[%s3 + $0x308] sm:$0xff] %v2418
  %2547 = vst [vmem:[%s3 + $0x310] sm:$0xff] %v2419
  %2548 = vst [vmem:[%s3 + $0x318] sm:$0xff] %v2420
  %2549 = vst [vmem:[%s3 + $0x320] sm:$0xff] %v2421
  %2550 = vst [vmem:[%s3 + $0x328] sm:$0xff] %v2422
  %2551 = vst [vmem:[%s3 + $0x330] sm:$0xff] %v2423
  %2552 = vst [vmem:[%s3 + $0x338] sm:$0xff] %v2424
  %2553 = vst [vmem:[%s3 + $0x340] sm:$0xff] %v2425
  %2554 = vst [vmem:[%s3 + $0x348] sm:$0xff] %v2426
  %2555 = vst [vmem:[%s3 + $0x350] sm:$0xff] %v2427
  %2556 = vst [vmem:[%s3 + $0x358] sm:$0xff] %v2428
  %2557 = vst [vmem:[%s3 + $0x360] sm:$0xff] %v2429
  %2558 = vst [vmem:[%s3 + $0x368] sm:$0xff] %v2430
  %2559 = vst [vmem:[%s3 + $0x370] sm:$0xff] %v2431
  %2560 = vst [vmem:[%s3 + $0x378] sm:$0xff] %v2432
  %2561 = vst [vmem:[%s3 + $0x380] sm:$0xff] %v2433
  %2562 = vst [vmem:[%s3 + $0x388] sm:$0xff] %v2434
  %2563 = vst [vmem:[%s3 + $0x390] sm:$0xff] %v2435
  %2564 = vst [vmem:[%s3 + $0x398] sm:$0xff] %v2436
  %2565 = vst [vmem:[%s3 + $0x3a0] sm:$0xff] %v2437
  %2566 = vst [vmem:[%s3 + $0x3a8] sm:$0xff] %v2438
  %2567 = vst [vmem:[%s3 + $0x3b0] sm:$0xff] %v2439
  %2568 = vst [vmem:[%s3 + $0x3b8] sm:$0xff] %v2440
  %2569 = vst [vmem:[%s3 + $0x3c0] sm:$0xff] %v2441
  %2570 = vst [vmem:[%s3 + $0x3c8] sm:$0xff] %v2442
  %2571 = vst [vmem:[%s3 + $0x3d0] sm:$0xff] %v2443
  %2572 = vst [vmem:[%s3 + $0x3d8] sm:$0xff] %v2444
  %2573 = vst [vmem:[%s3 + $0x3e0] sm:$0xff] %v2445
  %2574 = vst [vmem:[%s3 + $0x3e8] sm:$0xff] %v2446
  %2575 = vst [vmem:[%s3 + $0x3f0] sm:$0xff] %v2447
  %2576 = vst [vmem:[%s3 + $0x3f8] sm:$0xff] %v2448
  // Predicated region
  $region14: #{_lambda_.76} parent=0 // pred_check
    _
  $region15: #{_lambda_.76} parent=0 // pred_check_branch
    %2578 = sbr.rel (0) target = $region17
  $region16: #{_lambda_.76} parent=0 // pred_region
    _
  $region17: #{_lambda_.76} parent=0 // pred_fallthru
    _
  // Predicated region
  $region18: #{_lambda_.76} parent=0 // pred_check
    _
  $region19: #{_lambda_.76} parent=0 // pred_check_branch
    %2580 = sbr.rel (0) target = $region21
  $region20: #{_lambda_.76} parent=0 // pred_region
    _
  $region21: #{_lambda_.76} parent=0 // pred_fallthru
    _

// kernel: _lambda_.77
$region0: #{_lambda_.77}
  #allocation0 [shape = 'u32[]', space=smem, size = 0x4, offset = 0x4, fixed_abs, tag = 'smem constant byte address 0x4 - core index']
  #allocation1 [shape = 'u32[144,128]{1,0:T(1,128)}', space=vmem, size = 0x12000, scoped, tag = 'internal scratch']
  %s0 = inlined_call_operand.vmem [shape: bf16[1024,128], index: 0, kind: input, shape index: {}]
  %s1 = inlined_call_operand.vmem [shape: bf16[16,1024], index: 1, kind: input, shape index: {}]
  %s2 = inlined_call_operand.vmem [shape: f32[16,1], index: 2, kind: input, shape index: {}]
  %s3 = inlined_call_operand.vmem [shape: f32[16,128], index: 3, kind: output, shape index: {}]
  %s4 = sld [smem:[#allocation0]]
  $region22: #{_lambda_.77} parent=0
    _
  %s6 = ssub.s32 1, %s4
  %s7 = scalar_select 0, %s6, %s4
  // Predicated region
  $region2: #{_lambda_.77} parent=0 // pred_check
    _
  $region3: #{_lambda_.77} parent=0 // pred_check_branch
    %9 = sbr.rel (0) target = $region5
  $region4: #{_lambda_.77} parent=0 // pred_region
    _
  $region5: #{_lambda_.77} parent=0 // pred_fallthru
    _
  // Predicated region
  $region6: #{_lambda_.77} parent=0 // pred_check
    _
  $region7: #{_lambda_.77} parent=0 // pred_check_branch
    %11 = sbr.rel (0) target = $region9
  $region8: #{_lambda_.77} parent=0 // pred_region
    _
  $region9: #{_lambda_.77} parent=0 // pred_fallthru
    _
  // Predicated region
  $region10: #{_lambda_.77} parent=0 // pred_check
    _
  $region11: #{_lambda_.77} parent=0 // pred_check_branch
    %13 = sbr.rel (0) target = $region13
  $region12: #{_lambda_.77} parent=0 // pred_region
    _
  $region13: #{_lambda_.77} parent=0 // pred_fallthru
    _
  %v15 = vld [vmem:[%s1] sm:$0xff]
  %v16 = vld [vmem:[%s1 + $0x8] sm:$0xff]
  %v17 = vld [vmem:[%s1 + $0x10] sm:$0xff]
  %v18 = vld [vmem:[%s1 + $0x18] sm:$0xff]
  %v19 = vld [vmem:[%s1 + $0x20] sm:$0xff]
  %v20 = vld [vmem:[%s1 + $0x28] sm:$0xff]
  %v21 = vld [vmem:[%s1 + $0x30] sm:$0xff]
  %v22 = vld [vmem:[%s1 + $0x38] sm:$0xff]
  %v23 = vld [vmem:[%s0] sm:$0xf]
  %v24 = vld [vmem:[%s0 + $0x4] sm:$0xf]
  %v25 = vld [vmem:[%s0 + $0x8] sm:$0xf]
  %v26 = vld [vmem:[%s0 + $0xc] sm:$0xf]
  %v27 = vld [vmem:[%s0 + $0x10] sm:$0xf]
  %v28 = vld [vmem:[%s0 + $0x14] sm:$0xf]
  %v29 = vld [vmem:[%s0 + $0x18] sm:$0xf]
  %v30 = vld [vmem:[%s0 + $0x1c] sm:$0xf]
  %v31 = vld [vmem:[%s0 + $0x20] sm:$0xf]
  %v32 = vld [vmem:[%s0 + $0x24] sm:$0xf]
  %v33 = vld [vmem:[%s0 + $0x28] sm:$0xf]
  %v34 = vld [vmem:[%s0 + $0x2c] sm:$0xf]
  %v35 = vld [vmem:[%s0 + $0x30] sm:$0xf]
  %v36 = vld [vmem:[%s0 + $0x34] sm:$0xf]
  %v37 = vld [vmem:[%s0 + $0x38] sm:$0xf]
  %v38 = vld [vmem:[%s0 + $0x3c] sm:$0xf]
  %v39 = vld [vmem:[%s0 + $0x40] sm:$0xf]
  %v40 = vld [vmem:[%s0 + $0x44] sm:$0xf]
  %v41 = vld [vmem:[%s0 + $0x48] sm:$0xf]
  %v42 = vld [vmem:[%s0 + $0x4c] sm:$0xf]
  %v43 = vld [vmem:[%s0 + $0x50] sm:$0xf]
  %v44 = vld [vmem:[%s0 + $0x54] sm:$0xf]
  %v45 = vld [vmem:[%s0 + $0x58] sm:$0xf]
  %v46 = vld [vmem:[%s0 + $0x5c] sm:$0xf]
  %v47 = vld [vmem:[%s0 + $0x60] sm:$0xf]
  %v48 = vld [vmem:[%s0 + $0x64] sm:$0xf]
  %v49 = vld [vmem:[%s0 + $0x68] sm:$0xf]
  %v50 = vld [vmem:[%s0 + $0x6c] sm:$0xf]
  %v51 = vld [vmem:[%s0 + $0x70] sm:$0xf]
  %v52 = vld [vmem:[%s0 + $0x74] sm:$0xf]
  %v53 = vld [vmem:[%s0 + $0x78] sm:$0xf]
  %v54 = vld [vmem:[%s0 + $0x7c] sm:$0xf]
  %v55 = vld [vmem:[%s0 + $0x80] sm:$0xf]
  %v56 = vld [vmem:[%s0 + $0x84] sm:$0xf]
  %v57 = vld [vmem:[%s0 + $0x88] sm:$0xf]
  %v58 = vld [vmem:[%s0 + $0x8c] sm:$0xf]
  %v59 = vld [vmem:[%s0 + $0x90] sm:$0xf]
  %v60 = vld [vmem:[%s0 + $0x94] sm:$0xf]
  %v61 = vld [vmem:[%s0 + $0x98] sm:$0xf]
  %v62 = vld [vmem:[%s0 + $0x9c] sm:$0xf]
  %v63 = vld [vmem:[%s0 + $0xa0] sm:$0xf]
  %v64 = vld [vmem:[%s0 + $0xa4] sm:$0xf]
  %v65 = vld [vmem:[%s0 + $0xa8] sm:$0xf]
  %v66 = vld [vmem:[%s0 + $0xac] sm:$0xf]
  %v67 = vld [vmem:[%s0 + $0xb0] sm:$0xf]
  %v68 = vld [vmem:[%s0 + $0xb4] sm:$0xf]
  %v69 = vld [vmem:[%s0 + $0xb8] sm:$0xf]
  %v70 = vld [vmem:[%s0 + $0xbc] sm:$0xf]
  %v71 = vld [vmem:[%s0 + $0xc0] sm:$0xf]
  %v72 = vld [vmem:[%s0 + $0xc4] sm:$0xf]
  %v73 = vld [vmem:[%s0 + $0xc8] sm:$0xf]
  %v74 = vld [vmem:[%s0 + $0xcc] sm:$0xf]
  %v75 = vld [vmem:[%s0 + $0xd0] sm:$0xf]
  %v76 = vld [vmem:[%s0 + $0xd4] sm:$0xf]
  %v77 = vld [vmem:[%s0 + $0xd8] sm:$0xf]
  %v78 = vld [vmem:[%s0 + $0xdc] sm:$0xf]
  %v79 = vld [vmem:[%s0 + $0xe0] sm:$0xf]
  %v80 = vld [vmem:[%s0 + $0xe4] sm:$0xf]
  %v81 = vld [vmem:[%s0 + $0xe8] sm:$0xf]
  %v82 = vld [vmem:[%s0 + $0xec] sm:$0xf]
  %v83 = vld [vmem:[%s0 + $0xf0] sm:$0xf]
  %v84 = vld [vmem:[%s0 + $0xf4] sm:$0xf]
  %v85 = vld [vmem:[%s0 + $0xf8] sm:$0xf]
  %v86 = vld [vmem:[%s0 + $0xfc] sm:$0xf]
  %v87 = vld [vmem:[%s0 + $0x100] sm:$0xf]
  %v88 = vld [vmem:[%s0 + $0x104] sm:$0xf]
  %v89 = vld [vmem:[%s0 + $0x108] sm:$0xf]
  %v90 = vld [vmem:[%s0 + $0x10c] sm:$0xf]
  %v91 = vld [vmem:[%s0 + $0x110] sm:$0xf]
  %v92 = vld [vmem:[%s0 + $0x114] sm:$0xf]
  %v93 = vld [vmem:[%s0 + $0x118] sm:$0xf]
  %v94 = vld [vmem:[%s0 + $0x11c] sm:$0xf]
  %v95 = vld [vmem:[%s0 + $0x120] sm:$0xf]
  %v96 = vld [vmem:[%s0 + $0x124] sm:$0xf]
  %v97 = vld [vmem:[%s0 + $0x128] sm:$0xf]
  %v98 = vld [vmem:[%s0 + $0x12c] sm:$0xf]
  %v99 = vld [vmem:[%s0 + $0x130] sm:$0xf]
  %v100 = vld [vmem:[%s0 + $0x134] sm:$0xf]
  %v101 = vld [vmem:[%s0 + $0x138] sm:$0xf]
  %v102 = vld [vmem:[%s0 + $0x13c] sm:$0xf]
  %v103 = vld [vmem:[%s0 + $0x140] sm:$0xf]
  %v104 = vld [vmem:[%s0 + $0x144] sm:$0xf]
  %v105 = vld [vmem:[%s0 + $0x148] sm:$0xf]
  %v106 = vld [vmem:[%s0 + $0x14c] sm:$0xf]
  %v107 = vld [vmem:[%s0 + $0x150] sm:$0xf]
  %v108 = vld [vmem:[%s0 + $0x154] sm:$0xf]
  %v109 = vld [vmem:[%s0 + $0x158] sm:$0xf]
  %v110 = vld [vmem:[%s0 + $0x15c] sm:$0xf]
  %v111 = vld [vmem:[%s0 + $0x160] sm:$0xf]
  %v112 = vld [vmem:[%s0 + $0x164] sm:$0xf]
  %v113 = vld [vmem:[%s0 + $0x168] sm:$0xf]
  %v114 = vld [vmem:[%s0 + $0x16c] sm:$0xf]
  %v115 = vld [vmem:[%s0 + $0x170] sm:$0xf]
  %v116 = vld [vmem:[%s0 + $0x174] sm:$0xf]
  %v117 = vld [vmem:[%s0 + $0x178] sm:$0xf]
  %v118 = vld [vmem:[%s0 + $0x17c] sm:$0xf]
  %v119 = vld [vmem:[%s0 + $0x180] sm:$0xf]
  %v120 = vld [vmem:[%s0 + $0x184] sm:$0xf]
  %v121 = vld [vmem:[%s0 + $0x188] sm:$0xf]
  %v122 = vld [vmem:[%s0 + $0x18c] sm:$0xf]
  %v123 = vld [vmem:[%s0 + $0x190] sm:$0xf]
  %v124 = vld [vmem:[%s0 + $0x194] sm:$0xf]
  %v125 = vld [vmem:[%s0 + $0x198] sm:$0xf]
  %v126 = vld [vmem:[%s0 + $0x19c] sm:$0xf]
  %v127 = vld [vmem:[%s0 + $0x1a0] sm:$0xf]
  %v128 = vld [vmem:[%s0 + $0x1a4] sm:$0xf]
  %v129 = vld [vmem:[%s0 + $0x1a8] sm:$0xf]
  %v130 = vld [vmem:[%s0 + $0x1ac] sm:$0xf]
  %v131 = vld [vmem:[%s0 + $0x1b0] sm:$0xf]
  %v132 = vld [vmem:[%s0 + $0x1b4] sm:$0xf]
  %v133 = vld [vmem:[%s0 + $0x1b8] sm:$0xf]
  %v134 = vld [vmem:[%s0 + $0x1bc] sm:$0xf]
  %v135 = vld [vmem:[%s0 + $0x1c0] sm:$0xf]
  %v136 = vld [vmem:[%s0 + $0x1c4] sm:$0xf]
  %v137 = vld [vmem:[%s0 + $0x1c8] sm:$0xf]
  %v138 = vld [vmem:[%s0 + $0x1cc] sm:$0xf]
  %v139 = vld [vmem:[%s0 + $0x1d0] sm:$0xf]
  %v140 = vld [vmem:[%s0 + $0x1d4] sm:$0xf]
  %v141 = vld [vmem:[%s0 + $0x1d8] sm:$0xf]
  %v142 = vld [vmem:[%s0 + $0x1dc] sm:$0xf]
  %v143 = vld [vmem:[%s0 + $0x1e0] sm:$0xf]
  %v144 = vld [vmem:[%s0 + $0x1e4] sm:$0xf]
  %v145 = vld [vmem:[%s0 + $0x1e8] sm:$0xf]
  %v146 = vld [vmem:[%s0 + $0x1ec] sm:$0xf]
  %v147 = vld [vmem:[%s0 + $0x1f0] sm:$0xf]
  %v148 = vld [vmem:[%s0 + $0x1f4] sm:$0xf]
  %v149 = vld [vmem:[%s0 + $0x1f8] sm:$0xf]
  %v150 = vld [vmem:[%s0 + $0x1fc] sm:$0xf]
  %v151 = vld [vmem:[%s2] sm:$0xff]
  %v152 = vld [vmem:[%s2 + $0x8] sm:$0xff]
  %154 = vset.pattern.permute.xlu0 0
  %155 = vperm.xlu0 %154, %v151
  %v156 = vpop.permute.xlu0 %155
  %159 = vset.pattern.permute.xlu0 0
  %160 = vperm.xlu0 %159, %v152
  %v161 = vpop.permute.xlu0 %160
  %v171 = vunpack.c.l.b16 %v15
  %v172 = vunpack.c.h.b16 %v15
  %v173 = vunpack.c.l.b16 %v16
  %v174 = vunpack.c.h.b16 %v16
  %v175 = vunpack.c.l.b16 %v17
  %v176 = vunpack.c.h.b16 %v17
  %v177 = vunpack.c.l.b16 %v18
  %v178 = vunpack.c.h.b16 %v18
  %v179 = vunpack.c.l.b16 %v19
  %v180 = vunpack.c.h.b16 %v19
  %v181 = vunpack.c.l.b16 %v20
  %v182 = vunpack.c.h.b16 %v20
  %v183 = vunpack.c.l.b16 %v21
  %v184 = vunpack.c.h.b16 %v21
  %v185 = vunpack.c.l.b16 %v22
  %v186 = vunpack.c.h.b16 %v22
  %v187 = vpack.c.b16 %v179, %v171
  %v188 = vpack.c.b16 %v180, %v172
  %v189 = vpack.c.b16 %v181, %v173
  %v190 = vpack.c.b16 %v182, %v174
  %v191 = vpack.c.b16 %v183, %v175
  %v192 = vpack.c.b16 %v184, %v176
  %v193 = vpack.c.b16 %v185, %v177
  %v194 = vpack.c.b16 %v186, %v178
  %v331 = vunpack.c.l.b16 %v23
  %v332 = vunpack.c.l.b16 %v24
  %v333 = vunpack.c.l.b16 %v25
  %v334 = vunpack.c.l.b16 %v26
  %v335 = vunpack.c.l.b16 %v27
  %v336 = vunpack.c.l.b16 %v28
  %v337 = vunpack.c.l.b16 %v29
  %v338 = vunpack.c.l.b16 %v30
  %v339 = vunpack.c.l.b16 %v31
  %v340 = vunpack.c.l.b16 %v32
  %v341 = vunpack.c.l.b16 %v33
  %v342 = vunpack.c.l.b16 %v34
  %v343 = vunpack.c.l.b16 %v35
  %v344 = vunpack.c.l.b16 %v36
  %v345 = vunpack.c.l.b16 %v37
  %v346 = vunpack.c.l.b16 %v38
  %v347 = vunpack.c.l.b16 %v39
  %v348 = vunpack.c.l.b16 %v40
  %v349 = vunpack.c.l.b16 %v41
  %v350 = vunpack.c.l.b16 %v42
  %v351 = vunpack.c.l.b16 %v43
  %v352 = vunpack.c.l.b16 %v44
  %v353 = vunpack.c.l.b16 %v45
  %v354 = vunpack.c.l.b16 %v46
  %v355 = vunpack.c.l.b16 %v47
  %v356 = vunpack.c.l.b16 %v48
  %v357 = vunpack.c.l.b16 %v49
  %v358 = vunpack.c.l.b16 %v50
  %v359 = vunpack.c.l.b16 %v51
  %v360 = vunpack.c.l.b16 %v52
  %v361 = vunpack.c.l.b16 %v53
  %v362 = vunpack.c.l.b16 %v54
  %v363 = vunpack.c.l.b16 %v55
  %v364 = vunpack.c.l.b16 %v56
  %v365 = vunpack.c.l.b16 %v57
  %v366 = vunpack.c.l.b16 %v58
  %v367 = vunpack.c.l.b16 %v59
  %v368 = vunpack.c.l.b16 %v60
  %v369 = vunpack.c.l.b16 %v61
  %v370 = vunpack.c.l.b16 %v62
  %v371 = vunpack.c.l.b16 %v63
  %v372 = vunpack.c.l.b16 %v64
  %v373 = vunpack.c.l.b16 %v65
  %v374 = vunpack.c.l.b16 %v66
  %v375 = vunpack.c.l.b16 %v67
  %v376 = vunpack.c.l.b16 %v68
  %v377 = vunpack.c.l.b16 %v69
  %v378 = vunpack.c.l.b16 %v70
  %v379 = vunpack.c.l.b16 %v71
  %v380 = vunpack.c.l.b16 %v72
  %v381 = vunpack.c.l.b16 %v73
  %v382 = vunpack.c.l.b16 %v74
  %v383 = vunpack.c.l.b16 %v75
  %v384 = vunpack.c.l.b16 %v76
  %v385 = vunpack.c.l.b16 %v77
  %v386 = vunpack.c.l.b16 %v78
  %v387 = vunpack.c.l.b16 %v79
  %v388 = vunpack.c.l.b16 %v80
  %v389 = vunpack.c.l.b16 %v81
  %v390 = vunpack.c.l.b16 %v82
  %v391 = vunpack.c.l.b16 %v83
  %v392 = vunpack.c.l.b16 %v84
  %v393 = vunpack.c.l.b16 %v85
  %v394 = vunpack.c.l.b16 %v86
  %v395 = vunpack.c.l.b16 %v87
  %v396 = vunpack.c.l.b16 %v88
  %v397 = vunpack.c.l.b16 %v89
  %v398 = vunpack.c.l.b16 %v90
  %v399 = vunpack.c.l.b16 %v91
  %v400 = vunpack.c.l.b16 %v92
  %v401 = vunpack.c.l.b16 %v93
  %v402 = vunpack.c.l.b16 %v94
  %v403 = vunpack.c.l.b16 %v95
  %v404 = vunpack.c.l.b16 %v96
  %v405 = vunpack.c.l.b16 %v97
  %v406 = vunpack.c.l.b16 %v98
  %v407 = vunpack.c.l.b16 %v99
  %v408 = vunpack.c.l.b16 %v100
  %v409 = vunpack.c.l.b16 %v101
  %v410 = vunpack.c.l.b16 %v102
  %v411 = vunpack.c.l.b16 %v103
  %v412 = vunpack.c.l.b16 %v104
  %v413 = vunpack.c.l.b16 %v105
  %v414 = vunpack.c.l.b16 %v106
  %v415 = vunpack.c.l.b16 %v107
  %v416 = vunpack.c.l.b16 %v108
  %v417 = vunpack.c.l.b16 %v109
  %v418 = vunpack.c.l.b16 %v110
  %v419 = vunpack.c.l.b16 %v111
  %v420 = vunpack.c.l.b16 %v112
  %v421 = vunpack.c.l.b16 %v113
  %v422 = vunpack.c.l.b16 %v114
  %v423 = vunpack.c.l.b16 %v115
  %v424 = vunpack.c.l.b16 %v116
  %v425 = vunpack.c.l.b16 %v117
  %v426 = vunpack.c.l.b16 %v118
  %v427 = vunpack.c.l.b16 %v119
  %v428 = vunpack.c.l.b16 %v120
  %v429 = vunpack.c.l.b16 %v121
  %v430 = vunpack.c.l.b16 %v122
  %v431 = vunpack.c.l.b16 %v123
  %v432 = vunpack.c.l.b16 %v124
  %v433 = vunpack.c.l.b16 %v125
  %v434 = vunpack.c.l.b16 %v126
  %v435 = vunpack.c.l.b16 %v127
  %v436 = vunpack.c.l.b16 %v128
  %v437 = vunpack.c.l.b16 %v129
  %v438 = vunpack.c.l.b16 %v130
  %v439 = vunpack.c.l.b16 %v131
  %v440 = vunpack.c.l.b16 %v132
  %v441 = vunpack.c.l.b16 %v133
  %v442 = vunpack.c.l.b16 %v134
  %v443 = vunpack.c.l.b16 %v135
  %v444 = vunpack.c.l.b16 %v136
  %v445 = vunpack.c.l.b16 %v137
  %v446 = vunpack.c.l.b16 %v138
  %v447 = vunpack.c.l.b16 %v139
  %v448 = vunpack.c.l.b16 %v140
  %v449 = vunpack.c.l.b16 %v141
  %v450 = vunpack.c.l.b16 %v142
  %v451 = vunpack.c.l.b16 %v143
  %v452 = vunpack.c.l.b16 %v144
  %v453 = vunpack.c.l.b16 %v145
  %v454 = vunpack.c.l.b16 %v146
  %v455 = vunpack.c.l.b16 %v147
  %v456 = vunpack.c.l.b16 %v148
  %v457 = vunpack.c.l.b16 %v149
  %v458 = vunpack.c.l.b16 %v150
  %v459 = vpack.c.b16 %v332, %v331
  %v460 = vpack.c.b16 %v334, %v333
  %v461 = vpack.c.b16 %v336, %v335
  %v462 = vpack.c.b16 %v338, %v337
  %v463 = vpack.c.b16 %v340, %v339
  %v464 = vpack.c.b16 %v342, %v341
  %v465 = vpack.c.b16 %v344, %v343
  %v466 = vpack.c.b16 %v346, %v345
  %v467 = vpack.c.b16 %v348, %v347
  %v468 = vpack.c.b16 %v350, %v349
  %v469 = vpack.c.b16 %v352, %v351
  %v470 = vpack.c.b16 %v354, %v353
  %v471 = vpack.c.b16 %v356, %v355
  %v472 = vpack.c.b16 %v358, %v357
  %v473 = vpack.c.b16 %v360, %v359
  %v474 = vpack.c.b16 %v362, %v361
  %v475 = vpack.c.b16 %v364, %v363
  %v476 = vpack.c.b16 %v366, %v365
  %v477 = vpack.c.b16 %v368, %v367
  %v478 = vpack.c.b16 %v370, %v369
  %v479 = vpack.c.b16 %v372, %v371
  %v480 = vpack.c.b16 %v374, %v373
  %v481 = vpack.c.b16 %v376, %v375
  %v482 = vpack.c.b16 %v378, %v377
  %v483 = vpack.c.b16 %v380, %v379
  %v484 = vpack.c.b16 %v382, %v381
  %v485 = vpack.c.b16 %v384, %v383
  %v486 = vpack.c.b16 %v386, %v385
  %v487 = vpack.c.b16 %v388, %v387
  %v488 = vpack.c.b16 %v390, %v389
  %v489 = vpack.c.b16 %v392, %v391
  %v490 = vpack.c.b16 %v394, %v393
  %v491 = vpack.c.b16 %v396, %v395
  %v492 = vpack.c.b16 %v398, %v397
  %v493 = vpack.c.b16 %v400, %v399
  %v494 = vpack.c.b16 %v402, %v401
  %v495 = vpack.c.b16 %v404, %v403
  %v496 = vpack.c.b16 %v406, %v405
  %v497 = vpack.c.b16 %v408, %v407
  %v498 = vpack.c.b16 %v410, %v409
  %v499 = vpack.c.b16 %v412, %v411
  %v500 = vpack.c.b16 %v414, %v413
  %v501 = vpack.c.b16 %v416, %v415
  %v502 = vpack.c.b16 %v418, %v417
  %v503 = vpack.c.b16 %v420, %v419
  %v504 = vpack.c.b16 %v422, %v421
  %v505 = vpack.c.b16 %v424, %v423
  %v506 = vpack.c.b16 %v426, %v425
  %v507 = vpack.c.b16 %v428, %v427
  %v508 = vpack.c.b16 %v430, %v429
  %v509 = vpack.c.b16 %v432, %v431
  %v510 = vpack.c.b16 %v434, %v433
  %v511 = vpack.c.b16 %v436, %v435
  %v512 = vpack.c.b16 %v438, %v437
  %v513 = vpack.c.b16 %v440, %v439
  %v514 = vpack.c.b16 %v442, %v441
  %v515 = vpack.c.b16 %v444, %v443
  %v516 = vpack.c.b16 %v446, %v445
  %v517 = vpack.c.b16 %v448, %v447
  %v518 = vpack.c.b16 %v450, %v449
  %v519 = vpack.c.b16 %v452, %v451
  %v520 = vpack.c.b16 %v454, %v453
  %v521 = vpack.c.b16 %v456, %v455
  %v522 = vpack.c.b16 %v458, %v457
  %587 = vmatprep.subr.bf16.mxu0 0
  %588 = vmatpush1.bf16.msra.mxu0 %v459
  %589 = vmatprep.subr.bf16.mxu0 0
  %590 = vmatpush1.bf16.msra.mxu0 %v460
  %591 = vmatprep.subr.bf16.mxu0 0
  %592 = vmatpush1.bf16.msra.mxu0 %v461
  %593 = vmatprep.subr.bf16.mxu0 0
  %594 = vmatpush1.bf16.msra.mxu0 %v462
  %595 = vmatprep.subr.bf16.mxu0 0
  %596 = vmatpush1.bf16.msra.mxu0 %v463
  %597 = vmatprep.subr.bf16.mxu0 0
  %598 = vmatpush1.bf16.msra.mxu0 %v464
  %599 = vmatprep.subr.bf16.mxu0 0
  %600 = vmatpush1.bf16.msra.mxu0 %v465
  %601 = vmatprep.subr.bf16.mxu0 0
  %602 = vmatpush1.bf16.msra.mxu0 %v466
  %603 = vmatprep.subr.bf16.mxu0 0
  %604 = vmatpush1.bf16.msra.mxu0 %v467
  %605 = vmatprep.subr.bf16.mxu0 0
  %606 = vmatpush1.bf16.msra.mxu0 %v468
  %607 = vmatprep.subr.bf16.mxu0 0
  %608 = vmatpush1.bf16.msra.mxu0 %v469
  %609 = vmatprep.subr.bf16.mxu0 0
  %610 = vmatpush1.bf16.msra.mxu0 %v470
  %611 = vmatprep.subr.bf16.mxu0 0
  %612 = vmatpush1.bf16.msra.mxu0 %v471
  %613 = vmatprep.subr.bf16.mxu0 0
  %614 = vmatpush1.bf16.msra.mxu0 %v472
  %615 = vmatprep.subr.bf16.mxu0 0
  %616 = vmatpush1.bf16.msra.mxu0 %v473
  %617 = vmatprep.subr.bf16.mxu0 0
  %618 = vmatpush1.bf16.msra.mxu0 %v474
  %619 = vmatprep.mubr.bf16.mxu0 %v188
  %620 = vmatmul.mubr.bf16.gmra.mrb[0].mxu0 %v187
  %v621 = vpop.f32.mrb[0].mxu0
  %v622 = vadd.f32 %v156, %v621
  %v623 = vpop.f32.mrb[0].mxu0
  %v624 = vpop.f32.mrb[0].mxu0
  %v625 = vadd.f32 %v161, %v624
  %v626 = vpop.f32.mrb[0].mxu0
  %627 = vdwg.mxu0
  %628 = vmatprep.subr.bf16.mxu0 0
  %629 = vmatpush1.bf16.msra.mxu0 %v475
  %630 = vmatprep.subr.bf16.mxu0 0
  %631 = vmatpush1.bf16.msra.mxu0 %v476
  %632 = vmatprep.subr.bf16.mxu0 0
  %633 = vmatpush1.bf16.msra.mxu0 %v477
  %634 = vmatprep.subr.bf16.mxu0 0
  %635 = vmatpush1.bf16.msra.mxu0 %v478
  %636 = vmatprep.subr.bf16.mxu0 0
  %637 = vmatpush1.bf16.msra.mxu0 %v479
  %638 = vmatprep.subr.bf16.mxu0 0
  %639 = vmatpush1.bf16.msra.mxu0 %v480
  %640 = vmatprep.subr.bf16.mxu0 0
  %641 = vmatpush1.bf16.msra.mxu0 %v481
  %642 = vmatprep.subr.bf16.mxu0 0
  %643 = vmatpush1.bf16.msra.mxu0 %v482
  %644 = vmatprep.subr.bf16.mxu0 0
  %645 = vmatpush1.bf16.msra.mxu0 %v483
  %646 = vmatprep.subr.bf16.mxu0 0
  %647 = vmatpush1.bf16.msra.mxu0 %v484
  %648 = vmatprep.subr.bf16.mxu0 0
  %649 = vmatpush1.bf16.msra.mxu0 %v485
  %650 = vmatprep.subr.bf16.mxu0 0
  %651 = vmatpush1.bf16.msra.mxu0 %v486
  %652 = vmatprep.subr.bf16.mxu0 0
  %653 = vmatpush1.bf16.msra.mxu0 %v487
  %654 = vmatprep.subr.bf16.mxu0 0
  %655 = vmatpush1.bf16.msra.mxu0 %v488
  %656 = vmatprep.subr.bf16.mxu0 0
  %657 = vmatpush1.bf16.msra.mxu0 %v489
  %658 = vmatprep.subr.bf16.mxu0 0
  %659 = vmatpush1.bf16.msra.mxu0 %v490
  %660 = vmatprep.mubr.bf16.mxu0 %v190
  %661 = vmatmul.mubr.bf16.gmra.mrb[0].mxu0 %v189
  %v662 = vpop.f32.mrb[0].mxu0
  %v663 = vadd.f32 %v622, %v662
  %v664 = vpop.f32.mrb[0].mxu0
  %v665 = vpop.f32.mrb[0].mxu0
  %v666 = vadd.f32 %v625, %v665
  %v667 = vpop.f32.mrb[0].mxu0
  %668 = vdwg.mxu0
  %669 = vmatprep.subr.bf16.mxu0 0
  %670 = vmatpush1.bf16.msra.mxu0 %v491
  %671 = vmatprep.subr.bf16.mxu0 0
  %672 = vmatpush1.bf16.msra.mxu0 %v492
  %673 = vmatprep.subr.bf16.mxu0 0
  %674 = vmatpush1.bf16.msra.mxu0 %v493
  %675 = vmatprep.subr.bf16.mxu0 0
  %676 = vmatpush1.bf16.msra.mxu0 %v494
  %677 = vmatprep.subr.bf16.mxu0 0
  %678 = vmatpush1.bf16.msra.mxu0 %v495
  %679 = vmatprep.subr.bf16.mxu0 0
  %680 = vmatpush1.bf16.msra.mxu0 %v496
  %681 = vmatprep.subr.bf16.mxu0 0
  %682 = vmatpush1.bf16.msra.mxu0 %v497
  %683 = vmatprep.subr.bf16.mxu0 0
  %684 = vmatpush1.bf16.msra.mxu0 %v498
  %685 = vmatprep.subr.bf16.mxu0 0
  %686 = vmatpush1.bf16.msra.mxu0 %v499
  %687 = vmatprep.subr.bf16.mxu0 0
  %688 = vmatpush1.bf16.msra.mxu0 %v500
  %689 = vmatprep.subr.bf16.mxu0 0
  %690 = vmatpush1.bf16.msra.mxu0 %v501
  %691 = vmatprep.subr.bf16.mxu0 0
  %692 = vmatpush1.bf16.msra.mxu0 %v502
  %693 = vmatprep.subr.bf16.mxu0 0
  %694 = vmatpush1.bf16.msra.mxu0 %v503
  %695 = vmatprep.subr.bf16.mxu0 0
  %696 = vmatpush1.bf16.msra.mxu0 %v504
  %697 = vmatprep.subr.bf16.mxu0 0
  %698 = vmatpush1.bf16.msra.mxu0 %v505
  %699 = vmatprep.subr.bf16.mxu0 0
  %700 = vmatpush1.bf16.msra.mxu0 %v506
  %701 = vmatprep.mubr.bf16.mxu0 %v192
  %702 = vmatmul.mubr.bf16.gmra.mrb[0].mxu0 %v191
  %v703 = vpop.f32.mrb[0].mxu0
  %v704 = vadd.f32 %v663, %v703
  %v705 = vpop.f32.mrb[0].mxu0
  %v706 = vpop.f32.mrb[0].mxu0
  %v707 = vadd.f32 %v666, %v706
  %v708 = vpop.f32.mrb[0].mxu0
  %709 = vdwg.mxu0
  %710 = vmatprep.subr.bf16.mxu0 0
  %711 = vmatpush1.bf16.msra.mxu0 %v507
  %712 = vmatprep.subr.bf16.mxu0 0
  %713 = vmatpush1.bf16.msra.mxu0 %v508
  %714 = vmatprep.subr.bf16.mxu0 0
  %715 = vmatpush1.bf16.msra.mxu0 %v509
  %716 = vmatprep.subr.bf16.mxu0 0
  %717 = vmatpush1.bf16.msra.mxu0 %v510
  %718 = vmatprep.subr.bf16.mxu0 0
  %719 = vmatpush1.bf16.msra.mxu0 %v511
  %720 = vmatprep.subr.bf16.mxu0 0
  %721 = vmatpush1.bf16.msra.mxu0 %v512
  %722 = vmatprep.subr.bf16.mxu0 0
  %723 = vmatpush1.bf16.msra.mxu0 %v513
  %724 = vmatprep.subr.bf16.mxu0 0
  %725 = vmatpush1.bf16.msra.mxu0 %v514
  %726 = vmatprep.subr.bf16.mxu0 0
  %727 = vmatpush1.bf16.msra.mxu0 %v515
  %728 = vmatprep.subr.bf16.mxu0 0
  %729 = vmatpush1.bf16.msra.mxu0 %v516
  %730 = vmatprep.subr.bf16.mxu0 0
  %731 = vmatpush1.bf16.msra.mxu0 %v517
  %732 = vmatprep.subr.bf16.mxu0 0
  %733 = vmatpush1.bf16.msra.mxu0 %v518
  %734 = vmatprep.subr.bf16.mxu0 0
  %735 = vmatpush1.bf16.msra.mxu0 %v519
  %736 = vmatprep.subr.bf16.mxu0 0
  %737 = vmatpush1.bf16.msra.mxu0 %v520
  %738 = vmatprep.subr.bf16.mxu0 0
  %739 = vmatpush1.bf16.msra.mxu0 %v521
  %740 = vmatprep.subr.bf16.mxu0 0
  %741 = vmatpush1.bf16.msra.mxu0 %v522
  %742 = vmatprep.mubr.bf16.mxu0 %v194
  %743 = vmatmul.mubr.bf16.gmra.mrb[0].mxu0 %v193
  %v744 = vpop.f32.mrb[0].mxu0
  %v745 = vadd.f32 %v704, %v744
  %v746 = vpop.f32.mrb[0].mxu0
  %v747 = vpop.f32.mrb[0].mxu0
  %v748 = vadd.f32 %v707, %v747
  %v749 = vpop.f32.mrb[0].mxu0
  %750 = vdwg.mxu0
  %751 = vst [vmem:[%s3] sm:$0xff] %v745
  %752 = vst [vmem:[%s3 + $0x8] sm:$0xff] %v748
  // Predicated region
  $region14: #{_lambda_.77} parent=0 // pred_check
    _
  $region15: #{_lambda_.77} parent=0 // pred_check_branch
    %754 = sbr.rel (0) target = $region17
  $region16: #{_lambda_.77} parent=0 // pred_region
    _
  $region17: #{_lambda_.77} parent=0 // pred_fallthru
    _
  // Predicated region
  $region18: #{_lambda_.77} parent=0 // pred_check
    _
  $region19: #{_lambda_.77} parent=0 // pred_check_branch
    %756 = sbr.rel (0) target = $region21
  $region20: #{_lambda_.77} parent=0 // pred_region
    _
  $region21: #{_lambda_.77} parent=0 // pred_fallthru
    _

</llo_original>
